<compile_context>
chip_gen: v7x
topology: tpu7x:2x2x1
jax: 0.10.0
libtpu: 0.0.40
codegen_flags: <defaults>
</compile_context>

<pallas_src>
import functools
import math

import numpy as np
import jax
import jax.numpy as jnp
from jax.experimental import pallas as pl
from jax.experimental.pallas import tpu as pltpu


def _rope3d_kernel(tab_ref, xyz_ref, out_ref):
    # tab_ref: (4, 2Fp) f32 -- rows 0..2: per-axis gated frequency vectors, row 3: phase.
    # xyz_ref: (TN, 3)  f32 coordinates for this row tile.
    # out_ref: (TN, 2Fp) f32 -- flattened (F, 2) trailing dims (+ zero pad columns).
    xyz = xyz_ref[...]                    # (TN, 3)
    x = xyz[:, 0:1]                       # (TN, 1)
    y = xyz[:, 1:2]
    z = xyz[:, 2:3]
    fx = tab_ref[0:1, :]                  # (1, 2Fp)
    fy = tab_ref[1:2, :]
    fz = tab_ref[2:3, :]
    ph = tab_ref[3:4, :]
    # Fused argument on the VPU, then ONE sin per output element (cos(t) == sin(t + pi/2)),
    # stored full-lane-width in a single unmasked vst.
    arg = x * fx + y * fy + z * fz + ph   # (TN, 2Fp)
    out_ref[...] = jnp.sin(arg)


@functools.lru_cache(maxsize=None)
def _rope3d_table(feature_dim: int):
    """Constant (4, 2F_pad) frequency/phase table, built once per feature_dim (numpy)."""
    d3 = feature_dim // 3
    assert d3 >= 1, "feature_dim must be >= 3"
    n_freq = (d3 + 1) // 2                # len(arange(0, d3, 2))
    F = 3 * 2 * n_freq                    # total feature width
    two_f = 2 * F                         # flattened (F, 2)
    two_fp = max(128, ((two_f + 127) // 128) * 128)   # lane-pad to multiple of 128

    freqs = np.exp(np.arange(0, d3, 2, dtype=np.float32) * (-math.log(10000.0) / d3))
    freq_rep = np.repeat(freqs, 4).astype(np.float32)          # per-axis flat block (4*n_freq,)
    zeros = np.zeros_like(freq_rep)
    fx = np.concatenate([freq_rep, zeros, zeros])               # (2F,)
    fy = np.concatenate([zeros, freq_rep, zeros])
    fz = np.concatenate([zeros, zeros, freq_rep])
    phase = np.tile(np.array([math.pi / 2.0, 0.0, math.pi / 2.0, 0.0], np.float32), 3 * n_freq)

    table = np.zeros((4, two_fp), dtype=np.float32)             # pad columns: freq=0, phase=0
    table[0, :two_f] = fx
    table[1, :two_f] = fy
    table[2, :two_f] = fz
    table[3, :two_f] = phase
    return table, F, two_f, two_fp


def rotary_position_encoding_3d(xyz: jax.Array, feature_dim: int, *, tile_n: int = 1024) -> jax.Array:
    """Pallas implementation of RotaryPositionEncoding3D(feature_dim)(XYZ)."""
    B, N, C = xyz.shape
    assert C == 3, "XYZ must be (B, N, 3)"

    table_np, F, two_f, two_fp = _rope3d_table(feature_dim)
    table = jnp.asarray(table_np)

    # Collapse (B, N) into one row axis (contiguous, free in the wrapper).
    M = B * N
    xyz_flat = xyz.reshape(M, 3).astype(jnp.float32)

    # Tile over rows.  Budget VMEM: double-buffered output + lane-padded (->128) xyz blocks
    # must stay comfortably under the smallest default scoped limit (16 MiB on v5e).
    if M <= tile_n:
        tn = M                            # full-dim block (no (8,128) constraint in this case)
    else:
        tn = tile_n
        vmem_budget = 14 << 20
        while tn > 128 and (2 * tn * two_fp * 4 + 2 * tn * 128 * 4) > vmem_budget:
            tn //= 2
        tn = max(tn, 8)
    grid = (pl.cdiv(M, tn),)

    cost = pl.CostEstimate(
        flops=7 * M * two_f,
        transcendentals=M * two_f,
        bytes_accessed=M * (3 * 4 + two_f * 4) + 4 * two_fp * 4,
    )

    out_flat = pl.pallas_call(
        _rope3d_kernel,
        out_shape=jax.ShapeDtypeStruct((M, two_fp), jnp.float32),
        grid=grid,
        in_specs=[
            pl.BlockSpec((4, two_fp), lambda i: (0, 0)),        # constant table, stays resident
            pl.BlockSpec((tn, 3), lambda i: (i, 0)),
        ],
        out_specs=pl.BlockSpec((tn, two_fp), lambda i: (i, 0)),
        compiler_params=pltpu.CompilerParams(
            dimension_semantics=("parallel",),
            vmem_limit_bytes=32 << 20,
        ),
        cost_estimate=cost,
    )(table, xyz_flat)

    # Layout plumbing only: drop lane padding, split 2F back into (F, 2) = (..., cos/sin).
    if two_fp != two_f:
        out_flat = out_flat[:, :two_f]
    return out_flat.reshape(B, N, F, 2)


def _reference(xyz: jax.Array, feature_dim: int) -> jax.Array:
    """Pure-JAX mirror of the PyTorch RotaryPositionEncoding3D.forward."""
    B, N, _ = xyz.shape
    d3 = feature_dim // 3
    div_term = jnp.exp(jnp.arange(0, d3, 2, dtype=jnp.float32) * (-math.log(10000.0) / d3))
    div_term = div_term.reshape(1, 1, -1)

    def dup(feat):  # torch.stack([feat, feat], -1).view(B, N, -1)
        return jnp.stack([feat, feat], axis=-1).reshape(B, N, -1)

    xp, yp, zp = xyz[..., 0:1], xyz[..., 1:2], xyz[..., 2:3]
    sinx, cosx = dup(jnp.sin(xp * div_term)), dup(jnp.cos(xp * div_term))
    siny, cosy = dup(jnp.sin(yp * div_term)), dup(jnp.cos(yp * div_term))
    sinz, cosz = dup(jnp.sin(zp * div_term)), dup(jnp.cos(zp * div_term))
    cos_cat = jnp.concatenate([cosx, cosy, cosz], axis=-1)
    sin_cat = jnp.concatenate([sinx, siny, sinz], axis=-1)
    return jnp.stack([cos_cat, sin_cat], axis=-1)


if __name__ == "__main__":
    key = jax.random.PRNGKey(0)
    B, N = 2, 128
    FEATURE_DIM = 192   # -> per-axis 32 channels, F = 192, kernel lane width 2F = 384 (3x128)

    # deterministic small point cloud, coordinates in [-2, 2)
    XYZ = jax.random.uniform(key, (B, N, 3), dtype=jnp.float32) * 4.0 - 2.0

    out = rotary_position_encoding_3d(XYZ, FEATURE_DIM)
    out = jax.block_until_ready(out)

    ref = _reference(XYZ, FEATURE_DIM)
    assert out.shape == ref.shape, (out.shape, ref.shape)
    max_err = float(jnp.max(jnp.abs(out - ref)))
    assert jnp.allclose(out, ref, atol=3e-5, rtol=3e-5), max_err

    # NOTE: the torch `position_code.detach()` is a no-op here (no autodiff through this kernel).
    print("KERNEL_OK")
</pallas_src>

<mosaic_0001>
module attributes {stable_mosaic.version = 11 : i64} {
  func.func @_rope3d_kernel(%arg0: i32, %arg1: memref<4x384xf32, #tpu.memory_space<vmem>>, %arg2: memref<256x3xf32, #tpu.memory_space<vmem>>, %arg3: memref<256x384xf32, #tpu.memory_space<vmem>>) attributes {dimension_semantics = [#tpu.dimension_semantics<parallel>], iteration_bounds = array<i64: 1>, scalar_prefetch = 0 : i64, scratch_operands = 0 : i64, tpu.core_type = #tpu.core_type<tc>, window_params = [{pipeline_mode = #tpu.pipeline_mode<synchronous>, transform_indices = @transform_0, window_bounds = array<i64: 4, 384>}, {transform_indices = @transform_1, window_bounds = array<i64: 256, 3>}, {transform_indices = @transform_2, window_bounds = array<i64: 256, 384>}]} {
    %c0 = arith.constant 0 : index
    %c0_0 = arith.constant 0 : index
    %0 = vector.load %arg2[%c0, %c0_0] : memref<256x3xf32, #tpu.memory_space<vmem>>, vector<256x3xf32>
    %1 = vector.extract_strided_slice %0 {offsets = [0, 0], sizes = [256, 1], strides = [1, 1]} : vector<256x3xf32> to vector<256x1xf32>
    %2 = vector.extract_strided_slice %0 {offsets = [0, 1], sizes = [256, 1], strides = [1, 1]} : vector<256x3xf32> to vector<256x1xf32>
    %3 = vector.extract_strided_slice %0 {offsets = [0, 2], sizes = [256, 1], strides = [1, 1]} : vector<256x3xf32> to vector<256x1xf32>
    %c0_1 = arith.constant 0 : index
    %c0_2 = arith.constant 0 : index
    %4 = vector.load %arg1[%c0_1, %c0_2] : memref<4x384xf32, #tpu.memory_space<vmem>>, vector<1x384xf32>
    %c1 = arith.constant 1 : index
    %c0_3 = arith.constant 0 : index
    %5 = vector.load %arg1[%c1, %c0_3] : memref<4x384xf32, #tpu.memory_space<vmem>>, vector<1x384xf32>
    %c2 = arith.constant 2 : index
    %c0_4 = arith.constant 0 : index
    %6 = vector.load %arg1[%c2, %c0_4] : memref<4x384xf32, #tpu.memory_space<vmem>>, vector<1x384xf32>
    %c3 = arith.constant 3 : index
    %c0_5 = arith.constant 0 : index
    %7 = vector.load %arg1[%c3, %c0_5] : memref<4x384xf32, #tpu.memory_space<vmem>>, vector<1x384xf32>
    %8 = vector.broadcast %1 : vector<256x1xf32> to vector<256x384xf32>
    %9 = vector.broadcast %4 : vector<1x384xf32> to vector<256x384xf32>
    %10 = arith.mulf %8, %9 : vector<256x384xf32>
    %11 = vector.broadcast %2 : vector<256x1xf32> to vector<256x384xf32>
    %12 = vector.broadcast %5 : vector<1x384xf32> to vector<256x384xf32>
    %13 = arith.mulf %11, %12 : vector<256x384xf32>
    %14 = arith.addf %10, %13 : vector<256x384xf32>
    %15 = vector.broadcast %3 : vector<256x1xf32> to vector<256x384xf32>
    %16 = vector.broadcast %6 : vector<1x384xf32> to vector<256x384xf32>
    %17 = arith.mulf %15, %16 : vector<256x384xf32>
    %18 = arith.addf %14, %17 : vector<256x384xf32>
    %19 = vector.broadcast %7 : vector<1x384xf32> to vector<256x384xf32>
    %20 = arith.addf %18, %19 : vector<256x384xf32>
    %21 = math.sin %20 : vector<256x384xf32>
    %c0_6 = arith.constant 0 : index
    %c0_7 = arith.constant 0 : index
    %22 = vector.load %arg3[%c0_6, %c0_7] : memref<256x384xf32, #tpu.memory_space<vmem>>, vector<256x384xf32>
    tpu.vector_store %arg3[%c0_6, %c0_7], %21 {strides = array<i32>} : memref<256x384xf32, #tpu.memory_space<vmem>>, vector<256x384xf32>,
    return
  }
  func.func @transform_0(%arg0: i32) -> (i32, i32) {
    %c0_i32 = arith.constant 0 : i32
    %c0_i32_0 = arith.constant 0 : i32
    %c0_i32_1 = arith.constant 0 : i32
    return %c0_i32, %c0_i32_0 : i32, i32
  }
  func.func @transform_1(%arg0: i32) -> (i32, i32) {
    %c0_i32 = arith.constant 0 : i32
    %c0_i32_0 = arith.constant 0 : i32
    return %arg0, %c0_i32 : i32, i32
  }
  func.func @transform_2(%arg0: i32) -> (i32, i32) {
    %c0_i32 = arith.constant 0 : i32
    %c0_i32_0 = arith.constant 0 : i32
    return %arg0, %c0_i32 : i32, i32
  }
}

</mosaic_0001>

<llo_original>
// kernel: tpu_custom_call.1
$region0: #{tpu_custom_call.1}
  #allocation0 [shape = 'u32[]', space=smem, size = 0x4, offset = 0x4, fixed_abs, tag = 'smem constant byte address 0x4 - core index']
  #allocation1 [shape = 'u32[144,128]{1,0:T(1,128)}', space=vmem, size = 0x12000, scoped, tag = 'internal scratch']
  %s0 = inlined_call_operand.vmem [shape: f32[4,384], index: 0, kind: input, shape index: {}]
  %s1 = inlined_call_operand.vmem [shape: f32[256,3], index: 1, kind: input, shape index: {}]
  %s2 = inlined_call_operand.hbm [shape: f32[256,384], index: 2, kind: output, shape index: {}]
  %s3 = sld [smem:[#allocation0]]
  $region18: #{tpu_custom_call.1} parent=0
    _
  %s5 = ssub.s32 1, %s3
  %s6 = scalar_select 0, %s5, %s3
  $region1: #{tpu_custom_call.1} parent=0
    #allocation2 [shape = 'u8[393216]{0}', space=vmem, size = 0x60000, scoped, tag = 'output window, operand 0, single buffered']
    #allocation3 [shape = 's32[1]{0}', space=sflag, size = 0x4, scoped, tag = 'scoped memory for tpu_custom_call.1']
    %7 = vsyncpa [#allocation3], 0
    // Predicated region
    $region2: #{tpu_custom_call.1} parent=1 // pred_check
      _
    $region3: #{tpu_custom_call.1} parent=1 // pred_check_branch
      %9 = sbr.rel (0) target = $region5
    $region4: #{tpu_custom_call.1} parent=1 // pred_region
      _
    $region5: #{tpu_custom_call.1} parent=1 // pred_fallthru
      _
    // Predicated region
    $region6: #{tpu_custom_call.1} parent=1 // pred_check
      _
    $region7: #{tpu_custom_call.1} parent=1 // pred_check_branch
      %11 = sbr.rel (0) target = $region9
    $region8: #{tpu_custom_call.1} parent=1 // pred_region
      _
    $region9: #{tpu_custom_call.1} parent=1 // pred_fallthru
      _
    %v12 = vld [vmem:[%s1] sm:$0xff]
    %v13 = vld [vmem:[%s1 + $0x8] sm:$0xff]
    %v14 = vld [vmem:[%s1 + $0x10] sm:$0xff]
    %v15 = vld [vmem:[%s1 + $0x18] sm:$0xff]
    %v16 = vld [vmem:[%s1 + $0x20] sm:$0xff]
    %v17 = vld [vmem:[%s1 + $0x28] sm:$0xff]
    %v18 = vld [vmem:[%s1 + $0x30] sm:$0xff]
    %v19 = vld [vmem:[%s1 + $0x38] sm:$0xff]
    %v20 = vld [vmem:[%s1 + $0x40] sm:$0xff]
    %v21 = vld [vmem:[%s1 + $0x48] sm:$0xff]
    %v22 = vld [vmem:[%s1 + $0x50] sm:$0xff]
    %v23 = vld [vmem:[%s1 + $0x58] sm:$0xff]
    %v24 = vld [vmem:[%s1 + $0x60] sm:$0xff]
    %v25 = vld [vmem:[%s1 + $0x68] sm:$0xff]
    %v26 = vld [vmem:[%s1 + $0x70] sm:$0xff]
    %v27 = vld [vmem:[%s1 + $0x78] sm:$0xff]
    %v28 = vld [vmem:[%s1 + $0x80] sm:$0xff]
    %v29 = vld [vmem:[%s1 + $0x88] sm:$0xff]
    %v30 = vld [vmem:[%s1 + $0x90] sm:$0xff]
    %v31 = vld [vmem:[%s1 + $0x98] sm:$0xff]
    %v32 = vld [vmem:[%s1 + $0xa0] sm:$0xff]
    %v33 = vld [vmem:[%s1 + $0xa8] sm:$0xff]
    %v34 = vld [vmem:[%s1 + $0xb0] sm:$0xff]
    %v35 = vld [vmem:[%s1 + $0xb8] sm:$0xff]
    %v36 = vld [vmem:[%s1 + $0xc0] sm:$0xff]
    %v37 = vld [vmem:[%s1 + $0xc8] sm:$0xff]
    %v38 = vld [vmem:[%s1 + $0xd0] sm:$0xff]
    %v39 = vld [vmem:[%s1 + $0xd8] sm:$0xff]
    %v40 = vld [vmem:[%s1 + $0xe0] sm:$0xff]
    %v41 = vld [vmem:[%s1 + $0xe8] sm:$0xff]
    %v42 = vld [vmem:[%s1 + $0xf0] sm:$0xff]
    %v43 = vld [vmem:[%s1 + $0xf8] sm:$0xff]
    %v44 = vld [vmem:[%s0] ss:$4 sm:$0x7]
    %s45 = scalar_lea.vmem %s0, 1
    %v46 = vld [vmem:[%s45] ss:$4 sm:$0x7]
    %s47 = scalar_lea.vmem %s0, 2
    %v48 = vld [vmem:[%s47] ss:$4 sm:$0x7]
    %s49 = scalar_lea.vmem %s0, 3
    %v50 = vld [vmem:[%s49] ss:$4 sm:$0x7]
    %52 = vset.pattern.permute.xlu0 0
    %53 = vperm.xlu0 %52, %v12
    %v54 = vpop.permute.xlu0 %53
    %57 = vset.pattern.permute.xlu0 0
    %58 = vperm.xlu0 %57, %v13
    %v59 = vpop.permute.xlu0 %58
    %62 = vset.pattern.permute.xlu0 0
    %63 = vperm.xlu0 %62, %v14
    %v64 = vpop.permute.xlu0 %63
    %67 = vset.pattern.permute.xlu0 0
    %68 = vperm.xlu0 %67, %v15
    %v69 = vpop.permute.xlu0 %68
    %72 = vset.pattern.permute.xlu0 0
    %73 = vperm.xlu0 %72, %v16
    %v74 = vpop.permute.xlu0 %73
    %77 = vset.pattern.permute.xlu0 0
    %78 = vperm.xlu0 %77, %v17
    %v79 = vpop.permute.xlu0 %78
    %82 = vset.pattern.permute.xlu0 0
    %83 = vperm.xlu0 %82, %v18
    %v84 = vpop.permute.xlu0 %83
    %87 = vset.pattern.permute.xlu0 0
    %88 = vperm.xlu0 %87, %v19
    %v89 = vpop.permute.xlu0 %88
    %92 = vset.pattern.permute.xlu0 0
    %93 = vperm.xlu0 %92, %v20
    %v94 = vpop.permute.xlu0 %93
    %97 = vset.pattern.permute.xlu0 0
    %98 = vperm.xlu0 %97, %v21
    %v99 = vpop.permute.xlu0 %98
    %102 = vset.pattern.permute.xlu0 0
    %103 = vperm.xlu0 %102, %v22
    %v104 = vpop.permute.xlu0 %103
    %107 = vset.pattern.permute.xlu0 0
    %108 = vperm.xlu0 %107, %v23
    %v109 = vpop.permute.xlu0 %108
    %112 = vset.pattern.permute.xlu0 0
    %113 = vperm.xlu0 %112, %v24
    %v114 = vpop.permute.xlu0 %113
    %117 = vset.pattern.permute.xlu0 0
    %118 = vperm.xlu0 %117, %v25
    %v119 = vpop.permute.xlu0 %118
    %122 = vset.pattern.permute.xlu0 0
    %123 = vperm.xlu0 %122, %v26
    %v124 = vpop.permute.xlu0 %123
    %127 = vset.pattern.permute.xlu0 0
    %128 = vperm.xlu0 %127, %v27
    %v129 = vpop.permute.xlu0 %128
    %132 = vset.pattern.permute.xlu0 0
    %133 = vperm.xlu0 %132, %v28
    %v134 = vpop.permute.xlu0 %133
    %137 = vset.pattern.permute.xlu0 0
    %138 = vperm.xlu0 %137, %v29
    %v139 = vpop.permute.xlu0 %138
    %142 = vset.pattern.permute.xlu0 0
    %143 = vperm.xlu0 %142, %v30
    %v144 = vpop.permute.xlu0 %143
    %147 = vset.pattern.permute.xlu0 0
    %148 = vperm.xlu0 %147, %v31
    %v149 = vpop.permute.xlu0 %148
    %152 = vset.pattern.permute.xlu0 0
    %153 = vperm.xlu0 %152, %v32
    %v154 = vpop.permute.xlu0 %153
    %157 = vset.pattern.permute.xlu0 0
    %158 = vperm.xlu0 %157, %v33
    %v159 = vpop.permute.xlu0 %158
    %162 = vset.pattern.permute.xlu0 0
    %163 = vperm.xlu0 %162, %v34
    %v164 = vpop.permute.xlu0 %163
    %167 = vset.pattern.permute.xlu0 0
    %168 = vperm.xlu0 %167, %v35
    %v169 = vpop.permute.xlu0 %168
    %172 = vset.pattern.permute.xlu0 0
    %173 = vperm.xlu0 %172, %v36
    %v174 = vpop.permute.xlu0 %173
    %177 = vset.pattern.permute.xlu0 0
    %178 = vperm.xlu0 %177, %v37
    %v179 = vpop.permute.xlu0 %178
    %182 = vset.pattern.permute.xlu0 0
    %183 = vperm.xlu0 %182, %v38
    %v184 = vpop.permute.xlu0 %183
    %187 = vset.pattern.permute.xlu0 0
    %188 = vperm.xlu0 %187, %v39
    %v189 = vpop.permute.xlu0 %188
    %192 = vset.pattern.permute.xlu0 0
    %193 = vperm.xlu0 %192, %v40
    %v194 = vpop.permute.xlu0 %193
    %197 = vset.pattern.permute.xlu0 0
    %198 = vperm.xlu0 %197, %v41
    %v199 = vpop.permute.xlu0 %198
    %202 = vset.pattern.permute.xlu0 0
    %203 = vperm.xlu0 %202, %v42
    %v204 = vpop.permute.xlu0 %203
    %207 = vset.pattern.permute.xlu0 0
    %208 = vperm.xlu0 %207, %v43
    %v209 = vpop.permute.xlu0 %208
    %v212 = vlaneseq
    %v213 = vshrl.u32 %v212, 7
    %v214 = vsub.s32 0, %v213
    %v215 = vrot.slane %v44, %v214
    %v216 = vlaneseq
    %v217 = vshrl.u32 %v216, 7
    %v218 = vsub.s32 1, %v217
    %v219 = vrot.slane %v44, %v218
    %v220 = vlaneseq
    %v221 = vshrl.u32 %v220, 7
    %v222 = vsub.s32 2, %v221
    %v223 = vrot.slane %v44, %v222
    %v227 = vmul.f32 %v54, %v215
    %v228 = vmul.f32 %v54, %v219
    %v229 = vmul.f32 %v54, %v223
    %v230 = vmul.f32 %v59, %v215
    %v231 = vmul.f32 %v59, %v219
    %v232 = vmul.f32 %v59, %v223
    %v233 = vmul.f32 %v64, %v215
    %v234 = vmul.f32 %v64, %v219
    %v235 = vmul.f32 %v64, %v223
    %v236 = vmul.f32 %v69, %v215
    %v237 = vmul.f32 %v69, %v219
    %v238 = vmul.f32 %v69, %v223
    %v239 = vmul.f32 %v74, %v215
    %v240 = vmul.f32 %v74, %v219
    %v241 = vmul.f32 %v74, %v223
    %v242 = vmul.f32 %v79, %v215
    %v243 = vmul.f32 %v79, %v219
    %v244 = vmul.f32 %v79, %v223
    %v245 = vmul.f32 %v84, %v215
    %v246 = vmul.f32 %v84, %v219
    %v247 = vmul.f32 %v84, %v223
    %v248 = vmul.f32 %v89, %v215
    %v249 = vmul.f32 %v89, %v219
    %v250 = vmul.f32 %v89, %v223
    %v251 = vmul.f32 %v94, %v215
    %v252 = vmul.f32 %v94, %v219
    %v253 = vmul.f32 %v94, %v223
    %v254 = vmul.f32 %v99, %v215
    %v255 = vmul.f32 %v99, %v219
    %v256 = vmul.f32 %v99, %v223
    %v257 = vmul.f32 %v104, %v215
    %v258 = vmul.f32 %v104, %v219
    %v259 = vmul.f32 %v104, %v223
    %v260 = vmul.f32 %v109, %v215
    %v261 = vmul.f32 %v109, %v219
    %v262 = vmul.f32 %v109, %v223
    %v263 = vmul.f32 %v114, %v215
    %v264 = vmul.f32 %v114, %v219
    %v265 = vmul.f32 %v114, %v223
    %v266 = vmul.f32 %v119, %v215
    %v267 = vmul.f32 %v119, %v219
    %v268 = vmul.f32 %v119, %v223
    %v269 = vmul.f32 %v124, %v215
    %v270 = vmul.f32 %v124, %v219
    %v271 = vmul.f32 %v124, %v223
    %v272 = vmul.f32 %v129, %v215
    %v273 = vmul.f32 %v129, %v219
    %v274 = vmul.f32 %v129, %v223
    %v275 = vmul.f32 %v134, %v215
    %v276 = vmul.f32 %v134, %v219
    %v277 = vmul.f32 %v134, %v223
    %v278 = vmul.f32 %v139, %v215
    %v279 = vmul.f32 %v139, %v219
    %v280 = vmul.f32 %v139, %v223
    %v281 = vmul.f32 %v144, %v215
    %v282 = vmul.f32 %v144, %v219
    %v283 = vmul.f32 %v144, %v223
    %v284 = vmul.f32 %v149, %v215
    %v285 = vmul.f32 %v149, %v219
    %v286 = vmul.f32 %v149, %v223
    %v287 = vmul.f32 %v154, %v215
    %v288 = vmul.f32 %v154, %v219
    %v289 = vmul.f32 %v154, %v223
    %v290 = vmul.f32 %v159, %v215
    %v291 = vmul.f32 %v159, %v219
    %v292 = vmul.f32 %v159, %v223
    %v293 = vmul.f32 %v164, %v215
    %v294 = vmul.f32 %v164, %v219
    %v295 = vmul.f32 %v164, %v223
    %v296 = vmul.f32 %v169, %v215
    %v297 = vmul.f32 %v169, %v219
    %v298 = vmul.f32 %v169, %v223
    %v299 = vmul.f32 %v174, %v215
    %v300 = vmul.f32 %v174, %v219
    %v301 = vmul.f32 %v174, %v223
    %v302 = vmul.f32 %v179, %v215
    %v303 = vmul.f32 %v179, %v219
    %v304 = vmul.f32 %v179, %v223
    %v305 = vmul.f32 %v184, %v215
    %v306 = vmul.f32 %v184, %v219
    %v307 = vmul.f32 %v184, %v223
    %v308 = vmul.f32 %v189, %v215
    %v309 = vmul.f32 %v189, %v219
    %v310 = vmul.f32 %v189, %v223
    %v311 = vmul.f32 %v194, %v215
    %v312 = vmul.f32 %v194, %v219
    %v313 = vmul.f32 %v194, %v223
    %v314 = vmul.f32 %v199, %v215
    %v315 = vmul.f32 %v199, %v219
    %v316 = vmul.f32 %v199, %v223
    %v317 = vmul.f32 %v204, %v215
    %v318 = vmul.f32 %v204, %v219
    %v319 = vmul.f32 %v204, %v223
    %v320 = vmul.f32 %v209, %v215
    %v321 = vmul.f32 %v209, %v219
    %v322 = vmul.f32 %v209, %v223
    %323 = vset.pattern.permute.xlu0 1
    %324 = vperm.xlu0 %323, %v12
    %v325 = vpop.permute.xlu0 %324
    %327 = vset.pattern.permute.xlu0 1
    %328 = vperm.xlu0 %327, %v13
    %v329 = vpop.permute.xlu0 %328
    %331 = vset.pattern.permute.xlu0 1
    %332 = vperm.xlu0 %331, %v14
    %v333 = vpop.permute.xlu0 %332
    %335 = vset.pattern.permute.xlu0 1
    %336 = vperm.xlu0 %335, %v15
    %v337 = vpop.permute.xlu0 %336
    %339 = vset.pattern.permute.xlu0 1
    %340 = vperm.xlu0 %339, %v16
    %v341 = vpop.permute.xlu0 %340
    %343 = vset.pattern.permute.xlu0 1
    %344 = vperm.xlu0 %343, %v17
    %v345 = vpop.permute.xlu0 %344
    %347 = vset.pattern.permute.xlu0 1
    %348 = vperm.xlu0 %347, %v18
    %v349 = vpop.permute.xlu0 %348
    %351 = vset.pattern.permute.xlu0 1
    %352 = vperm.xlu0 %351, %v19
    %v353 = vpop.permute.xlu0 %352
    %355 = vset.pattern.permute.xlu0 1
    %356 = vperm.xlu0 %355, %v20
    %v357 = vpop.permute.xlu0 %356
    %359 = vset.pattern.permute.xlu0 1
    %360 = vperm.xlu0 %359, %v21
    %v361 = vpop.permute.xlu0 %360
    %363 = vset.pattern.permute.xlu0 1
    %364 = vperm.xlu0 %363, %v22
    %v365 = vpop.permute.xlu0 %364
    %367 = vset.pattern.permute.xlu0 1
    %368 = vperm.xlu0 %367, %v23
    %v369 = vpop.permute.xlu0 %368
    %371 = vset.pattern.permute.xlu0 1
    %372 = vperm.xlu0 %371, %v24
    %v373 = vpop.permute.xlu0 %372
    %375 = vset.pattern.permute.xlu0 1
    %376 = vperm.xlu0 %375, %v25
    %v377 = vpop.permute.xlu0 %376
    %379 = vset.pattern.permute.xlu0 1
    %380 = vperm.xlu0 %379, %v26
    %v381 = vpop.permute.xlu0 %380
    %383 = vset.pattern.permute.xlu0 1
    %384 = vperm.xlu0 %383, %v27
    %v385 = vpop.permute.xlu0 %384
    %387 = vset.pattern.permute.xlu0 1
    %388 = vperm.xlu0 %387, %v28
    %v389 = vpop.permute.xlu0 %388
    %391 = vset.pattern.permute.xlu0 1
    %392 = vperm.xlu0 %391, %v29
    %v393 = vpop.permute.xlu0 %392
    %395 = vset.pattern.permute.xlu0 1
    %396 = vperm.xlu0 %395, %v30
    %v397 = vpop.permute.xlu0 %396
    %399 = vset.pattern.permute.xlu0 1
    %400 = vperm.xlu0 %399, %v31
    %v401 = vpop.permute.xlu0 %400
    %403 = vset.pattern.permute.xlu0 1
    %404 = vperm.xlu0 %403, %v32
    %v405 = vpop.permute.xlu0 %404
    %407 = vset.pattern.permute.xlu0 1
    %408 = vperm.xlu0 %407, %v33
    %v409 = vpop.permute.xlu0 %408
    %411 = vset.pattern.permute.xlu0 1
    %412 = vperm.xlu0 %411, %v34
    %v413 = vpop.permute.xlu0 %412
    %415 = vset.pattern.permute.xlu0 1
    %416 = vperm.xlu0 %415, %v35
    %v417 = vpop.permute.xlu0 %416
    %419 = vset.pattern.permute.xlu0 1
    %420 = vperm.xlu0 %419, %v36
    %v421 = vpop.permute.xlu0 %420
    %423 = vset.pattern.permute.xlu0 1
    %424 = vperm.xlu0 %423, %v37
    %v425 = vpop.permute.xlu0 %424
    %427 = vset.pattern.permute.xlu0 1
    %428 = vperm.xlu0 %427, %v38
    %v429 = vpop.permute.xlu0 %428
    %431 = vset.pattern.permute.xlu0 1
    %432 = vperm.xlu0 %431, %v39
    %v433 = vpop.permute.xlu0 %432
    %435 = vset.pattern.permute.xlu0 1
    %436 = vperm.xlu0 %435, %v40
    %v437 = vpop.permute.xlu0 %436
    %439 = vset.pattern.permute.xlu0 1
    %440 = vperm.xlu0 %439, %v41
    %v441 = vpop.permute.xlu0 %440
    %443 = vset.pattern.permute.xlu0 1
    %444 = vperm.xlu0 %443, %v42
    %v445 = vpop.permute.xlu0 %444
    %447 = vset.pattern.permute.xlu0 1
    %448 = vperm.xlu0 %447, %v43
    %v449 = vpop.permute.xlu0 %448
    %v452 = vlaneseq
    %v453 = vshrl.u32 %v452, 7
    %v454 = vsub.s32 0, %v453
    %v455 = vrot.slane %v46, %v454
    %v456 = vlaneseq
    %v457 = vshrl.u32 %v456, 7
    %v458 = vsub.s32 1, %v457
    %v459 = vrot.slane %v46, %v458
    %v460 = vlaneseq
    %v461 = vshrl.u32 %v460, 7
    %v462 = vsub.s32 2, %v461
    %v463 = vrot.slane %v46, %v462
    %v467 = vmul.f32 %v325, %v455
    %v468 = vmul.f32 %v325, %v459
    %v469 = vmul.f32 %v325, %v463
    %v470 = vmul.f32 %v329, %v455
    %v471 = vmul.f32 %v329, %v459
    %v472 = vmul.f32 %v329, %v463
    %v473 = vmul.f32 %v333, %v455
    %v474 = vmul.f32 %v333, %v459
    %v475 = vmul.f32 %v333, %v463
    %v476 = vmul.f32 %v337, %v455
    %v477 = vmul.f32 %v337, %v459
    %v478 = vmul.f32 %v337, %v463
    %v479 = vmul.f32 %v341, %v455
    %v480 = vmul.f32 %v341, %v459
    %v481 = vmul.f32 %v341, %v463
    %v482 = vmul.f32 %v345, %v455
    %v483 = vmul.f32 %v345, %v459
    %v484 = vmul.f32 %v345, %v463
    %v485 = vmul.f32 %v349, %v455
    %v486 = vmul.f32 %v349, %v459
    %v487 = vmul.f32 %v349, %v463
    %v488 = vmul.f32 %v353, %v455
    %v489 = vmul.f32 %v353, %v459
    %v490 = vmul.f32 %v353, %v463
    %v491 = vmul.f32 %v357, %v455
    %v492 = vmul.f32 %v357, %v459
    %v493 = vmul.f32 %v357, %v463
    %v494 = vmul.f32 %v361, %v455
    %v495 = vmul.f32 %v361, %v459
    %v496 = vmul.f32 %v361, %v463
    %v497 = vmul.f32 %v365, %v455
    %v498 = vmul.f32 %v365, %v459
    %v499 = vmul.f32 %v365, %v463
    %v500 = vmul.f32 %v369, %v455
    %v501 = vmul.f32 %v369, %v459
    %v502 = vmul.f32 %v369, %v463
    %v503 = vmul.f32 %v373, %v455
    %v504 = vmul.f32 %v373, %v459
    %v505 = vmul.f32 %v373, %v463
    %v506 = vmul.f32 %v377, %v455
    %v507 = vmul.f32 %v377, %v459
    %v508 = vmul.f32 %v377, %v463
    %v509 = vmul.f32 %v381, %v455
    %v510 = vmul.f32 %v381, %v459
    %v511 = vmul.f32 %v381, %v463
    %v512 = vmul.f32 %v385, %v455
    %v513 = vmul.f32 %v385, %v459
    %v514 = vmul.f32 %v385, %v463
    %v515 = vmul.f32 %v389, %v455
    %v516 = vmul.f32 %v389, %v459
    %v517 = vmul.f32 %v389, %v463
    %v518 = vmul.f32 %v393, %v455
    %v519 = vmul.f32 %v393, %v459
    %v520 = vmul.f32 %v393, %v463
    %v521 = vmul.f32 %v397, %v455
    %v522 = vmul.f32 %v397, %v459
    %v523 = vmul.f32 %v397, %v463
    %v524 = vmul.f32 %v401, %v455
    %v525 = vmul.f32 %v401, %v459
    %v526 = vmul.f32 %v401, %v463
    %v527 = vmul.f32 %v405, %v455
    %v528 = vmul.f32 %v405, %v459
    %v529 = vmul.f32 %v405, %v463
    %v530 = vmul.f32 %v409, %v455
    %v531 = vmul.f32 %v409, %v459
    %v532 = vmul.f32 %v409, %v463
    %v533 = vmul.f32 %v413, %v455
    %v534 = vmul.f32 %v413, %v459
    %v535 = vmul.f32 %v413, %v463
    %v536 = vmul.f32 %v417, %v455
    %v537 = vmul.f32 %v417, %v459
    %v538 = vmul.f32 %v417, %v463
    %v539 = vmul.f32 %v421, %v455
    %v540 = vmul.f32 %v421, %v459
    %v541 = vmul.f32 %v421, %v463
    %v542 = vmul.f32 %v425, %v455
    %v543 = vmul.f32 %v425, %v459
    %v544 = vmul.f32 %v425, %v463
    %v545 = vmul.f32 %v429, %v455
    %v546 = vmul.f32 %v429, %v459
    %v547 = vmul.f32 %v429, %v463
    %v548 = vmul.f32 %v433, %v455
    %v549 = vmul.f32 %v433, %v459
    %v550 = vmul.f32 %v433, %v463
    %v551 = vmul.f32 %v437, %v455
    %v552 = vmul.f32 %v437, %v459
    %v553 = vmul.f32 %v437, %v463
    %v554 = vmul.f32 %v441, %v455
    %v555 = vmul.f32 %v441, %v459
    %v556 = vmul.f32 %v441, %v463
    %v557 = vmul.f32 %v445, %v455
    %v558 = vmul.f32 %v445, %v459
    %v559 = vmul.f32 %v445, %v463
    %v560 = vmul.f32 %v449, %v455
    %v561 = vmul.f32 %v449, %v459
    %v562 = vmul.f32 %v449, %v463
    %v563 = vadd.f32 %v227, %v467
    %v564 = vadd.f32 %v228, %v468
    %v565 = vadd.f32 %v229, %v469
    %v566 = vadd.f32 %v230, %v470
    %v567 = vadd.f32 %v231, %v471
    %v568 = vadd.f32 %v232, %v472
    %v569 = vadd.f32 %v233, %v473
    %v570 = vadd.f32 %v234, %v474
    %v571 = vadd.f32 %v235, %v475
    %v572 = vadd.f32 %v236, %v476
    %v573 = vadd.f32 %v237, %v477
    %v574 = vadd.f32 %v238, %v478
    %v575 = vadd.f32 %v239, %v479
    %v576 = vadd.f32 %v240, %v480
    %v577 = vadd.f32 %v241, %v481
    %v578 = vadd.f32 %v242, %v482
    %v579 = vadd.f32 %v243, %v483
    %v580 = vadd.f32 %v244, %v484
    %v581 = vadd.f32 %v245, %v485
    %v582 = vadd.f32 %v246, %v486
    %v583 = vadd.f32 %v247, %v487
    %v584 = vadd.f32 %v248, %v488
    %v585 = vadd.f32 %v249, %v489
    %v586 = vadd.f32 %v250, %v490
    %v587 = vadd.f32 %v251, %v491
    %v588 = vadd.f32 %v252, %v492
    %v589 = vadd.f32 %v253, %v493
    %v590 = vadd.f32 %v254, %v494
    %v591 = vadd.f32 %v255, %v495
    %v592 = vadd.f32 %v256, %v496
    %v593 = vadd.f32 %v257, %v497
    %v594 = vadd.f32 %v258, %v498
    %v595 = vadd.f32 %v259, %v499
    %v596 = vadd.f32 %v260, %v500
    %v597 = vadd.f32 %v261, %v501
    %v598 = vadd.f32 %v262, %v502
    %v599 = vadd.f32 %v263, %v503
    %v600 = vadd.f32 %v264, %v504
    %v601 = vadd.f32 %v265, %v505
    %v602 = vadd.f32 %v266, %v506
    %v603 = vadd.f32 %v267, %v507
    %v604 = vadd.f32 %v268, %v508
    %v605 = vadd.f32 %v269, %v509
    %v606 = vadd.f32 %v270, %v510
    %v607 = vadd.f32 %v271, %v511
    %v608 = vadd.f32 %v272, %v512
    %v609 = vadd.f32 %v273, %v513
    %v610 = vadd.f32 %v274, %v514
    %v611 = vadd.f32 %v275, %v515
    %v612 = vadd.f32 %v276, %v516
    %v613 = vadd.f32 %v277, %v517
    %v614 = vadd.f32 %v278, %v518
    %v615 = vadd.f32 %v279, %v519
    %v616 = vadd.f32 %v280, %v520
    %v617 = vadd.f32 %v281, %v521
    %v618 = vadd.f32 %v282, %v522
    %v619 = vadd.f32 %v283, %v523
    %v620 = vadd.f32 %v284, %v524
    %v621 = vadd.f32 %v285, %v525
    %v622 = vadd.f32 %v286, %v526
    %v623 = vadd.f32 %v287, %v527
    %v624 = vadd.f32 %v288, %v528
    %v625 = vadd.f32 %v289, %v529
    %v626 = vadd.f32 %v290, %v530
    %v627 = vadd.f32 %v291, %v531
    %v628 = vadd.f32 %v292, %v532
    %v629 = vadd.f32 %v293, %v533
    %v630 = vadd.f32 %v294, %v534
    %v631 = vadd.f32 %v295, %v535
    %v632 = vadd.f32 %v296, %v536
    %v633 = vadd.f32 %v297, %v537
    %v634 = vadd.f32 %v298, %v538
    %v635 = vadd.f32 %v299, %v539
    %v636 = vadd.f32 %v300, %v540
    %v637 = vadd.f32 %v301, %v541
    %v638 = vadd.f32 %v302, %v542
    %v639 = vadd.f32 %v303, %v543
    %v640 = vadd.f32 %v304, %v544
    %v641 = vadd.f32 %v305, %v545
    %v642 = vadd.f32 %v306, %v546
    %v643 = vadd.f32 %v307, %v547
    %v644 = vadd.f32 %v308, %v548
    %v645 = vadd.f32 %v309, %v549
    %v646 = vadd.f32 %v310, %v550
    %v647 = vadd.f32 %v311, %v551
    %v648 = vadd.f32 %v312, %v552
    %v649 = vadd.f32 %v313, %v553
    %v650 = vadd.f32 %v314, %v554
    %v651 = vadd.f32 %v315, %v555
    %v652 = vadd.f32 %v316, %v556
    %v653 = vadd.f32 %v317, %v557
    %v654 = vadd.f32 %v318, %v558
    %v655 = vadd.f32 %v319, %v559
    %v656 = vadd.f32 %v320, %v560
    %v657 = vadd.f32 %v321, %v561
    %v658 = vadd.f32 %v322, %v562
    %659 = vset.pattern.permute.xlu0 2
    %660 = vperm.xlu0 %659, %v12
    %v661 = vpop.permute.xlu0 %660
    %663 = vset.pattern.permute.xlu0 2
    %664 = vperm.xlu0 %663, %v13
    %v665 = vpop.permute.xlu0 %664
    %667 = vset.pattern.permute.xlu0 2
    %668 = vperm.xlu0 %667, %v14
    %v669 = vpop.permute.xlu0 %668
    %671 = vset.pattern.permute.xlu0 2
    %672 = vperm.xlu0 %671, %v15
    %v673 = vpop.permute.xlu0 %672
    %675 = vset.pattern.permute.xlu0 2
    %676 = vperm.xlu0 %675, %v16
    %v677 = vpop.permute.xlu0 %676
    %679 = vset.pattern.permute.xlu0 2
    %680 = vperm.xlu0 %679, %v17
    %v681 = vpop.permute.xlu0 %680
    %683 = vset.pattern.permute.xlu0 2
    %684 = vperm.xlu0 %683, %v18
    %v685 = vpop.permute.xlu0 %684
    %687 = vset.pattern.permute.xlu0 2
    %688 = vperm.xlu0 %687, %v19
    %v689 = vpop.permute.xlu0 %688
    %691 = vset.pattern.permute.xlu0 2
    %692 = vperm.xlu0 %691, %v20
    %v693 = vpop.permute.xlu0 %692
    %695 = vset.pattern.permute.xlu0 2
    %696 = vperm.xlu0 %695, %v21
    %v697 = vpop.permute.xlu0 %696
    %699 = vset.pattern.permute.xlu0 2
    %700 = vperm.xlu0 %699, %v22
    %v701 = vpop.permute.xlu0 %700
    %703 = vset.pattern.permute.xlu0 2
    %704 = vperm.xlu0 %703, %v23
    %v705 = vpop.permute.xlu0 %704
    %707 = vset.pattern.permute.xlu0 2
    %708 = vperm.xlu0 %707, %v24
    %v709 = vpop.permute.xlu0 %708
    %711 = vset.pattern.permute.xlu0 2
    %712 = vperm.xlu0 %711, %v25
    %v713 = vpop.permute.xlu0 %712
    %715 = vset.pattern.permute.xlu0 2
    %716 = vperm.xlu0 %715, %v26
    %v717 = vpop.permute.xlu0 %716
    %719 = vset.pattern.permute.xlu0 2
    %720 = vperm.xlu0 %719, %v27
    %v721 = vpop.permute.xlu0 %720
    %723 = vset.pattern.permute.xlu0 2
    %724 = vperm.xlu0 %723, %v28
    %v725 = vpop.permute.xlu0 %724
    %727 = vset.pattern.permute.xlu0 2
    %728 = vperm.xlu0 %727, %v29
    %v729 = vpop.permute.xlu0 %728
    %731 = vset.pattern.permute.xlu0 2
    %732 = vperm.xlu0 %731, %v30
    %v733 = vpop.permute.xlu0 %732
    %735 = vset.pattern.permute.xlu0 2
    %736 = vperm.xlu0 %735, %v31
    %v737 = vpop.permute.xlu0 %736
    %739 = vset.pattern.permute.xlu0 2
    %740 = vperm.xlu0 %739, %v32
    %v741 = vpop.permute.xlu0 %740
    %743 = vset.pattern.permute.xlu0 2
    %744 = vperm.xlu0 %743, %v33
    %v745 = vpop.permute.xlu0 %744
    %747 = vset.pattern.permute.xlu0 2
    %748 = vperm.xlu0 %747, %v34
    %v749 = vpop.permute.xlu0 %748
    %751 = vset.pattern.permute.xlu0 2
    %752 = vperm.xlu0 %751, %v35
    %v753 = vpop.permute.xlu0 %752
    %755 = vset.pattern.permute.xlu0 2
    %756 = vperm.xlu0 %755, %v36
    %v757 = vpop.permute.xlu0 %756
    %759 = vset.pattern.permute.xlu0 2
    %760 = vperm.xlu0 %759, %v37
    %v761 = vpop.permute.xlu0 %760
    %763 = vset.pattern.permute.xlu0 2
    %764 = vperm.xlu0 %763, %v38
    %v765 = vpop.permute.xlu0 %764
    %767 = vset.pattern.permute.xlu0 2
    %768 = vperm.xlu0 %767, %v39
    %v769 = vpop.permute.xlu0 %768
    %771 = vset.pattern.permute.xlu0 2
    %772 = vperm.xlu0 %771, %v40
    %v773 = vpop.permute.xlu0 %772
    %775 = vset.pattern.permute.xlu0 2
    %776 = vperm.xlu0 %775, %v41
    %v777 = vpop.permute.xlu0 %776
    %779 = vset.pattern.permute.xlu0 2
    %780 = vperm.xlu0 %779, %v42
    %v781 = vpop.permute.xlu0 %780
    %783 = vset.pattern.permute.xlu0 2
    %784 = vperm.xlu0 %783, %v43
    %v785 = vpop.permute.xlu0 %784
    %v788 = vlaneseq
    %v789 = vshrl.u32 %v788, 7
    %v790 = vsub.s32 0, %v789
    %v791 = vrot.slane %v48, %v790
    %v792 = vlaneseq
    %v793 = vshrl.u32 %v792, 7
    %v794 = vsub.s32 1, %v793
    %v795 = vrot.slane %v48, %v794
    %v796 = vlaneseq
    %v797 = vshrl.u32 %v796, 7
    %v798 = vsub.s32 2, %v797
    %v799 = vrot.slane %v48, %v798
    %v803 = vmul.f32 %v661, %v791
    %v804 = vmul.f32 %v661, %v795
    %v805 = vmul.f32 %v661, %v799
    %v806 = vmul.f32 %v665, %v791
    %v807 = vmul.f32 %v665, %v795
    %v808 = vmul.f32 %v665, %v799
    %v809 = vmul.f32 %v669, %v791
    %v810 = vmul.f32 %v669, %v795
    %v811 = vmul.f32 %v669, %v799
    %v812 = vmul.f32 %v673, %v791
    %v813 = vmul.f32 %v673, %v795
    %v814 = vmul.f32 %v673, %v799
    %v815 = vmul.f32 %v677, %v791
    %v816 = vmul.f32 %v677, %v795
    %v817 = vmul.f32 %v677, %v799
    %v818 = vmul.f32 %v681, %v791
    %v819 = vmul.f32 %v681, %v795
    %v820 = vmul.f32 %v681, %v799
    %v821 = vmul.f32 %v685, %v791
    %v822 = vmul.f32 %v685, %v795
    %v823 = vmul.f32 %v685, %v799
    %v824 = vmul.f32 %v689, %v791
    %v825 = vmul.f32 %v689, %v795
    %v826 = vmul.f32 %v689, %v799
    %v827 = vmul.f32 %v693, %v791
    %v828 = vmul.f32 %v693, %v795
    %v829 = vmul.f32 %v693, %v799
    %v830 = vmul.f32 %v697, %v791
    %v831 = vmul.f32 %v697, %v795
    %v832 = vmul.f32 %v697, %v799
    %v833 = vmul.f32 %v701, %v791
    %v834 = vmul.f32 %v701, %v795
    %v835 = vmul.f32 %v701, %v799
    %v836 = vmul.f32 %v705, %v791
    %v837 = vmul.f32 %v705, %v795
    %v838 = vmul.f32 %v705, %v799
    %v839 = vmul.f32 %v709, %v791
    %v840 = vmul.f32 %v709, %v795
    %v841 = vmul.f32 %v709, %v799
    %v842 = vmul.f32 %v713, %v791
    %v843 = vmul.f32 %v713, %v795
    %v844 = vmul.f32 %v713, %v799
    %v845 = vmul.f32 %v717, %v791
    %v846 = vmul.f32 %v717, %v795
    %v847 = vmul.f32 %v717, %v799
    %v848 = vmul.f32 %v721, %v791
    %v849 = vmul.f32 %v721, %v795
    %v850 = vmul.f32 %v721, %v799
    %v851 = vmul.f32 %v725, %v791
    %v852 = vmul.f32 %v725, %v795
    %v853 = vmul.f32 %v725, %v799
    %v854 = vmul.f32 %v729, %v791
    %v855 = vmul.f32 %v729, %v795
    %v856 = vmul.f32 %v729, %v799
    %v857 = vmul.f32 %v733, %v791
    %v858 = vmul.f32 %v733, %v795
    %v859 = vmul.f32 %v733, %v799
    %v860 = vmul.f32 %v737, %v791
    %v861 = vmul.f32 %v737, %v795
    %v862 = vmul.f32 %v737, %v799
    %v863 = vmul.f32 %v741, %v791
    %v864 = vmul.f32 %v741, %v795
    %v865 = vmul.f32 %v741, %v799
    %v866 = vmul.f32 %v745, %v791
    %v867 = vmul.f32 %v745, %v795
    %v868 = vmul.f32 %v745, %v799
    %v869 = vmul.f32 %v749, %v791
    %v870 = vmul.f32 %v749, %v795
    %v871 = vmul.f32 %v749, %v799
    %v872 = vmul.f32 %v753, %v791
    %v873 = vmul.f32 %v753, %v795
    %v874 = vmul.f32 %v753, %v799
    %v875 = vmul.f32 %v757, %v791
    %v876 = vmul.f32 %v757, %v795
    %v877 = vmul.f32 %v757, %v799
    %v878 = vmul.f32 %v761, %v791
    %v879 = vmul.f32 %v761, %v795
    %v880 = vmul.f32 %v761, %v799
    %v881 = vmul.f32 %v765, %v791
    %v882 = vmul.f32 %v765, %v795
    %v883 = vmul.f32 %v765, %v799
    %v884 = vmul.f32 %v769, %v791
    %v885 = vmul.f32 %v769, %v795
    %v886 = vmul.f32 %v769, %v799
    %v887 = vmul.f32 %v773, %v791
    %v888 = vmul.f32 %v773, %v795
    %v889 = vmul.f32 %v773, %v799
    %v890 = vmul.f32 %v777, %v791
    %v891 = vmul.f32 %v777, %v795
    %v892 = vmul.f32 %v777, %v799
    %v893 = vmul.f32 %v781, %v791
    %v894 = vmul.f32 %v781, %v795
    %v895 = vmul.f32 %v781, %v799
    %v896 = vmul.f32 %v785, %v791
    %v897 = vmul.f32 %v785, %v795
    %v898 = vmul.f32 %v785, %v799
    %v899 = vadd.f32 %v563, %v803
    %v900 = vadd.f32 %v564, %v804
    %v901 = vadd.f32 %v565, %v805
    %v902 = vadd.f32 %v566, %v806
    %v903 = vadd.f32 %v567, %v807
    %v904 = vadd.f32 %v568, %v808
    %v905 = vadd.f32 %v569, %v809
    %v906 = vadd.f32 %v570, %v810
    %v907 = vadd.f32 %v571, %v811
    %v908 = vadd.f32 %v572, %v812
    %v909 = vadd.f32 %v573, %v813
    %v910 = vadd.f32 %v574, %v814
    %v911 = vadd.f32 %v575, %v815
    %v912 = vadd.f32 %v576, %v816
    %v913 = vadd.f32 %v577, %v817
    %v914 = vadd.f32 %v578, %v818
    %v915 = vadd.f32 %v579, %v819
    %v916 = vadd.f32 %v580, %v820
    %v917 = vadd.f32 %v581, %v821
    %v918 = vadd.f32 %v582, %v822
    %v919 = vadd.f32 %v583, %v823
    %v920 = vadd.f32 %v584, %v824
    %v921 = vadd.f32 %v585, %v825
    %v922 = vadd.f32 %v586, %v826
    %v923 = vadd.f32 %v587, %v827
    %v924 = vadd.f32 %v588, %v828
    %v925 = vadd.f32 %v589, %v829
    %v926 = vadd.f32 %v590, %v830
    %v927 = vadd.f32 %v591, %v831
    %v928 = vadd.f32 %v592, %v832
    %v929 = vadd.f32 %v593, %v833
    %v930 = vadd.f32 %v594, %v834
    %v931 = vadd.f32 %v595, %v835
    %v932 = vadd.f32 %v596, %v836
    %v933 = vadd.f32 %v597, %v837
    %v934 = vadd.f32 %v598, %v838
    %v935 = vadd.f32 %v599, %v839
    %v936 = vadd.f32 %v600, %v840
    %v937 = vadd.f32 %v601, %v841
    %v938 = vadd.f32 %v602, %v842
    %v939 = vadd.f32 %v603, %v843
    %v940 = vadd.f32 %v604, %v844
    %v941 = vadd.f32 %v605, %v845
    %v942 = vadd.f32 %v606, %v846
    %v943 = vadd.f32 %v607, %v847
    %v944 = vadd.f32 %v608, %v848
    %v945 = vadd.f32 %v609, %v849
    %v946 = vadd.f32 %v610, %v850
    %v947 = vadd.f32 %v611, %v851
    %v948 = vadd.f32 %v612, %v852
    %v949 = vadd.f32 %v613, %v853
    %v950 = vadd.f32 %v614, %v854
    %v951 = vadd.f32 %v615, %v855
    %v952 = vadd.f32 %v616, %v856
    %v953 = vadd.f32 %v617, %v857
    %v954 = vadd.f32 %v618, %v858
    %v955 = vadd.f32 %v619, %v859
    %v956 = vadd.f32 %v620, %v860
    %v957 = vadd.f32 %v621, %v861
    %v958 = vadd.f32 %v622, %v862
    %v959 = vadd.f32 %v623, %v863
    %v960 = vadd.f32 %v624, %v864
    %v961 = vadd.f32 %v625, %v865
    %v962 = vadd.f32 %v626, %v866
    %v963 = vadd.f32 %v627, %v867
    %v964 = vadd.f32 %v628, %v868
    %v965 = vadd.f32 %v629, %v869
    %v966 = vadd.f32 %v630, %v870
    %v967 = vadd.f32 %v631, %v871
    %v968 = vadd.f32 %v632, %v872
    %v969 = vadd.f32 %v633, %v873
    %v970 = vadd.f32 %v634, %v874
    %v971 = vadd.f32 %v635, %v875
    %v972 = vadd.f32 %v636, %v876
    %v973 = vadd.f32 %v637, %v877
    %v974 = vadd.f32 %v638, %v878
    %v975 = vadd.f32 %v639, %v879
    %v976 = vadd.f32 %v640, %v880
    %v977 = vadd.f32 %v641, %v881
    %v978 = vadd.f32 %v642, %v882
    %v979 = vadd.f32 %v643, %v883
    %v980 = vadd.f32 %v644, %v884
    %v981 = vadd.f32 %v645, %v885
    %v982 = vadd.f32 %v646, %v886
    %v983 = vadd.f32 %v647, %v887
    %v984 = vadd.f32 %v648, %v888
    %v985 = vadd.f32 %v649, %v889
    %v986 = vadd.f32 %v650, %v890
    %v987 = vadd.f32 %v651, %v891
    %v988 = vadd.f32 %v652, %v892
    %v989 = vadd.f32 %v653, %v893
    %v990 = vadd.f32 %v654, %v894
    %v991 = vadd.f32 %v655, %v895
    %v992 = vadd.f32 %v656, %v896
    %v993 = vadd.f32 %v657, %v897
    %v994 = vadd.f32 %v658, %v898
    %v996 = vlaneseq
    %v997 = vshrl.u32 %v996, 7
    %v998 = vsub.s32 0, %v997
    %v999 = vrot.slane %v50, %v998
    %v1000 = vlaneseq
    %v1001 = vshrl.u32 %v1000, 7
    %v1002 = vsub.s32 1, %v1001
    %v1003 = vrot.slane %v50, %v1002
    %v1004 = vlaneseq
    %v1005 = vshrl.u32 %v1004, 7
    %v1006 = vsub.s32 2, %v1005
    %v1007 = vrot.slane %v50, %v1006
    %v1011 = vadd.f32 %v899, %v999
    %v1012 = vadd.f32 %v900, %v1003
    %v1013 = vadd.f32 %v901, %v1007
    %v1014 = vadd.f32 %v902, %v999
    %v1015 = vadd.f32 %v903, %v1003
    %v1016 = vadd.f32 %v904, %v1007
    %v1017 = vadd.f32 %v905, %v999
    %v1018 = vadd.f32 %v906, %v1003
    %v1019 = vadd.f32 %v907, %v1007
    %v1020 = vadd.f32 %v908, %v999
    %v1021 = vadd.f32 %v909, %v1003
    %v1022 = vadd.f32 %v910, %v1007
    %v1023 = vadd.f32 %v911, %v999
    %v1024 = vadd.f32 %v912, %v1003
    %v1025 = vadd.f32 %v913, %v1007
    %v1026 = vadd.f32 %v914, %v999
    %v1027 = vadd.f32 %v915, %v1003
    %v1028 = vadd.f32 %v916, %v1007
    %v1029 = vadd.f32 %v917, %v999
    %v1030 = vadd.f32 %v918, %v1003
    %v1031 = vadd.f32 %v919, %v1007
    %v1032 = vadd.f32 %v920, %v999
    %v1033 = vadd.f32 %v921, %v1003
    %v1034 = vadd.f32 %v922, %v1007
    %v1035 = vadd.f32 %v923, %v999
    %v1036 = vadd.f32 %v924, %v1003
    %v1037 = vadd.f32 %v925, %v1007
    %v1038 = vadd.f32 %v926, %v999
    %v1039 = vadd.f32 %v927, %v1003
    %v1040 = vadd.f32 %v928, %v1007
    %v1041 = vadd.f32 %v929, %v999
    %v1042 = vadd.f32 %v930, %v1003
    %v1043 = vadd.f32 %v931, %v1007
    %v1044 = vadd.f32 %v932, %v999
    %v1045 = vadd.f32 %v933, %v1003
    %v1046 = vadd.f32 %v934, %v1007
    %v1047 = vadd.f32 %v935, %v999
    %v1048 = vadd.f32 %v936, %v1003
    %v1049 = vadd.f32 %v937, %v1007
    %v1050 = vadd.f32 %v938, %v999
    %v1051 = vadd.f32 %v939, %v1003
    %v1052 = vadd.f32 %v940, %v1007
    %v1053 = vadd.f32 %v941, %v999
    %v1054 = vadd.f32 %v942, %v1003
    %v1055 = vadd.f32 %v943, %v1007
    %v1056 = vadd.f32 %v944, %v999
    %v1057 = vadd.f32 %v945, %v1003
    %v1058 = vadd.f32 %v946, %v1007
    %v1059 = vadd.f32 %v947, %v999
    %v1060 = vadd.f32 %v948, %v1003
    %v1061 = vadd.f32 %v949, %v1007
    %v1062 = vadd.f32 %v950, %v999
    %v1063 = vadd.f32 %v951, %v1003
    %v1064 = vadd.f32 %v952, %v1007
    %v1065 = vadd.f32 %v953, %v999
    %v1066 = vadd.f32 %v954, %v1003
    %v1067 = vadd.f32 %v955, %v1007
    %v1068 = vadd.f32 %v956, %v999
    %v1069 = vadd.f32 %v957, %v1003
    %v1070 = vadd.f32 %v958, %v1007
    %v1071 = vadd.f32 %v959, %v999
    %v1072 = vadd.f32 %v960, %v1003
    %v1073 = vadd.f32 %v961, %v1007
    %v1074 = vadd.f32 %v962, %v999
    %v1075 = vadd.f32 %v963, %v1003
    %v1076 = vadd.f32 %v964, %v1007
    %v1077 = vadd.f32 %v965, %v999
    %v1078 = vadd.f32 %v966, %v1003
    %v1079 = vadd.f32 %v967, %v1007
    %v1080 = vadd.f32 %v968, %v999
    %v1081 = vadd.f32 %v969, %v1003
    %v1082 = vadd.f32 %v970, %v1007
    %v1083 = vadd.f32 %v971, %v999
    %v1084 = vadd.f32 %v972, %v1003
    %v1085 = vadd.f32 %v973, %v1007
    %v1086 = vadd.f32 %v974, %v999
    %v1087 = vadd.f32 %v975, %v1003
    %v1088 = vadd.f32 %v976, %v1007
    %v1089 = vadd.f32 %v977, %v999
    %v1090 = vadd.f32 %v978, %v1003
    %v1091 = vadd.f32 %v979, %v1007
    %v1092 = vadd.f32 %v980, %v999
    %v1093 = vadd.f32 %v981, %v1003
    %v1094 = vadd.f32 %v982, %v1007
    %v1095 = vadd.f32 %v983, %v999
    %v1096 = vadd.f32 %v984, %v1003
    %v1097 = vadd.f32 %v985, %v1007
    %v1098 = vadd.f32 %v986, %v999
    %v1099 = vadd.f32 %v987, %v1003
    %v1100 = vadd.f32 %v988, %v1007
    %v1101 = vadd.f32 %v989, %v999
    %v1102 = vadd.f32 %v990, %v1003
    %v1103 = vadd.f32 %v991, %v1007
    %v1104 = vadd.f32 %v992, %v999
    %v1105 = vadd.f32 %v993, %v1003
    %v1106 = vadd.f32 %v994, %v1007
    %v1107 = vand.u32 2147483647, %v1011
    %vm1108 = vcmp.le.f32.partialorder %v1107, 0.7853982
    %vm1109 = vcmp.lt.s32.totalorder %v1011, 0
    %v1110 = vand.u32 %v1011, 2139095040
    %v1111 = vshrl.u32 %v1110, 23
    %v1112 = vsub.s32 %v1111, 127
    %v1113 = vand.u32 2147483647, %v1011
    %v1114 = vand.u32 %v1113, 8388607
    %v1115 = vor.u32 %v1114, 8388608
    %v1116 = vsub.s32 0, %v1115
    %v1117 = vadd.s32 %v1112, 1
    %vm1118 = vcmp.gt.s32.totalorder %v1117, 0
    %v1119 = vsel %vm1118, %v1117, 0
    %v1120 = vshrl.u32 %v1119, 5
    %v1121 = vand.u32 %v1119, 31
    %v1122 = vsub.s32 32, %v1121
    %v1123 = vshrl.u32 683565275, %v1122
    %v1124 = vshll.u32 683565275, %v1121
    %v1125 = vshrl.u32 2475754826, %v1122
    %v1126 = vor.u32 %v1124, %v1125
    %v1127 = vshll.u32 2475754826, %v1121
    %v1128 = vshrl.u32 2131351028, %v1122
    %v1129 = vor.u32 %v1127, %v1128
    %v1130 = vshll.u32 2131351028, %v1121
    %v1131 = vshrl.u32 2102212464, %v1122
    %v1132 = vor.u32 %v1130, %v1131
    %v1133 = vshll.u32 2102212464, %v1121
    %v1134 = vshrl.u32 920167782, %v1122
    %v1135 = vor.u32 %v1133, %v1134
    %v1136 = vshll.u32 920167782, %v1121
    %v1137 = vshrl.u32 1326507024, %v1122
    %v1138 = vor.u32 %v1136, %v1137
    %vm1139 = vcmp.lt.s32.totalorder %v1120, 1
    %vm1140 = vcmp.lt.s32.totalorder %v1120, 2
    %vm1141 = vcmp.lt.s32.totalorder %v1120, 3
    %vm1142 = vcmp.lt.s32.totalorder %v1120, 4
    %v1143 = vsel %vm1139, %v1123, %v1126
    %v1144 = vsel %vm1142, %v1132, 2102212464
    %v1145 = vsel %vm1141, %v1129, %v1144
    %v1146 = vsel %vm1140, %v1143, %v1145
    %v1147 = vsel %vm1139, %v1126, %v1129
    %v1148 = vsel %vm1142, %v1135, 920167782
    %v1149 = vsel %vm1141, %v1132, %v1148
    %v1150 = vsel %vm1140, %v1147, %v1149
    %v1151 = vsel %vm1139, %v1129, %v1132
    %v1152 = vsel %vm1142, %v1138, 1326507024
    %v1153 = vsel %vm1141, %v1135, %v1152
    %v1154 = vsel %vm1140, %v1151, %v1153
    %v1155 = vshll.u32 %v1115, 8
    %v1156 = vmul.u32.u64.compose %v1155, %v1154
    %v1157 = vextract.low.u32 %v1156
    %v1158 = vextract.high.u32 %v1156
    %v1159 = vmul.u32.u64.compose %v1155, %v1150
    %v1160 = vextract.low.u32 %v1159
    %v1161 = vextract.high.u32 %v1159
    %v1162 = vmul.u32 %v1155, %v1146
    %v1163 = vadd.s32 %v1158, %v1160
    %vm1164 = vc.u32 %v1158, %v1160
    %v1165 = vadd.s32 %v1161, 1
    %v1166 = vsel %vm1164, %v1165, %v1161
    %v1167 = vadd.s32 %v1162, %v1166
    %v1168 = vadd.s32 %v1167, 536870912
    %v1169 = vshrl.u32 %v1168, 30
    %v1170 = vshll.u32 %v1169, 30
    %v1171 = vsub.s32 %v1167, %v1170
    %vm1172 = vcmp.lt.s32.totalorder %v1171, 0
    %v1173 = vsub.s32 0, %v1171
    %v1174 = vsel %vm1172, %v1173, %v1171
    %v1175 = vclz %v1174
    %v1176 = vsub.s32 %v1175, 2
    %vm1177 = vcmp.gt.s32.totalorder 0, %v1176
    %v1178 = vsel %vm1177, 0, %v1176
    %v1179 = vsub.s32 32, %v1178
    %v1180 = vshll.u32 %v1171, %v1178
    %v1181 = vshrl.u32 %v1163, %v1179
    %v1182 = vor.u32 %v1180, %v1181
    %v1183 = vsub.s32 4294967266, %v1178
    %v1184 = vadd.s32 %v1183, 127
    %v1185 = vshll.u32 %v1184, 23
    %v1186 = vor.u32 4788187, %v1185
    %v1187 = vand.u32 2147483647, %v1186
    %v1189 = vcvt.s32.f32 %v1182
    %v1190 = vmul.f32 %v1189, %v1187
    %v1191 = vxor.u32 %v1190, 2147483648
    %v1192 = vsel %vm1109, %v1191, %v1190
    %v1193 = vsub.s32 4, %v1169
    %v1194 = vsel %vm1109, %v1193, %v1169
    %v1195 = vsel %vm1108, %v1011, %v1192
    %v1196 = vsel %vm1108, 0, %v1194
    %v1197 = vcosq.f32.pop %v1195
    %v1198 = vsinq.f32.pop %v1195
    %vm1199 = vweird.f32 %v1011
    %v1200 = vadd.s32 %v1196, 3
    %v1201 = vand.u32 %v1200, 3
    %vm1202 = vcmp.lt.s32.totalorder %v1201, 2
    %vm1203 = vcmp.eq.s32.totalorder %v1201, 0
    %v1204 = vxor.u32 %v1198, 2147483648
    %v1205 = vsel %vm1203, %v1197, %v1204
    %vm1206 = vcmp.eq.s32.totalorder %v1201, 2
    %v1207 = vxor.u32 %v1197, 2147483648
    %v1208 = vsel %vm1206, %v1207, %v1198
    %v1209 = vsel %vm1202, %v1205, %v1208
    %v1210 = vsel %vm1199, nan, %v1209
    %v1211 = vand.u32 2147483647, %v1012
    %vm1212 = vcmp.le.f32.partialorder %v1211, 0.7853982
    %vm1213 = vcmp.lt.s32.totalorder %v1012, 0
    %v1214 = vand.u32 %v1012, 2139095040
    %v1215 = vshrl.u32 %v1214, 23
    %v1216 = vsub.s32 %v1215, 127
    %v1217 = vand.u32 2147483647, %v1012
    %v1218 = vand.u32 %v1217, 8388607
    %v1219 = vor.u32 %v1218, 8388608
    %v1220 = vsub.s32 0, %v1219
    %v1221 = vadd.s32 %v1216, 1
    %vm1222 = vcmp.gt.s32.totalorder %v1221, 0
    %v1223 = vsel %vm1222, %v1221, 0
    %v1224 = vshrl.u32 %v1223, 5
    %v1225 = vand.u32 %v1223, 31
    %v1226 = vsub.s32 32, %v1225
    %v1227 = vshrl.u32 683565275, %v1226
    %v1228 = vshll.u32 683565275, %v1225
    %v1229 = vshrl.u32 2475754826, %v1226
    %v1230 = vor.u32 %v1228, %v1229
    %v1231 = vshll.u32 2475754826, %v1225
    %v1232 = vshrl.u32 2131351028, %v1226
    %v1233 = vor.u32 %v1231, %v1232
    %v1234 = vshll.u32 2131351028, %v1225
    %v1235 = vshrl.u32 2102212464, %v1226
    %v1236 = vor.u32 %v1234, %v1235
    %v1237 = vshll.u32 2102212464, %v1225
    %v1238 = vshrl.u32 920167782, %v1226
    %v1239 = vor.u32 %v1237, %v1238
    %v1240 = vshll.u32 920167782, %v1225
    %v1241 = vshrl.u32 1326507024, %v1226
    %v1242 = vor.u32 %v1240, %v1241
    %vm1243 = vcmp.lt.s32.totalorder %v1224, 1
    %vm1244 = vcmp.lt.s32.totalorder %v1224, 2
    %vm1245 = vcmp.lt.s32.totalorder %v1224, 3
    %vm1246 = vcmp.lt.s32.totalorder %v1224, 4
    %v1247 = vsel %vm1243, %v1227, %v1230
    %v1248 = vsel %vm1246, %v1236, 2102212464
    %v1249 = vsel %vm1245, %v1233, %v1248
    %v1250 = vsel %vm1244, %v1247, %v1249
    %v1251 = vsel %vm1243, %v1230, %v1233
    %v1252 = vsel %vm1246, %v1239, 920167782
    %v1253 = vsel %vm1245, %v1236, %v1252
    %v1254 = vsel %vm1244, %v1251, %v1253
    %v1255 = vsel %vm1243, %v1233, %v1236
    %v1256 = vsel %vm1246, %v1242, 1326507024
    %v1257 = vsel %vm1245, %v1239, %v1256
    %v1258 = vsel %vm1244, %v1255, %v1257
    %v1259 = vshll.u32 %v1219, 8
    %v1260 = vmul.u32.u64.compose %v1259, %v1258
    %v1261 = vextract.low.u32 %v1260
    %v1262 = vextract.high.u32 %v1260
    %v1263 = vmul.u32.u64.compose %v1259, %v1254
    %v1264 = vextract.low.u32 %v1263
    %v1265 = vextract.high.u32 %v1263
    %v1266 = vmul.u32 %v1259, %v1250
    %v1267 = vadd.s32 %v1262, %v1264
    %vm1268 = vc.u32 %v1262, %v1264
    %v1269 = vadd.s32 %v1265, 1
    %v1270 = vsel %vm1268, %v1269, %v1265
    %v1271 = vadd.s32 %v1266, %v1270
    %v1272 = vadd.s32 %v1271, 536870912
    %v1273 = vshrl.u32 %v1272, 30
    %v1274 = vshll.u32 %v1273, 30
    %v1275 = vsub.s32 %v1271, %v1274
    %vm1276 = vcmp.lt.s32.totalorder %v1275, 0
    %v1277 = vsub.s32 0, %v1275
    %v1278 = vsel %vm1276, %v1277, %v1275
    %v1279 = vclz %v1278
    %v1280 = vsub.s32 %v1279, 2
    %vm1281 = vcmp.gt.s32.totalorder 0, %v1280
    %v1282 = vsel %vm1281, 0, %v1280
    %v1283 = vsub.s32 32, %v1282
    %v1284 = vshll.u32 %v1275, %v1282
    %v1285 = vshrl.u32 %v1267, %v1283
    %v1286 = vor.u32 %v1284, %v1285
    %v1287 = vsub.s32 4294967266, %v1282
    %v1288 = vadd.s32 %v1287, 127
    %v1289 = vshll.u32 %v1288, 23
    %v1290 = vor.u32 4788187, %v1289
    %v1291 = vand.u32 2147483647, %v1290
    %v1293 = vcvt.s32.f32 %v1286
    %v1294 = vmul.f32 %v1293, %v1291
    %v1295 = vxor.u32 %v1294, 2147483648
    %v1296 = vsel %vm1213, %v1295, %v1294
    %v1297 = vsub.s32 4, %v1273
    %v1298 = vsel %vm1213, %v1297, %v1273
    %v1299 = vsel %vm1212, %v1012, %v1296
    %v1300 = vsel %vm1212, 0, %v1298
    %v1301 = vcosq.f32.pop %v1299
    %v1302 = vsinq.f32.pop %v1299
    %vm1303 = vweird.f32 %v1012
    %v1304 = vadd.s32 %v1300, 3
    %v1305 = vand.u32 %v1304, 3
    %vm1306 = vcmp.lt.s32.totalorder %v1305, 2
    %vm1307 = vcmp.eq.s32.totalorder %v1305, 0
    %v1308 = vxor.u32 %v1302, 2147483648
    %v1309 = vsel %vm1307, %v1301, %v1308
    %vm1310 = vcmp.eq.s32.totalorder %v1305, 2
    %v1311 = vxor.u32 %v1301, 2147483648
    %v1312 = vsel %vm1310, %v1311, %v1302
    %v1313 = vsel %vm1306, %v1309, %v1312
    %v1314 = vsel %vm1303, nan, %v1313
    %v1315 = vand.u32 2147483647, %v1013
    %vm1316 = vcmp.le.f32.partialorder %v1315, 0.7853982
    %vm1317 = vcmp.lt.s32.totalorder %v1013, 0
    %v1318 = vand.u32 %v1013, 2139095040
    %v1319 = vshrl.u32 %v1318, 23
    %v1320 = vsub.s32 %v1319, 127
    %v1321 = vand.u32 2147483647, %v1013
    %v1322 = vand.u32 %v1321, 8388607
    %v1323 = vor.u32 %v1322, 8388608
    %v1324 = vsub.s32 0, %v1323
    %v1325 = vadd.s32 %v1320, 1
    %vm1326 = vcmp.gt.s32.totalorder %v1325, 0
    %v1327 = vsel %vm1326, %v1325, 0
    %v1328 = vshrl.u32 %v1327, 5
    %v1329 = vand.u32 %v1327, 31
    %v1330 = vsub.s32 32, %v1329
    %v1331 = vshrl.u32 683565275, %v1330
    %v1332 = vshll.u32 683565275, %v1329
    %v1333 = vshrl.u32 2475754826, %v1330
    %v1334 = vor.u32 %v1332, %v1333
    %v1335 = vshll.u32 2475754826, %v1329
    %v1336 = vshrl.u32 2131351028, %v1330
    %v1337 = vor.u32 %v1335, %v1336
    %v1338 = vshll.u32 2131351028, %v1329
    %v1339 = vshrl.u32 2102212464, %v1330
    %v1340 = vor.u32 %v1338, %v1339
    %v1341 = vshll.u32 2102212464, %v1329
    %v1342 = vshrl.u32 920167782, %v1330
    %v1343 = vor.u32 %v1341, %v1342
    %v1344 = vshll.u32 920167782, %v1329
    %v1345 = vshrl.u32 1326507024, %v1330
    %v1346 = vor.u32 %v1344, %v1345
    %vm1347 = vcmp.lt.s32.totalorder %v1328, 1
    %vm1348 = vcmp.lt.s32.totalorder %v1328, 2
    %vm1349 = vcmp.lt.s32.totalorder %v1328, 3
    %vm1350 = vcmp.lt.s32.totalorder %v1328, 4
    %v1351 = vsel %vm1347, %v1331, %v1334
    %v1352 = vsel %vm1350, %v1340, 2102212464
    %v1353 = vsel %vm1349, %v1337, %v1352
    %v1354 = vsel %vm1348, %v1351, %v1353
    %v1355 = vsel %vm1347, %v1334, %v1337
    %v1356 = vsel %vm1350, %v1343, 920167782
    %v1357 = vsel %vm1349, %v1340, %v1356
    %v1358 = vsel %vm1348, %v1355, %v1357
    %v1359 = vsel %vm1347, %v1337, %v1340
    %v1360 = vsel %vm1350, %v1346, 1326507024
    %v1361 = vsel %vm1349, %v1343, %v1360
    %v1362 = vsel %vm1348, %v1359, %v1361
    %v1363 = vshll.u32 %v1323, 8
    %v1364 = vmul.u32.u64.compose %v1363, %v1362
    %v1365 = vextract.low.u32 %v1364
    %v1366 = vextract.high.u32 %v1364
    %v1367 = vmul.u32.u64.compose %v1363, %v1358
    %v1368 = vextract.low.u32 %v1367
    %v1369 = vextract.high.u32 %v1367
    %v1370 = vmul.u32 %v1363, %v1354
    %v1371 = vadd.s32 %v1366, %v1368
    %vm1372 = vc.u32 %v1366, %v1368
    %v1373 = vadd.s32 %v1369, 1
    %v1374 = vsel %vm1372, %v1373, %v1369
    %v1375 = vadd.s32 %v1370, %v1374
    %v1376 = vadd.s32 %v1375, 536870912
    %v1377 = vshrl.u32 %v1376, 30
    %v1378 = vshll.u32 %v1377, 30
    %v1379 = vsub.s32 %v1375, %v1378
    %vm1380 = vcmp.lt.s32.totalorder %v1379, 0
    %v1381 = vsub.s32 0, %v1379
    %v1382 = vsel %vm1380, %v1381, %v1379
    %v1383 = vclz %v1382
    %v1384 = vsub.s32 %v1383, 2
    %vm1385 = vcmp.gt.s32.totalorder 0, %v1384
    %v1386 = vsel %vm1385, 0, %v1384
    %v1387 = vsub.s32 32, %v1386
    %v1388 = vshll.u32 %v1379, %v1386
    %v1389 = vshrl.u32 %v1371, %v1387
    %v1390 = vor.u32 %v1388, %v1389
    %v1391 = vsub.s32 4294967266, %v1386
    %v1392 = vadd.s32 %v1391, 127
    %v1393 = vshll.u32 %v1392, 23
    %v1394 = vor.u32 4788187, %v1393
    %v1395 = vand.u32 2147483647, %v1394
    %v1397 = vcvt.s32.f32 %v1390
    %v1398 = vmul.f32 %v1397, %v1395
    %v1399 = vxor.u32 %v1398, 2147483648
    %v1400 = vsel %vm1317, %v1399, %v1398
    %v1401 = vsub.s32 4, %v1377
    %v1402 = vsel %vm1317, %v1401, %v1377
    %v1403 = vsel %vm1316, %v1013, %v1400
    %v1404 = vsel %vm1316, 0, %v1402
    %v1405 = vcosq.f32.pop %v1403
    %v1406 = vsinq.f32.pop %v1403
    %vm1407 = vweird.f32 %v1013
    %v1408 = vadd.s32 %v1404, 3
    %v1409 = vand.u32 %v1408, 3
    %vm1410 = vcmp.lt.s32.totalorder %v1409, 2
    %vm1411 = vcmp.eq.s32.totalorder %v1409, 0
    %v1412 = vxor.u32 %v1406, 2147483648
    %v1413 = vsel %vm1411, %v1405, %v1412
    %vm1414 = vcmp.eq.s32.totalorder %v1409, 2
    %v1415 = vxor.u32 %v1405, 2147483648
    %v1416 = vsel %vm1414, %v1415, %v1406
    %v1417 = vsel %vm1410, %v1413, %v1416
    %v1418 = vsel %vm1407, nan, %v1417
    %v1419 = vand.u32 2147483647, %v1014
    %vm1420 = vcmp.le.f32.partialorder %v1419, 0.7853982
    %vm1421 = vcmp.lt.s32.totalorder %v1014, 0
    %v1422 = vand.u32 %v1014, 2139095040
    %v1423 = vshrl.u32 %v1422, 23
    %v1424 = vsub.s32 %v1423, 127
    %v1425 = vand.u32 2147483647, %v1014
    %v1426 = vand.u32 %v1425, 8388607
    %v1427 = vor.u32 %v1426, 8388608
    %v1428 = vsub.s32 0, %v1427
    %v1429 = vadd.s32 %v1424, 1
    %vm1430 = vcmp.gt.s32.totalorder %v1429, 0
    %v1431 = vsel %vm1430, %v1429, 0
    %v1432 = vshrl.u32 %v1431, 5
    %v1433 = vand.u32 %v1431, 31
    %v1434 = vsub.s32 32, %v1433
    %v1435 = vshrl.u32 683565275, %v1434
    %v1436 = vshll.u32 683565275, %v1433
    %v1437 = vshrl.u32 2475754826, %v1434
    %v1438 = vor.u32 %v1436, %v1437
    %v1439 = vshll.u32 2475754826, %v1433
    %v1440 = vshrl.u32 2131351028, %v1434
    %v1441 = vor.u32 %v1439, %v1440
    %v1442 = vshll.u32 2131351028, %v1433
    %v1443 = vshrl.u32 2102212464, %v1434
    %v1444 = vor.u32 %v1442, %v1443
    %v1445 = vshll.u32 2102212464, %v1433
    %v1446 = vshrl.u32 920167782, %v1434
    %v1447 = vor.u32 %v1445, %v1446
    %v1448 = vshll.u32 920167782, %v1433
    %v1449 = vshrl.u32 1326507024, %v1434
    %v1450 = vor.u32 %v1448, %v1449
    %vm1451 = vcmp.lt.s32.totalorder %v1432, 1
    %vm1452 = vcmp.lt.s32.totalorder %v1432, 2
    %vm1453 = vcmp.lt.s32.totalorder %v1432, 3
    %vm1454 = vcmp.lt.s32.totalorder %v1432, 4
    %v1455 = vsel %vm1451, %v1435, %v1438
    %v1456 = vsel %vm1454, %v1444, 2102212464
    %v1457 = vsel %vm1453, %v1441, %v1456
    %v1458 = vsel %vm1452, %v1455, %v1457
    %v1459 = vsel %vm1451, %v1438, %v1441
    %v1460 = vsel %vm1454, %v1447, 920167782
    %v1461 = vsel %vm1453, %v1444, %v1460
    %v1462 = vsel %vm1452, %v1459, %v1461
    %v1463 = vsel %vm1451, %v1441, %v1444
    %v1464 = vsel %vm1454, %v1450, 1326507024
    %v1465 = vsel %vm1453, %v1447, %v1464
    %v1466 = vsel %vm1452, %v1463, %v1465
    %v1467 = vshll.u32 %v1427, 8
    %v1468 = vmul.u32.u64.compose %v1467, %v1466
    %v1469 = vextract.low.u32 %v1468
    %v1470 = vextract.high.u32 %v1468
    %v1471 = vmul.u32.u64.compose %v1467, %v1462
    %v1472 = vextract.low.u32 %v1471
    %v1473 = vextract.high.u32 %v1471
    %v1474 = vmul.u32 %v1467, %v1458
    %v1475 = vadd.s32 %v1470, %v1472
    %vm1476 = vc.u32 %v1470, %v1472
    %v1477 = vadd.s32 %v1473, 1
    %v1478 = vsel %vm1476, %v1477, %v1473
    %v1479 = vadd.s32 %v1474, %v1478
    %v1480 = vadd.s32 %v1479, 536870912
    %v1481 = vshrl.u32 %v1480, 30
    %v1482 = vshll.u32 %v1481, 30
    %v1483 = vsub.s32 %v1479, %v1482
    %vm1484 = vcmp.lt.s32.totalorder %v1483, 0
    %v1485 = vsub.s32 0, %v1483
    %v1486 = vsel %vm1484, %v1485, %v1483
    %v1487 = vclz %v1486
    %v1488 = vsub.s32 %v1487, 2
    %vm1489 = vcmp.gt.s32.totalorder 0, %v1488
    %v1490 = vsel %vm1489, 0, %v1488
    %v1491 = vsub.s32 32, %v1490
    %v1492 = vshll.u32 %v1483, %v1490
    %v1493 = vshrl.u32 %v1475, %v1491
    %v1494 = vor.u32 %v1492, %v1493
    %v1495 = vsub.s32 4294967266, %v1490
    %v1496 = vadd.s32 %v1495, 127
    %v1497 = vshll.u32 %v1496, 23
    %v1498 = vor.u32 4788187, %v1497
    %v1499 = vand.u32 2147483647, %v1498
    %v1501 = vcvt.s32.f32 %v1494
    %v1502 = vmul.f32 %v1501, %v1499
    %v1503 = vxor.u32 %v1502, 2147483648
    %v1504 = vsel %vm1421, %v1503, %v1502
    %v1505 = vsub.s32 4, %v1481
    %v1506 = vsel %vm1421, %v1505, %v1481
    %v1507 = vsel %vm1420, %v1014, %v1504
    %v1508 = vsel %vm1420, 0, %v1506
    %v1509 = vcosq.f32.pop %v1507
    %v1510 = vsinq.f32.pop %v1507
    %vm1511 = vweird.f32 %v1014
    %v1512 = vadd.s32 %v1508, 3
    %v1513 = vand.u32 %v1512, 3
    %vm1514 = vcmp.lt.s32.totalorder %v1513, 2
    %vm1515 = vcmp.eq.s32.totalorder %v1513, 0
    %v1516 = vxor.u32 %v1510, 2147483648
    %v1517 = vsel %vm1515, %v1509, %v1516
    %vm1518 = vcmp.eq.s32.totalorder %v1513, 2
    %v1519 = vxor.u32 %v1509, 2147483648
    %v1520 = vsel %vm1518, %v1519, %v1510
    %v1521 = vsel %vm1514, %v1517, %v1520
    %v1522 = vsel %vm1511, nan, %v1521
    %v1523 = vand.u32 2147483647, %v1015
    %vm1524 = vcmp.le.f32.partialorder %v1523, 0.7853982
    %vm1525 = vcmp.lt.s32.totalorder %v1015, 0
    %v1526 = vand.u32 %v1015, 2139095040
    %v1527 = vshrl.u32 %v1526, 23
    %v1528 = vsub.s32 %v1527, 127
    %v1529 = vand.u32 2147483647, %v1015
    %v1530 = vand.u32 %v1529, 8388607
    %v1531 = vor.u32 %v1530, 8388608
    %v1532 = vsub.s32 0, %v1531
    %v1533 = vadd.s32 %v1528, 1
    %vm1534 = vcmp.gt.s32.totalorder %v1533, 0
    %v1535 = vsel %vm1534, %v1533, 0
    %v1536 = vshrl.u32 %v1535, 5
    %v1537 = vand.u32 %v1535, 31
    %v1538 = vsub.s32 32, %v1537
    %v1539 = vshrl.u32 683565275, %v1538
    %v1540 = vshll.u32 683565275, %v1537
    %v1541 = vshrl.u32 2475754826, %v1538
    %v1542 = vor.u32 %v1540, %v1541
    %v1543 = vshll.u32 2475754826, %v1537
    %v1544 = vshrl.u32 2131351028, %v1538
    %v1545 = vor.u32 %v1543, %v1544
    %v1546 = vshll.u32 2131351028, %v1537
    %v1547 = vshrl.u32 2102212464, %v1538
    %v1548 = vor.u32 %v1546, %v1547
    %v1549 = vshll.u32 2102212464, %v1537
    %v1550 = vshrl.u32 920167782, %v1538
    %v1551 = vor.u32 %v1549, %v1550
    %v1552 = vshll.u32 920167782, %v1537
    %v1553 = vshrl.u32 1326507024, %v1538
    %v1554 = vor.u32 %v1552, %v1553
    %vm1555 = vcmp.lt.s32.totalorder %v1536, 1
    %vm1556 = vcmp.lt.s32.totalorder %v1536, 2
    %vm1557 = vcmp.lt.s32.totalorder %v1536, 3
    %vm1558 = vcmp.lt.s32.totalorder %v1536, 4
    %v1559 = vsel %vm1555, %v1539, %v1542
    %v1560 = vsel %vm1558, %v1548, 2102212464
    %v1561 = vsel %vm1557, %v1545, %v1560
    %v1562 = vsel %vm1556, %v1559, %v1561
    %v1563 = vsel %vm1555, %v1542, %v1545
    %v1564 = vsel %vm1558, %v1551, 920167782
    %v1565 = vsel %vm1557, %v1548, %v1564
    %v1566 = vsel %vm1556, %v1563, %v1565
    %v1567 = vsel %vm1555, %v1545, %v1548
    %v1568 = vsel %vm1558, %v1554, 1326507024
    %v1569 = vsel %vm1557, %v1551, %v1568
    %v1570 = vsel %vm1556, %v1567, %v1569
    %v1571 = vshll.u32 %v1531, 8
    %v1572 = vmul.u32.u64.compose %v1571, %v1570
    %v1573 = vextract.low.u32 %v1572
    %v1574 = vextract.high.u32 %v1572
    %v1575 = vmul.u32.u64.compose %v1571, %v1566
    %v1576 = vextract.low.u32 %v1575
    %v1577 = vextract.high.u32 %v1575
    %v1578 = vmul.u32 %v1571, %v1562
    %v1579 = vadd.s32 %v1574, %v1576
    %vm1580 = vc.u32 %v1574, %v1576
    %v1581 = vadd.s32 %v1577, 1
    %v1582 = vsel %vm1580, %v1581, %v1577
    %v1583 = vadd.s32 %v1578, %v1582
    %v1584 = vadd.s32 %v1583, 536870912
    %v1585 = vshrl.u32 %v1584, 30
    %v1586 = vshll.u32 %v1585, 30
    %v1587 = vsub.s32 %v1583, %v1586
    %vm1588 = vcmp.lt.s32.totalorder %v1587, 0
    %v1589 = vsub.s32 0, %v1587
    %v1590 = vsel %vm1588, %v1589, %v1587
    %v1591 = vclz %v1590
    %v1592 = vsub.s32 %v1591, 2
    %vm1593 = vcmp.gt.s32.totalorder 0, %v1592
    %v1594 = vsel %vm1593, 0, %v1592
    %v1595 = vsub.s32 32, %v1594
    %v1596 = vshll.u32 %v1587, %v1594
    %v1597 = vshrl.u32 %v1579, %v1595
    %v1598 = vor.u32 %v1596, %v1597
    %v1599 = vsub.s32 4294967266, %v1594
    %v1600 = vadd.s32 %v1599, 127
    %v1601 = vshll.u32 %v1600, 23
    %v1602 = vor.u32 4788187, %v1601
    %v1603 = vand.u32 2147483647, %v1602
    %v1605 = vcvt.s32.f32 %v1598
    %v1606 = vmul.f32 %v1605, %v1603
    %v1607 = vxor.u32 %v1606, 2147483648
    %v1608 = vsel %vm1525, %v1607, %v1606
    %v1609 = vsub.s32 4, %v1585
    %v1610 = vsel %vm1525, %v1609, %v1585
    %v1611 = vsel %vm1524, %v1015, %v1608
    %v1612 = vsel %vm1524, 0, %v1610
    %v1613 = vcosq.f32.pop %v1611
    %v1614 = vsinq.f32.pop %v1611
    %vm1615 = vweird.f32 %v1015
    %v1616 = vadd.s32 %v1612, 3
    %v1617 = vand.u32 %v1616, 3
    %vm1618 = vcmp.lt.s32.totalorder %v1617, 2
    %vm1619 = vcmp.eq.s32.totalorder %v1617, 0
    %v1620 = vxor.u32 %v1614, 2147483648
    %v1621 = vsel %vm1619, %v1613, %v1620
    %vm1622 = vcmp.eq.s32.totalorder %v1617, 2
    %v1623 = vxor.u32 %v1613, 2147483648
    %v1624 = vsel %vm1622, %v1623, %v1614
    %v1625 = vsel %vm1618, %v1621, %v1624
    %v1626 = vsel %vm1615, nan, %v1625
    %v1627 = vand.u32 2147483647, %v1016
    %vm1628 = vcmp.le.f32.partialorder %v1627, 0.7853982
    %vm1629 = vcmp.lt.s32.totalorder %v1016, 0
    %v1630 = vand.u32 %v1016, 2139095040
    %v1631 = vshrl.u32 %v1630, 23
    %v1632 = vsub.s32 %v1631, 127
    %v1633 = vand.u32 2147483647, %v1016
    %v1634 = vand.u32 %v1633, 8388607
    %v1635 = vor.u32 %v1634, 8388608
    %v1636 = vsub.s32 0, %v1635
    %v1637 = vadd.s32 %v1632, 1
    %vm1638 = vcmp.gt.s32.totalorder %v1637, 0
    %v1639 = vsel %vm1638, %v1637, 0
    %v1640 = vshrl.u32 %v1639, 5
    %v1641 = vand.u32 %v1639, 31
    %v1642 = vsub.s32 32, %v1641
    %v1643 = vshrl.u32 683565275, %v1642
    %v1644 = vshll.u32 683565275, %v1641
    %v1645 = vshrl.u32 2475754826, %v1642
    %v1646 = vor.u32 %v1644, %v1645
    %v1647 = vshll.u32 2475754826, %v1641
    %v1648 = vshrl.u32 2131351028, %v1642
    %v1649 = vor.u32 %v1647, %v1648
    %v1650 = vshll.u32 2131351028, %v1641
    %v1651 = vshrl.u32 2102212464, %v1642
    %v1652 = vor.u32 %v1650, %v1651
    %v1653 = vshll.u32 2102212464, %v1641
    %v1654 = vshrl.u32 920167782, %v1642
    %v1655 = vor.u32 %v1653, %v1654
    %v1656 = vshll.u32 920167782, %v1641
    %v1657 = vshrl.u32 1326507024, %v1642
    %v1658 = vor.u32 %v1656, %v1657
    %vm1659 = vcmp.lt.s32.totalorder %v1640, 1
    %vm1660 = vcmp.lt.s32.totalorder %v1640, 2
    %vm1661 = vcmp.lt.s32.totalorder %v1640, 3
    %vm1662 = vcmp.lt.s32.totalorder %v1640, 4
    %v1663 = vsel %vm1659, %v1643, %v1646
    %v1664 = vsel %vm1662, %v1652, 2102212464
    %v1665 = vsel %vm1661, %v1649, %v1664
    %v1666 = vsel %vm1660, %v1663, %v1665
    %v1667 = vsel %vm1659, %v1646, %v1649
    %v1668 = vsel %vm1662, %v1655, 920167782
    %v1669 = vsel %vm1661, %v1652, %v1668
    %v1670 = vsel %vm1660, %v1667, %v1669
    %v1671 = vsel %vm1659, %v1649, %v1652
    %v1672 = vsel %vm1662, %v1658, 1326507024
    %v1673 = vsel %vm1661, %v1655, %v1672
    %v1674 = vsel %vm1660, %v1671, %v1673
    %v1675 = vshll.u32 %v1635, 8
    %v1676 = vmul.u32.u64.compose %v1675, %v1674
    %v1677 = vextract.low.u32 %v1676
    %v1678 = vextract.high.u32 %v1676
    %v1679 = vmul.u32.u64.compose %v1675, %v1670
    %v1680 = vextract.low.u32 %v1679
    %v1681 = vextract.high.u32 %v1679
    %v1682 = vmul.u32 %v1675, %v1666
    %v1683 = vadd.s32 %v1678, %v1680
    %vm1684 = vc.u32 %v1678, %v1680
    %v1685 = vadd.s32 %v1681, 1
    %v1686 = vsel %vm1684, %v1685, %v1681
    %v1687 = vadd.s32 %v1682, %v1686
    %v1688 = vadd.s32 %v1687, 536870912
    %v1689 = vshrl.u32 %v1688, 30
    %v1690 = vshll.u32 %v1689, 30
    %v1691 = vsub.s32 %v1687, %v1690
    %vm1692 = vcmp.lt.s32.totalorder %v1691, 0
    %v1693 = vsub.s32 0, %v1691
    %v1694 = vsel %vm1692, %v1693, %v1691
    %v1695 = vclz %v1694
    %v1696 = vsub.s32 %v1695, 2
    %vm1697 = vcmp.gt.s32.totalorder 0, %v1696
    %v1698 = vsel %vm1697, 0, %v1696
    %v1699 = vsub.s32 32, %v1698
    %v1700 = vshll.u32 %v1691, %v1698
    %v1701 = vshrl.u32 %v1683, %v1699
    %v1702 = vor.u32 %v1700, %v1701
    %v1703 = vsub.s32 4294967266, %v1698
    %v1704 = vadd.s32 %v1703, 127
    %v1705 = vshll.u32 %v1704, 23
    %v1706 = vor.u32 4788187, %v1705
    %v1707 = vand.u32 2147483647, %v1706
    %v1709 = vcvt.s32.f32 %v1702
    %v1710 = vmul.f32 %v1709, %v1707
    %v1711 = vxor.u32 %v1710, 2147483648
    %v1712 = vsel %vm1629, %v1711, %v1710
    %v1713 = vsub.s32 4, %v1689
    %v1714 = vsel %vm1629, %v1713, %v1689
    %v1715 = vsel %vm1628, %v1016, %v1712
    %v1716 = vsel %vm1628, 0, %v1714
    %v1717 = vcosq.f32.pop %v1715
    %v1718 = vsinq.f32.pop %v1715
    %vm1719 = vweird.f32 %v1016
    %v1720 = vadd.s32 %v1716, 3
    %v1721 = vand.u32 %v1720, 3
    %vm1722 = vcmp.lt.s32.totalorder %v1721, 2
    %vm1723 = vcmp.eq.s32.totalorder %v1721, 0
    %v1724 = vxor.u32 %v1718, 2147483648
    %v1725 = vsel %vm1723, %v1717, %v1724
    %vm1726 = vcmp.eq.s32.totalorder %v1721, 2
    %v1727 = vxor.u32 %v1717, 2147483648
    %v1728 = vsel %vm1726, %v1727, %v1718
    %v1729 = vsel %vm1722, %v1725, %v1728
    %v1730 = vsel %vm1719, nan, %v1729
    %v1731 = vand.u32 2147483647, %v1017
    %vm1732 = vcmp.le.f32.partialorder %v1731, 0.7853982
    %vm1733 = vcmp.lt.s32.totalorder %v1017, 0
    %v1734 = vand.u32 %v1017, 2139095040
    %v1735 = vshrl.u32 %v1734, 23
    %v1736 = vsub.s32 %v1735, 127
    %v1737 = vand.u32 2147483647, %v1017
    %v1738 = vand.u32 %v1737, 8388607
    %v1739 = vor.u32 %v1738, 8388608
    %v1740 = vsub.s32 0, %v1739
    %v1741 = vadd.s32 %v1736, 1
    %vm1742 = vcmp.gt.s32.totalorder %v1741, 0
    %v1743 = vsel %vm1742, %v1741, 0
    %v1744 = vshrl.u32 %v1743, 5
    %v1745 = vand.u32 %v1743, 31
    %v1746 = vsub.s32 32, %v1745
    %v1747 = vshrl.u32 683565275, %v1746
    %v1748 = vshll.u32 683565275, %v1745
    %v1749 = vshrl.u32 2475754826, %v1746
    %v1750 = vor.u32 %v1748, %v1749
    %v1751 = vshll.u32 2475754826, %v1745
    %v1752 = vshrl.u32 2131351028, %v1746
    %v1753 = vor.u32 %v1751, %v1752
    %v1754 = vshll.u32 2131351028, %v1745
    %v1755 = vshrl.u32 2102212464, %v1746
    %v1756 = vor.u32 %v1754, %v1755
    %v1757 = vshll.u32 2102212464, %v1745
    %v1758 = vshrl.u32 920167782, %v1746
    %v1759 = vor.u32 %v1757, %v1758
    %v1760 = vshll.u32 920167782, %v1745
    %v1761 = vshrl.u32 1326507024, %v1746
    %v1762 = vor.u32 %v1760, %v1761
    %vm1763 = vcmp.lt.s32.totalorder %v1744, 1
    %vm1764 = vcmp.lt.s32.totalorder %v1744, 2
    %vm1765 = vcmp.lt.s32.totalorder %v1744, 3
    %vm1766 = vcmp.lt.s32.totalorder %v1744, 4
    %v1767 = vsel %vm1763, %v1747, %v1750
    %v1768 = vsel %vm1766, %v1756, 2102212464
    %v1769 = vsel %vm1765, %v1753, %v1768
    %v1770 = vsel %vm1764, %v1767, %v1769
    %v1771 = vsel %vm1763, %v1750, %v1753
    %v1772 = vsel %vm1766, %v1759, 920167782
    %v1773 = vsel %vm1765, %v1756, %v1772
    %v1774 = vsel %vm1764, %v1771, %v1773
    %v1775 = vsel %vm1763, %v1753, %v1756
    %v1776 = vsel %vm1766, %v1762, 1326507024
    %v1777 = vsel %vm1765, %v1759, %v1776
    %v1778 = vsel %vm1764, %v1775, %v1777
    %v1779 = vshll.u32 %v1739, 8
    %v1780 = vmul.u32.u64.compose %v1779, %v1778
    %v1781 = vextract.low.u32 %v1780
    %v1782 = vextract.high.u32 %v1780
    %v1783 = vmul.u32.u64.compose %v1779, %v1774
    %v1784 = vextract.low.u32 %v1783
    %v1785 = vextract.high.u32 %v1783
    %v1786 = vmul.u32 %v1779, %v1770
    %v1787 = vadd.s32 %v1782, %v1784
    %vm1788 = vc.u32 %v1782, %v1784
    %v1789 = vadd.s32 %v1785, 1
    %v1790 = vsel %vm1788, %v1789, %v1785
    %v1791 = vadd.s32 %v1786, %v1790
    %v1792 = vadd.s32 %v1791, 536870912
    %v1793 = vshrl.u32 %v1792, 30
    %v1794 = vshll.u32 %v1793, 30
    %v1795 = vsub.s32 %v1791, %v1794
    %vm1796 = vcmp.lt.s32.totalorder %v1795, 0
    %v1797 = vsub.s32 0, %v1795
    %v1798 = vsel %vm1796, %v1797, %v1795
    %v1799 = vclz %v1798
    %v1800 = vsub.s32 %v1799, 2
    %vm1801 = vcmp.gt.s32.totalorder 0, %v1800
    %v1802 = vsel %vm1801, 0, %v1800
    %v1803 = vsub.s32 32, %v1802
    %v1804 = vshll.u32 %v1795, %v1802
    %v1805 = vshrl.u32 %v1787, %v1803
    %v1806 = vor.u32 %v1804, %v1805
    %v1807 = vsub.s32 4294967266, %v1802
    %v1808 = vadd.s32 %v1807, 127
    %v1809 = vshll.u32 %v1808, 23
    %v1810 = vor.u32 4788187, %v1809
    %v1811 = vand.u32 2147483647, %v1810
    %v1813 = vcvt.s32.f32 %v1806
    %v1814 = vmul.f32 %v1813, %v1811
    %v1815 = vxor.u32 %v1814, 2147483648
    %v1816 = vsel %vm1733, %v1815, %v1814
    %v1817 = vsub.s32 4, %v1793
    %v1818 = vsel %vm1733, %v1817, %v1793
    %v1819 = vsel %vm1732, %v1017, %v1816
    %v1820 = vsel %vm1732, 0, %v1818
    %v1821 = vcosq.f32.pop %v1819
    %v1822 = vsinq.f32.pop %v1819
    %vm1823 = vweird.f32 %v1017
    %v1824 = vadd.s32 %v1820, 3
    %v1825 = vand.u32 %v1824, 3
    %vm1826 = vcmp.lt.s32.totalorder %v1825, 2
    %vm1827 = vcmp.eq.s32.totalorder %v1825, 0
    %v1828 = vxor.u32 %v1822, 2147483648
    %v1829 = vsel %vm1827, %v1821, %v1828
    %vm1830 = vcmp.eq.s32.totalorder %v1825, 2
    %v1831 = vxor.u32 %v1821, 2147483648
    %v1832 = vsel %vm1830, %v1831, %v1822
    %v1833 = vsel %vm1826, %v1829, %v1832
    %v1834 = vsel %vm1823, nan, %v1833
    %v1835 = vand.u32 2147483647, %v1018
    %vm1836 = vcmp.le.f32.partialorder %v1835, 0.7853982
    %vm1837 = vcmp.lt.s32.totalorder %v1018, 0
    %v1838 = vand.u32 %v1018, 2139095040
    %v1839 = vshrl.u32 %v1838, 23
    %v1840 = vsub.s32 %v1839, 127
    %v1841 = vand.u32 2147483647, %v1018
    %v1842 = vand.u32 %v1841, 8388607
    %v1843 = vor.u32 %v1842, 8388608
    %v1844 = vsub.s32 0, %v1843
    %v1845 = vadd.s32 %v1840, 1
    %vm1846 = vcmp.gt.s32.totalorder %v1845, 0
    %v1847 = vsel %vm1846, %v1845, 0
    %v1848 = vshrl.u32 %v1847, 5
    %v1849 = vand.u32 %v1847, 31
    %v1850 = vsub.s32 32, %v1849
    %v1851 = vshrl.u32 683565275, %v1850
    %v1852 = vshll.u32 683565275, %v1849
    %v1853 = vshrl.u32 2475754826, %v1850
    %v1854 = vor.u32 %v1852, %v1853
    %v1855 = vshll.u32 2475754826, %v1849
    %v1856 = vshrl.u32 2131351028, %v1850
    %v1857 = vor.u32 %v1855, %v1856
    %v1858 = vshll.u32 2131351028, %v1849
    %v1859 = vshrl.u32 2102212464, %v1850
    %v1860 = vor.u32 %v1858, %v1859
    %v1861 = vshll.u32 2102212464, %v1849
    %v1862 = vshrl.u32 920167782, %v1850
    %v1863 = vor.u32 %v1861, %v1862
    %v1864 = vshll.u32 920167782, %v1849
    %v1865 = vshrl.u32 1326507024, %v1850
    %v1866 = vor.u32 %v1864, %v1865
    %vm1867 = vcmp.lt.s32.totalorder %v1848, 1
    %vm1868 = vcmp.lt.s32.totalorder %v1848, 2
    %vm1869 = vcmp.lt.s32.totalorder %v1848, 3
    %vm1870 = vcmp.lt.s32.totalorder %v1848, 4
    %v1871 = vsel %vm1867, %v1851, %v1854
    %v1872 = vsel %vm1870, %v1860, 2102212464
    %v1873 = vsel %vm1869, %v1857, %v1872
    %v1874 = vsel %vm1868, %v1871, %v1873
    %v1875 = vsel %vm1867, %v1854, %v1857
    %v1876 = vsel %vm1870, %v1863, 920167782
    %v1877 = vsel %vm1869, %v1860, %v1876
    %v1878 = vsel %vm1868, %v1875, %v1877
    %v1879 = vsel %vm1867, %v1857, %v1860
    %v1880 = vsel %vm1870, %v1866, 1326507024
    %v1881 = vsel %vm1869, %v1863, %v1880
    %v1882 = vsel %vm1868, %v1879, %v1881
    %v1883 = vshll.u32 %v1843, 8
    %v1884 = vmul.u32.u64.compose %v1883, %v1882
    %v1885 = vextract.low.u32 %v1884
    %v1886 = vextract.high.u32 %v1884
    %v1887 = vmul.u32.u64.compose %v1883, %v1878
    %v1888 = vextract.low.u32 %v1887
    %v1889 = vextract.high.u32 %v1887
    %v1890 = vmul.u32 %v1883, %v1874
    %v1891 = vadd.s32 %v1886, %v1888
    %vm1892 = vc.u32 %v1886, %v1888
    %v1893 = vadd.s32 %v1889, 1
    %v1894 = vsel %vm1892, %v1893, %v1889
    %v1895 = vadd.s32 %v1890, %v1894
    %v1896 = vadd.s32 %v1895, 536870912
    %v1897 = vshrl.u32 %v1896, 30
    %v1898 = vshll.u32 %v1897, 30
    %v1899 = vsub.s32 %v1895, %v1898
    %vm1900 = vcmp.lt.s32.totalorder %v1899, 0
    %v1901 = vsub.s32 0, %v1899
    %v1902 = vsel %vm1900, %v1901, %v1899
    %v1903 = vclz %v1902
    %v1904 = vsub.s32 %v1903, 2
    %vm1905 = vcmp.gt.s32.totalorder 0, %v1904
    %v1906 = vsel %vm1905, 0, %v1904
    %v1907 = vsub.s32 32, %v1906
    %v1908 = vshll.u32 %v1899, %v1906
    %v1909 = vshrl.u32 %v1891, %v1907
    %v1910 = vor.u32 %v1908, %v1909
    %v1911 = vsub.s32 4294967266, %v1906
    %v1912 = vadd.s32 %v1911, 127
    %v1913 = vshll.u32 %v1912, 23
    %v1914 = vor.u32 4788187, %v1913
    %v1915 = vand.u32 2147483647, %v1914
    %v1917 = vcvt.s32.f32 %v1910
    %v1918 = vmul.f32 %v1917, %v1915
    %v1919 = vxor.u32 %v1918, 2147483648
    %v1920 = vsel %vm1837, %v1919, %v1918
    %v1921 = vsub.s32 4, %v1897
    %v1922 = vsel %vm1837, %v1921, %v1897
    %v1923 = vsel %vm1836, %v1018, %v1920
    %v1924 = vsel %vm1836, 0, %v1922
    %v1925 = vcosq.f32.pop %v1923
    %v1926 = vsinq.f32.pop %v1923
    %vm1927 = vweird.f32 %v1018
    %v1928 = vadd.s32 %v1924, 3
    %v1929 = vand.u32 %v1928, 3
    %vm1930 = vcmp.lt.s32.totalorder %v1929, 2
    %vm1931 = vcmp.eq.s32.totalorder %v1929, 0
    %v1932 = vxor.u32 %v1926, 2147483648
    %v1933 = vsel %vm1931, %v1925, %v1932
    %vm1934 = vcmp.eq.s32.totalorder %v1929, 2
    %v1935 = vxor.u32 %v1925, 2147483648
    %v1936 = vsel %vm1934, %v1935, %v1926
    %v1937 = vsel %vm1930, %v1933, %v1936
    %v1938 = vsel %vm1927, nan, %v1937
    %v1939 = vand.u32 2147483647, %v1019
    %vm1940 = vcmp.le.f32.partialorder %v1939, 0.7853982
    %vm1941 = vcmp.lt.s32.totalorder %v1019, 0
    %v1942 = vand.u32 %v1019, 2139095040
    %v1943 = vshrl.u32 %v1942, 23
    %v1944 = vsub.s32 %v1943, 127
    %v1945 = vand.u32 2147483647, %v1019
    %v1946 = vand.u32 %v1945, 8388607
    %v1947 = vor.u32 %v1946, 8388608
    %v1948 = vsub.s32 0, %v1947
    %v1949 = vadd.s32 %v1944, 1
    %vm1950 = vcmp.gt.s32.totalorder %v1949, 0
    %v1951 = vsel %vm1950, %v1949, 0
    %v1952 = vshrl.u32 %v1951, 5
    %v1953 = vand.u32 %v1951, 31
    %v1954 = vsub.s32 32, %v1953
    %v1955 = vshrl.u32 683565275, %v1954
    %v1956 = vshll.u32 683565275, %v1953
    %v1957 = vshrl.u32 2475754826, %v1954
    %v1958 = vor.u32 %v1956, %v1957
    %v1959 = vshll.u32 2475754826, %v1953
    %v1960 = vshrl.u32 2131351028, %v1954
    %v1961 = vor.u32 %v1959, %v1960
    %v1962 = vshll.u32 2131351028, %v1953
    %v1963 = vshrl.u32 2102212464, %v1954
    %v1964 = vor.u32 %v1962, %v1963
    %v1965 = vshll.u32 2102212464, %v1953
    %v1966 = vshrl.u32 920167782, %v1954
    %v1967 = vor.u32 %v1965, %v1966
    %v1968 = vshll.u32 920167782, %v1953
    %v1969 = vshrl.u32 1326507024, %v1954
    %v1970 = vor.u32 %v1968, %v1969
    %vm1971 = vcmp.lt.s32.totalorder %v1952, 1
    %vm1972 = vcmp.lt.s32.totalorder %v1952, 2
    %vm1973 = vcmp.lt.s32.totalorder %v1952, 3
    %vm1974 = vcmp.lt.s32.totalorder %v1952, 4
    %v1975 = vsel %vm1971, %v1955, %v1958
    %v1976 = vsel %vm1974, %v1964, 2102212464
    %v1977 = vsel %vm1973, %v1961, %v1976
    %v1978 = vsel %vm1972, %v1975, %v1977
    %v1979 = vsel %vm1971, %v1958, %v1961
    %v1980 = vsel %vm1974, %v1967, 920167782
    %v1981 = vsel %vm1973, %v1964, %v1980
    %v1982 = vsel %vm1972, %v1979, %v1981
    %v1983 = vsel %vm1971, %v1961, %v1964
    %v1984 = vsel %vm1974, %v1970, 1326507024
    %v1985 = vsel %vm1973, %v1967, %v1984
    %v1986 = vsel %vm1972, %v1983, %v1985
    %v1987 = vshll.u32 %v1947, 8
    %v1988 = vmul.u32.u64.compose %v1987, %v1986
    %v1989 = vextract.low.u32 %v1988
    %v1990 = vextract.high.u32 %v1988
    %v1991 = vmul.u32.u64.compose %v1987, %v1982
    %v1992 = vextract.low.u32 %v1991
    %v1993 = vextract.high.u32 %v1991
    %v1994 = vmul.u32 %v1987, %v1978
    %v1995 = vadd.s32 %v1990, %v1992
    %vm1996 = vc.u32 %v1990, %v1992
    %v1997 = vadd.s32 %v1993, 1
    %v1998 = vsel %vm1996, %v1997, %v1993
    %v1999 = vadd.s32 %v1994, %v1998
    %v2000 = vadd.s32 %v1999, 536870912
    %v2001 = vshrl.u32 %v2000, 30
    %v2002 = vshll.u32 %v2001, 30
    %v2003 = vsub.s32 %v1999, %v2002
    %vm2004 = vcmp.lt.s32.totalorder %v2003, 0
    %v2005 = vsub.s32 0, %v2003
    %v2006 = vsel %vm2004, %v2005, %v2003
    %v2007 = vclz %v2006
    %v2008 = vsub.s32 %v2007, 2
    %vm2009 = vcmp.gt.s32.totalorder 0, %v2008
    %v2010 = vsel %vm2009, 0, %v2008
    %v2011 = vsub.s32 32, %v2010
    %v2012 = vshll.u32 %v2003, %v2010
    %v2013 = vshrl.u32 %v1995, %v2011
    %v2014 = vor.u32 %v2012, %v2013
    %v2015 = vsub.s32 4294967266, %v2010
    %v2016 = vadd.s32 %v2015, 127
    %v2017 = vshll.u32 %v2016, 23
    %v2018 = vor.u32 4788187, %v2017
    %v2019 = vand.u32 2147483647, %v2018
    %v2021 = vcvt.s32.f32 %v2014
    %v2022 = vmul.f32 %v2021, %v2019
    %v2023 = vxor.u32 %v2022, 2147483648
    %v2024 = vsel %vm1941, %v2023, %v2022
    %v2025 = vsub.s32 4, %v2001
    %v2026 = vsel %vm1941, %v2025, %v2001
    %v2027 = vsel %vm1940, %v1019, %v2024
    %v2028 = vsel %vm1940, 0, %v2026
    %v2029 = vcosq.f32.pop %v2027
    %v2030 = vsinq.f32.pop %v2027
    %vm2031 = vweird.f32 %v1019
    %v2032 = vadd.s32 %v2028, 3
    %v2033 = vand.u32 %v2032, 3
    %vm2034 = vcmp.lt.s32.totalorder %v2033, 2
    %vm2035 = vcmp.eq.s32.totalorder %v2033, 0
    %v2036 = vxor.u32 %v2030, 2147483648
    %v2037 = vsel %vm2035, %v2029, %v2036
    %vm2038 = vcmp.eq.s32.totalorder %v2033, 2
    %v2039 = vxor.u32 %v2029, 2147483648
    %v2040 = vsel %vm2038, %v2039, %v2030
    %v2041 = vsel %vm2034, %v2037, %v2040
    %v2042 = vsel %vm2031, nan, %v2041
    %v2043 = vand.u32 2147483647, %v1020
    %vm2044 = vcmp.le.f32.partialorder %v2043, 0.7853982
    %vm2045 = vcmp.lt.s32.totalorder %v1020, 0
    %v2046 = vand.u32 %v1020, 2139095040
    %v2047 = vshrl.u32 %v2046, 23
    %v2048 = vsub.s32 %v2047, 127
    %v2049 = vand.u32 2147483647, %v1020
    %v2050 = vand.u32 %v2049, 8388607
    %v2051 = vor.u32 %v2050, 8388608
    %v2052 = vsub.s32 0, %v2051
    %v2053 = vadd.s32 %v2048, 1
    %vm2054 = vcmp.gt.s32.totalorder %v2053, 0
    %v2055 = vsel %vm2054, %v2053, 0
    %v2056 = vshrl.u32 %v2055, 5
    %v2057 = vand.u32 %v2055, 31
    %v2058 = vsub.s32 32, %v2057
    %v2059 = vshrl.u32 683565275, %v2058
    %v2060 = vshll.u32 683565275, %v2057
    %v2061 = vshrl.u32 2475754826, %v2058
    %v2062 = vor.u32 %v2060, %v2061
    %v2063 = vshll.u32 2475754826, %v2057
    %v2064 = vshrl.u32 2131351028, %v2058
    %v2065 = vor.u32 %v2063, %v2064
    %v2066 = vshll.u32 2131351028, %v2057
    %v2067 = vshrl.u32 2102212464, %v2058
    %v2068 = vor.u32 %v2066, %v2067
    %v2069 = vshll.u32 2102212464, %v2057
    %v2070 = vshrl.u32 920167782, %v2058
    %v2071 = vor.u32 %v2069, %v2070
    %v2072 = vshll.u32 920167782, %v2057
    %v2073 = vshrl.u32 1326507024, %v2058
    %v2074 = vor.u32 %v2072, %v2073
    %vm2075 = vcmp.lt.s32.totalorder %v2056, 1
    %vm2076 = vcmp.lt.s32.totalorder %v2056, 2
    %vm2077 = vcmp.lt.s32.totalorder %v2056, 3
    %vm2078 = vcmp.lt.s32.totalorder %v2056, 4
    %v2079 = vsel %vm2075, %v2059, %v2062
    %v2080 = vsel %vm2078, %v2068, 2102212464
    %v2081 = vsel %vm2077, %v2065, %v2080
    %v2082 = vsel %vm2076, %v2079, %v2081
    %v2083 = vsel %vm2075, %v2062, %v2065
    %v2084 = vsel %vm2078, %v2071, 920167782
    %v2085 = vsel %vm2077, %v2068, %v2084
    %v2086 = vsel %vm2076, %v2083, %v2085
    %v2087 = vsel %vm2075, %v2065, %v2068
    %v2088 = vsel %vm2078, %v2074, 1326507024
    %v2089 = vsel %vm2077, %v2071, %v2088
    %v2090 = vsel %vm2076, %v2087, %v2089
    %v2091 = vshll.u32 %v2051, 8
    %v2092 = vmul.u32.u64.compose %v2091, %v2090
    %v2093 = vextract.low.u32 %v2092
    %v2094 = vextract.high.u32 %v2092
    %v2095 = vmul.u32.u64.compose %v2091, %v2086
    %v2096 = vextract.low.u32 %v2095
    %v2097 = vextract.high.u32 %v2095
    %v2098 = vmul.u32 %v2091, %v2082
    %v2099 = vadd.s32 %v2094, %v2096
    %vm2100 = vc.u32 %v2094, %v2096
    %v2101 = vadd.s32 %v2097, 1
    %v2102 = vsel %vm2100, %v2101, %v2097
    %v2103 = vadd.s32 %v2098, %v2102
    %v2104 = vadd.s32 %v2103, 536870912
    %v2105 = vshrl.u32 %v2104, 30
    %v2106 = vshll.u32 %v2105, 30
    %v2107 = vsub.s32 %v2103, %v2106
    %vm2108 = vcmp.lt.s32.totalorder %v2107, 0
    %v2109 = vsub.s32 0, %v2107
    %v2110 = vsel %vm2108, %v2109, %v2107
    %v2111 = vclz %v2110
    %v2112 = vsub.s32 %v2111, 2
    %vm2113 = vcmp.gt.s32.totalorder 0, %v2112
    %v2114 = vsel %vm2113, 0, %v2112
    %v2115 = vsub.s32 32, %v2114
    %v2116 = vshll.u32 %v2107, %v2114
    %v2117 = vshrl.u32 %v2099, %v2115
    %v2118 = vor.u32 %v2116, %v2117
    %v2119 = vsub.s32 4294967266, %v2114
    %v2120 = vadd.s32 %v2119, 127
    %v2121 = vshll.u32 %v2120, 23
    %v2122 = vor.u32 4788187, %v2121
    %v2123 = vand.u32 2147483647, %v2122
    %v2125 = vcvt.s32.f32 %v2118
    %v2126 = vmul.f32 %v2125, %v2123
    %v2127 = vxor.u32 %v2126, 2147483648
    %v2128 = vsel %vm2045, %v2127, %v2126
    %v2129 = vsub.s32 4, %v2105
    %v2130 = vsel %vm2045, %v2129, %v2105
    %v2131 = vsel %vm2044, %v1020, %v2128
    %v2132 = vsel %vm2044, 0, %v2130
    %v2133 = vcosq.f32.pop %v2131
    %v2134 = vsinq.f32.pop %v2131
    %vm2135 = vweird.f32 %v1020
    %v2136 = vadd.s32 %v2132, 3
    %v2137 = vand.u32 %v2136, 3
    %vm2138 = vcmp.lt.s32.totalorder %v2137, 2
    %vm2139 = vcmp.eq.s32.totalorder %v2137, 0
    %v2140 = vxor.u32 %v2134, 2147483648
    %v2141 = vsel %vm2139, %v2133, %v2140
    %vm2142 = vcmp.eq.s32.totalorder %v2137, 2
    %v2143 = vxor.u32 %v2133, 2147483648
    %v2144 = vsel %vm2142, %v2143, %v2134
    %v2145 = vsel %vm2138, %v2141, %v2144
    %v2146 = vsel %vm2135, nan, %v2145
    %v2147 = vand.u32 2147483647, %v1021
    %vm2148 = vcmp.le.f32.partialorder %v2147, 0.7853982
    %vm2149 = vcmp.lt.s32.totalorder %v1021, 0
    %v2150 = vand.u32 %v1021, 2139095040
    %v2151 = vshrl.u32 %v2150, 23
    %v2152 = vsub.s32 %v2151, 127
    %v2153 = vand.u32 2147483647, %v1021
    %v2154 = vand.u32 %v2153, 8388607
    %v2155 = vor.u32 %v2154, 8388608
    %v2156 = vsub.s32 0, %v2155
    %v2157 = vadd.s32 %v2152, 1
    %vm2158 = vcmp.gt.s32.totalorder %v2157, 0
    %v2159 = vsel %vm2158, %v2157, 0
    %v2160 = vshrl.u32 %v2159, 5
    %v2161 = vand.u32 %v2159, 31
    %v2162 = vsub.s32 32, %v2161
    %v2163 = vshrl.u32 683565275, %v2162
    %v2164 = vshll.u32 683565275, %v2161
    %v2165 = vshrl.u32 2475754826, %v2162
    %v2166 = vor.u32 %v2164, %v2165
    %v2167 = vshll.u32 2475754826, %v2161
    %v2168 = vshrl.u32 2131351028, %v2162
    %v2169 = vor.u32 %v2167, %v2168
    %v2170 = vshll.u32 2131351028, %v2161
    %v2171 = vshrl.u32 2102212464, %v2162
    %v2172 = vor.u32 %v2170, %v2171
    %v2173 = vshll.u32 2102212464, %v2161
    %v2174 = vshrl.u32 920167782, %v2162
    %v2175 = vor.u32 %v2173, %v2174
    %v2176 = vshll.u32 920167782, %v2161
    %v2177 = vshrl.u32 1326507024, %v2162
    %v2178 = vor.u32 %v2176, %v2177
    %vm2179 = vcmp.lt.s32.totalorder %v2160, 1
    %vm2180 = vcmp.lt.s32.totalorder %v2160, 2
    %vm2181 = vcmp.lt.s32.totalorder %v2160, 3
    %vm2182 = vcmp.lt.s32.totalorder %v2160, 4
    %v2183 = vsel %vm2179, %v2163, %v2166
    %v2184 = vsel %vm2182, %v2172, 2102212464
    %v2185 = vsel %vm2181, %v2169, %v2184
    %v2186 = vsel %vm2180, %v2183, %v2185
    %v2187 = vsel %vm2179, %v2166, %v2169
    %v2188 = vsel %vm2182, %v2175, 920167782
    %v2189 = vsel %vm2181, %v2172, %v2188
    %v2190 = vsel %vm2180, %v2187, %v2189
    %v2191 = vsel %vm2179, %v2169, %v2172
    %v2192 = vsel %vm2182, %v2178, 1326507024
    %v2193 = vsel %vm2181, %v2175, %v2192
    %v2194 = vsel %vm2180, %v2191, %v2193
    %v2195 = vshll.u32 %v2155, 8
    %v2196 = vmul.u32.u64.compose %v2195, %v2194
    %v2197 = vextract.low.u32 %v2196
    %v2198 = vextract.high.u32 %v2196
    %v2199 = vmul.u32.u64.compose %v2195, %v2190
    %v2200 = vextract.low.u32 %v2199
    %v2201 = vextract.high.u32 %v2199
    %v2202 = vmul.u32 %v2195, %v2186
    %v2203 = vadd.s32 %v2198, %v2200
    %vm2204 = vc.u32 %v2198, %v2200
    %v2205 = vadd.s32 %v2201, 1
    %v2206 = vsel %vm2204, %v2205, %v2201
    %v2207 = vadd.s32 %v2202, %v2206
    %v2208 = vadd.s32 %v2207, 536870912
    %v2209 = vshrl.u32 %v2208, 30
    %v2210 = vshll.u32 %v2209, 30
    %v2211 = vsub.s32 %v2207, %v2210
    %vm2212 = vcmp.lt.s32.totalorder %v2211, 0
    %v2213 = vsub.s32 0, %v2211
    %v2214 = vsel %vm2212, %v2213, %v2211
    %v2215 = vclz %v2214
    %v2216 = vsub.s32 %v2215, 2
    %vm2217 = vcmp.gt.s32.totalorder 0, %v2216
    %v2218 = vsel %vm2217, 0, %v2216
    %v2219 = vsub.s32 32, %v2218
    %v2220 = vshll.u32 %v2211, %v2218
    %v2221 = vshrl.u32 %v2203, %v2219
    %v2222 = vor.u32 %v2220, %v2221
    %v2223 = vsub.s32 4294967266, %v2218
    %v2224 = vadd.s32 %v2223, 127
    %v2225 = vshll.u32 %v2224, 23
    %v2226 = vor.u32 4788187, %v2225
    %v2227 = vand.u32 2147483647, %v2226
    %v2229 = vcvt.s32.f32 %v2222
    %v2230 = vmul.f32 %v2229, %v2227
    %v2231 = vxor.u32 %v2230, 2147483648
    %v2232 = vsel %vm2149, %v2231, %v2230
    %v2233 = vsub.s32 4, %v2209
    %v2234 = vsel %vm2149, %v2233, %v2209
    %v2235 = vsel %vm2148, %v1021, %v2232
    %v2236 = vsel %vm2148, 0, %v2234
    %v2237 = vcosq.f32.pop %v2235
    %v2238 = vsinq.f32.pop %v2235
    %vm2239 = vweird.f32 %v1021
    %v2240 = vadd.s32 %v2236, 3
    %v2241 = vand.u32 %v2240, 3
    %vm2242 = vcmp.lt.s32.totalorder %v2241, 2
    %vm2243 = vcmp.eq.s32.totalorder %v2241, 0
    %v2244 = vxor.u32 %v2238, 2147483648
    %v2245 = vsel %vm2243, %v2237, %v2244
    %vm2246 = vcmp.eq.s32.totalorder %v2241, 2
    %v2247 = vxor.u32 %v2237, 2147483648
    %v2248 = vsel %vm2246, %v2247, %v2238
    %v2249 = vsel %vm2242, %v2245, %v2248
    %v2250 = vsel %vm2239, nan, %v2249
    %v2251 = vand.u32 2147483647, %v1022
    %vm2252 = vcmp.le.f32.partialorder %v2251, 0.7853982
    %vm2253 = vcmp.lt.s32.totalorder %v1022, 0
    %v2254 = vand.u32 %v1022, 2139095040
    %v2255 = vshrl.u32 %v2254, 23
    %v2256 = vsub.s32 %v2255, 127
    %v2257 = vand.u32 2147483647, %v1022
    %v2258 = vand.u32 %v2257, 8388607
    %v2259 = vor.u32 %v2258, 8388608
    %v2260 = vsub.s32 0, %v2259
    %v2261 = vadd.s32 %v2256, 1
    %vm2262 = vcmp.gt.s32.totalorder %v2261, 0
    %v2263 = vsel %vm2262, %v2261, 0
    %v2264 = vshrl.u32 %v2263, 5
    %v2265 = vand.u32 %v2263, 31
    %v2266 = vsub.s32 32, %v2265
    %v2267 = vshrl.u32 683565275, %v2266
    %v2268 = vshll.u32 683565275, %v2265
    %v2269 = vshrl.u32 2475754826, %v2266
    %v2270 = vor.u32 %v2268, %v2269
    %v2271 = vshll.u32 2475754826, %v2265
    %v2272 = vshrl.u32 2131351028, %v2266
    %v2273 = vor.u32 %v2271, %v2272
    %v2274 = vshll.u32 2131351028, %v2265
    %v2275 = vshrl.u32 2102212464, %v2266
    %v2276 = vor.u32 %v2274, %v2275
    %v2277 = vshll.u32 2102212464, %v2265
    %v2278 = vshrl.u32 920167782, %v2266
    %v2279 = vor.u32 %v2277, %v2278
    %v2280 = vshll.u32 920167782, %v2265
    %v2281 = vshrl.u32 1326507024, %v2266
    %v2282 = vor.u32 %v2280, %v2281
    %vm2283 = vcmp.lt.s32.totalorder %v2264, 1
    %vm2284 = vcmp.lt.s32.totalorder %v2264, 2
    %vm2285 = vcmp.lt.s32.totalorder %v2264, 3
    %vm2286 = vcmp.lt.s32.totalorder %v2264, 4
    %v2287 = vsel %vm2283, %v2267, %v2270
    %v2288 = vsel %vm2286, %v2276, 2102212464
    %v2289 = vsel %vm2285, %v2273, %v2288
    %v2290 = vsel %vm2284, %v2287, %v2289
    %v2291 = vsel %vm2283, %v2270, %v2273
    %v2292 = vsel %vm2286, %v2279, 920167782
    %v2293 = vsel %vm2285, %v2276, %v2292
    %v2294 = vsel %vm2284, %v2291, %v2293
    %v2295 = vsel %vm2283, %v2273, %v2276
    %v2296 = vsel %vm2286, %v2282, 1326507024
    %v2297 = vsel %vm2285, %v2279, %v2296
    %v2298 = vsel %vm2284, %v2295, %v2297
    %v2299 = vshll.u32 %v2259, 8
    %v2300 = vmul.u32.u64.compose %v2299, %v2298
    %v2301 = vextract.low.u32 %v2300
    %v2302 = vextract.high.u32 %v2300
    %v2303 = vmul.u32.u64.compose %v2299, %v2294
    %v2304 = vextract.low.u32 %v2303
    %v2305 = vextract.high.u32 %v2303
    %v2306 = vmul.u32 %v2299, %v2290
    %v2307 = vadd.s32 %v2302, %v2304
    %vm2308 = vc.u32 %v2302, %v2304
    %v2309 = vadd.s32 %v2305, 1
    %v2310 = vsel %vm2308, %v2309, %v2305
    %v2311 = vadd.s32 %v2306, %v2310
    %v2312 = vadd.s32 %v2311, 536870912
    %v2313 = vshrl.u32 %v2312, 30
    %v2314 = vshll.u32 %v2313, 30
    %v2315 = vsub.s32 %v2311, %v2314
    %vm2316 = vcmp.lt.s32.totalorder %v2315, 0
    %v2317 = vsub.s32 0, %v2315
    %v2318 = vsel %vm2316, %v2317, %v2315
    %v2319 = vclz %v2318
    %v2320 = vsub.s32 %v2319, 2
    %vm2321 = vcmp.gt.s32.totalorder 0, %v2320
    %v2322 = vsel %vm2321, 0, %v2320
    %v2323 = vsub.s32 32, %v2322
    %v2324 = vshll.u32 %v2315, %v2322
    %v2325 = vshrl.u32 %v2307, %v2323
    %v2326 = vor.u32 %v2324, %v2325
    %v2327 = vsub.s32 4294967266, %v2322
    %v2328 = vadd.s32 %v2327, 127
    %v2329 = vshll.u32 %v2328, 23
    %v2330 = vor.u32 4788187, %v2329
    %v2331 = vand.u32 2147483647, %v2330
    %v2333 = vcvt.s32.f32 %v2326
    %v2334 = vmul.f32 %v2333, %v2331
    %v2335 = vxor.u32 %v2334, 2147483648
    %v2336 = vsel %vm2253, %v2335, %v2334
    %v2337 = vsub.s32 4, %v2313
    %v2338 = vsel %vm2253, %v2337, %v2313
    %v2339 = vsel %vm2252, %v1022, %v2336
    %v2340 = vsel %vm2252, 0, %v2338
    %v2341 = vcosq.f32.pop %v2339
    %v2342 = vsinq.f32.pop %v2339
    %vm2343 = vweird.f32 %v1022
    %v2344 = vadd.s32 %v2340, 3
    %v2345 = vand.u32 %v2344, 3
    %vm2346 = vcmp.lt.s32.totalorder %v2345, 2
    %vm2347 = vcmp.eq.s32.totalorder %v2345, 0
    %v2348 = vxor.u32 %v2342, 2147483648
    %v2349 = vsel %vm2347, %v2341, %v2348
    %vm2350 = vcmp.eq.s32.totalorder %v2345, 2
    %v2351 = vxor.u32 %v2341, 2147483648
    %v2352 = vsel %vm2350, %v2351, %v2342
    %v2353 = vsel %vm2346, %v2349, %v2352
    %v2354 = vsel %vm2343, nan, %v2353
    %v2355 = vand.u32 2147483647, %v1023
    %vm2356 = vcmp.le.f32.partialorder %v2355, 0.7853982
    %vm2357 = vcmp.lt.s32.totalorder %v1023, 0
    %v2358 = vand.u32 %v1023, 2139095040
    %v2359 = vshrl.u32 %v2358, 23
    %v2360 = vsub.s32 %v2359, 127
    %v2361 = vand.u32 2147483647, %v1023
    %v2362 = vand.u32 %v2361, 8388607
    %v2363 = vor.u32 %v2362, 8388608
    %v2364 = vsub.s32 0, %v2363
    %v2365 = vadd.s32 %v2360, 1
    %vm2366 = vcmp.gt.s32.totalorder %v2365, 0
    %v2367 = vsel %vm2366, %v2365, 0
    %v2368 = vshrl.u32 %v2367, 5
    %v2369 = vand.u32 %v2367, 31
    %v2370 = vsub.s32 32, %v2369
    %v2371 = vshrl.u32 683565275, %v2370
    %v2372 = vshll.u32 683565275, %v2369
    %v2373 = vshrl.u32 2475754826, %v2370
    %v2374 = vor.u32 %v2372, %v2373
    %v2375 = vshll.u32 2475754826, %v2369
    %v2376 = vshrl.u32 2131351028, %v2370
    %v2377 = vor.u32 %v2375, %v2376
    %v2378 = vshll.u32 2131351028, %v2369
    %v2379 = vshrl.u32 2102212464, %v2370
    %v2380 = vor.u32 %v2378, %v2379
    %v2381 = vshll.u32 2102212464, %v2369
    %v2382 = vshrl.u32 920167782, %v2370
    %v2383 = vor.u32 %v2381, %v2382
    %v2384 = vshll.u32 920167782, %v2369
    %v2385 = vshrl.u32 1326507024, %v2370
    %v2386 = vor.u32 %v2384, %v2385
    %vm2387 = vcmp.lt.s32.totalorder %v2368, 1
    %vm2388 = vcmp.lt.s32.totalorder %v2368, 2
    %vm2389 = vcmp.lt.s32.totalorder %v2368, 3
    %vm2390 = vcmp.lt.s32.totalorder %v2368, 4
    %v2391 = vsel %vm2387, %v2371, %v2374
    %v2392 = vsel %vm2390, %v2380, 2102212464
    %v2393 = vsel %vm2389, %v2377, %v2392
    %v2394 = vsel %vm2388, %v2391, %v2393
    %v2395 = vsel %vm2387, %v2374, %v2377
    %v2396 = vsel %vm2390, %v2383, 920167782
    %v2397 = vsel %vm2389, %v2380, %v2396
    %v2398 = vsel %vm2388, %v2395, %v2397
    %v2399 = vsel %vm2387, %v2377, %v2380
    %v2400 = vsel %vm2390, %v2386, 1326507024
    %v2401 = vsel %vm2389, %v2383, %v2400
    %v2402 = vsel %vm2388, %v2399, %v2401
    %v2403 = vshll.u32 %v2363, 8
    %v2404 = vmul.u32.u64.compose %v2403, %v2402
    %v2405 = vextract.low.u32 %v2404
    %v2406 = vextract.high.u32 %v2404
    %v2407 = vmul.u32.u64.compose %v2403, %v2398
    %v2408 = vextract.low.u32 %v2407
    %v2409 = vextract.high.u32 %v2407
    %v2410 = vmul.u32 %v2403, %v2394
    %v2411 = vadd.s32 %v2406, %v2408
    %vm2412 = vc.u32 %v2406, %v2408
    %v2413 = vadd.s32 %v2409, 1
    %v2414 = vsel %vm2412, %v2413, %v2409
    %v2415 = vadd.s32 %v2410, %v2414
    %v2416 = vadd.s32 %v2415, 536870912
    %v2417 = vshrl.u32 %v2416, 30
    %v2418 = vshll.u32 %v2417, 30
    %v2419 = vsub.s32 %v2415, %v2418
    %vm2420 = vcmp.lt.s32.totalorder %v2419, 0
    %v2421 = vsub.s32 0, %v2419
    %v2422 = vsel %vm2420, %v2421, %v2419
    %v2423 = vclz %v2422
    %v2424 = vsub.s32 %v2423, 2
    %vm2425 = vcmp.gt.s32.totalorder 0, %v2424
    %v2426 = vsel %vm2425, 0, %v2424
    %v2427 = vsub.s32 32, %v2426
    %v2428 = vshll.u32 %v2419, %v2426
    %v2429 = vshrl.u32 %v2411, %v2427
    %v2430 = vor.u32 %v2428, %v2429
    %v2431 = vsub.s32 4294967266, %v2426
    %v2432 = vadd.s32 %v2431, 127
    %v2433 = vshll.u32 %v2432, 23
    %v2434 = vor.u32 4788187, %v2433
    %v2435 = vand.u32 2147483647, %v2434
    %v2437 = vcvt.s32.f32 %v2430
    %v2438 = vmul.f32 %v2437, %v2435
    %v2439 = vxor.u32 %v2438, 2147483648
    %v2440 = vsel %vm2357, %v2439, %v2438
    %v2441 = vsub.s32 4, %v2417
    %v2442 = vsel %vm2357, %v2441, %v2417
    %v2443 = vsel %vm2356, %v1023, %v2440
    %v2444 = vsel %vm2356, 0, %v2442
    %v2445 = vcosq.f32.pop %v2443
    %v2446 = vsinq.f32.pop %v2443
    %vm2447 = vweird.f32 %v1023
    %v2448 = vadd.s32 %v2444, 3
    %v2449 = vand.u32 %v2448, 3
    %vm2450 = vcmp.lt.s32.totalorder %v2449, 2
    %vm2451 = vcmp.eq.s32.totalorder %v2449, 0
    %v2452 = vxor.u32 %v2446, 2147483648
    %v2453 = vsel %vm2451, %v2445, %v2452
    %vm2454 = vcmp.eq.s32.totalorder %v2449, 2
    %v2455 = vxor.u32 %v2445, 2147483648
    %v2456 = vsel %vm2454, %v2455, %v2446
    %v2457 = vsel %vm2450, %v2453, %v2456
    %v2458 = vsel %vm2447, nan, %v2457
    %v2459 = vand.u32 2147483647, %v1024
    %vm2460 = vcmp.le.f32.partialorder %v2459, 0.7853982
    %vm2461 = vcmp.lt.s32.totalorder %v1024, 0
    %v2462 = vand.u32 %v1024, 2139095040
    %v2463 = vshrl.u32 %v2462, 23
    %v2464 = vsub.s32 %v2463, 127
    %v2465 = vand.u32 2147483647, %v1024
    %v2466 = vand.u32 %v2465, 8388607
    %v2467 = vor.u32 %v2466, 8388608
    %v2468 = vsub.s32 0, %v2467
    %v2469 = vadd.s32 %v2464, 1
    %vm2470 = vcmp.gt.s32.totalorder %v2469, 0
    %v2471 = vsel %vm2470, %v2469, 0
    %v2472 = vshrl.u32 %v2471, 5
    %v2473 = vand.u32 %v2471, 31
    %v2474 = vsub.s32 32, %v2473
    %v2475 = vshrl.u32 683565275, %v2474
    %v2476 = vshll.u32 683565275, %v2473
    %v2477 = vshrl.u32 2475754826, %v2474
    %v2478 = vor.u32 %v2476, %v2477
    %v2479 = vshll.u32 2475754826, %v2473
    %v2480 = vshrl.u32 2131351028, %v2474
    %v2481 = vor.u32 %v2479, %v2480
    %v2482 = vshll.u32 2131351028, %v2473
    %v2483 = vshrl.u32 2102212464, %v2474
    %v2484 = vor.u32 %v2482, %v2483
    %v2485 = vshll.u32 2102212464, %v2473
    %v2486 = vshrl.u32 920167782, %v2474
    %v2487 = vor.u32 %v2485, %v2486
    %v2488 = vshll.u32 920167782, %v2473
    %v2489 = vshrl.u32 1326507024, %v2474
    %v2490 = vor.u32 %v2488, %v2489
    %vm2491 = vcmp.lt.s32.totalorder %v2472, 1
    %vm2492 = vcmp.lt.s32.totalorder %v2472, 2
    %vm2493 = vcmp.lt.s32.totalorder %v2472, 3
    %vm2494 = vcmp.lt.s32.totalorder %v2472, 4
    %v2495 = vsel %vm2491, %v2475, %v2478
    %v2496 = vsel %vm2494, %v2484, 2102212464
    %v2497 = vsel %vm2493, %v2481, %v2496
    %v2498 = vsel %vm2492, %v2495, %v2497
    %v2499 = vsel %vm2491, %v2478, %v2481
    %v2500 = vsel %vm2494, %v2487, 920167782
    %v2501 = vsel %vm2493, %v2484, %v2500
    %v2502 = vsel %vm2492, %v2499, %v2501
    %v2503 = vsel %vm2491, %v2481, %v2484
    %v2504 = vsel %vm2494, %v2490, 1326507024
    %v2505 = vsel %vm2493, %v2487, %v2504
    %v2506 = vsel %vm2492, %v2503, %v2505
    %v2507 = vshll.u32 %v2467, 8
    %v2508 = vmul.u32.u64.compose %v2507, %v2506
    %v2509 = vextract.low.u32 %v2508
    %v2510 = vextract.high.u32 %v2508
    %v2511 = vmul.u32.u64.compose %v2507, %v2502
    %v2512 = vextract.low.u32 %v2511
    %v2513 = vextract.high.u32 %v2511
    %v2514 = vmul.u32 %v2507, %v2498
    %v2515 = vadd.s32 %v2510, %v2512
    %vm2516 = vc.u32 %v2510, %v2512
    %v2517 = vadd.s32 %v2513, 1
    %v2518 = vsel %vm2516, %v2517, %v2513
    %v2519 = vadd.s32 %v2514, %v2518
    %v2520 = vadd.s32 %v2519, 536870912
    %v2521 = vshrl.u32 %v2520, 30
    %v2522 = vshll.u32 %v2521, 30
    %v2523 = vsub.s32 %v2519, %v2522
    %vm2524 = vcmp.lt.s32.totalorder %v2523, 0
    %v2525 = vsub.s32 0, %v2523
    %v2526 = vsel %vm2524, %v2525, %v2523
    %v2527 = vclz %v2526
    %v2528 = vsub.s32 %v2527, 2
    %vm2529 = vcmp.gt.s32.totalorder 0, %v2528
    %v2530 = vsel %vm2529, 0, %v2528
    %v2531 = vsub.s32 32, %v2530
    %v2532 = vshll.u32 %v2523, %v2530
    %v2533 = vshrl.u32 %v2515, %v2531
    %v2534 = vor.u32 %v2532, %v2533
    %v2535 = vsub.s32 4294967266, %v2530
    %v2536 = vadd.s32 %v2535, 127
    %v2537 = vshll.u32 %v2536, 23
    %v2538 = vor.u32 4788187, %v2537
    %v2539 = vand.u32 2147483647, %v2538
    %v2541 = vcvt.s32.f32 %v2534
    %v2542 = vmul.f32 %v2541, %v2539
    %v2543 = vxor.u32 %v2542, 2147483648
    %v2544 = vsel %vm2461, %v2543, %v2542
    %v2545 = vsub.s32 4, %v2521
    %v2546 = vsel %vm2461, %v2545, %v2521
    %v2547 = vsel %vm2460, %v1024, %v2544
    %v2548 = vsel %vm2460, 0, %v2546
    %v2549 = vcosq.f32.pop %v2547
    %v2550 = vsinq.f32.pop %v2547
    %vm2551 = vweird.f32 %v1024
    %v2552 = vadd.s32 %v2548, 3
    %v2553 = vand.u32 %v2552, 3
    %vm2554 = vcmp.lt.s32.totalorder %v2553, 2
    %vm2555 = vcmp.eq.s32.totalorder %v2553, 0
    %v2556 = vxor.u32 %v2550, 2147483648
    %v2557 = vsel %vm2555, %v2549, %v2556
    %vm2558 = vcmp.eq.s32.totalorder %v2553, 2
    %v2559 = vxor.u32 %v2549, 2147483648
    %v2560 = vsel %vm2558, %v2559, %v2550
    %v2561 = vsel %vm2554, %v2557, %v2560
    %v2562 = vsel %vm2551, nan, %v2561
    %v2563 = vand.u32 2147483647, %v1025
    %vm2564 = vcmp.le.f32.partialorder %v2563, 0.7853982
    %vm2565 = vcmp.lt.s32.totalorder %v1025, 0
    %v2566 = vand.u32 %v1025, 2139095040
    %v2567 = vshrl.u32 %v2566, 23
    %v2568 = vsub.s32 %v2567, 127
    %v2569 = vand.u32 2147483647, %v1025
    %v2570 = vand.u32 %v2569, 8388607
    %v2571 = vor.u32 %v2570, 8388608
    %v2572 = vsub.s32 0, %v2571
    %v2573 = vadd.s32 %v2568, 1
    %vm2574 = vcmp.gt.s32.totalorder %v2573, 0
    %v2575 = vsel %vm2574, %v2573, 0
    %v2576 = vshrl.u32 %v2575, 5
    %v2577 = vand.u32 %v2575, 31
    %v2578 = vsub.s32 32, %v2577
    %v2579 = vshrl.u32 683565275, %v2578
    %v2580 = vshll.u32 683565275, %v2577
    %v2581 = vshrl.u32 2475754826, %v2578
    %v2582 = vor.u32 %v2580, %v2581
    %v2583 = vshll.u32 2475754826, %v2577
    %v2584 = vshrl.u32 2131351028, %v2578
    %v2585 = vor.u32 %v2583, %v2584
    %v2586 = vshll.u32 2131351028, %v2577
    %v2587 = vshrl.u32 2102212464, %v2578
    %v2588 = vor.u32 %v2586, %v2587
    %v2589 = vshll.u32 2102212464, %v2577
    %v2590 = vshrl.u32 920167782, %v2578
    %v2591 = vor.u32 %v2589, %v2590
    %v2592 = vshll.u32 920167782, %v2577
    %v2593 = vshrl.u32 1326507024, %v2578
    %v2594 = vor.u32 %v2592, %v2593
    %vm2595 = vcmp.lt.s32.totalorder %v2576, 1
    %vm2596 = vcmp.lt.s32.totalorder %v2576, 2
    %vm2597 = vcmp.lt.s32.totalorder %v2576, 3
    %vm2598 = vcmp.lt.s32.totalorder %v2576, 4
    %v2599 = vsel %vm2595, %v2579, %v2582
    %v2600 = vsel %vm2598, %v2588, 2102212464
    %v2601 = vsel %vm2597, %v2585, %v2600
    %v2602 = vsel %vm2596, %v2599, %v2601
    %v2603 = vsel %vm2595, %v2582, %v2585
    %v2604 = vsel %vm2598, %v2591, 920167782
    %v2605 = vsel %vm2597, %v2588, %v2604
    %v2606 = vsel %vm2596, %v2603, %v2605
    %v2607 = vsel %vm2595, %v2585, %v2588
    %v2608 = vsel %vm2598, %v2594, 1326507024
    %v2609 = vsel %vm2597, %v2591, %v2608
    %v2610 = vsel %vm2596, %v2607, %v2609
    %v2611 = vshll.u32 %v2571, 8
    %v2612 = vmul.u32.u64.compose %v2611, %v2610
    %v2613 = vextract.low.u32 %v2612
    %v2614 = vextract.high.u32 %v2612
    %v2615 = vmul.u32.u64.compose %v2611, %v2606
    %v2616 = vextract.low.u32 %v2615
    %v2617 = vextract.high.u32 %v2615
    %v2618 = vmul.u32 %v2611, %v2602
    %v2619 = vadd.s32 %v2614, %v2616
    %vm2620 = vc.u32 %v2614, %v2616
    %v2621 = vadd.s32 %v2617, 1
    %v2622 = vsel %vm2620, %v2621, %v2617
    %v2623 = vadd.s32 %v2618, %v2622
    %v2624 = vadd.s32 %v2623, 536870912
    %v2625 = vshrl.u32 %v2624, 30
    %v2626 = vshll.u32 %v2625, 30
    %v2627 = vsub.s32 %v2623, %v2626
    %vm2628 = vcmp.lt.s32.totalorder %v2627, 0
    %v2629 = vsub.s32 0, %v2627
    %v2630 = vsel %vm2628, %v2629, %v2627
    %v2631 = vclz %v2630
    %v2632 = vsub.s32 %v2631, 2
    %vm2633 = vcmp.gt.s32.totalorder 0, %v2632
    %v2634 = vsel %vm2633, 0, %v2632
    %v2635 = vsub.s32 32, %v2634
    %v2636 = vshll.u32 %v2627, %v2634
    %v2637 = vshrl.u32 %v2619, %v2635
    %v2638 = vor.u32 %v2636, %v2637
    %v2639 = vsub.s32 4294967266, %v2634
    %v2640 = vadd.s32 %v2639, 127
    %v2641 = vshll.u32 %v2640, 23
    %v2642 = vor.u32 4788187, %v2641
    %v2643 = vand.u32 2147483647, %v2642
    %v2645 = vcvt.s32.f32 %v2638
    %v2646 = vmul.f32 %v2645, %v2643
    %v2647 = vxor.u32 %v2646, 2147483648
    %v2648 = vsel %vm2565, %v2647, %v2646
    %v2649 = vsub.s32 4, %v2625
    %v2650 = vsel %vm2565, %v2649, %v2625
    %v2651 = vsel %vm2564, %v1025, %v2648
    %v2652 = vsel %vm2564, 0, %v2650
    %v2653 = vcosq.f32.pop %v2651
    %v2654 = vsinq.f32.pop %v2651
    %vm2655 = vweird.f32 %v1025
    %v2656 = vadd.s32 %v2652, 3
    %v2657 = vand.u32 %v2656, 3
    %vm2658 = vcmp.lt.s32.totalorder %v2657, 2
    %vm2659 = vcmp.eq.s32.totalorder %v2657, 0
    %v2660 = vxor.u32 %v2654, 2147483648
    %v2661 = vsel %vm2659, %v2653, %v2660
    %vm2662 = vcmp.eq.s32.totalorder %v2657, 2
    %v2663 = vxor.u32 %v2653, 2147483648
    %v2664 = vsel %vm2662, %v2663, %v2654
    %v2665 = vsel %vm2658, %v2661, %v2664
    %v2666 = vsel %vm2655, nan, %v2665
    %v2667 = vand.u32 2147483647, %v1026
    %vm2668 = vcmp.le.f32.partialorder %v2667, 0.7853982
    %vm2669 = vcmp.lt.s32.totalorder %v1026, 0
    %v2670 = vand.u32 %v1026, 2139095040
    %v2671 = vshrl.u32 %v2670, 23
    %v2672 = vsub.s32 %v2671, 127
    %v2673 = vand.u32 2147483647, %v1026
    %v2674 = vand.u32 %v2673, 8388607
    %v2675 = vor.u32 %v2674, 8388608
    %v2676 = vsub.s32 0, %v2675
    %v2677 = vadd.s32 %v2672, 1
    %vm2678 = vcmp.gt.s32.totalorder %v2677, 0
    %v2679 = vsel %vm2678, %v2677, 0
    %v2680 = vshrl.u32 %v2679, 5
    %v2681 = vand.u32 %v2679, 31
    %v2682 = vsub.s32 32, %v2681
    %v2683 = vshrl.u32 683565275, %v2682
    %v2684 = vshll.u32 683565275, %v2681
    %v2685 = vshrl.u32 2475754826, %v2682
    %v2686 = vor.u32 %v2684, %v2685
    %v2687 = vshll.u32 2475754826, %v2681
    %v2688 = vshrl.u32 2131351028, %v2682
    %v2689 = vor.u32 %v2687, %v2688
    %v2690 = vshll.u32 2131351028, %v2681
    %v2691 = vshrl.u32 2102212464, %v2682
    %v2692 = vor.u32 %v2690, %v2691
    %v2693 = vshll.u32 2102212464, %v2681
    %v2694 = vshrl.u32 920167782, %v2682
    %v2695 = vor.u32 %v2693, %v2694
    %v2696 = vshll.u32 920167782, %v2681
    %v2697 = vshrl.u32 1326507024, %v2682
    %v2698 = vor.u32 %v2696, %v2697
    %vm2699 = vcmp.lt.s32.totalorder %v2680, 1
    %vm2700 = vcmp.lt.s32.totalorder %v2680, 2
    %vm2701 = vcmp.lt.s32.totalorder %v2680, 3
    %vm2702 = vcmp.lt.s32.totalorder %v2680, 4
    %v2703 = vsel %vm2699, %v2683, %v2686
    %v2704 = vsel %vm2702, %v2692, 2102212464
    %v2705 = vsel %vm2701, %v2689, %v2704
    %v2706 = vsel %vm2700, %v2703, %v2705
    %v2707 = vsel %vm2699, %v2686, %v2689
    %v2708 = vsel %vm2702, %v2695, 920167782
    %v2709 = vsel %vm2701, %v2692, %v2708
    %v2710 = vsel %vm2700, %v2707, %v2709
    %v2711 = vsel %vm2699, %v2689, %v2692
    %v2712 = vsel %vm2702, %v2698, 1326507024
    %v2713 = vsel %vm2701, %v2695, %v2712
    %v2714 = vsel %vm2700, %v2711, %v2713
    %v2715 = vshll.u32 %v2675, 8
    %v2716 = vmul.u32.u64.compose %v2715, %v2714
    %v2717 = vextract.low.u32 %v2716
    %v2718 = vextract.high.u32 %v2716
    %v2719 = vmul.u32.u64.compose %v2715, %v2710
    %v2720 = vextract.low.u32 %v2719
    %v2721 = vextract.high.u32 %v2719
    %v2722 = vmul.u32 %v2715, %v2706
    %v2723 = vadd.s32 %v2718, %v2720
    %vm2724 = vc.u32 %v2718, %v2720
    %v2725 = vadd.s32 %v2721, 1
    %v2726 = vsel %vm2724, %v2725, %v2721
    %v2727 = vadd.s32 %v2722, %v2726
    %v2728 = vadd.s32 %v2727, 536870912
    %v2729 = vshrl.u32 %v2728, 30
    %v2730 = vshll.u32 %v2729, 30
    %v2731 = vsub.s32 %v2727, %v2730
    %vm2732 = vcmp.lt.s32.totalorder %v2731, 0
    %v2733 = vsub.s32 0, %v2731
    %v2734 = vsel %vm2732, %v2733, %v2731
    %v2735 = vclz %v2734
    %v2736 = vsub.s32 %v2735, 2
    %vm2737 = vcmp.gt.s32.totalorder 0, %v2736
    %v2738 = vsel %vm2737, 0, %v2736
    %v2739 = vsub.s32 32, %v2738
    %v2740 = vshll.u32 %v2731, %v2738
    %v2741 = vshrl.u32 %v2723, %v2739
    %v2742 = vor.u32 %v2740, %v2741
    %v2743 = vsub.s32 4294967266, %v2738
    %v2744 = vadd.s32 %v2743, 127
    %v2745 = vshll.u32 %v2744, 23
    %v2746 = vor.u32 4788187, %v2745
    %v2747 = vand.u32 2147483647, %v2746
    %v2749 = vcvt.s32.f32 %v2742
    %v2750 = vmul.f32 %v2749, %v2747
    %v2751 = vxor.u32 %v2750, 2147483648
    %v2752 = vsel %vm2669, %v2751, %v2750
    %v2753 = vsub.s32 4, %v2729
    %v2754 = vsel %vm2669, %v2753, %v2729
    %v2755 = vsel %vm2668, %v1026, %v2752
    %v2756 = vsel %vm2668, 0, %v2754
    %v2757 = vcosq.f32.pop %v2755
    %v2758 = vsinq.f32.pop %v2755
    %vm2759 = vweird.f32 %v1026
    %v2760 = vadd.s32 %v2756, 3
    %v2761 = vand.u32 %v2760, 3
    %vm2762 = vcmp.lt.s32.totalorder %v2761, 2
    %vm2763 = vcmp.eq.s32.totalorder %v2761, 0
    %v2764 = vxor.u32 %v2758, 2147483648
    %v2765 = vsel %vm2763, %v2757, %v2764
    %vm2766 = vcmp.eq.s32.totalorder %v2761, 2
    %v2767 = vxor.u32 %v2757, 2147483648
    %v2768 = vsel %vm2766, %v2767, %v2758
    %v2769 = vsel %vm2762, %v2765, %v2768
    %v2770 = vsel %vm2759, nan, %v2769
    %v2771 = vand.u32 2147483647, %v1027
    %vm2772 = vcmp.le.f32.partialorder %v2771, 0.7853982
    %vm2773 = vcmp.lt.s32.totalorder %v1027, 0
    %v2774 = vand.u32 %v1027, 2139095040
    %v2775 = vshrl.u32 %v2774, 23
    %v2776 = vsub.s32 %v2775, 127
    %v2777 = vand.u32 2147483647, %v1027
    %v2778 = vand.u32 %v2777, 8388607
    %v2779 = vor.u32 %v2778, 8388608
    %v2780 = vsub.s32 0, %v2779
    %v2781 = vadd.s32 %v2776, 1
    %vm2782 = vcmp.gt.s32.totalorder %v2781, 0
    %v2783 = vsel %vm2782, %v2781, 0
    %v2784 = vshrl.u32 %v2783, 5
    %v2785 = vand.u32 %v2783, 31
    %v2786 = vsub.s32 32, %v2785
    %v2787 = vshrl.u32 683565275, %v2786
    %v2788 = vshll.u32 683565275, %v2785
    %v2789 = vshrl.u32 2475754826, %v2786
    %v2790 = vor.u32 %v2788, %v2789
    %v2791 = vshll.u32 2475754826, %v2785
    %v2792 = vshrl.u32 2131351028, %v2786
    %v2793 = vor.u32 %v2791, %v2792
    %v2794 = vshll.u32 2131351028, %v2785
    %v2795 = vshrl.u32 2102212464, %v2786
    %v2796 = vor.u32 %v2794, %v2795
    %v2797 = vshll.u32 2102212464, %v2785
    %v2798 = vshrl.u32 920167782, %v2786
    %v2799 = vor.u32 %v2797, %v2798
    %v2800 = vshll.u32 920167782, %v2785
    %v2801 = vshrl.u32 1326507024, %v2786
    %v2802 = vor.u32 %v2800, %v2801
    %vm2803 = vcmp.lt.s32.totalorder %v2784, 1
    %vm2804 = vcmp.lt.s32.totalorder %v2784, 2
    %vm2805 = vcmp.lt.s32.totalorder %v2784, 3
    %vm2806 = vcmp.lt.s32.totalorder %v2784, 4
    %v2807 = vsel %vm2803, %v2787, %v2790
    %v2808 = vsel %vm2806, %v2796, 2102212464
    %v2809 = vsel %vm2805, %v2793, %v2808
    %v2810 = vsel %vm2804, %v2807, %v2809
    %v2811 = vsel %vm2803, %v2790, %v2793
    %v2812 = vsel %vm2806, %v2799, 920167782
    %v2813 = vsel %vm2805, %v2796, %v2812
    %v2814 = vsel %vm2804, %v2811, %v2813
    %v2815 = vsel %vm2803, %v2793, %v2796
    %v2816 = vsel %vm2806, %v2802, 1326507024
    %v2817 = vsel %vm2805, %v2799, %v2816
    %v2818 = vsel %vm2804, %v2815, %v2817
    %v2819 = vshll.u32 %v2779, 8
    %v2820 = vmul.u32.u64.compose %v2819, %v2818
    %v2821 = vextract.low.u32 %v2820
    %v2822 = vextract.high.u32 %v2820
    %v2823 = vmul.u32.u64.compose %v2819, %v2814
    %v2824 = vextract.low.u32 %v2823
    %v2825 = vextract.high.u32 %v2823
    %v2826 = vmul.u32 %v2819, %v2810
    %v2827 = vadd.s32 %v2822, %v2824
    %vm2828 = vc.u32 %v2822, %v2824
    %v2829 = vadd.s32 %v2825, 1
    %v2830 = vsel %vm2828, %v2829, %v2825
    %v2831 = vadd.s32 %v2826, %v2830
    %v2832 = vadd.s32 %v2831, 536870912
    %v2833 = vshrl.u32 %v2832, 30
    %v2834 = vshll.u32 %v2833, 30
    %v2835 = vsub.s32 %v2831, %v2834
    %vm2836 = vcmp.lt.s32.totalorder %v2835, 0
    %v2837 = vsub.s32 0, %v2835
    %v2838 = vsel %vm2836, %v2837, %v2835
    %v2839 = vclz %v2838
    %v2840 = vsub.s32 %v2839, 2
    %vm2841 = vcmp.gt.s32.totalorder 0, %v2840
    %v2842 = vsel %vm2841, 0, %v2840
    %v2843 = vsub.s32 32, %v2842
    %v2844 = vshll.u32 %v2835, %v2842
    %v2845 = vshrl.u32 %v2827, %v2843
    %v2846 = vor.u32 %v2844, %v2845
    %v2847 = vsub.s32 4294967266, %v2842
    %v2848 = vadd.s32 %v2847, 127
    %v2849 = vshll.u32 %v2848, 23
    %v2850 = vor.u32 4788187, %v2849
    %v2851 = vand.u32 2147483647, %v2850
    %v2853 = vcvt.s32.f32 %v2846
    %v2854 = vmul.f32 %v2853, %v2851
    %v2855 = vxor.u32 %v2854, 2147483648
    %v2856 = vsel %vm2773, %v2855, %v2854
    %v2857 = vsub.s32 4, %v2833
    %v2858 = vsel %vm2773, %v2857, %v2833
    %v2859 = vsel %vm2772, %v1027, %v2856
    %v2860 = vsel %vm2772, 0, %v2858
    %v2861 = vcosq.f32.pop %v2859
    %v2862 = vsinq.f32.pop %v2859
    %vm2863 = vweird.f32 %v1027
    %v2864 = vadd.s32 %v2860, 3
    %v2865 = vand.u32 %v2864, 3
    %vm2866 = vcmp.lt.s32.totalorder %v2865, 2
    %vm2867 = vcmp.eq.s32.totalorder %v2865, 0
    %v2868 = vxor.u32 %v2862, 2147483648
    %v2869 = vsel %vm2867, %v2861, %v2868
    %vm2870 = vcmp.eq.s32.totalorder %v2865, 2
    %v2871 = vxor.u32 %v2861, 2147483648
    %v2872 = vsel %vm2870, %v2871, %v2862
    %v2873 = vsel %vm2866, %v2869, %v2872
    %v2874 = vsel %vm2863, nan, %v2873
    %v2875 = vand.u32 2147483647, %v1028
    %vm2876 = vcmp.le.f32.partialorder %v2875, 0.7853982
    %vm2877 = vcmp.lt.s32.totalorder %v1028, 0
    %v2878 = vand.u32 %v1028, 2139095040
    %v2879 = vshrl.u32 %v2878, 23
    %v2880 = vsub.s32 %v2879, 127
    %v2881 = vand.u32 2147483647, %v1028
    %v2882 = vand.u32 %v2881, 8388607
    %v2883 = vor.u32 %v2882, 8388608
    %v2884 = vsub.s32 0, %v2883
    %v2885 = vadd.s32 %v2880, 1
    %vm2886 = vcmp.gt.s32.totalorder %v2885, 0
    %v2887 = vsel %vm2886, %v2885, 0
    %v2888 = vshrl.u32 %v2887, 5
    %v2889 = vand.u32 %v2887, 31
    %v2890 = vsub.s32 32, %v2889
    %v2891 = vshrl.u32 683565275, %v2890
    %v2892 = vshll.u32 683565275, %v2889
    %v2893 = vshrl.u32 2475754826, %v2890
    %v2894 = vor.u32 %v2892, %v2893
    %v2895 = vshll.u32 2475754826, %v2889
    %v2896 = vshrl.u32 2131351028, %v2890
    %v2897 = vor.u32 %v2895, %v2896
    %v2898 = vshll.u32 2131351028, %v2889
    %v2899 = vshrl.u32 2102212464, %v2890
    %v2900 = vor.u32 %v2898, %v2899
    %v2901 = vshll.u32 2102212464, %v2889
    %v2902 = vshrl.u32 920167782, %v2890
    %v2903 = vor.u32 %v2901, %v2902
    %v2904 = vshll.u32 920167782, %v2889
    %v2905 = vshrl.u32 1326507024, %v2890
    %v2906 = vor.u32 %v2904, %v2905
    %vm2907 = vcmp.lt.s32.totalorder %v2888, 1
    %vm2908 = vcmp.lt.s32.totalorder %v2888, 2
    %vm2909 = vcmp.lt.s32.totalorder %v2888, 3
    %vm2910 = vcmp.lt.s32.totalorder %v2888, 4
    %v2911 = vsel %vm2907, %v2891, %v2894
    %v2912 = vsel %vm2910, %v2900, 2102212464
    %v2913 = vsel %vm2909, %v2897, %v2912
    %v2914 = vsel %vm2908, %v2911, %v2913
    %v2915 = vsel %vm2907, %v2894, %v2897
    %v2916 = vsel %vm2910, %v2903, 920167782
    %v2917 = vsel %vm2909, %v2900, %v2916
    %v2918 = vsel %vm2908, %v2915, %v2917
    %v2919 = vsel %vm2907, %v2897, %v2900
    %v2920 = vsel %vm2910, %v2906, 1326507024
    %v2921 = vsel %vm2909, %v2903, %v2920
    %v2922 = vsel %vm2908, %v2919, %v2921
    %v2923 = vshll.u32 %v2883, 8
    %v2924 = vmul.u32.u64.compose %v2923, %v2922
    %v2925 = vextract.low.u32 %v2924
    %v2926 = vextract.high.u32 %v2924
    %v2927 = vmul.u32.u64.compose %v2923, %v2918
    %v2928 = vextract.low.u32 %v2927
    %v2929 = vextract.high.u32 %v2927
    %v2930 = vmul.u32 %v2923, %v2914
    %v2931 = vadd.s32 %v2926, %v2928
    %vm2932 = vc.u32 %v2926, %v2928
    %v2933 = vadd.s32 %v2929, 1
    %v2934 = vsel %vm2932, %v2933, %v2929
    %v2935 = vadd.s32 %v2930, %v2934
    %v2936 = vadd.s32 %v2935, 536870912
    %v2937 = vshrl.u32 %v2936, 30
    %v2938 = vshll.u32 %v2937, 30
    %v2939 = vsub.s32 %v2935, %v2938
    %vm2940 = vcmp.lt.s32.totalorder %v2939, 0
    %v2941 = vsub.s32 0, %v2939
    %v2942 = vsel %vm2940, %v2941, %v2939
    %v2943 = vclz %v2942
    %v2944 = vsub.s32 %v2943, 2
    %vm2945 = vcmp.gt.s32.totalorder 0, %v2944
    %v2946 = vsel %vm2945, 0, %v2944
    %v2947 = vsub.s32 32, %v2946
    %v2948 = vshll.u32 %v2939, %v2946
    %v2949 = vshrl.u32 %v2931, %v2947
    %v2950 = vor.u32 %v2948, %v2949
    %v2951 = vsub.s32 4294967266, %v2946
    %v2952 = vadd.s32 %v2951, 127
    %v2953 = vshll.u32 %v2952, 23
    %v2954 = vor.u32 4788187, %v2953
    %v2955 = vand.u32 2147483647, %v2954
    %v2957 = vcvt.s32.f32 %v2950
    %v2958 = vmul.f32 %v2957, %v2955
    %v2959 = vxor.u32 %v2958, 2147483648
    %v2960 = vsel %vm2877, %v2959, %v2958
    %v2961 = vsub.s32 4, %v2937
    %v2962 = vsel %vm2877, %v2961, %v2937
    %v2963 = vsel %vm2876, %v1028, %v2960
    %v2964 = vsel %vm2876, 0, %v2962
    %v2965 = vcosq.f32.pop %v2963
    %v2966 = vsinq.f32.pop %v2963
    %vm2967 = vweird.f32 %v1028
    %v2968 = vadd.s32 %v2964, 3
    %v2969 = vand.u32 %v2968, 3
    %vm2970 = vcmp.lt.s32.totalorder %v2969, 2
    %vm2971 = vcmp.eq.s32.totalorder %v2969, 0
    %v2972 = vxor.u32 %v2966, 2147483648
    %v2973 = vsel %vm2971, %v2965, %v2972
    %vm2974 = vcmp.eq.s32.totalorder %v2969, 2
    %v2975 = vxor.u32 %v2965, 2147483648
    %v2976 = vsel %vm2974, %v2975, %v2966
    %v2977 = vsel %vm2970, %v2973, %v2976
    %v2978 = vsel %vm2967, nan, %v2977
    %v2979 = vand.u32 2147483647, %v1029
    %vm2980 = vcmp.le.f32.partialorder %v2979, 0.7853982
    %vm2981 = vcmp.lt.s32.totalorder %v1029, 0
    %v2982 = vand.u32 %v1029, 2139095040
    %v2983 = vshrl.u32 %v2982, 23
    %v2984 = vsub.s32 %v2983, 127
    %v2985 = vand.u32 2147483647, %v1029
    %v2986 = vand.u32 %v2985, 8388607
    %v2987 = vor.u32 %v2986, 8388608
    %v2988 = vsub.s32 0, %v2987
    %v2989 = vadd.s32 %v2984, 1
    %vm2990 = vcmp.gt.s32.totalorder %v2989, 0
    %v2991 = vsel %vm2990, %v2989, 0
    %v2992 = vshrl.u32 %v2991, 5
    %v2993 = vand.u32 %v2991, 31
    %v2994 = vsub.s32 32, %v2993
    %v2995 = vshrl.u32 683565275, %v2994
    %v2996 = vshll.u32 683565275, %v2993
    %v2997 = vshrl.u32 2475754826, %v2994
    %v2998 = vor.u32 %v2996, %v2997
    %v2999 = vshll.u32 2475754826, %v2993
    %v3000 = vshrl.u32 2131351028, %v2994
    %v3001 = vor.u32 %v2999, %v3000
    %v3002 = vshll.u32 2131351028, %v2993
    %v3003 = vshrl.u32 2102212464, %v2994
    %v3004 = vor.u32 %v3002, %v3003
    %v3005 = vshll.u32 2102212464, %v2993
    %v3006 = vshrl.u32 920167782, %v2994
    %v3007 = vor.u32 %v3005, %v3006
    %v3008 = vshll.u32 920167782, %v2993
    %v3009 = vshrl.u32 1326507024, %v2994
    %v3010 = vor.u32 %v3008, %v3009
    %vm3011 = vcmp.lt.s32.totalorder %v2992, 1
    %vm3012 = vcmp.lt.s32.totalorder %v2992, 2
    %vm3013 = vcmp.lt.s32.totalorder %v2992, 3
    %vm3014 = vcmp.lt.s32.totalorder %v2992, 4
    %v3015 = vsel %vm3011, %v2995, %v2998
    %v3016 = vsel %vm3014, %v3004, 2102212464
    %v3017 = vsel %vm3013, %v3001, %v3016
    %v3018 = vsel %vm3012, %v3015, %v3017
    %v3019 = vsel %vm3011, %v2998, %v3001
    %v3020 = vsel %vm3014, %v3007, 920167782
    %v3021 = vsel %vm3013, %v3004, %v3020
    %v3022 = vsel %vm3012, %v3019, %v3021
    %v3023 = vsel %vm3011, %v3001, %v3004
    %v3024 = vsel %vm3014, %v3010, 1326507024
    %v3025 = vsel %vm3013, %v3007, %v3024
    %v3026 = vsel %vm3012, %v3023, %v3025
    %v3027 = vshll.u32 %v2987, 8
    %v3028 = vmul.u32.u64.compose %v3027, %v3026
    %v3029 = vextract.low.u32 %v3028
    %v3030 = vextract.high.u32 %v3028
    %v3031 = vmul.u32.u64.compose %v3027, %v3022
    %v3032 = vextract.low.u32 %v3031
    %v3033 = vextract.high.u32 %v3031
    %v3034 = vmul.u32 %v3027, %v3018
    %v3035 = vadd.s32 %v3030, %v3032
    %vm3036 = vc.u32 %v3030, %v3032
    %v3037 = vadd.s32 %v3033, 1
    %v3038 = vsel %vm3036, %v3037, %v3033
    %v3039 = vadd.s32 %v3034, %v3038
    %v3040 = vadd.s32 %v3039, 536870912
    %v3041 = vshrl.u32 %v3040, 30
    %v3042 = vshll.u32 %v3041, 30
    %v3043 = vsub.s32 %v3039, %v3042
    %vm3044 = vcmp.lt.s32.totalorder %v3043, 0
    %v3045 = vsub.s32 0, %v3043
    %v3046 = vsel %vm3044, %v3045, %v3043
    %v3047 = vclz %v3046
    %v3048 = vsub.s32 %v3047, 2
    %vm3049 = vcmp.gt.s32.totalorder 0, %v3048
    %v3050 = vsel %vm3049, 0, %v3048
    %v3051 = vsub.s32 32, %v3050
    %v3052 = vshll.u32 %v3043, %v3050
    %v3053 = vshrl.u32 %v3035, %v3051
    %v3054 = vor.u32 %v3052, %v3053
    %v3055 = vsub.s32 4294967266, %v3050
    %v3056 = vadd.s32 %v3055, 127
    %v3057 = vshll.u32 %v3056, 23
    %v3058 = vor.u32 4788187, %v3057
    %v3059 = vand.u32 2147483647, %v3058
    %v3061 = vcvt.s32.f32 %v3054
    %v3062 = vmul.f32 %v3061, %v3059
    %v3063 = vxor.u32 %v3062, 2147483648
    %v3064 = vsel %vm2981, %v3063, %v3062
    %v3065 = vsub.s32 4, %v3041
    %v3066 = vsel %vm2981, %v3065, %v3041
    %v3067 = vsel %vm2980, %v1029, %v3064
    %v3068 = vsel %vm2980, 0, %v3066
    %v3069 = vcosq.f32.pop %v3067
    %v3070 = vsinq.f32.pop %v3067
    %vm3071 = vweird.f32 %v1029
    %v3072 = vadd.s32 %v3068, 3
    %v3073 = vand.u32 %v3072, 3
    %vm3074 = vcmp.lt.s32.totalorder %v3073, 2
    %vm3075 = vcmp.eq.s32.totalorder %v3073, 0
    %v3076 = vxor.u32 %v3070, 2147483648
    %v3077 = vsel %vm3075, %v3069, %v3076
    %vm3078 = vcmp.eq.s32.totalorder %v3073, 2
    %v3079 = vxor.u32 %v3069, 2147483648
    %v3080 = vsel %vm3078, %v3079, %v3070
    %v3081 = vsel %vm3074, %v3077, %v3080
    %v3082 = vsel %vm3071, nan, %v3081
    %v3083 = vand.u32 2147483647, %v1030
    %vm3084 = vcmp.le.f32.partialorder %v3083, 0.7853982
    %vm3085 = vcmp.lt.s32.totalorder %v1030, 0
    %v3086 = vand.u32 %v1030, 2139095040
    %v3087 = vshrl.u32 %v3086, 23
    %v3088 = vsub.s32 %v3087, 127
    %v3089 = vand.u32 2147483647, %v1030
    %v3090 = vand.u32 %v3089, 8388607
    %v3091 = vor.u32 %v3090, 8388608
    %v3092 = vsub.s32 0, %v3091
    %v3093 = vadd.s32 %v3088, 1
    %vm3094 = vcmp.gt.s32.totalorder %v3093, 0
    %v3095 = vsel %vm3094, %v3093, 0
    %v3096 = vshrl.u32 %v3095, 5
    %v3097 = vand.u32 %v3095, 31
    %v3098 = vsub.s32 32, %v3097
    %v3099 = vshrl.u32 683565275, %v3098
    %v3100 = vshll.u32 683565275, %v3097
    %v3101 = vshrl.u32 2475754826, %v3098
    %v3102 = vor.u32 %v3100, %v3101
    %v3103 = vshll.u32 2475754826, %v3097
    %v3104 = vshrl.u32 2131351028, %v3098
    %v3105 = vor.u32 %v3103, %v3104
    %v3106 = vshll.u32 2131351028, %v3097
    %v3107 = vshrl.u32 2102212464, %v3098
    %v3108 = vor.u32 %v3106, %v3107
    %v3109 = vshll.u32 2102212464, %v3097
    %v3110 = vshrl.u32 920167782, %v3098
    %v3111 = vor.u32 %v3109, %v3110
    %v3112 = vshll.u32 920167782, %v3097
    %v3113 = vshrl.u32 1326507024, %v3098
    %v3114 = vor.u32 %v3112, %v3113
    %vm3115 = vcmp.lt.s32.totalorder %v3096, 1
    %vm3116 = vcmp.lt.s32.totalorder %v3096, 2
    %vm3117 = vcmp.lt.s32.totalorder %v3096, 3
    %vm3118 = vcmp.lt.s32.totalorder %v3096, 4
    %v3119 = vsel %vm3115, %v3099, %v3102
    %v3120 = vsel %vm3118, %v3108, 2102212464
    %v3121 = vsel %vm3117, %v3105, %v3120
    %v3122 = vsel %vm3116, %v3119, %v3121
    %v3123 = vsel %vm3115, %v3102, %v3105
    %v3124 = vsel %vm3118, %v3111, 920167782
    %v3125 = vsel %vm3117, %v3108, %v3124
    %v3126 = vsel %vm3116, %v3123, %v3125
    %v3127 = vsel %vm3115, %v3105, %v3108
    %v3128 = vsel %vm3118, %v3114, 1326507024
    %v3129 = vsel %vm3117, %v3111, %v3128
    %v3130 = vsel %vm3116, %v3127, %v3129
    %v3131 = vshll.u32 %v3091, 8
    %v3132 = vmul.u32.u64.compose %v3131, %v3130
    %v3133 = vextract.low.u32 %v3132
    %v3134 = vextract.high.u32 %v3132
    %v3135 = vmul.u32.u64.compose %v3131, %v3126
    %v3136 = vextract.low.u32 %v3135
    %v3137 = vextract.high.u32 %v3135
    %v3138 = vmul.u32 %v3131, %v3122
    %v3139 = vadd.s32 %v3134, %v3136
    %vm3140 = vc.u32 %v3134, %v3136
    %v3141 = vadd.s32 %v3137, 1
    %v3142 = vsel %vm3140, %v3141, %v3137
    %v3143 = vadd.s32 %v3138, %v3142
    %v3144 = vadd.s32 %v3143, 536870912
    %v3145 = vshrl.u32 %v3144, 30
    %v3146 = vshll.u32 %v3145, 30
    %v3147 = vsub.s32 %v3143, %v3146
    %vm3148 = vcmp.lt.s32.totalorder %v3147, 0
    %v3149 = vsub.s32 0, %v3147
    %v3150 = vsel %vm3148, %v3149, %v3147
    %v3151 = vclz %v3150
    %v3152 = vsub.s32 %v3151, 2
    %vm3153 = vcmp.gt.s32.totalorder 0, %v3152
    %v3154 = vsel %vm3153, 0, %v3152
    %v3155 = vsub.s32 32, %v3154
    %v3156 = vshll.u32 %v3147, %v3154
    %v3157 = vshrl.u32 %v3139, %v3155
    %v3158 = vor.u32 %v3156, %v3157
    %v3159 = vsub.s32 4294967266, %v3154
    %v3160 = vadd.s32 %v3159, 127
    %v3161 = vshll.u32 %v3160, 23
    %v3162 = vor.u32 4788187, %v3161
    %v3163 = vand.u32 2147483647, %v3162
    %v3165 = vcvt.s32.f32 %v3158
    %v3166 = vmul.f32 %v3165, %v3163
    %v3167 = vxor.u32 %v3166, 2147483648
    %v3168 = vsel %vm3085, %v3167, %v3166
    %v3169 = vsub.s32 4, %v3145
    %v3170 = vsel %vm3085, %v3169, %v3145
    %v3171 = vsel %vm3084, %v1030, %v3168
    %v3172 = vsel %vm3084, 0, %v3170
    %v3173 = vcosq.f32.pop %v3171
    %v3174 = vsinq.f32.pop %v3171
    %vm3175 = vweird.f32 %v1030
    %v3176 = vadd.s32 %v3172, 3
    %v3177 = vand.u32 %v3176, 3
    %vm3178 = vcmp.lt.s32.totalorder %v3177, 2
    %vm3179 = vcmp.eq.s32.totalorder %v3177, 0
    %v3180 = vxor.u32 %v3174, 2147483648
    %v3181 = vsel %vm3179, %v3173, %v3180
    %vm3182 = vcmp.eq.s32.totalorder %v3177, 2
    %v3183 = vxor.u32 %v3173, 2147483648
    %v3184 = vsel %vm3182, %v3183, %v3174
    %v3185 = vsel %vm3178, %v3181, %v3184
    %v3186 = vsel %vm3175, nan, %v3185
    %v3187 = vand.u32 2147483647, %v1031
    %vm3188 = vcmp.le.f32.partialorder %v3187, 0.7853982
    %vm3189 = vcmp.lt.s32.totalorder %v1031, 0
    %v3190 = vand.u32 %v1031, 2139095040
    %v3191 = vshrl.u32 %v3190, 23
    %v3192 = vsub.s32 %v3191, 127
    %v3193 = vand.u32 2147483647, %v1031
    %v3194 = vand.u32 %v3193, 8388607
    %v3195 = vor.u32 %v3194, 8388608
    %v3196 = vsub.s32 0, %v3195
    %v3197 = vadd.s32 %v3192, 1
    %vm3198 = vcmp.gt.s32.totalorder %v3197, 0
    %v3199 = vsel %vm3198, %v3197, 0
    %v3200 = vshrl.u32 %v3199, 5
    %v3201 = vand.u32 %v3199, 31
    %v3202 = vsub.s32 32, %v3201
    %v3203 = vshrl.u32 683565275, %v3202
    %v3204 = vshll.u32 683565275, %v3201
    %v3205 = vshrl.u32 2475754826, %v3202
    %v3206 = vor.u32 %v3204, %v3205
    %v3207 = vshll.u32 2475754826, %v3201
    %v3208 = vshrl.u32 2131351028, %v3202
    %v3209 = vor.u32 %v3207, %v3208
    %v3210 = vshll.u32 2131351028, %v3201
    %v3211 = vshrl.u32 2102212464, %v3202
    %v3212 = vor.u32 %v3210, %v3211
    %v3213 = vshll.u32 2102212464, %v3201
    %v3214 = vshrl.u32 920167782, %v3202
    %v3215 = vor.u32 %v3213, %v3214
    %v3216 = vshll.u32 920167782, %v3201
    %v3217 = vshrl.u32 1326507024, %v3202
    %v3218 = vor.u32 %v3216, %v3217
    %vm3219 = vcmp.lt.s32.totalorder %v3200, 1
    %vm3220 = vcmp.lt.s32.totalorder %v3200, 2
    %vm3221 = vcmp.lt.s32.totalorder %v3200, 3
    %vm3222 = vcmp.lt.s32.totalorder %v3200, 4
    %v3223 = vsel %vm3219, %v3203, %v3206
    %v3224 = vsel %vm3222, %v3212, 2102212464
    %v3225 = vsel %vm3221, %v3209, %v3224
    %v3226 = vsel %vm3220, %v3223, %v3225
    %v3227 = vsel %vm3219, %v3206, %v3209
    %v3228 = vsel %vm3222, %v3215, 920167782
    %v3229 = vsel %vm3221, %v3212, %v3228
    %v3230 = vsel %vm3220, %v3227, %v3229
    %v3231 = vsel %vm3219, %v3209, %v3212
    %v3232 = vsel %vm3222, %v3218, 1326507024
    %v3233 = vsel %vm3221, %v3215, %v3232
    %v3234 = vsel %vm3220, %v3231, %v3233
    %v3235 = vshll.u32 %v3195, 8
    %v3236 = vmul.u32.u64.compose %v3235, %v3234
    %v3237 = vextract.low.u32 %v3236
    %v3238 = vextract.high.u32 %v3236
    %v3239 = vmul.u32.u64.compose %v3235, %v3230
    %v3240 = vextract.low.u32 %v3239
    %v3241 = vextract.high.u32 %v3239
    %v3242 = vmul.u32 %v3235, %v3226
    %v3243 = vadd.s32 %v3238, %v3240
    %vm3244 = vc.u32 %v3238, %v3240
    %v3245 = vadd.s32 %v3241, 1
    %v3246 = vsel %vm3244, %v3245, %v3241
    %v3247 = vadd.s32 %v3242, %v3246
    %v3248 = vadd.s32 %v3247, 536870912
    %v3249 = vshrl.u32 %v3248, 30
    %v3250 = vshll.u32 %v3249, 30
    %v3251 = vsub.s32 %v3247, %v3250
    %vm3252 = vcmp.lt.s32.totalorder %v3251, 0
    %v3253 = vsub.s32 0, %v3251
    %v3254 = vsel %vm3252, %v3253, %v3251
    %v3255 = vclz %v3254
    %v3256 = vsub.s32 %v3255, 2
    %vm3257 = vcmp.gt.s32.totalorder 0, %v3256
    %v3258 = vsel %vm3257, 0, %v3256
    %v3259 = vsub.s32 32, %v3258
    %v3260 = vshll.u32 %v3251, %v3258
    %v3261 = vshrl.u32 %v3243, %v3259
    %v3262 = vor.u32 %v3260, %v3261
    %v3263 = vsub.s32 4294967266, %v3258
    %v3264 = vadd.s32 %v3263, 127
    %v3265 = vshll.u32 %v3264, 23
    %v3266 = vor.u32 4788187, %v3265
    %v3267 = vand.u32 2147483647, %v3266
    %v3269 = vcvt.s32.f32 %v3262
    %v3270 = vmul.f32 %v3269, %v3267
    %v3271 = vxor.u32 %v3270, 2147483648
    %v3272 = vsel %vm3189, %v3271, %v3270
    %v3273 = vsub.s32 4, %v3249
    %v3274 = vsel %vm3189, %v3273, %v3249
    %v3275 = vsel %vm3188, %v1031, %v3272
    %v3276 = vsel %vm3188, 0, %v3274
    %v3277 = vcosq.f32.pop %v3275
    %v3278 = vsinq.f32.pop %v3275
    %vm3279 = vweird.f32 %v1031
    %v3280 = vadd.s32 %v3276, 3
    %v3281 = vand.u32 %v3280, 3
    %vm3282 = vcmp.lt.s32.totalorder %v3281, 2
    %vm3283 = vcmp.eq.s32.totalorder %v3281, 0
    %v3284 = vxor.u32 %v3278, 2147483648
    %v3285 = vsel %vm3283, %v3277, %v3284
    %vm3286 = vcmp.eq.s32.totalorder %v3281, 2
    %v3287 = vxor.u32 %v3277, 2147483648
    %v3288 = vsel %vm3286, %v3287, %v3278
    %v3289 = vsel %vm3282, %v3285, %v3288
    %v3290 = vsel %vm3279, nan, %v3289
    %v3291 = vand.u32 2147483647, %v1032
    %vm3292 = vcmp.le.f32.partialorder %v3291, 0.7853982
    %vm3293 = vcmp.lt.s32.totalorder %v1032, 0
    %v3294 = vand.u32 %v1032, 2139095040
    %v3295 = vshrl.u32 %v3294, 23
    %v3296 = vsub.s32 %v3295, 127
    %v3297 = vand.u32 2147483647, %v1032
    %v3298 = vand.u32 %v3297, 8388607
    %v3299 = vor.u32 %v3298, 8388608
    %v3300 = vsub.s32 0, %v3299
    %v3301 = vadd.s32 %v3296, 1
    %vm3302 = vcmp.gt.s32.totalorder %v3301, 0
    %v3303 = vsel %vm3302, %v3301, 0
    %v3304 = vshrl.u32 %v3303, 5
    %v3305 = vand.u32 %v3303, 31
    %v3306 = vsub.s32 32, %v3305
    %v3307 = vshrl.u32 683565275, %v3306
    %v3308 = vshll.u32 683565275, %v3305
    %v3309 = vshrl.u32 2475754826, %v3306
    %v3310 = vor.u32 %v3308, %v3309
    %v3311 = vshll.u32 2475754826, %v3305
    %v3312 = vshrl.u32 2131351028, %v3306
    %v3313 = vor.u32 %v3311, %v3312
    %v3314 = vshll.u32 2131351028, %v3305
    %v3315 = vshrl.u32 2102212464, %v3306
    %v3316 = vor.u32 %v3314, %v3315
    %v3317 = vshll.u32 2102212464, %v3305
    %v3318 = vshrl.u32 920167782, %v3306
    %v3319 = vor.u32 %v3317, %v3318
    %v3320 = vshll.u32 920167782, %v3305
    %v3321 = vshrl.u32 1326507024, %v3306
    %v3322 = vor.u32 %v3320, %v3321
    %vm3323 = vcmp.lt.s32.totalorder %v3304, 1
    %vm3324 = vcmp.lt.s32.totalorder %v3304, 2
    %vm3325 = vcmp.lt.s32.totalorder %v3304, 3
    %vm3326 = vcmp.lt.s32.totalorder %v3304, 4
    %v3327 = vsel %vm3323, %v3307, %v3310
    %v3328 = vsel %vm3326, %v3316, 2102212464
    %v3329 = vsel %vm3325, %v3313, %v3328
    %v3330 = vsel %vm3324, %v3327, %v3329
    %v3331 = vsel %vm3323, %v3310, %v3313
    %v3332 = vsel %vm3326, %v3319, 920167782
    %v3333 = vsel %vm3325, %v3316, %v3332
    %v3334 = vsel %vm3324, %v3331, %v3333
    %v3335 = vsel %vm3323, %v3313, %v3316
    %v3336 = vsel %vm3326, %v3322, 1326507024
    %v3337 = vsel %vm3325, %v3319, %v3336
    %v3338 = vsel %vm3324, %v3335, %v3337
    %v3339 = vshll.u32 %v3299, 8
    %v3340 = vmul.u32.u64.compose %v3339, %v3338
    %v3341 = vextract.low.u32 %v3340
    %v3342 = vextract.high.u32 %v3340
    %v3343 = vmul.u32.u64.compose %v3339, %v3334
    %v3344 = vextract.low.u32 %v3343
    %v3345 = vextract.high.u32 %v3343
    %v3346 = vmul.u32 %v3339, %v3330
    %v3347 = vadd.s32 %v3342, %v3344
    %vm3348 = vc.u32 %v3342, %v3344
    %v3349 = vadd.s32 %v3345, 1
    %v3350 = vsel %vm3348, %v3349, %v3345
    %v3351 = vadd.s32 %v3346, %v3350
    %v3352 = vadd.s32 %v3351, 536870912
    %v3353 = vshrl.u32 %v3352, 30
    %v3354 = vshll.u32 %v3353, 30
    %v3355 = vsub.s32 %v3351, %v3354
    %vm3356 = vcmp.lt.s32.totalorder %v3355, 0
    %v3357 = vsub.s32 0, %v3355
    %v3358 = vsel %vm3356, %v3357, %v3355
    %v3359 = vclz %v3358
    %v3360 = vsub.s32 %v3359, 2
    %vm3361 = vcmp.gt.s32.totalorder 0, %v3360
    %v3362 = vsel %vm3361, 0, %v3360
    %v3363 = vsub.s32 32, %v3362
    %v3364 = vshll.u32 %v3355, %v3362
    %v3365 = vshrl.u32 %v3347, %v3363
    %v3366 = vor.u32 %v3364, %v3365
    %v3367 = vsub.s32 4294967266, %v3362
    %v3368 = vadd.s32 %v3367, 127
    %v3369 = vshll.u32 %v3368, 23
    %v3370 = vor.u32 4788187, %v3369
    %v3371 = vand.u32 2147483647, %v3370
    %v3373 = vcvt.s32.f32 %v3366
    %v3374 = vmul.f32 %v3373, %v3371
    %v3375 = vxor.u32 %v3374, 2147483648
    %v3376 = vsel %vm3293, %v3375, %v3374
    %v3377 = vsub.s32 4, %v3353
    %v3378 = vsel %vm3293, %v3377, %v3353
    %v3379 = vsel %vm3292, %v1032, %v3376
    %v3380 = vsel %vm3292, 0, %v3378
    %v3381 = vcosq.f32.pop %v3379
    %v3382 = vsinq.f32.pop %v3379
    %vm3383 = vweird.f32 %v1032
    %v3384 = vadd.s32 %v3380, 3
    %v3385 = vand.u32 %v3384, 3
    %vm3386 = vcmp.lt.s32.totalorder %v3385, 2
    %vm3387 = vcmp.eq.s32.totalorder %v3385, 0
    %v3388 = vxor.u32 %v3382, 2147483648
    %v3389 = vsel %vm3387, %v3381, %v3388
    %vm3390 = vcmp.eq.s32.totalorder %v3385, 2
    %v3391 = vxor.u32 %v3381, 2147483648
    %v3392 = vsel %vm3390, %v3391, %v3382
    %v3393 = vsel %vm3386, %v3389, %v3392
    %v3394 = vsel %vm3383, nan, %v3393
    %v3395 = vand.u32 2147483647, %v1033
    %vm3396 = vcmp.le.f32.partialorder %v3395, 0.7853982
    %vm3397 = vcmp.lt.s32.totalorder %v1033, 0
    %v3398 = vand.u32 %v1033, 2139095040
    %v3399 = vshrl.u32 %v3398, 23
    %v3400 = vsub.s32 %v3399, 127
    %v3401 = vand.u32 2147483647, %v1033
    %v3402 = vand.u32 %v3401, 8388607
    %v3403 = vor.u32 %v3402, 8388608
    %v3404 = vsub.s32 0, %v3403
    %v3405 = vadd.s32 %v3400, 1
    %vm3406 = vcmp.gt.s32.totalorder %v3405, 0
    %v3407 = vsel %vm3406, %v3405, 0
    %v3408 = vshrl.u32 %v3407, 5
    %v3409 = vand.u32 %v3407, 31
    %v3410 = vsub.s32 32, %v3409
    %v3411 = vshrl.u32 683565275, %v3410
    %v3412 = vshll.u32 683565275, %v3409
    %v3413 = vshrl.u32 2475754826, %v3410
    %v3414 = vor.u32 %v3412, %v3413
    %v3415 = vshll.u32 2475754826, %v3409
    %v3416 = vshrl.u32 2131351028, %v3410
    %v3417 = vor.u32 %v3415, %v3416
    %v3418 = vshll.u32 2131351028, %v3409
    %v3419 = vshrl.u32 2102212464, %v3410
    %v3420 = vor.u32 %v3418, %v3419
    %v3421 = vshll.u32 2102212464, %v3409
    %v3422 = vshrl.u32 920167782, %v3410
    %v3423 = vor.u32 %v3421, %v3422
    %v3424 = vshll.u32 920167782, %v3409
    %v3425 = vshrl.u32 1326507024, %v3410
    %v3426 = vor.u32 %v3424, %v3425
    %vm3427 = vcmp.lt.s32.totalorder %v3408, 1
    %vm3428 = vcmp.lt.s32.totalorder %v3408, 2
    %vm3429 = vcmp.lt.s32.totalorder %v3408, 3
    %vm3430 = vcmp.lt.s32.totalorder %v3408, 4
    %v3431 = vsel %vm3427, %v3411, %v3414
    %v3432 = vsel %vm3430, %v3420, 2102212464
    %v3433 = vsel %vm3429, %v3417, %v3432
    %v3434 = vsel %vm3428, %v3431, %v3433
    %v3435 = vsel %vm3427, %v3414, %v3417
    %v3436 = vsel %vm3430, %v3423, 920167782
    %v3437 = vsel %vm3429, %v3420, %v3436
    %v3438 = vsel %vm3428, %v3435, %v3437
    %v3439 = vsel %vm3427, %v3417, %v3420
    %v3440 = vsel %vm3430, %v3426, 1326507024
    %v3441 = vsel %vm3429, %v3423, %v3440
    %v3442 = vsel %vm3428, %v3439, %v3441
    %v3443 = vshll.u32 %v3403, 8
    %v3444 = vmul.u32.u64.compose %v3443, %v3442
    %v3445 = vextract.low.u32 %v3444
    %v3446 = vextract.high.u32 %v3444
    %v3447 = vmul.u32.u64.compose %v3443, %v3438
    %v3448 = vextract.low.u32 %v3447
    %v3449 = vextract.high.u32 %v3447
    %v3450 = vmul.u32 %v3443, %v3434
    %v3451 = vadd.s32 %v3446, %v3448
    %vm3452 = vc.u32 %v3446, %v3448
    %v3453 = vadd.s32 %v3449, 1
    %v3454 = vsel %vm3452, %v3453, %v3449
    %v3455 = vadd.s32 %v3450, %v3454
    %v3456 = vadd.s32 %v3455, 536870912
    %v3457 = vshrl.u32 %v3456, 30
    %v3458 = vshll.u32 %v3457, 30
    %v3459 = vsub.s32 %v3455, %v3458
    %vm3460 = vcmp.lt.s32.totalorder %v3459, 0
    %v3461 = vsub.s32 0, %v3459
    %v3462 = vsel %vm3460, %v3461, %v3459
    %v3463 = vclz %v3462
    %v3464 = vsub.s32 %v3463, 2
    %vm3465 = vcmp.gt.s32.totalorder 0, %v3464
    %v3466 = vsel %vm3465, 0, %v3464
    %v3467 = vsub.s32 32, %v3466
    %v3468 = vshll.u32 %v3459, %v3466
    %v3469 = vshrl.u32 %v3451, %v3467
    %v3470 = vor.u32 %v3468, %v3469
    %v3471 = vsub.s32 4294967266, %v3466
    %v3472 = vadd.s32 %v3471, 127
    %v3473 = vshll.u32 %v3472, 23
    %v3474 = vor.u32 4788187, %v3473
    %v3475 = vand.u32 2147483647, %v3474
    %v3477 = vcvt.s32.f32 %v3470
    %v3478 = vmul.f32 %v3477, %v3475
    %v3479 = vxor.u32 %v3478, 2147483648
    %v3480 = vsel %vm3397, %v3479, %v3478
    %v3481 = vsub.s32 4, %v3457
    %v3482 = vsel %vm3397, %v3481, %v3457
    %v3483 = vsel %vm3396, %v1033, %v3480
    %v3484 = vsel %vm3396, 0, %v3482
    %v3485 = vcosq.f32.pop %v3483
    %v3486 = vsinq.f32.pop %v3483
    %vm3487 = vweird.f32 %v1033
    %v3488 = vadd.s32 %v3484, 3
    %v3489 = vand.u32 %v3488, 3
    %vm3490 = vcmp.lt.s32.totalorder %v3489, 2
    %vm3491 = vcmp.eq.s32.totalorder %v3489, 0
    %v3492 = vxor.u32 %v3486, 2147483648
    %v3493 = vsel %vm3491, %v3485, %v3492
    %vm3494 = vcmp.eq.s32.totalorder %v3489, 2
    %v3495 = vxor.u32 %v3485, 2147483648
    %v3496 = vsel %vm3494, %v3495, %v3486
    %v3497 = vsel %vm3490, %v3493, %v3496
    %v3498 = vsel %vm3487, nan, %v3497
    %v3499 = vand.u32 2147483647, %v1034
    %vm3500 = vcmp.le.f32.partialorder %v3499, 0.7853982
    %vm3501 = vcmp.lt.s32.totalorder %v1034, 0
    %v3502 = vand.u32 %v1034, 2139095040
    %v3503 = vshrl.u32 %v3502, 23
    %v3504 = vsub.s32 %v3503, 127
    %v3505 = vand.u32 2147483647, %v1034
    %v3506 = vand.u32 %v3505, 8388607
    %v3507 = vor.u32 %v3506, 8388608
    %v3508 = vsub.s32 0, %v3507
    %v3509 = vadd.s32 %v3504, 1
    %vm3510 = vcmp.gt.s32.totalorder %v3509, 0
    %v3511 = vsel %vm3510, %v3509, 0
    %v3512 = vshrl.u32 %v3511, 5
    %v3513 = vand.u32 %v3511, 31
    %v3514 = vsub.s32 32, %v3513
    %v3515 = vshrl.u32 683565275, %v3514
    %v3516 = vshll.u32 683565275, %v3513
    %v3517 = vshrl.u32 2475754826, %v3514
    %v3518 = vor.u32 %v3516, %v3517
    %v3519 = vshll.u32 2475754826, %v3513
    %v3520 = vshrl.u32 2131351028, %v3514
    %v3521 = vor.u32 %v3519, %v3520
    %v3522 = vshll.u32 2131351028, %v3513
    %v3523 = vshrl.u32 2102212464, %v3514
    %v3524 = vor.u32 %v3522, %v3523
    %v3525 = vshll.u32 2102212464, %v3513
    %v3526 = vshrl.u32 920167782, %v3514
    %v3527 = vor.u32 %v3525, %v3526
    %v3528 = vshll.u32 920167782, %v3513
    %v3529 = vshrl.u32 1326507024, %v3514
    %v3530 = vor.u32 %v3528, %v3529
    %vm3531 = vcmp.lt.s32.totalorder %v3512, 1
    %vm3532 = vcmp.lt.s32.totalorder %v3512, 2
    %vm3533 = vcmp.lt.s32.totalorder %v3512, 3
    %vm3534 = vcmp.lt.s32.totalorder %v3512, 4
    %v3535 = vsel %vm3531, %v3515, %v3518
    %v3536 = vsel %vm3534, %v3524, 2102212464
    %v3537 = vsel %vm3533, %v3521, %v3536
    %v3538 = vsel %vm3532, %v3535, %v3537
    %v3539 = vsel %vm3531, %v3518, %v3521
    %v3540 = vsel %vm3534, %v3527, 920167782
    %v3541 = vsel %vm3533, %v3524, %v3540
    %v3542 = vsel %vm3532, %v3539, %v3541
    %v3543 = vsel %vm3531, %v3521, %v3524
    %v3544 = vsel %vm3534, %v3530, 1326507024
    %v3545 = vsel %vm3533, %v3527, %v3544
    %v3546 = vsel %vm3532, %v3543, %v3545
    %v3547 = vshll.u32 %v3507, 8
    %v3548 = vmul.u32.u64.compose %v3547, %v3546
    %v3549 = vextract.low.u32 %v3548
    %v3550 = vextract.high.u32 %v3548
    %v3551 = vmul.u32.u64.compose %v3547, %v3542
    %v3552 = vextract.low.u32 %v3551
    %v3553 = vextract.high.u32 %v3551
    %v3554 = vmul.u32 %v3547, %v3538
    %v3555 = vadd.s32 %v3550, %v3552
    %vm3556 = vc.u32 %v3550, %v3552
    %v3557 = vadd.s32 %v3553, 1
    %v3558 = vsel %vm3556, %v3557, %v3553
    %v3559 = vadd.s32 %v3554, %v3558
    %v3560 = vadd.s32 %v3559, 536870912
    %v3561 = vshrl.u32 %v3560, 30
    %v3562 = vshll.u32 %v3561, 30
    %v3563 = vsub.s32 %v3559, %v3562
    %vm3564 = vcmp.lt.s32.totalorder %v3563, 0
    %v3565 = vsub.s32 0, %v3563
    %v3566 = vsel %vm3564, %v3565, %v3563
    %v3567 = vclz %v3566
    %v3568 = vsub.s32 %v3567, 2
    %vm3569 = vcmp.gt.s32.totalorder 0, %v3568
    %v3570 = vsel %vm3569, 0, %v3568
    %v3571 = vsub.s32 32, %v3570
    %v3572 = vshll.u32 %v3563, %v3570
    %v3573 = vshrl.u32 %v3555, %v3571
    %v3574 = vor.u32 %v3572, %v3573
    %v3575 = vsub.s32 4294967266, %v3570
    %v3576 = vadd.s32 %v3575, 127
    %v3577 = vshll.u32 %v3576, 23
    %v3578 = vor.u32 4788187, %v3577
    %v3579 = vand.u32 2147483647, %v3578
    %v3581 = vcvt.s32.f32 %v3574
    %v3582 = vmul.f32 %v3581, %v3579
    %v3583 = vxor.u32 %v3582, 2147483648
    %v3584 = vsel %vm3501, %v3583, %v3582
    %v3585 = vsub.s32 4, %v3561
    %v3586 = vsel %vm3501, %v3585, %v3561
    %v3587 = vsel %vm3500, %v1034, %v3584
    %v3588 = vsel %vm3500, 0, %v3586
    %v3589 = vcosq.f32.pop %v3587
    %v3590 = vsinq.f32.pop %v3587
    %vm3591 = vweird.f32 %v1034
    %v3592 = vadd.s32 %v3588, 3
    %v3593 = vand.u32 %v3592, 3
    %vm3594 = vcmp.lt.s32.totalorder %v3593, 2
    %vm3595 = vcmp.eq.s32.totalorder %v3593, 0
    %v3596 = vxor.u32 %v3590, 2147483648
    %v3597 = vsel %vm3595, %v3589, %v3596
    %vm3598 = vcmp.eq.s32.totalorder %v3593, 2
    %v3599 = vxor.u32 %v3589, 2147483648
    %v3600 = vsel %vm3598, %v3599, %v3590
    %v3601 = vsel %vm3594, %v3597, %v3600
    %v3602 = vsel %vm3591, nan, %v3601
    %v3603 = vand.u32 2147483647, %v1035
    %vm3604 = vcmp.le.f32.partialorder %v3603, 0.7853982
    %vm3605 = vcmp.lt.s32.totalorder %v1035, 0
    %v3606 = vand.u32 %v1035, 2139095040
    %v3607 = vshrl.u32 %v3606, 23
    %v3608 = vsub.s32 %v3607, 127
    %v3609 = vand.u32 2147483647, %v1035
    %v3610 = vand.u32 %v3609, 8388607
    %v3611 = vor.u32 %v3610, 8388608
    %v3612 = vsub.s32 0, %v3611
    %v3613 = vadd.s32 %v3608, 1
    %vm3614 = vcmp.gt.s32.totalorder %v3613, 0
    %v3615 = vsel %vm3614, %v3613, 0
    %v3616 = vshrl.u32 %v3615, 5
    %v3617 = vand.u32 %v3615, 31
    %v3618 = vsub.s32 32, %v3617
    %v3619 = vshrl.u32 683565275, %v3618
    %v3620 = vshll.u32 683565275, %v3617
    %v3621 = vshrl.u32 2475754826, %v3618
    %v3622 = vor.u32 %v3620, %v3621
    %v3623 = vshll.u32 2475754826, %v3617
    %v3624 = vshrl.u32 2131351028, %v3618
    %v3625 = vor.u32 %v3623, %v3624
    %v3626 = vshll.u32 2131351028, %v3617
    %v3627 = vshrl.u32 2102212464, %v3618
    %v3628 = vor.u32 %v3626, %v3627
    %v3629 = vshll.u32 2102212464, %v3617
    %v3630 = vshrl.u32 920167782, %v3618
    %v3631 = vor.u32 %v3629, %v3630
    %v3632 = vshll.u32 920167782, %v3617
    %v3633 = vshrl.u32 1326507024, %v3618
    %v3634 = vor.u32 %v3632, %v3633
    %vm3635 = vcmp.lt.s32.totalorder %v3616, 1
    %vm3636 = vcmp.lt.s32.totalorder %v3616, 2
    %vm3637 = vcmp.lt.s32.totalorder %v3616, 3
    %vm3638 = vcmp.lt.s32.totalorder %v3616, 4
    %v3639 = vsel %vm3635, %v3619, %v3622
    %v3640 = vsel %vm3638, %v3628, 2102212464
    %v3641 = vsel %vm3637, %v3625, %v3640
    %v3642 = vsel %vm3636, %v3639, %v3641
    %v3643 = vsel %vm3635, %v3622, %v3625
    %v3644 = vsel %vm3638, %v3631, 920167782
    %v3645 = vsel %vm3637, %v3628, %v3644
    %v3646 = vsel %vm3636, %v3643, %v3645
    %v3647 = vsel %vm3635, %v3625, %v3628
    %v3648 = vsel %vm3638, %v3634, 1326507024
    %v3649 = vsel %vm3637, %v3631, %v3648
    %v3650 = vsel %vm3636, %v3647, %v3649
    %v3651 = vshll.u32 %v3611, 8
    %v3652 = vmul.u32.u64.compose %v3651, %v3650
    %v3653 = vextract.low.u32 %v3652
    %v3654 = vextract.high.u32 %v3652
    %v3655 = vmul.u32.u64.compose %v3651, %v3646
    %v3656 = vextract.low.u32 %v3655
    %v3657 = vextract.high.u32 %v3655
    %v3658 = vmul.u32 %v3651, %v3642
    %v3659 = vadd.s32 %v3654, %v3656
    %vm3660 = vc.u32 %v3654, %v3656
    %v3661 = vadd.s32 %v3657, 1
    %v3662 = vsel %vm3660, %v3661, %v3657
    %v3663 = vadd.s32 %v3658, %v3662
    %v3664 = vadd.s32 %v3663, 536870912
    %v3665 = vshrl.u32 %v3664, 30
    %v3666 = vshll.u32 %v3665, 30
    %v3667 = vsub.s32 %v3663, %v3666
    %vm3668 = vcmp.lt.s32.totalorder %v3667, 0
    %v3669 = vsub.s32 0, %v3667
    %v3670 = vsel %vm3668, %v3669, %v3667
    %v3671 = vclz %v3670
    %v3672 = vsub.s32 %v3671, 2
    %vm3673 = vcmp.gt.s32.totalorder 0, %v3672
    %v3674 = vsel %vm3673, 0, %v3672
    %v3675 = vsub.s32 32, %v3674
    %v3676 = vshll.u32 %v3667, %v3674
    %v3677 = vshrl.u32 %v3659, %v3675
    %v3678 = vor.u32 %v3676, %v3677
    %v3679 = vsub.s32 4294967266, %v3674
    %v3680 = vadd.s32 %v3679, 127
    %v3681 = vshll.u32 %v3680, 23
    %v3682 = vor.u32 4788187, %v3681
    %v3683 = vand.u32 2147483647, %v3682
    %v3685 = vcvt.s32.f32 %v3678
    %v3686 = vmul.f32 %v3685, %v3683
    %v3687 = vxor.u32 %v3686, 2147483648
    %v3688 = vsel %vm3605, %v3687, %v3686
    %v3689 = vsub.s32 4, %v3665
    %v3690 = vsel %vm3605, %v3689, %v3665
    %v3691 = vsel %vm3604, %v1035, %v3688
    %v3692 = vsel %vm3604, 0, %v3690
    %v3693 = vcosq.f32.pop %v3691
    %v3694 = vsinq.f32.pop %v3691
    %vm3695 = vweird.f32 %v1035
    %v3696 = vadd.s32 %v3692, 3
    %v3697 = vand.u32 %v3696, 3
    %vm3698 = vcmp.lt.s32.totalorder %v3697, 2
    %vm3699 = vcmp.eq.s32.totalorder %v3697, 0
    %v3700 = vxor.u32 %v3694, 2147483648
    %v3701 = vsel %vm3699, %v3693, %v3700
    %vm3702 = vcmp.eq.s32.totalorder %v3697, 2
    %v3703 = vxor.u32 %v3693, 2147483648
    %v3704 = vsel %vm3702, %v3703, %v3694
    %v3705 = vsel %vm3698, %v3701, %v3704
    %v3706 = vsel %vm3695, nan, %v3705
    %v3707 = vand.u32 2147483647, %v1036
    %vm3708 = vcmp.le.f32.partialorder %v3707, 0.7853982
    %vm3709 = vcmp.lt.s32.totalorder %v1036, 0
    %v3710 = vand.u32 %v1036, 2139095040
    %v3711 = vshrl.u32 %v3710, 23
    %v3712 = vsub.s32 %v3711, 127
    %v3713 = vand.u32 2147483647, %v1036
    %v3714 = vand.u32 %v3713, 8388607
    %v3715 = vor.u32 %v3714, 8388608
    %v3716 = vsub.s32 0, %v3715
    %v3717 = vadd.s32 %v3712, 1
    %vm3718 = vcmp.gt.s32.totalorder %v3717, 0
    %v3719 = vsel %vm3718, %v3717, 0
    %v3720 = vshrl.u32 %v3719, 5
    %v3721 = vand.u32 %v3719, 31
    %v3722 = vsub.s32 32, %v3721
    %v3723 = vshrl.u32 683565275, %v3722
    %v3724 = vshll.u32 683565275, %v3721
    %v3725 = vshrl.u32 2475754826, %v3722
    %v3726 = vor.u32 %v3724, %v3725
    %v3727 = vshll.u32 2475754826, %v3721
    %v3728 = vshrl.u32 2131351028, %v3722
    %v3729 = vor.u32 %v3727, %v3728
    %v3730 = vshll.u32 2131351028, %v3721
    %v3731 = vshrl.u32 2102212464, %v3722
    %v3732 = vor.u32 %v3730, %v3731
    %v3733 = vshll.u32 2102212464, %v3721
    %v3734 = vshrl.u32 920167782, %v3722
    %v3735 = vor.u32 %v3733, %v3734
    %v3736 = vshll.u32 920167782, %v3721
    %v3737 = vshrl.u32 1326507024, %v3722
    %v3738 = vor.u32 %v3736, %v3737
    %vm3739 = vcmp.lt.s32.totalorder %v3720, 1
    %vm3740 = vcmp.lt.s32.totalorder %v3720, 2
    %vm3741 = vcmp.lt.s32.totalorder %v3720, 3
    %vm3742 = vcmp.lt.s32.totalorder %v3720, 4
    %v3743 = vsel %vm3739, %v3723, %v3726
    %v3744 = vsel %vm3742, %v3732, 2102212464
    %v3745 = vsel %vm3741, %v3729, %v3744
    %v3746 = vsel %vm3740, %v3743, %v3745
    %v3747 = vsel %vm3739, %v3726, %v3729
    %v3748 = vsel %vm3742, %v3735, 920167782
    %v3749 = vsel %vm3741, %v3732, %v3748
    %v3750 = vsel %vm3740, %v3747, %v3749
    %v3751 = vsel %vm3739, %v3729, %v3732
    %v3752 = vsel %vm3742, %v3738, 1326507024
    %v3753 = vsel %vm3741, %v3735, %v3752
    %v3754 = vsel %vm3740, %v3751, %v3753
    %v3755 = vshll.u32 %v3715, 8
    %v3756 = vmul.u32.u64.compose %v3755, %v3754
    %v3757 = vextract.low.u32 %v3756
    %v3758 = vextract.high.u32 %v3756
    %v3759 = vmul.u32.u64.compose %v3755, %v3750
    %v3760 = vextract.low.u32 %v3759
    %v3761 = vextract.high.u32 %v3759
    %v3762 = vmul.u32 %v3755, %v3746
    %v3763 = vadd.s32 %v3758, %v3760
    %vm3764 = vc.u32 %v3758, %v3760
    %v3765 = vadd.s32 %v3761, 1
    %v3766 = vsel %vm3764, %v3765, %v3761
    %v3767 = vadd.s32 %v3762, %v3766
    %v3768 = vadd.s32 %v3767, 536870912
    %v3769 = vshrl.u32 %v3768, 30
    %v3770 = vshll.u32 %v3769, 30
    %v3771 = vsub.s32 %v3767, %v3770
    %vm3772 = vcmp.lt.s32.totalorder %v3771, 0
    %v3773 = vsub.s32 0, %v3771
    %v3774 = vsel %vm3772, %v3773, %v3771
    %v3775 = vclz %v3774
    %v3776 = vsub.s32 %v3775, 2
    %vm3777 = vcmp.gt.s32.totalorder 0, %v3776
    %v3778 = vsel %vm3777, 0, %v3776
    %v3779 = vsub.s32 32, %v3778
    %v3780 = vshll.u32 %v3771, %v3778
    %v3781 = vshrl.u32 %v3763, %v3779
    %v3782 = vor.u32 %v3780, %v3781
    %v3783 = vsub.s32 4294967266, %v3778
    %v3784 = vadd.s32 %v3783, 127
    %v3785 = vshll.u32 %v3784, 23
    %v3786 = vor.u32 4788187, %v3785
    %v3787 = vand.u32 2147483647, %v3786
    %v3789 = vcvt.s32.f32 %v3782
    %v3790 = vmul.f32 %v3789, %v3787
    %v3791 = vxor.u32 %v3790, 2147483648
    %v3792 = vsel %vm3709, %v3791, %v3790
    %v3793 = vsub.s32 4, %v3769
    %v3794 = vsel %vm3709, %v3793, %v3769
    %v3795 = vsel %vm3708, %v1036, %v3792
    %v3796 = vsel %vm3708, 0, %v3794
    %v3797 = vcosq.f32.pop %v3795
    %v3798 = vsinq.f32.pop %v3795
    %vm3799 = vweird.f32 %v1036
    %v3800 = vadd.s32 %v3796, 3
    %v3801 = vand.u32 %v3800, 3
    %vm3802 = vcmp.lt.s32.totalorder %v3801, 2
    %vm3803 = vcmp.eq.s32.totalorder %v3801, 0
    %v3804 = vxor.u32 %v3798, 2147483648
    %v3805 = vsel %vm3803, %v3797, %v3804
    %vm3806 = vcmp.eq.s32.totalorder %v3801, 2
    %v3807 = vxor.u32 %v3797, 2147483648
    %v3808 = vsel %vm3806, %v3807, %v3798
    %v3809 = vsel %vm3802, %v3805, %v3808
    %v3810 = vsel %vm3799, nan, %v3809
    %v3811 = vand.u32 2147483647, %v1037
    %vm3812 = vcmp.le.f32.partialorder %v3811, 0.7853982
    %vm3813 = vcmp.lt.s32.totalorder %v1037, 0
    %v3814 = vand.u32 %v1037, 2139095040
    %v3815 = vshrl.u32 %v3814, 23
    %v3816 = vsub.s32 %v3815, 127
    %v3817 = vand.u32 2147483647, %v1037
    %v3818 = vand.u32 %v3817, 8388607
    %v3819 = vor.u32 %v3818, 8388608
    %v3820 = vsub.s32 0, %v3819
    %v3821 = vadd.s32 %v3816, 1
    %vm3822 = vcmp.gt.s32.totalorder %v3821, 0
    %v3823 = vsel %vm3822, %v3821, 0
    %v3824 = vshrl.u32 %v3823, 5
    %v3825 = vand.u32 %v3823, 31
    %v3826 = vsub.s32 32, %v3825
    %v3827 = vshrl.u32 683565275, %v3826
    %v3828 = vshll.u32 683565275, %v3825
    %v3829 = vshrl.u32 2475754826, %v3826
    %v3830 = vor.u32 %v3828, %v3829
    %v3831 = vshll.u32 2475754826, %v3825
    %v3832 = vshrl.u32 2131351028, %v3826
    %v3833 = vor.u32 %v3831, %v3832
    %v3834 = vshll.u32 2131351028, %v3825
    %v3835 = vshrl.u32 2102212464, %v3826
    %v3836 = vor.u32 %v3834, %v3835
    %v3837 = vshll.u32 2102212464, %v3825
    %v3838 = vshrl.u32 920167782, %v3826
    %v3839 = vor.u32 %v3837, %v3838
    %v3840 = vshll.u32 920167782, %v3825
    %v3841 = vshrl.u32 1326507024, %v3826
    %v3842 = vor.u32 %v3840, %v3841
    %vm3843 = vcmp.lt.s32.totalorder %v3824, 1
    %vm3844 = vcmp.lt.s32.totalorder %v3824, 2
    %vm3845 = vcmp.lt.s32.totalorder %v3824, 3
    %vm3846 = vcmp.lt.s32.totalorder %v3824, 4
    %v3847 = vsel %vm3843, %v3827, %v3830
    %v3848 = vsel %vm3846, %v3836, 2102212464
    %v3849 = vsel %vm3845, %v3833, %v3848
    %v3850 = vsel %vm3844, %v3847, %v3849
    %v3851 = vsel %vm3843, %v3830, %v3833
    %v3852 = vsel %vm3846, %v3839, 920167782
    %v3853 = vsel %vm3845, %v3836, %v3852
    %v3854 = vsel %vm3844, %v3851, %v3853
    %v3855 = vsel %vm3843, %v3833, %v3836
    %v3856 = vsel %vm3846, %v3842, 1326507024
    %v3857 = vsel %vm3845, %v3839, %v3856
    %v3858 = vsel %vm3844, %v3855, %v3857
    %v3859 = vshll.u32 %v3819, 8
    %v3860 = vmul.u32.u64.compose %v3859, %v3858
    %v3861 = vextract.low.u32 %v3860
    %v3862 = vextract.high.u32 %v3860
    %v3863 = vmul.u32.u64.compose %v3859, %v3854
    %v3864 = vextract.low.u32 %v3863
    %v3865 = vextract.high.u32 %v3863
    %v3866 = vmul.u32 %v3859, %v3850
    %v3867 = vadd.s32 %v3862, %v3864
    %vm3868 = vc.u32 %v3862, %v3864
    %v3869 = vadd.s32 %v3865, 1
    %v3870 = vsel %vm3868, %v3869, %v3865
    %v3871 = vadd.s32 %v3866, %v3870
    %v3872 = vadd.s32 %v3871, 536870912
    %v3873 = vshrl.u32 %v3872, 30
    %v3874 = vshll.u32 %v3873, 30
    %v3875 = vsub.s32 %v3871, %v3874
    %vm3876 = vcmp.lt.s32.totalorder %v3875, 0
    %v3877 = vsub.s32 0, %v3875
    %v3878 = vsel %vm3876, %v3877, %v3875
    %v3879 = vclz %v3878
    %v3880 = vsub.s32 %v3879, 2
    %vm3881 = vcmp.gt.s32.totalorder 0, %v3880
    %v3882 = vsel %vm3881, 0, %v3880
    %v3883 = vsub.s32 32, %v3882
    %v3884 = vshll.u32 %v3875, %v3882
    %v3885 = vshrl.u32 %v3867, %v3883
    %v3886 = vor.u32 %v3884, %v3885
    %v3887 = vsub.s32 4294967266, %v3882
    %v3888 = vadd.s32 %v3887, 127
    %v3889 = vshll.u32 %v3888, 23
    %v3890 = vor.u32 4788187, %v3889
    %v3891 = vand.u32 2147483647, %v3890
    %v3893 = vcvt.s32.f32 %v3886
    %v3894 = vmul.f32 %v3893, %v3891
    %v3895 = vxor.u32 %v3894, 2147483648
    %v3896 = vsel %vm3813, %v3895, %v3894
    %v3897 = vsub.s32 4, %v3873
    %v3898 = vsel %vm3813, %v3897, %v3873
    %v3899 = vsel %vm3812, %v1037, %v3896
    %v3900 = vsel %vm3812, 0, %v3898
    %v3901 = vcosq.f32.pop %v3899
    %v3902 = vsinq.f32.pop %v3899
    %vm3903 = vweird.f32 %v1037
    %v3904 = vadd.s32 %v3900, 3
    %v3905 = vand.u32 %v3904, 3
    %vm3906 = vcmp.lt.s32.totalorder %v3905, 2
    %vm3907 = vcmp.eq.s32.totalorder %v3905, 0
    %v3908 = vxor.u32 %v3902, 2147483648
    %v3909 = vsel %vm3907, %v3901, %v3908
    %vm3910 = vcmp.eq.s32.totalorder %v3905, 2
    %v3911 = vxor.u32 %v3901, 2147483648
    %v3912 = vsel %vm3910, %v3911, %v3902
    %v3913 = vsel %vm3906, %v3909, %v3912
    %v3914 = vsel %vm3903, nan, %v3913
    %v3915 = vand.u32 2147483647, %v1038
    %vm3916 = vcmp.le.f32.partialorder %v3915, 0.7853982
    %vm3917 = vcmp.lt.s32.totalorder %v1038, 0
    %v3918 = vand.u32 %v1038, 2139095040
    %v3919 = vshrl.u32 %v3918, 23
    %v3920 = vsub.s32 %v3919, 127
    %v3921 = vand.u32 2147483647, %v1038
    %v3922 = vand.u32 %v3921, 8388607
    %v3923 = vor.u32 %v3922, 8388608
    %v3924 = vsub.s32 0, %v3923
    %v3925 = vadd.s32 %v3920, 1
    %vm3926 = vcmp.gt.s32.totalorder %v3925, 0
    %v3927 = vsel %vm3926, %v3925, 0
    %v3928 = vshrl.u32 %v3927, 5
    %v3929 = vand.u32 %v3927, 31
    %v3930 = vsub.s32 32, %v3929
    %v3931 = vshrl.u32 683565275, %v3930
    %v3932 = vshll.u32 683565275, %v3929
    %v3933 = vshrl.u32 2475754826, %v3930
    %v3934 = vor.u32 %v3932, %v3933
    %v3935 = vshll.u32 2475754826, %v3929
    %v3936 = vshrl.u32 2131351028, %v3930
    %v3937 = vor.u32 %v3935, %v3936
    %v3938 = vshll.u32 2131351028, %v3929
    %v3939 = vshrl.u32 2102212464, %v3930
    %v3940 = vor.u32 %v3938, %v3939
    %v3941 = vshll.u32 2102212464, %v3929
    %v3942 = vshrl.u32 920167782, %v3930
    %v3943 = vor.u32 %v3941, %v3942
    %v3944 = vshll.u32 920167782, %v3929
    %v3945 = vshrl.u32 1326507024, %v3930
    %v3946 = vor.u32 %v3944, %v3945
    %vm3947 = vcmp.lt.s32.totalorder %v3928, 1
    %vm3948 = vcmp.lt.s32.totalorder %v3928, 2
    %vm3949 = vcmp.lt.s32.totalorder %v3928, 3
    %vm3950 = vcmp.lt.s32.totalorder %v3928, 4
    %v3951 = vsel %vm3947, %v3931, %v3934
    %v3952 = vsel %vm3950, %v3940, 2102212464
    %v3953 = vsel %vm3949, %v3937, %v3952
    %v3954 = vsel %vm3948, %v3951, %v3953
    %v3955 = vsel %vm3947, %v3934, %v3937
    %v3956 = vsel %vm3950, %v3943, 920167782
    %v3957 = vsel %vm3949, %v3940, %v3956
    %v3958 = vsel %vm3948, %v3955, %v3957
    %v3959 = vsel %vm3947, %v3937, %v3940
    %v3960 = vsel %vm3950, %v3946, 1326507024
    %v3961 = vsel %vm3949, %v3943, %v3960
    %v3962 = vsel %vm3948, %v3959, %v3961
    %v3963 = vshll.u32 %v3923, 8
    %v3964 = vmul.u32.u64.compose %v3963, %v3962
    %v3965 = vextract.low.u32 %v3964
    %v3966 = vextract.high.u32 %v3964
    %v3967 = vmul.u32.u64.compose %v3963, %v3958
    %v3968 = vextract.low.u32 %v3967
    %v3969 = vextract.high.u32 %v3967
    %v3970 = vmul.u32 %v3963, %v3954
    %v3971 = vadd.s32 %v3966, %v3968
    %vm3972 = vc.u32 %v3966, %v3968
    %v3973 = vadd.s32 %v3969, 1
    %v3974 = vsel %vm3972, %v3973, %v3969
    %v3975 = vadd.s32 %v3970, %v3974
    %v3976 = vadd.s32 %v3975, 536870912
    %v3977 = vshrl.u32 %v3976, 30
    %v3978 = vshll.u32 %v3977, 30
    %v3979 = vsub.s32 %v3975, %v3978
    %vm3980 = vcmp.lt.s32.totalorder %v3979, 0
    %v3981 = vsub.s32 0, %v3979
    %v3982 = vsel %vm3980, %v3981, %v3979
    %v3983 = vclz %v3982
    %v3984 = vsub.s32 %v3983, 2
    %vm3985 = vcmp.gt.s32.totalorder 0, %v3984
    %v3986 = vsel %vm3985, 0, %v3984
    %v3987 = vsub.s32 32, %v3986
    %v3988 = vshll.u32 %v3979, %v3986
    %v3989 = vshrl.u32 %v3971, %v3987
    %v3990 = vor.u32 %v3988, %v3989
    %v3991 = vsub.s32 4294967266, %v3986
    %v3992 = vadd.s32 %v3991, 127
    %v3993 = vshll.u32 %v3992, 23
    %v3994 = vor.u32 4788187, %v3993
    %v3995 = vand.u32 2147483647, %v3994
    %v3997 = vcvt.s32.f32 %v3990
    %v3998 = vmul.f32 %v3997, %v3995
    %v3999 = vxor.u32 %v3998, 2147483648
    %v4000 = vsel %vm3917, %v3999, %v3998
    %v4001 = vsub.s32 4, %v3977
    %v4002 = vsel %vm3917, %v4001, %v3977
    %v4003 = vsel %vm3916, %v1038, %v4000
    %v4004 = vsel %vm3916, 0, %v4002
    %v4005 = vcosq.f32.pop %v4003
    %v4006 = vsinq.f32.pop %v4003
    %vm4007 = vweird.f32 %v1038
    %v4008 = vadd.s32 %v4004, 3
    %v4009 = vand.u32 %v4008, 3
    %vm4010 = vcmp.lt.s32.totalorder %v4009, 2
    %vm4011 = vcmp.eq.s32.totalorder %v4009, 0
    %v4012 = vxor.u32 %v4006, 2147483648
    %v4013 = vsel %vm4011, %v4005, %v4012
    %vm4014 = vcmp.eq.s32.totalorder %v4009, 2
    %v4015 = vxor.u32 %v4005, 2147483648
    %v4016 = vsel %vm4014, %v4015, %v4006
    %v4017 = vsel %vm4010, %v4013, %v4016
    %v4018 = vsel %vm4007, nan, %v4017
    %v4019 = vand.u32 2147483647, %v1039
    %vm4020 = vcmp.le.f32.partialorder %v4019, 0.7853982
    %vm4021 = vcmp.lt.s32.totalorder %v1039, 0
    %v4022 = vand.u32 %v1039, 2139095040
    %v4023 = vshrl.u32 %v4022, 23
    %v4024 = vsub.s32 %v4023, 127
    %v4025 = vand.u32 2147483647, %v1039
    %v4026 = vand.u32 %v4025, 8388607
    %v4027 = vor.u32 %v4026, 8388608
    %v4028 = vsub.s32 0, %v4027
    %v4029 = vadd.s32 %v4024, 1
    %vm4030 = vcmp.gt.s32.totalorder %v4029, 0
    %v4031 = vsel %vm4030, %v4029, 0
    %v4032 = vshrl.u32 %v4031, 5
    %v4033 = vand.u32 %v4031, 31
    %v4034 = vsub.s32 32, %v4033
    %v4035 = vshrl.u32 683565275, %v4034
    %v4036 = vshll.u32 683565275, %v4033
    %v4037 = vshrl.u32 2475754826, %v4034
    %v4038 = vor.u32 %v4036, %v4037
    %v4039 = vshll.u32 2475754826, %v4033
    %v4040 = vshrl.u32 2131351028, %v4034
    %v4041 = vor.u32 %v4039, %v4040
    %v4042 = vshll.u32 2131351028, %v4033
    %v4043 = vshrl.u32 2102212464, %v4034
    %v4044 = vor.u32 %v4042, %v4043
    %v4045 = vshll.u32 2102212464, %v4033
    %v4046 = vshrl.u32 920167782, %v4034
    %v4047 = vor.u32 %v4045, %v4046
    %v4048 = vshll.u32 920167782, %v4033
    %v4049 = vshrl.u32 1326507024, %v4034
    %v4050 = vor.u32 %v4048, %v4049
    %vm4051 = vcmp.lt.s32.totalorder %v4032, 1
    %vm4052 = vcmp.lt.s32.totalorder %v4032, 2
    %vm4053 = vcmp.lt.s32.totalorder %v4032, 3
    %vm4054 = vcmp.lt.s32.totalorder %v4032, 4
    %v4055 = vsel %vm4051, %v4035, %v4038
    %v4056 = vsel %vm4054, %v4044, 2102212464
    %v4057 = vsel %vm4053, %v4041, %v4056
    %v4058 = vsel %vm4052, %v4055, %v4057
    %v4059 = vsel %vm4051, %v4038, %v4041
    %v4060 = vsel %vm4054, %v4047, 920167782
    %v4061 = vsel %vm4053, %v4044, %v4060
    %v4062 = vsel %vm4052, %v4059, %v4061
    %v4063 = vsel %vm4051, %v4041, %v4044
    %v4064 = vsel %vm4054, %v4050, 1326507024
    %v4065 = vsel %vm4053, %v4047, %v4064
    %v4066 = vsel %vm4052, %v4063, %v4065
    %v4067 = vshll.u32 %v4027, 8
    %v4068 = vmul.u32.u64.compose %v4067, %v4066
    %v4069 = vextract.low.u32 %v4068
    %v4070 = vextract.high.u32 %v4068
    %v4071 = vmul.u32.u64.compose %v4067, %v4062
    %v4072 = vextract.low.u32 %v4071
    %v4073 = vextract.high.u32 %v4071
    %v4074 = vmul.u32 %v4067, %v4058
    %v4075 = vadd.s32 %v4070, %v4072
    %vm4076 = vc.u32 %v4070, %v4072
    %v4077 = vadd.s32 %v4073, 1
    %v4078 = vsel %vm4076, %v4077, %v4073
    %v4079 = vadd.s32 %v4074, %v4078
    %v4080 = vadd.s32 %v4079, 536870912
    %v4081 = vshrl.u32 %v4080, 30
    %v4082 = vshll.u32 %v4081, 30
    %v4083 = vsub.s32 %v4079, %v4082
    %vm4084 = vcmp.lt.s32.totalorder %v4083, 0
    %v4085 = vsub.s32 0, %v4083
    %v4086 = vsel %vm4084, %v4085, %v4083
    %v4087 = vclz %v4086
    %v4088 = vsub.s32 %v4087, 2
    %vm4089 = vcmp.gt.s32.totalorder 0, %v4088
    %v4090 = vsel %vm4089, 0, %v4088
    %v4091 = vsub.s32 32, %v4090
    %v4092 = vshll.u32 %v4083, %v4090
    %v4093 = vshrl.u32 %v4075, %v4091
    %v4094 = vor.u32 %v4092, %v4093
    %v4095 = vsub.s32 4294967266, %v4090
    %v4096 = vadd.s32 %v4095, 127
    %v4097 = vshll.u32 %v4096, 23
    %v4098 = vor.u32 4788187, %v4097
    %v4099 = vand.u32 2147483647, %v4098
    %v4101 = vcvt.s32.f32 %v4094
    %v4102 = vmul.f32 %v4101, %v4099
    %v4103 = vxor.u32 %v4102, 2147483648
    %v4104 = vsel %vm4021, %v4103, %v4102
    %v4105 = vsub.s32 4, %v4081
    %v4106 = vsel %vm4021, %v4105, %v4081
    %v4107 = vsel %vm4020, %v1039, %v4104
    %v4108 = vsel %vm4020, 0, %v4106
    %v4109 = vcosq.f32.pop %v4107
    %v4110 = vsinq.f32.pop %v4107
    %vm4111 = vweird.f32 %v1039
    %v4112 = vadd.s32 %v4108, 3
    %v4113 = vand.u32 %v4112, 3
    %vm4114 = vcmp.lt.s32.totalorder %v4113, 2
    %vm4115 = vcmp.eq.s32.totalorder %v4113, 0
    %v4116 = vxor.u32 %v4110, 2147483648
    %v4117 = vsel %vm4115, %v4109, %v4116
    %vm4118 = vcmp.eq.s32.totalorder %v4113, 2
    %v4119 = vxor.u32 %v4109, 2147483648
    %v4120 = vsel %vm4118, %v4119, %v4110
    %v4121 = vsel %vm4114, %v4117, %v4120
    %v4122 = vsel %vm4111, nan, %v4121
    %v4123 = vand.u32 2147483647, %v1040
    %vm4124 = vcmp.le.f32.partialorder %v4123, 0.7853982
    %vm4125 = vcmp.lt.s32.totalorder %v1040, 0
    %v4126 = vand.u32 %v1040, 2139095040
    %v4127 = vshrl.u32 %v4126, 23
    %v4128 = vsub.s32 %v4127, 127
    %v4129 = vand.u32 2147483647, %v1040
    %v4130 = vand.u32 %v4129, 8388607
    %v4131 = vor.u32 %v4130, 8388608
    %v4132 = vsub.s32 0, %v4131
    %v4133 = vadd.s32 %v4128, 1
    %vm4134 = vcmp.gt.s32.totalorder %v4133, 0
    %v4135 = vsel %vm4134, %v4133, 0
    %v4136 = vshrl.u32 %v4135, 5
    %v4137 = vand.u32 %v4135, 31
    %v4138 = vsub.s32 32, %v4137
    %v4139 = vshrl.u32 683565275, %v4138
    %v4140 = vshll.u32 683565275, %v4137
    %v4141 = vshrl.u32 2475754826, %v4138
    %v4142 = vor.u32 %v4140, %v4141
    %v4143 = vshll.u32 2475754826, %v4137
    %v4144 = vshrl.u32 2131351028, %v4138
    %v4145 = vor.u32 %v4143, %v4144
    %v4146 = vshll.u32 2131351028, %v4137
    %v4147 = vshrl.u32 2102212464, %v4138
    %v4148 = vor.u32 %v4146, %v4147
    %v4149 = vshll.u32 2102212464, %v4137
    %v4150 = vshrl.u32 920167782, %v4138
    %v4151 = vor.u32 %v4149, %v4150
    %v4152 = vshll.u32 920167782, %v4137
    %v4153 = vshrl.u32 1326507024, %v4138
    %v4154 = vor.u32 %v4152, %v4153
    %vm4155 = vcmp.lt.s32.totalorder %v4136, 1
    %vm4156 = vcmp.lt.s32.totalorder %v4136, 2
    %vm4157 = vcmp.lt.s32.totalorder %v4136, 3
    %vm4158 = vcmp.lt.s32.totalorder %v4136, 4
    %v4159 = vsel %vm4155, %v4139, %v4142
    %v4160 = vsel %vm4158, %v4148, 2102212464
    %v4161 = vsel %vm4157, %v4145, %v4160
    %v4162 = vsel %vm4156, %v4159, %v4161
    %v4163 = vsel %vm4155, %v4142, %v4145
    %v4164 = vsel %vm4158, %v4151, 920167782
    %v4165 = vsel %vm4157, %v4148, %v4164
    %v4166 = vsel %vm4156, %v4163, %v4165
    %v4167 = vsel %vm4155, %v4145, %v4148
    %v4168 = vsel %vm4158, %v4154, 1326507024
    %v4169 = vsel %vm4157, %v4151, %v4168
    %v4170 = vsel %vm4156, %v4167, %v4169
    %v4171 = vshll.u32 %v4131, 8
    %v4172 = vmul.u32.u64.compose %v4171, %v4170
    %v4173 = vextract.low.u32 %v4172
    %v4174 = vextract.high.u32 %v4172
    %v4175 = vmul.u32.u64.compose %v4171, %v4166
    %v4176 = vextract.low.u32 %v4175
    %v4177 = vextract.high.u32 %v4175
    %v4178 = vmul.u32 %v4171, %v4162
    %v4179 = vadd.s32 %v4174, %v4176
    %vm4180 = vc.u32 %v4174, %v4176
    %v4181 = vadd.s32 %v4177, 1
    %v4182 = vsel %vm4180, %v4181, %v4177
    %v4183 = vadd.s32 %v4178, %v4182
    %v4184 = vadd.s32 %v4183, 536870912
    %v4185 = vshrl.u32 %v4184, 30
    %v4186 = vshll.u32 %v4185, 30
    %v4187 = vsub.s32 %v4183, %v4186
    %vm4188 = vcmp.lt.s32.totalorder %v4187, 0
    %v4189 = vsub.s32 0, %v4187
    %v4190 = vsel %vm4188, %v4189, %v4187
    %v4191 = vclz %v4190
    %v4192 = vsub.s32 %v4191, 2
    %vm4193 = vcmp.gt.s32.totalorder 0, %v4192
    %v4194 = vsel %vm4193, 0, %v4192
    %v4195 = vsub.s32 32, %v4194
    %v4196 = vshll.u32 %v4187, %v4194
    %v4197 = vshrl.u32 %v4179, %v4195
    %v4198 = vor.u32 %v4196, %v4197
    %v4199 = vsub.s32 4294967266, %v4194
    %v4200 = vadd.s32 %v4199, 127
    %v4201 = vshll.u32 %v4200, 23
    %v4202 = vor.u32 4788187, %v4201
    %v4203 = vand.u32 2147483647, %v4202
    %v4205 = vcvt.s32.f32 %v4198
    %v4206 = vmul.f32 %v4205, %v4203
    %v4207 = vxor.u32 %v4206, 2147483648
    %v4208 = vsel %vm4125, %v4207, %v4206
    %v4209 = vsub.s32 4, %v4185
    %v4210 = vsel %vm4125, %v4209, %v4185
    %v4211 = vsel %vm4124, %v1040, %v4208
    %v4212 = vsel %vm4124, 0, %v4210
    %v4213 = vcosq.f32.pop %v4211
    %v4214 = vsinq.f32.pop %v4211
    %vm4215 = vweird.f32 %v1040
    %v4216 = vadd.s32 %v4212, 3
    %v4217 = vand.u32 %v4216, 3
    %vm4218 = vcmp.lt.s32.totalorder %v4217, 2
    %vm4219 = vcmp.eq.s32.totalorder %v4217, 0
    %v4220 = vxor.u32 %v4214, 2147483648
    %v4221 = vsel %vm4219, %v4213, %v4220
    %vm4222 = vcmp.eq.s32.totalorder %v4217, 2
    %v4223 = vxor.u32 %v4213, 2147483648
    %v4224 = vsel %vm4222, %v4223, %v4214
    %v4225 = vsel %vm4218, %v4221, %v4224
    %v4226 = vsel %vm4215, nan, %v4225
    %v4227 = vand.u32 2147483647, %v1041
    %vm4228 = vcmp.le.f32.partialorder %v4227, 0.7853982
    %vm4229 = vcmp.lt.s32.totalorder %v1041, 0
    %v4230 = vand.u32 %v1041, 2139095040
    %v4231 = vshrl.u32 %v4230, 23
    %v4232 = vsub.s32 %v4231, 127
    %v4233 = vand.u32 2147483647, %v1041
    %v4234 = vand.u32 %v4233, 8388607
    %v4235 = vor.u32 %v4234, 8388608
    %v4236 = vsub.s32 0, %v4235
    %v4237 = vadd.s32 %v4232, 1
    %vm4238 = vcmp.gt.s32.totalorder %v4237, 0
    %v4239 = vsel %vm4238, %v4237, 0
    %v4240 = vshrl.u32 %v4239, 5
    %v4241 = vand.u32 %v4239, 31
    %v4242 = vsub.s32 32, %v4241
    %v4243 = vshrl.u32 683565275, %v4242
    %v4244 = vshll.u32 683565275, %v4241
    %v4245 = vshrl.u32 2475754826, %v4242
    %v4246 = vor.u32 %v4244, %v4245
    %v4247 = vshll.u32 2475754826, %v4241
    %v4248 = vshrl.u32 2131351028, %v4242
    %v4249 = vor.u32 %v4247, %v4248
    %v4250 = vshll.u32 2131351028, %v4241
    %v4251 = vshrl.u32 2102212464, %v4242
    %v4252 = vor.u32 %v4250, %v4251
    %v4253 = vshll.u32 2102212464, %v4241
    %v4254 = vshrl.u32 920167782, %v4242
    %v4255 = vor.u32 %v4253, %v4254
    %v4256 = vshll.u32 920167782, %v4241
    %v4257 = vshrl.u32 1326507024, %v4242
    %v4258 = vor.u32 %v4256, %v4257
    %vm4259 = vcmp.lt.s32.totalorder %v4240, 1
    %vm4260 = vcmp.lt.s32.totalorder %v4240, 2
    %vm4261 = vcmp.lt.s32.totalorder %v4240, 3
    %vm4262 = vcmp.lt.s32.totalorder %v4240, 4
    %v4263 = vsel %vm4259, %v4243, %v4246
    %v4264 = vsel %vm4262, %v4252, 2102212464
    %v4265 = vsel %vm4261, %v4249, %v4264
    %v4266 = vsel %vm4260, %v4263, %v4265
    %v4267 = vsel %vm4259, %v4246, %v4249
    %v4268 = vsel %vm4262, %v4255, 920167782
    %v4269 = vsel %vm4261, %v4252, %v4268
    %v4270 = vsel %vm4260, %v4267, %v4269
    %v4271 = vsel %vm4259, %v4249, %v4252
    %v4272 = vsel %vm4262, %v4258, 1326507024
    %v4273 = vsel %vm4261, %v4255, %v4272
    %v4274 = vsel %vm4260, %v4271, %v4273
    %v4275 = vshll.u32 %v4235, 8
    %v4276 = vmul.u32.u64.compose %v4275, %v4274
    %v4277 = vextract.low.u32 %v4276
    %v4278 = vextract.high.u32 %v4276
    %v4279 = vmul.u32.u64.compose %v4275, %v4270
    %v4280 = vextract.low.u32 %v4279
    %v4281 = vextract.high.u32 %v4279
    %v4282 = vmul.u32 %v4275, %v4266
    %v4283 = vadd.s32 %v4278, %v4280
    %vm4284 = vc.u32 %v4278, %v4280
    %v4285 = vadd.s32 %v4281, 1
    %v4286 = vsel %vm4284, %v4285, %v4281
    %v4287 = vadd.s32 %v4282, %v4286
    %v4288 = vadd.s32 %v4287, 536870912
    %v4289 = vshrl.u32 %v4288, 30
    %v4290 = vshll.u32 %v4289, 30
    %v4291 = vsub.s32 %v4287, %v4290
    %vm4292 = vcmp.lt.s32.totalorder %v4291, 0
    %v4293 = vsub.s32 0, %v4291
    %v4294 = vsel %vm4292, %v4293, %v4291
    %v4295 = vclz %v4294
    %v4296 = vsub.s32 %v4295, 2
    %vm4297 = vcmp.gt.s32.totalorder 0, %v4296
    %v4298 = vsel %vm4297, 0, %v4296
    %v4299 = vsub.s32 32, %v4298
    %v4300 = vshll.u32 %v4291, %v4298
    %v4301 = vshrl.u32 %v4283, %v4299
    %v4302 = vor.u32 %v4300, %v4301
    %v4303 = vsub.s32 4294967266, %v4298
    %v4304 = vadd.s32 %v4303, 127
    %v4305 = vshll.u32 %v4304, 23
    %v4306 = vor.u32 4788187, %v4305
    %v4307 = vand.u32 2147483647, %v4306
    %v4309 = vcvt.s32.f32 %v4302
    %v4310 = vmul.f32 %v4309, %v4307
    %v4311 = vxor.u32 %v4310, 2147483648
    %v4312 = vsel %vm4229, %v4311, %v4310
    %v4313 = vsub.s32 4, %v4289
    %v4314 = vsel %vm4229, %v4313, %v4289
    %v4315 = vsel %vm4228, %v1041, %v4312
    %v4316 = vsel %vm4228, 0, %v4314
    %v4317 = vcosq.f32.pop %v4315
    %v4318 = vsinq.f32.pop %v4315
    %vm4319 = vweird.f32 %v1041
    %v4320 = vadd.s32 %v4316, 3
    %v4321 = vand.u32 %v4320, 3
    %vm4322 = vcmp.lt.s32.totalorder %v4321, 2
    %vm4323 = vcmp.eq.s32.totalorder %v4321, 0
    %v4324 = vxor.u32 %v4318, 2147483648
    %v4325 = vsel %vm4323, %v4317, %v4324
    %vm4326 = vcmp.eq.s32.totalorder %v4321, 2
    %v4327 = vxor.u32 %v4317, 2147483648
    %v4328 = vsel %vm4326, %v4327, %v4318
    %v4329 = vsel %vm4322, %v4325, %v4328
    %v4330 = vsel %vm4319, nan, %v4329
    %v4331 = vand.u32 2147483647, %v1042
    %vm4332 = vcmp.le.f32.partialorder %v4331, 0.7853982
    %vm4333 = vcmp.lt.s32.totalorder %v1042, 0
    %v4334 = vand.u32 %v1042, 2139095040
    %v4335 = vshrl.u32 %v4334, 23
    %v4336 = vsub.s32 %v4335, 127
    %v4337 = vand.u32 2147483647, %v1042
    %v4338 = vand.u32 %v4337, 8388607
    %v4339 = vor.u32 %v4338, 8388608
    %v4340 = vsub.s32 0, %v4339
    %v4341 = vadd.s32 %v4336, 1
    %vm4342 = vcmp.gt.s32.totalorder %v4341, 0
    %v4343 = vsel %vm4342, %v4341, 0
    %v4344 = vshrl.u32 %v4343, 5
    %v4345 = vand.u32 %v4343, 31
    %v4346 = vsub.s32 32, %v4345
    %v4347 = vshrl.u32 683565275, %v4346
    %v4348 = vshll.u32 683565275, %v4345
    %v4349 = vshrl.u32 2475754826, %v4346
    %v4350 = vor.u32 %v4348, %v4349
    %v4351 = vshll.u32 2475754826, %v4345
    %v4352 = vshrl.u32 2131351028, %v4346
    %v4353 = vor.u32 %v4351, %v4352
    %v4354 = vshll.u32 2131351028, %v4345
    %v4355 = vshrl.u32 2102212464, %v4346
    %v4356 = vor.u32 %v4354, %v4355
    %v4357 = vshll.u32 2102212464, %v4345
    %v4358 = vshrl.u32 920167782, %v4346
    %v4359 = vor.u32 %v4357, %v4358
    %v4360 = vshll.u32 920167782, %v4345
    %v4361 = vshrl.u32 1326507024, %v4346
    %v4362 = vor.u32 %v4360, %v4361
    %vm4363 = vcmp.lt.s32.totalorder %v4344, 1
    %vm4364 = vcmp.lt.s32.totalorder %v4344, 2
    %vm4365 = vcmp.lt.s32.totalorder %v4344, 3
    %vm4366 = vcmp.lt.s32.totalorder %v4344, 4
    %v4367 = vsel %vm4363, %v4347, %v4350
    %v4368 = vsel %vm4366, %v4356, 2102212464
    %v4369 = vsel %vm4365, %v4353, %v4368
    %v4370 = vsel %vm4364, %v4367, %v4369
    %v4371 = vsel %vm4363, %v4350, %v4353
    %v4372 = vsel %vm4366, %v4359, 920167782
    %v4373 = vsel %vm4365, %v4356, %v4372
    %v4374 = vsel %vm4364, %v4371, %v4373
    %v4375 = vsel %vm4363, %v4353, %v4356
    %v4376 = vsel %vm4366, %v4362, 1326507024
    %v4377 = vsel %vm4365, %v4359, %v4376
    %v4378 = vsel %vm4364, %v4375, %v4377
    %v4379 = vshll.u32 %v4339, 8
    %v4380 = vmul.u32.u64.compose %v4379, %v4378
    %v4381 = vextract.low.u32 %v4380
    %v4382 = vextract.high.u32 %v4380
    %v4383 = vmul.u32.u64.compose %v4379, %v4374
    %v4384 = vextract.low.u32 %v4383
    %v4385 = vextract.high.u32 %v4383
    %v4386 = vmul.u32 %v4379, %v4370
    %v4387 = vadd.s32 %v4382, %v4384
    %vm4388 = vc.u32 %v4382, %v4384
    %v4389 = vadd.s32 %v4385, 1
    %v4390 = vsel %vm4388, %v4389, %v4385
    %v4391 = vadd.s32 %v4386, %v4390
    %v4392 = vadd.s32 %v4391, 536870912
    %v4393 = vshrl.u32 %v4392, 30
    %v4394 = vshll.u32 %v4393, 30
    %v4395 = vsub.s32 %v4391, %v4394
    %vm4396 = vcmp.lt.s32.totalorder %v4395, 0
    %v4397 = vsub.s32 0, %v4395
    %v4398 = vsel %vm4396, %v4397, %v4395
    %v4399 = vclz %v4398
    %v4400 = vsub.s32 %v4399, 2
    %vm4401 = vcmp.gt.s32.totalorder 0, %v4400
    %v4402 = vsel %vm4401, 0, %v4400
    %v4403 = vsub.s32 32, %v4402
    %v4404 = vshll.u32 %v4395, %v4402
    %v4405 = vshrl.u32 %v4387, %v4403
    %v4406 = vor.u32 %v4404, %v4405
    %v4407 = vsub.s32 4294967266, %v4402
    %v4408 = vadd.s32 %v4407, 127
    %v4409 = vshll.u32 %v4408, 23
    %v4410 = vor.u32 4788187, %v4409
    %v4411 = vand.u32 2147483647, %v4410
    %v4413 = vcvt.s32.f32 %v4406
    %v4414 = vmul.f32 %v4413, %v4411
    %v4415 = vxor.u32 %v4414, 2147483648
    %v4416 = vsel %vm4333, %v4415, %v4414
    %v4417 = vsub.s32 4, %v4393
    %v4418 = vsel %vm4333, %v4417, %v4393
    %v4419 = vsel %vm4332, %v1042, %v4416
    %v4420 = vsel %vm4332, 0, %v4418
    %v4421 = vcosq.f32.pop %v4419
    %v4422 = vsinq.f32.pop %v4419
    %vm4423 = vweird.f32 %v1042
    %v4424 = vadd.s32 %v4420, 3
    %v4425 = vand.u32 %v4424, 3
    %vm4426 = vcmp.lt.s32.totalorder %v4425, 2
    %vm4427 = vcmp.eq.s32.totalorder %v4425, 0
    %v4428 = vxor.u32 %v4422, 2147483648
    %v4429 = vsel %vm4427, %v4421, %v4428
    %vm4430 = vcmp.eq.s32.totalorder %v4425, 2
    %v4431 = vxor.u32 %v4421, 2147483648
    %v4432 = vsel %vm4430, %v4431, %v4422
    %v4433 = vsel %vm4426, %v4429, %v4432
    %v4434 = vsel %vm4423, nan, %v4433
    %v4435 = vand.u32 2147483647, %v1043
    %vm4436 = vcmp.le.f32.partialorder %v4435, 0.7853982
    %vm4437 = vcmp.lt.s32.totalorder %v1043, 0
    %v4438 = vand.u32 %v1043, 2139095040
    %v4439 = vshrl.u32 %v4438, 23
    %v4440 = vsub.s32 %v4439, 127
    %v4441 = vand.u32 2147483647, %v1043
    %v4442 = vand.u32 %v4441, 8388607
    %v4443 = vor.u32 %v4442, 8388608
    %v4444 = vsub.s32 0, %v4443
    %v4445 = vadd.s32 %v4440, 1
    %vm4446 = vcmp.gt.s32.totalorder %v4445, 0
    %v4447 = vsel %vm4446, %v4445, 0
    %v4448 = vshrl.u32 %v4447, 5
    %v4449 = vand.u32 %v4447, 31
    %v4450 = vsub.s32 32, %v4449
    %v4451 = vshrl.u32 683565275, %v4450
    %v4452 = vshll.u32 683565275, %v4449
    %v4453 = vshrl.u32 2475754826, %v4450
    %v4454 = vor.u32 %v4452, %v4453
    %v4455 = vshll.u32 2475754826, %v4449
    %v4456 = vshrl.u32 2131351028, %v4450
    %v4457 = vor.u32 %v4455, %v4456
    %v4458 = vshll.u32 2131351028, %v4449
    %v4459 = vshrl.u32 2102212464, %v4450
    %v4460 = vor.u32 %v4458, %v4459
    %v4461 = vshll.u32 2102212464, %v4449
    %v4462 = vshrl.u32 920167782, %v4450
    %v4463 = vor.u32 %v4461, %v4462
    %v4464 = vshll.u32 920167782, %v4449
    %v4465 = vshrl.u32 1326507024, %v4450
    %v4466 = vor.u32 %v4464, %v4465
    %vm4467 = vcmp.lt.s32.totalorder %v4448, 1
    %vm4468 = vcmp.lt.s32.totalorder %v4448, 2
    %vm4469 = vcmp.lt.s32.totalorder %v4448, 3
    %vm4470 = vcmp.lt.s32.totalorder %v4448, 4
    %v4471 = vsel %vm4467, %v4451, %v4454
    %v4472 = vsel %vm4470, %v4460, 2102212464
    %v4473 = vsel %vm4469, %v4457, %v4472
    %v4474 = vsel %vm4468, %v4471, %v4473
    %v4475 = vsel %vm4467, %v4454, %v4457
    %v4476 = vsel %vm4470, %v4463, 920167782
    %v4477 = vsel %vm4469, %v4460, %v4476
    %v4478 = vsel %vm4468, %v4475, %v4477
    %v4479 = vsel %vm4467, %v4457, %v4460
    %v4480 = vsel %vm4470, %v4466, 1326507024
    %v4481 = vsel %vm4469, %v4463, %v4480
    %v4482 = vsel %vm4468, %v4479, %v4481
    %v4483 = vshll.u32 %v4443, 8
    %v4484 = vmul.u32.u64.compose %v4483, %v4482
    %v4485 = vextract.low.u32 %v4484
    %v4486 = vextract.high.u32 %v4484
    %v4487 = vmul.u32.u64.compose %v4483, %v4478
    %v4488 = vextract.low.u32 %v4487
    %v4489 = vextract.high.u32 %v4487
    %v4490 = vmul.u32 %v4483, %v4474
    %v4491 = vadd.s32 %v4486, %v4488
    %vm4492 = vc.u32 %v4486, %v4488
    %v4493 = vadd.s32 %v4489, 1
    %v4494 = vsel %vm4492, %v4493, %v4489
    %v4495 = vadd.s32 %v4490, %v4494
    %v4496 = vadd.s32 %v4495, 536870912
    %v4497 = vshrl.u32 %v4496, 30
    %v4498 = vshll.u32 %v4497, 30
    %v4499 = vsub.s32 %v4495, %v4498
    %vm4500 = vcmp.lt.s32.totalorder %v4499, 0
    %v4501 = vsub.s32 0, %v4499
    %v4502 = vsel %vm4500, %v4501, %v4499
    %v4503 = vclz %v4502
    %v4504 = vsub.s32 %v4503, 2
    %vm4505 = vcmp.gt.s32.totalorder 0, %v4504
    %v4506 = vsel %vm4505, 0, %v4504
    %v4507 = vsub.s32 32, %v4506
    %v4508 = vshll.u32 %v4499, %v4506
    %v4509 = vshrl.u32 %v4491, %v4507
    %v4510 = vor.u32 %v4508, %v4509
    %v4511 = vsub.s32 4294967266, %v4506
    %v4512 = vadd.s32 %v4511, 127
    %v4513 = vshll.u32 %v4512, 23
    %v4514 = vor.u32 4788187, %v4513
    %v4515 = vand.u32 2147483647, %v4514
    %v4517 = vcvt.s32.f32 %v4510
    %v4518 = vmul.f32 %v4517, %v4515
    %v4519 = vxor.u32 %v4518, 2147483648
    %v4520 = vsel %vm4437, %v4519, %v4518
    %v4521 = vsub.s32 4, %v4497
    %v4522 = vsel %vm4437, %v4521, %v4497
    %v4523 = vsel %vm4436, %v1043, %v4520
    %v4524 = vsel %vm4436, 0, %v4522
    %v4525 = vcosq.f32.pop %v4523
    %v4526 = vsinq.f32.pop %v4523
    %vm4527 = vweird.f32 %v1043
    %v4528 = vadd.s32 %v4524, 3
    %v4529 = vand.u32 %v4528, 3
    %vm4530 = vcmp.lt.s32.totalorder %v4529, 2
    %vm4531 = vcmp.eq.s32.totalorder %v4529, 0
    %v4532 = vxor.u32 %v4526, 2147483648
    %v4533 = vsel %vm4531, %v4525, %v4532
    %vm4534 = vcmp.eq.s32.totalorder %v4529, 2
    %v4535 = vxor.u32 %v4525, 2147483648
    %v4536 = vsel %vm4534, %v4535, %v4526
    %v4537 = vsel %vm4530, %v4533, %v4536
    %v4538 = vsel %vm4527, nan, %v4537
    %v4539 = vand.u32 2147483647, %v1044
    %vm4540 = vcmp.le.f32.partialorder %v4539, 0.7853982
    %vm4541 = vcmp.lt.s32.totalorder %v1044, 0
    %v4542 = vand.u32 %v1044, 2139095040
    %v4543 = vshrl.u32 %v4542, 23
    %v4544 = vsub.s32 %v4543, 127
    %v4545 = vand.u32 2147483647, %v1044
    %v4546 = vand.u32 %v4545, 8388607
    %v4547 = vor.u32 %v4546, 8388608
    %v4548 = vsub.s32 0, %v4547
    %v4549 = vadd.s32 %v4544, 1
    %vm4550 = vcmp.gt.s32.totalorder %v4549, 0
    %v4551 = vsel %vm4550, %v4549, 0
    %v4552 = vshrl.u32 %v4551, 5
    %v4553 = vand.u32 %v4551, 31
    %v4554 = vsub.s32 32, %v4553
    %v4555 = vshrl.u32 683565275, %v4554
    %v4556 = vshll.u32 683565275, %v4553
    %v4557 = vshrl.u32 2475754826, %v4554
    %v4558 = vor.u32 %v4556, %v4557
    %v4559 = vshll.u32 2475754826, %v4553
    %v4560 = vshrl.u32 2131351028, %v4554
    %v4561 = vor.u32 %v4559, %v4560
    %v4562 = vshll.u32 2131351028, %v4553
    %v4563 = vshrl.u32 2102212464, %v4554
    %v4564 = vor.u32 %v4562, %v4563
    %v4565 = vshll.u32 2102212464, %v4553
    %v4566 = vshrl.u32 920167782, %v4554
    %v4567 = vor.u32 %v4565, %v4566
    %v4568 = vshll.u32 920167782, %v4553
    %v4569 = vshrl.u32 1326507024, %v4554
    %v4570 = vor.u32 %v4568, %v4569
    %vm4571 = vcmp.lt.s32.totalorder %v4552, 1
    %vm4572 = vcmp.lt.s32.totalorder %v4552, 2
    %vm4573 = vcmp.lt.s32.totalorder %v4552, 3
    %vm4574 = vcmp.lt.s32.totalorder %v4552, 4
    %v4575 = vsel %vm4571, %v4555, %v4558
    %v4576 = vsel %vm4574, %v4564, 2102212464
    %v4577 = vsel %vm4573, %v4561, %v4576
    %v4578 = vsel %vm4572, %v4575, %v4577
    %v4579 = vsel %vm4571, %v4558, %v4561
    %v4580 = vsel %vm4574, %v4567, 920167782
    %v4581 = vsel %vm4573, %v4564, %v4580
    %v4582 = vsel %vm4572, %v4579, %v4581
    %v4583 = vsel %vm4571, %v4561, %v4564
    %v4584 = vsel %vm4574, %v4570, 1326507024
    %v4585 = vsel %vm4573, %v4567, %v4584
    %v4586 = vsel %vm4572, %v4583, %v4585
    %v4587 = vshll.u32 %v4547, 8
    %v4588 = vmul.u32.u64.compose %v4587, %v4586
    %v4589 = vextract.low.u32 %v4588
    %v4590 = vextract.high.u32 %v4588
    %v4591 = vmul.u32.u64.compose %v4587, %v4582
    %v4592 = vextract.low.u32 %v4591
    %v4593 = vextract.high.u32 %v4591
    %v4594 = vmul.u32 %v4587, %v4578
    %v4595 = vadd.s32 %v4590, %v4592
    %vm4596 = vc.u32 %v4590, %v4592
    %v4597 = vadd.s32 %v4593, 1
    %v4598 = vsel %vm4596, %v4597, %v4593
    %v4599 = vadd.s32 %v4594, %v4598
    %v4600 = vadd.s32 %v4599, 536870912
    %v4601 = vshrl.u32 %v4600, 30
    %v4602 = vshll.u32 %v4601, 30
    %v4603 = vsub.s32 %v4599, %v4602
    %vm4604 = vcmp.lt.s32.totalorder %v4603, 0
    %v4605 = vsub.s32 0, %v4603
    %v4606 = vsel %vm4604, %v4605, %v4603
    %v4607 = vclz %v4606
    %v4608 = vsub.s32 %v4607, 2
    %vm4609 = vcmp.gt.s32.totalorder 0, %v4608
    %v4610 = vsel %vm4609, 0, %v4608
    %v4611 = vsub.s32 32, %v4610
    %v4612 = vshll.u32 %v4603, %v4610
    %v4613 = vshrl.u32 %v4595, %v4611
    %v4614 = vor.u32 %v4612, %v4613
    %v4615 = vsub.s32 4294967266, %v4610
    %v4616 = vadd.s32 %v4615, 127
    %v4617 = vshll.u32 %v4616, 23
    %v4618 = vor.u32 4788187, %v4617
    %v4619 = vand.u32 2147483647, %v4618
    %v4621 = vcvt.s32.f32 %v4614
    %v4622 = vmul.f32 %v4621, %v4619
    %v4623 = vxor.u32 %v4622, 2147483648
    %v4624 = vsel %vm4541, %v4623, %v4622
    %v4625 = vsub.s32 4, %v4601
    %v4626 = vsel %vm4541, %v4625, %v4601
    %v4627 = vsel %vm4540, %v1044, %v4624
    %v4628 = vsel %vm4540, 0, %v4626
    %v4629 = vcosq.f32.pop %v4627
    %v4630 = vsinq.f32.pop %v4627
    %vm4631 = vweird.f32 %v1044
    %v4632 = vadd.s32 %v4628, 3
    %v4633 = vand.u32 %v4632, 3
    %vm4634 = vcmp.lt.s32.totalorder %v4633, 2
    %vm4635 = vcmp.eq.s32.totalorder %v4633, 0
    %v4636 = vxor.u32 %v4630, 2147483648
    %v4637 = vsel %vm4635, %v4629, %v4636
    %vm4638 = vcmp.eq.s32.totalorder %v4633, 2
    %v4639 = vxor.u32 %v4629, 2147483648
    %v4640 = vsel %vm4638, %v4639, %v4630
    %v4641 = vsel %vm4634, %v4637, %v4640
    %v4642 = vsel %vm4631, nan, %v4641
    %v4643 = vand.u32 2147483647, %v1045
    %vm4644 = vcmp.le.f32.partialorder %v4643, 0.7853982
    %vm4645 = vcmp.lt.s32.totalorder %v1045, 0
    %v4646 = vand.u32 %v1045, 2139095040
    %v4647 = vshrl.u32 %v4646, 23
    %v4648 = vsub.s32 %v4647, 127
    %v4649 = vand.u32 2147483647, %v1045
    %v4650 = vand.u32 %v4649, 8388607
    %v4651 = vor.u32 %v4650, 8388608
    %v4652 = vsub.s32 0, %v4651
    %v4653 = vadd.s32 %v4648, 1
    %vm4654 = vcmp.gt.s32.totalorder %v4653, 0
    %v4655 = vsel %vm4654, %v4653, 0
    %v4656 = vshrl.u32 %v4655, 5
    %v4657 = vand.u32 %v4655, 31
    %v4658 = vsub.s32 32, %v4657
    %v4659 = vshrl.u32 683565275, %v4658
    %v4660 = vshll.u32 683565275, %v4657
    %v4661 = vshrl.u32 2475754826, %v4658
    %v4662 = vor.u32 %v4660, %v4661
    %v4663 = vshll.u32 2475754826, %v4657
    %v4664 = vshrl.u32 2131351028, %v4658
    %v4665 = vor.u32 %v4663, %v4664
    %v4666 = vshll.u32 2131351028, %v4657
    %v4667 = vshrl.u32 2102212464, %v4658
    %v4668 = vor.u32 %v4666, %v4667
    %v4669 = vshll.u32 2102212464, %v4657
    %v4670 = vshrl.u32 920167782, %v4658
    %v4671 = vor.u32 %v4669, %v4670
    %v4672 = vshll.u32 920167782, %v4657
    %v4673 = vshrl.u32 1326507024, %v4658
    %v4674 = vor.u32 %v4672, %v4673
    %vm4675 = vcmp.lt.s32.totalorder %v4656, 1
    %vm4676 = vcmp.lt.s32.totalorder %v4656, 2
    %vm4677 = vcmp.lt.s32.totalorder %v4656, 3
    %vm4678 = vcmp.lt.s32.totalorder %v4656, 4
    %v4679 = vsel %vm4675, %v4659, %v4662
    %v4680 = vsel %vm4678, %v4668, 2102212464
    %v4681 = vsel %vm4677, %v4665, %v4680
    %v4682 = vsel %vm4676, %v4679, %v4681
    %v4683 = vsel %vm4675, %v4662, %v4665
    %v4684 = vsel %vm4678, %v4671, 920167782
    %v4685 = vsel %vm4677, %v4668, %v4684
    %v4686 = vsel %vm4676, %v4683, %v4685
    %v4687 = vsel %vm4675, %v4665, %v4668
    %v4688 = vsel %vm4678, %v4674, 1326507024
    %v4689 = vsel %vm4677, %v4671, %v4688
    %v4690 = vsel %vm4676, %v4687, %v4689
    %v4691 = vshll.u32 %v4651, 8
    %v4692 = vmul.u32.u64.compose %v4691, %v4690
    %v4693 = vextract.low.u32 %v4692
    %v4694 = vextract.high.u32 %v4692
    %v4695 = vmul.u32.u64.compose %v4691, %v4686
    %v4696 = vextract.low.u32 %v4695
    %v4697 = vextract.high.u32 %v4695
    %v4698 = vmul.u32 %v4691, %v4682
    %v4699 = vadd.s32 %v4694, %v4696
    %vm4700 = vc.u32 %v4694, %v4696
    %v4701 = vadd.s32 %v4697, 1
    %v4702 = vsel %vm4700, %v4701, %v4697
    %v4703 = vadd.s32 %v4698, %v4702
    %v4704 = vadd.s32 %v4703, 536870912
    %v4705 = vshrl.u32 %v4704, 30
    %v4706 = vshll.u32 %v4705, 30
    %v4707 = vsub.s32 %v4703, %v4706
    %vm4708 = vcmp.lt.s32.totalorder %v4707, 0
    %v4709 = vsub.s32 0, %v4707
    %v4710 = vsel %vm4708, %v4709, %v4707
    %v4711 = vclz %v4710
    %v4712 = vsub.s32 %v4711, 2
    %vm4713 = vcmp.gt.s32.totalorder 0, %v4712
    %v4714 = vsel %vm4713, 0, %v4712
    %v4715 = vsub.s32 32, %v4714
    %v4716 = vshll.u32 %v4707, %v4714
    %v4717 = vshrl.u32 %v4699, %v4715
    %v4718 = vor.u32 %v4716, %v4717
    %v4719 = vsub.s32 4294967266, %v4714
    %v4720 = vadd.s32 %v4719, 127
    %v4721 = vshll.u32 %v4720, 23
    %v4722 = vor.u32 4788187, %v4721
    %v4723 = vand.u32 2147483647, %v4722
    %v4725 = vcvt.s32.f32 %v4718
    %v4726 = vmul.f32 %v4725, %v4723
    %v4727 = vxor.u32 %v4726, 2147483648
    %v4728 = vsel %vm4645, %v4727, %v4726
    %v4729 = vsub.s32 4, %v4705
    %v4730 = vsel %vm4645, %v4729, %v4705
    %v4731 = vsel %vm4644, %v1045, %v4728
    %v4732 = vsel %vm4644, 0, %v4730
    %v4733 = vcosq.f32.pop %v4731
    %v4734 = vsinq.f32.pop %v4731
    %vm4735 = vweird.f32 %v1045
    %v4736 = vadd.s32 %v4732, 3
    %v4737 = vand.u32 %v4736, 3
    %vm4738 = vcmp.lt.s32.totalorder %v4737, 2
    %vm4739 = vcmp.eq.s32.totalorder %v4737, 0
    %v4740 = vxor.u32 %v4734, 2147483648
    %v4741 = vsel %vm4739, %v4733, %v4740
    %vm4742 = vcmp.eq.s32.totalorder %v4737, 2
    %v4743 = vxor.u32 %v4733, 2147483648
    %v4744 = vsel %vm4742, %v4743, %v4734
    %v4745 = vsel %vm4738, %v4741, %v4744
    %v4746 = vsel %vm4735, nan, %v4745
    %v4747 = vand.u32 2147483647, %v1046
    %vm4748 = vcmp.le.f32.partialorder %v4747, 0.7853982
    %vm4749 = vcmp.lt.s32.totalorder %v1046, 0
    %v4750 = vand.u32 %v1046, 2139095040
    %v4751 = vshrl.u32 %v4750, 23
    %v4752 = vsub.s32 %v4751, 127
    %v4753 = vand.u32 2147483647, %v1046
    %v4754 = vand.u32 %v4753, 8388607
    %v4755 = vor.u32 %v4754, 8388608
    %v4756 = vsub.s32 0, %v4755
    %v4757 = vadd.s32 %v4752, 1
    %vm4758 = vcmp.gt.s32.totalorder %v4757, 0
    %v4759 = vsel %vm4758, %v4757, 0
    %v4760 = vshrl.u32 %v4759, 5
    %v4761 = vand.u32 %v4759, 31
    %v4762 = vsub.s32 32, %v4761
    %v4763 = vshrl.u32 683565275, %v4762
    %v4764 = vshll.u32 683565275, %v4761
    %v4765 = vshrl.u32 2475754826, %v4762
    %v4766 = vor.u32 %v4764, %v4765
    %v4767 = vshll.u32 2475754826, %v4761
    %v4768 = vshrl.u32 2131351028, %v4762
    %v4769 = vor.u32 %v4767, %v4768
    %v4770 = vshll.u32 2131351028, %v4761
    %v4771 = vshrl.u32 2102212464, %v4762
    %v4772 = vor.u32 %v4770, %v4771
    %v4773 = vshll.u32 2102212464, %v4761
    %v4774 = vshrl.u32 920167782, %v4762
    %v4775 = vor.u32 %v4773, %v4774
    %v4776 = vshll.u32 920167782, %v4761
    %v4777 = vshrl.u32 1326507024, %v4762
    %v4778 = vor.u32 %v4776, %v4777
    %vm4779 = vcmp.lt.s32.totalorder %v4760, 1
    %vm4780 = vcmp.lt.s32.totalorder %v4760, 2
    %vm4781 = vcmp.lt.s32.totalorder %v4760, 3
    %vm4782 = vcmp.lt.s32.totalorder %v4760, 4
    %v4783 = vsel %vm4779, %v4763, %v4766
    %v4784 = vsel %vm4782, %v4772, 2102212464
    %v4785 = vsel %vm4781, %v4769, %v4784
    %v4786 = vsel %vm4780, %v4783, %v4785
    %v4787 = vsel %vm4779, %v4766, %v4769
    %v4788 = vsel %vm4782, %v4775, 920167782
    %v4789 = vsel %vm4781, %v4772, %v4788
    %v4790 = vsel %vm4780, %v4787, %v4789
    %v4791 = vsel %vm4779, %v4769, %v4772
    %v4792 = vsel %vm4782, %v4778, 1326507024
    %v4793 = vsel %vm4781, %v4775, %v4792
    %v4794 = vsel %vm4780, %v4791, %v4793
    %v4795 = vshll.u32 %v4755, 8
    %v4796 = vmul.u32.u64.compose %v4795, %v4794
    %v4797 = vextract.low.u32 %v4796
    %v4798 = vextract.high.u32 %v4796
    %v4799 = vmul.u32.u64.compose %v4795, %v4790
    %v4800 = vextract.low.u32 %v4799
    %v4801 = vextract.high.u32 %v4799
    %v4802 = vmul.u32 %v4795, %v4786
    %v4803 = vadd.s32 %v4798, %v4800
    %vm4804 = vc.u32 %v4798, %v4800
    %v4805 = vadd.s32 %v4801, 1
    %v4806 = vsel %vm4804, %v4805, %v4801
    %v4807 = vadd.s32 %v4802, %v4806
    %v4808 = vadd.s32 %v4807, 536870912
    %v4809 = vshrl.u32 %v4808, 30
    %v4810 = vshll.u32 %v4809, 30
    %v4811 = vsub.s32 %v4807, %v4810
    %vm4812 = vcmp.lt.s32.totalorder %v4811, 0
    %v4813 = vsub.s32 0, %v4811
    %v4814 = vsel %vm4812, %v4813, %v4811
    %v4815 = vclz %v4814
    %v4816 = vsub.s32 %v4815, 2
    %vm4817 = vcmp.gt.s32.totalorder 0, %v4816
    %v4818 = vsel %vm4817, 0, %v4816
    %v4819 = vsub.s32 32, %v4818
    %v4820 = vshll.u32 %v4811, %v4818
    %v4821 = vshrl.u32 %v4803, %v4819
    %v4822 = vor.u32 %v4820, %v4821
    %v4823 = vsub.s32 4294967266, %v4818
    %v4824 = vadd.s32 %v4823, 127
    %v4825 = vshll.u32 %v4824, 23
    %v4826 = vor.u32 4788187, %v4825
    %v4827 = vand.u32 2147483647, %v4826
    %v4829 = vcvt.s32.f32 %v4822
    %v4830 = vmul.f32 %v4829, %v4827
    %v4831 = vxor.u32 %v4830, 2147483648
    %v4832 = vsel %vm4749, %v4831, %v4830
    %v4833 = vsub.s32 4, %v4809
    %v4834 = vsel %vm4749, %v4833, %v4809
    %v4835 = vsel %vm4748, %v1046, %v4832
    %v4836 = vsel %vm4748, 0, %v4834
    %v4837 = vcosq.f32.pop %v4835
    %v4838 = vsinq.f32.pop %v4835
    %vm4839 = vweird.f32 %v1046
    %v4840 = vadd.s32 %v4836, 3
    %v4841 = vand.u32 %v4840, 3
    %vm4842 = vcmp.lt.s32.totalorder %v4841, 2
    %vm4843 = vcmp.eq.s32.totalorder %v4841, 0
    %v4844 = vxor.u32 %v4838, 2147483648
    %v4845 = vsel %vm4843, %v4837, %v4844
    %vm4846 = vcmp.eq.s32.totalorder %v4841, 2
    %v4847 = vxor.u32 %v4837, 2147483648
    %v4848 = vsel %vm4846, %v4847, %v4838
    %v4849 = vsel %vm4842, %v4845, %v4848
    %v4850 = vsel %vm4839, nan, %v4849
    %v4851 = vand.u32 2147483647, %v1047
    %vm4852 = vcmp.le.f32.partialorder %v4851, 0.7853982
    %vm4853 = vcmp.lt.s32.totalorder %v1047, 0
    %v4854 = vand.u32 %v1047, 2139095040
    %v4855 = vshrl.u32 %v4854, 23
    %v4856 = vsub.s32 %v4855, 127
    %v4857 = vand.u32 2147483647, %v1047
    %v4858 = vand.u32 %v4857, 8388607
    %v4859 = vor.u32 %v4858, 8388608
    %v4860 = vsub.s32 0, %v4859
    %v4861 = vadd.s32 %v4856, 1
    %vm4862 = vcmp.gt.s32.totalorder %v4861, 0
    %v4863 = vsel %vm4862, %v4861, 0
    %v4864 = vshrl.u32 %v4863, 5
    %v4865 = vand.u32 %v4863, 31
    %v4866 = vsub.s32 32, %v4865
    %v4867 = vshrl.u32 683565275, %v4866
    %v4868 = vshll.u32 683565275, %v4865
    %v4869 = vshrl.u32 2475754826, %v4866
    %v4870 = vor.u32 %v4868, %v4869
    %v4871 = vshll.u32 2475754826, %v4865
    %v4872 = vshrl.u32 2131351028, %v4866
    %v4873 = vor.u32 %v4871, %v4872
    %v4874 = vshll.u32 2131351028, %v4865
    %v4875 = vshrl.u32 2102212464, %v4866
    %v4876 = vor.u32 %v4874, %v4875
    %v4877 = vshll.u32 2102212464, %v4865
    %v4878 = vshrl.u32 920167782, %v4866
    %v4879 = vor.u32 %v4877, %v4878
    %v4880 = vshll.u32 920167782, %v4865
    %v4881 = vshrl.u32 1326507024, %v4866
    %v4882 = vor.u32 %v4880, %v4881
    %vm4883 = vcmp.lt.s32.totalorder %v4864, 1
    %vm4884 = vcmp.lt.s32.totalorder %v4864, 2
    %vm4885 = vcmp.lt.s32.totalorder %v4864, 3
    %vm4886 = vcmp.lt.s32.totalorder %v4864, 4
    %v4887 = vsel %vm4883, %v4867, %v4870
    %v4888 = vsel %vm4886, %v4876, 2102212464
    %v4889 = vsel %vm4885, %v4873, %v4888
    %v4890 = vsel %vm4884, %v4887, %v4889
    %v4891 = vsel %vm4883, %v4870, %v4873
    %v4892 = vsel %vm4886, %v4879, 920167782
    %v4893 = vsel %vm4885, %v4876, %v4892
    %v4894 = vsel %vm4884, %v4891, %v4893
    %v4895 = vsel %vm4883, %v4873, %v4876
    %v4896 = vsel %vm4886, %v4882, 1326507024
    %v4897 = vsel %vm4885, %v4879, %v4896
    %v4898 = vsel %vm4884, %v4895, %v4897
    %v4899 = vshll.u32 %v4859, 8
    %v4900 = vmul.u32.u64.compose %v4899, %v4898
    %v4901 = vextract.low.u32 %v4900
    %v4902 = vextract.high.u32 %v4900
    %v4903 = vmul.u32.u64.compose %v4899, %v4894
    %v4904 = vextract.low.u32 %v4903
    %v4905 = vextract.high.u32 %v4903
    %v4906 = vmul.u32 %v4899, %v4890
    %v4907 = vadd.s32 %v4902, %v4904
    %vm4908 = vc.u32 %v4902, %v4904
    %v4909 = vadd.s32 %v4905, 1
    %v4910 = vsel %vm4908, %v4909, %v4905
    %v4911 = vadd.s32 %v4906, %v4910
    %v4912 = vadd.s32 %v4911, 536870912
    %v4913 = vshrl.u32 %v4912, 30
    %v4914 = vshll.u32 %v4913, 30
    %v4915 = vsub.s32 %v4911, %v4914
    %vm4916 = vcmp.lt.s32.totalorder %v4915, 0
    %v4917 = vsub.s32 0, %v4915
    %v4918 = vsel %vm4916, %v4917, %v4915
    %v4919 = vclz %v4918
    %v4920 = vsub.s32 %v4919, 2
    %vm4921 = vcmp.gt.s32.totalorder 0, %v4920
    %v4922 = vsel %vm4921, 0, %v4920
    %v4923 = vsub.s32 32, %v4922
    %v4924 = vshll.u32 %v4915, %v4922
    %v4925 = vshrl.u32 %v4907, %v4923
    %v4926 = vor.u32 %v4924, %v4925
    %v4927 = vsub.s32 4294967266, %v4922
    %v4928 = vadd.s32 %v4927, 127
    %v4929 = vshll.u32 %v4928, 23
    %v4930 = vor.u32 4788187, %v4929
    %v4931 = vand.u32 2147483647, %v4930
    %v4933 = vcvt.s32.f32 %v4926
    %v4934 = vmul.f32 %v4933, %v4931
    %v4935 = vxor.u32 %v4934, 2147483648
    %v4936 = vsel %vm4853, %v4935, %v4934
    %v4937 = vsub.s32 4, %v4913
    %v4938 = vsel %vm4853, %v4937, %v4913
    %v4939 = vsel %vm4852, %v1047, %v4936
    %v4940 = vsel %vm4852, 0, %v4938
    %v4941 = vcosq.f32.pop %v4939
    %v4942 = vsinq.f32.pop %v4939
    %vm4943 = vweird.f32 %v1047
    %v4944 = vadd.s32 %v4940, 3
    %v4945 = vand.u32 %v4944, 3
    %vm4946 = vcmp.lt.s32.totalorder %v4945, 2
    %vm4947 = vcmp.eq.s32.totalorder %v4945, 0
    %v4948 = vxor.u32 %v4942, 2147483648
    %v4949 = vsel %vm4947, %v4941, %v4948
    %vm4950 = vcmp.eq.s32.totalorder %v4945, 2
    %v4951 = vxor.u32 %v4941, 2147483648
    %v4952 = vsel %vm4950, %v4951, %v4942
    %v4953 = vsel %vm4946, %v4949, %v4952
    %v4954 = vsel %vm4943, nan, %v4953
    %v4955 = vand.u32 2147483647, %v1048
    %vm4956 = vcmp.le.f32.partialorder %v4955, 0.7853982
    %vm4957 = vcmp.lt.s32.totalorder %v1048, 0
    %v4958 = vand.u32 %v1048, 2139095040
    %v4959 = vshrl.u32 %v4958, 23
    %v4960 = vsub.s32 %v4959, 127
    %v4961 = vand.u32 2147483647, %v1048
    %v4962 = vand.u32 %v4961, 8388607
    %v4963 = vor.u32 %v4962, 8388608
    %v4964 = vsub.s32 0, %v4963
    %v4965 = vadd.s32 %v4960, 1
    %vm4966 = vcmp.gt.s32.totalorder %v4965, 0
    %v4967 = vsel %vm4966, %v4965, 0
    %v4968 = vshrl.u32 %v4967, 5
    %v4969 = vand.u32 %v4967, 31
    %v4970 = vsub.s32 32, %v4969
    %v4971 = vshrl.u32 683565275, %v4970
    %v4972 = vshll.u32 683565275, %v4969
    %v4973 = vshrl.u32 2475754826, %v4970
    %v4974 = vor.u32 %v4972, %v4973
    %v4975 = vshll.u32 2475754826, %v4969
    %v4976 = vshrl.u32 2131351028, %v4970
    %v4977 = vor.u32 %v4975, %v4976
    %v4978 = vshll.u32 2131351028, %v4969
    %v4979 = vshrl.u32 2102212464, %v4970
    %v4980 = vor.u32 %v4978, %v4979
    %v4981 = vshll.u32 2102212464, %v4969
    %v4982 = vshrl.u32 920167782, %v4970
    %v4983 = vor.u32 %v4981, %v4982
    %v4984 = vshll.u32 920167782, %v4969
    %v4985 = vshrl.u32 1326507024, %v4970
    %v4986 = vor.u32 %v4984, %v4985
    %vm4987 = vcmp.lt.s32.totalorder %v4968, 1
    %vm4988 = vcmp.lt.s32.totalorder %v4968, 2
    %vm4989 = vcmp.lt.s32.totalorder %v4968, 3
    %vm4990 = vcmp.lt.s32.totalorder %v4968, 4
    %v4991 = vsel %vm4987, %v4971, %v4974
    %v4992 = vsel %vm4990, %v4980, 2102212464
    %v4993 = vsel %vm4989, %v4977, %v4992
    %v4994 = vsel %vm4988, %v4991, %v4993
    %v4995 = vsel %vm4987, %v4974, %v4977
    %v4996 = vsel %vm4990, %v4983, 920167782
    %v4997 = vsel %vm4989, %v4980, %v4996
    %v4998 = vsel %vm4988, %v4995, %v4997
    %v4999 = vsel %vm4987, %v4977, %v4980
    %v5000 = vsel %vm4990, %v4986, 1326507024
    %v5001 = vsel %vm4989, %v4983, %v5000
    %v5002 = vsel %vm4988, %v4999, %v5001
    %v5003 = vshll.u32 %v4963, 8
    %v5004 = vmul.u32.u64.compose %v5003, %v5002
    %v5005 = vextract.low.u32 %v5004
    %v5006 = vextract.high.u32 %v5004
    %v5007 = vmul.u32.u64.compose %v5003, %v4998
    %v5008 = vextract.low.u32 %v5007
    %v5009 = vextract.high.u32 %v5007
    %v5010 = vmul.u32 %v5003, %v4994
    %v5011 = vadd.s32 %v5006, %v5008
    %vm5012 = vc.u32 %v5006, %v5008
    %v5013 = vadd.s32 %v5009, 1
    %v5014 = vsel %vm5012, %v5013, %v5009
    %v5015 = vadd.s32 %v5010, %v5014
    %v5016 = vadd.s32 %v5015, 536870912
    %v5017 = vshrl.u32 %v5016, 30
    %v5018 = vshll.u32 %v5017, 30
    %v5019 = vsub.s32 %v5015, %v5018
    %vm5020 = vcmp.lt.s32.totalorder %v5019, 0
    %v5021 = vsub.s32 0, %v5019
    %v5022 = vsel %vm5020, %v5021, %v5019
    %v5023 = vclz %v5022
    %v5024 = vsub.s32 %v5023, 2
    %vm5025 = vcmp.gt.s32.totalorder 0, %v5024
    %v5026 = vsel %vm5025, 0, %v5024
    %v5027 = vsub.s32 32, %v5026
    %v5028 = vshll.u32 %v5019, %v5026
    %v5029 = vshrl.u32 %v5011, %v5027
    %v5030 = vor.u32 %v5028, %v5029
    %v5031 = vsub.s32 4294967266, %v5026
    %v5032 = vadd.s32 %v5031, 127
    %v5033 = vshll.u32 %v5032, 23
    %v5034 = vor.u32 4788187, %v5033
    %v5035 = vand.u32 2147483647, %v5034
    %v5037 = vcvt.s32.f32 %v5030
    %v5038 = vmul.f32 %v5037, %v5035
    %v5039 = vxor.u32 %v5038, 2147483648
    %v5040 = vsel %vm4957, %v5039, %v5038
    %v5041 = vsub.s32 4, %v5017
    %v5042 = vsel %vm4957, %v5041, %v5017
    %v5043 = vsel %vm4956, %v1048, %v5040
    %v5044 = vsel %vm4956, 0, %v5042
    %v5045 = vcosq.f32.pop %v5043
    %v5046 = vsinq.f32.pop %v5043
    %vm5047 = vweird.f32 %v1048
    %v5048 = vadd.s32 %v5044, 3
    %v5049 = vand.u32 %v5048, 3
    %vm5050 = vcmp.lt.s32.totalorder %v5049, 2
    %vm5051 = vcmp.eq.s32.totalorder %v5049, 0
    %v5052 = vxor.u32 %v5046, 2147483648
    %v5053 = vsel %vm5051, %v5045, %v5052
    %vm5054 = vcmp.eq.s32.totalorder %v5049, 2
    %v5055 = vxor.u32 %v5045, 2147483648
    %v5056 = vsel %vm5054, %v5055, %v5046
    %v5057 = vsel %vm5050, %v5053, %v5056
    %v5058 = vsel %vm5047, nan, %v5057
    %v5059 = vand.u32 2147483647, %v1049
    %vm5060 = vcmp.le.f32.partialorder %v5059, 0.7853982
    %vm5061 = vcmp.lt.s32.totalorder %v1049, 0
    %v5062 = vand.u32 %v1049, 2139095040
    %v5063 = vshrl.u32 %v5062, 23
    %v5064 = vsub.s32 %v5063, 127
    %v5065 = vand.u32 2147483647, %v1049
    %v5066 = vand.u32 %v5065, 8388607
    %v5067 = vor.u32 %v5066, 8388608
    %v5068 = vsub.s32 0, %v5067
    %v5069 = vadd.s32 %v5064, 1
    %vm5070 = vcmp.gt.s32.totalorder %v5069, 0
    %v5071 = vsel %vm5070, %v5069, 0
    %v5072 = vshrl.u32 %v5071, 5
    %v5073 = vand.u32 %v5071, 31
    %v5074 = vsub.s32 32, %v5073
    %v5075 = vshrl.u32 683565275, %v5074
    %v5076 = vshll.u32 683565275, %v5073
    %v5077 = vshrl.u32 2475754826, %v5074
    %v5078 = vor.u32 %v5076, %v5077
    %v5079 = vshll.u32 2475754826, %v5073
    %v5080 = vshrl.u32 2131351028, %v5074
    %v5081 = vor.u32 %v5079, %v5080
    %v5082 = vshll.u32 2131351028, %v5073
    %v5083 = vshrl.u32 2102212464, %v5074
    %v5084 = vor.u32 %v5082, %v5083
    %v5085 = vshll.u32 2102212464, %v5073
    %v5086 = vshrl.u32 920167782, %v5074
    %v5087 = vor.u32 %v5085, %v5086
    %v5088 = vshll.u32 920167782, %v5073
    %v5089 = vshrl.u32 1326507024, %v5074
    %v5090 = vor.u32 %v5088, %v5089
    %vm5091 = vcmp.lt.s32.totalorder %v5072, 1
    %vm5092 = vcmp.lt.s32.totalorder %v5072, 2
    %vm5093 = vcmp.lt.s32.totalorder %v5072, 3
    %vm5094 = vcmp.lt.s32.totalorder %v5072, 4
    %v5095 = vsel %vm5091, %v5075, %v5078
    %v5096 = vsel %vm5094, %v5084, 2102212464
    %v5097 = vsel %vm5093, %v5081, %v5096
    %v5098 = vsel %vm5092, %v5095, %v5097
    %v5099 = vsel %vm5091, %v5078, %v5081
    %v5100 = vsel %vm5094, %v5087, 920167782
    %v5101 = vsel %vm5093, %v5084, %v5100
    %v5102 = vsel %vm5092, %v5099, %v5101
    %v5103 = vsel %vm5091, %v5081, %v5084
    %v5104 = vsel %vm5094, %v5090, 1326507024
    %v5105 = vsel %vm5093, %v5087, %v5104
    %v5106 = vsel %vm5092, %v5103, %v5105
    %v5107 = vshll.u32 %v5067, 8
    %v5108 = vmul.u32.u64.compose %v5107, %v5106
    %v5109 = vextract.low.u32 %v5108
    %v5110 = vextract.high.u32 %v5108
    %v5111 = vmul.u32.u64.compose %v5107, %v5102
    %v5112 = vextract.low.u32 %v5111
    %v5113 = vextract.high.u32 %v5111
    %v5114 = vmul.u32 %v5107, %v5098
    %v5115 = vadd.s32 %v5110, %v5112
    %vm5116 = vc.u32 %v5110, %v5112
    %v5117 = vadd.s32 %v5113, 1
    %v5118 = vsel %vm5116, %v5117, %v5113
    %v5119 = vadd.s32 %v5114, %v5118
    %v5120 = vadd.s32 %v5119, 536870912
    %v5121 = vshrl.u32 %v5120, 30
    %v5122 = vshll.u32 %v5121, 30
    %v5123 = vsub.s32 %v5119, %v5122
    %vm5124 = vcmp.lt.s32.totalorder %v5123, 0
    %v5125 = vsub.s32 0, %v5123
    %v5126 = vsel %vm5124, %v5125, %v5123
    %v5127 = vclz %v5126
    %v5128 = vsub.s32 %v5127, 2
    %vm5129 = vcmp.gt.s32.totalorder 0, %v5128
    %v5130 = vsel %vm5129, 0, %v5128
    %v5131 = vsub.s32 32, %v5130
    %v5132 = vshll.u32 %v5123, %v5130
    %v5133 = vshrl.u32 %v5115, %v5131
    %v5134 = vor.u32 %v5132, %v5133
    %v5135 = vsub.s32 4294967266, %v5130
    %v5136 = vadd.s32 %v5135, 127
    %v5137 = vshll.u32 %v5136, 23
    %v5138 = vor.u32 4788187, %v5137
    %v5139 = vand.u32 2147483647, %v5138
    %v5141 = vcvt.s32.f32 %v5134
    %v5142 = vmul.f32 %v5141, %v5139
    %v5143 = vxor.u32 %v5142, 2147483648
    %v5144 = vsel %vm5061, %v5143, %v5142
    %v5145 = vsub.s32 4, %v5121
    %v5146 = vsel %vm5061, %v5145, %v5121
    %v5147 = vsel %vm5060, %v1049, %v5144
    %v5148 = vsel %vm5060, 0, %v5146
    %v5149 = vcosq.f32.pop %v5147
    %v5150 = vsinq.f32.pop %v5147
    %vm5151 = vweird.f32 %v1049
    %v5152 = vadd.s32 %v5148, 3
    %v5153 = vand.u32 %v5152, 3
    %vm5154 = vcmp.lt.s32.totalorder %v5153, 2
    %vm5155 = vcmp.eq.s32.totalorder %v5153, 0
    %v5156 = vxor.u32 %v5150, 2147483648
    %v5157 = vsel %vm5155, %v5149, %v5156
    %vm5158 = vcmp.eq.s32.totalorder %v5153, 2
    %v5159 = vxor.u32 %v5149, 2147483648
    %v5160 = vsel %vm5158, %v5159, %v5150
    %v5161 = vsel %vm5154, %v5157, %v5160
    %v5162 = vsel %vm5151, nan, %v5161
    %v5163 = vand.u32 2147483647, %v1050
    %vm5164 = vcmp.le.f32.partialorder %v5163, 0.7853982
    %vm5165 = vcmp.lt.s32.totalorder %v1050, 0
    %v5166 = vand.u32 %v1050, 2139095040
    %v5167 = vshrl.u32 %v5166, 23
    %v5168 = vsub.s32 %v5167, 127
    %v5169 = vand.u32 2147483647, %v1050
    %v5170 = vand.u32 %v5169, 8388607
    %v5171 = vor.u32 %v5170, 8388608
    %v5172 = vsub.s32 0, %v5171
    %v5173 = vadd.s32 %v5168, 1
    %vm5174 = vcmp.gt.s32.totalorder %v5173, 0
    %v5175 = vsel %vm5174, %v5173, 0
    %v5176 = vshrl.u32 %v5175, 5
    %v5177 = vand.u32 %v5175, 31
    %v5178 = vsub.s32 32, %v5177
    %v5179 = vshrl.u32 683565275, %v5178
    %v5180 = vshll.u32 683565275, %v5177
    %v5181 = vshrl.u32 2475754826, %v5178
    %v5182 = vor.u32 %v5180, %v5181
    %v5183 = vshll.u32 2475754826, %v5177
    %v5184 = vshrl.u32 2131351028, %v5178
    %v5185 = vor.u32 %v5183, %v5184
    %v5186 = vshll.u32 2131351028, %v5177
    %v5187 = vshrl.u32 2102212464, %v5178
    %v5188 = vor.u32 %v5186, %v5187
    %v5189 = vshll.u32 2102212464, %v5177
    %v5190 = vshrl.u32 920167782, %v5178
    %v5191 = vor.u32 %v5189, %v5190
    %v5192 = vshll.u32 920167782, %v5177
    %v5193 = vshrl.u32 1326507024, %v5178
    %v5194 = vor.u32 %v5192, %v5193
    %vm5195 = vcmp.lt.s32.totalorder %v5176, 1
    %vm5196 = vcmp.lt.s32.totalorder %v5176, 2
    %vm5197 = vcmp.lt.s32.totalorder %v5176, 3
    %vm5198 = vcmp.lt.s32.totalorder %v5176, 4
    %v5199 = vsel %vm5195, %v5179, %v5182
    %v5200 = vsel %vm5198, %v5188, 2102212464
    %v5201 = vsel %vm5197, %v5185, %v5200
    %v5202 = vsel %vm5196, %v5199, %v5201
    %v5203 = vsel %vm5195, %v5182, %v5185
    %v5204 = vsel %vm5198, %v5191, 920167782
    %v5205 = vsel %vm5197, %v5188, %v5204
    %v5206 = vsel %vm5196, %v5203, %v5205
    %v5207 = vsel %vm5195, %v5185, %v5188
    %v5208 = vsel %vm5198, %v5194, 1326507024
    %v5209 = vsel %vm5197, %v5191, %v5208
    %v5210 = vsel %vm5196, %v5207, %v5209
    %v5211 = vshll.u32 %v5171, 8
    %v5212 = vmul.u32.u64.compose %v5211, %v5210
    %v5213 = vextract.low.u32 %v5212
    %v5214 = vextract.high.u32 %v5212
    %v5215 = vmul.u32.u64.compose %v5211, %v5206
    %v5216 = vextract.low.u32 %v5215
    %v5217 = vextract.high.u32 %v5215
    %v5218 = vmul.u32 %v5211, %v5202
    %v5219 = vadd.s32 %v5214, %v5216
    %vm5220 = vc.u32 %v5214, %v5216
    %v5221 = vadd.s32 %v5217, 1
    %v5222 = vsel %vm5220, %v5221, %v5217
    %v5223 = vadd.s32 %v5218, %v5222
    %v5224 = vadd.s32 %v5223, 536870912
    %v5225 = vshrl.u32 %v5224, 30
    %v5226 = vshll.u32 %v5225, 30
    %v5227 = vsub.s32 %v5223, %v5226
    %vm5228 = vcmp.lt.s32.totalorder %v5227, 0
    %v5229 = vsub.s32 0, %v5227
    %v5230 = vsel %vm5228, %v5229, %v5227
    %v5231 = vclz %v5230
    %v5232 = vsub.s32 %v5231, 2
    %vm5233 = vcmp.gt.s32.totalorder 0, %v5232
    %v5234 = vsel %vm5233, 0, %v5232
    %v5235 = vsub.s32 32, %v5234
    %v5236 = vshll.u32 %v5227, %v5234
    %v5237 = vshrl.u32 %v5219, %v5235
    %v5238 = vor.u32 %v5236, %v5237
    %v5239 = vsub.s32 4294967266, %v5234
    %v5240 = vadd.s32 %v5239, 127
    %v5241 = vshll.u32 %v5240, 23
    %v5242 = vor.u32 4788187, %v5241
    %v5243 = vand.u32 2147483647, %v5242
    %v5245 = vcvt.s32.f32 %v5238
    %v5246 = vmul.f32 %v5245, %v5243
    %v5247 = vxor.u32 %v5246, 2147483648
    %v5248 = vsel %vm5165, %v5247, %v5246
    %v5249 = vsub.s32 4, %v5225
    %v5250 = vsel %vm5165, %v5249, %v5225
    %v5251 = vsel %vm5164, %v1050, %v5248
    %v5252 = vsel %vm5164, 0, %v5250
    %v5253 = vcosq.f32.pop %v5251
    %v5254 = vsinq.f32.pop %v5251
    %vm5255 = vweird.f32 %v1050
    %v5256 = vadd.s32 %v5252, 3
    %v5257 = vand.u32 %v5256, 3
    %vm5258 = vcmp.lt.s32.totalorder %v5257, 2
    %vm5259 = vcmp.eq.s32.totalorder %v5257, 0
    %v5260 = vxor.u32 %v5254, 2147483648
    %v5261 = vsel %vm5259, %v5253, %v5260
    %vm5262 = vcmp.eq.s32.totalorder %v5257, 2
    %v5263 = vxor.u32 %v5253, 2147483648
    %v5264 = vsel %vm5262, %v5263, %v5254
    %v5265 = vsel %vm5258, %v5261, %v5264
    %v5266 = vsel %vm5255, nan, %v5265
    %v5267 = vand.u32 2147483647, %v1051
    %vm5268 = vcmp.le.f32.partialorder %v5267, 0.7853982
    %vm5269 = vcmp.lt.s32.totalorder %v1051, 0
    %v5270 = vand.u32 %v1051, 2139095040
    %v5271 = vshrl.u32 %v5270, 23
    %v5272 = vsub.s32 %v5271, 127
    %v5273 = vand.u32 2147483647, %v1051
    %v5274 = vand.u32 %v5273, 8388607
    %v5275 = vor.u32 %v5274, 8388608
    %v5276 = vsub.s32 0, %v5275
    %v5277 = vadd.s32 %v5272, 1
    %vm5278 = vcmp.gt.s32.totalorder %v5277, 0
    %v5279 = vsel %vm5278, %v5277, 0
    %v5280 = vshrl.u32 %v5279, 5
    %v5281 = vand.u32 %v5279, 31
    %v5282 = vsub.s32 32, %v5281
    %v5283 = vshrl.u32 683565275, %v5282
    %v5284 = vshll.u32 683565275, %v5281
    %v5285 = vshrl.u32 2475754826, %v5282
    %v5286 = vor.u32 %v5284, %v5285
    %v5287 = vshll.u32 2475754826, %v5281
    %v5288 = vshrl.u32 2131351028, %v5282
    %v5289 = vor.u32 %v5287, %v5288
    %v5290 = vshll.u32 2131351028, %v5281
    %v5291 = vshrl.u32 2102212464, %v5282
    %v5292 = vor.u32 %v5290, %v5291
    %v5293 = vshll.u32 2102212464, %v5281
    %v5294 = vshrl.u32 920167782, %v5282
    %v5295 = vor.u32 %v5293, %v5294
    %v5296 = vshll.u32 920167782, %v5281
    %v5297 = vshrl.u32 1326507024, %v5282
    %v5298 = vor.u32 %v5296, %v5297
    %vm5299 = vcmp.lt.s32.totalorder %v5280, 1
    %vm5300 = vcmp.lt.s32.totalorder %v5280, 2
    %vm5301 = vcmp.lt.s32.totalorder %v5280, 3
    %vm5302 = vcmp.lt.s32.totalorder %v5280, 4
    %v5303 = vsel %vm5299, %v5283, %v5286
    %v5304 = vsel %vm5302, %v5292, 2102212464
    %v5305 = vsel %vm5301, %v5289, %v5304
    %v5306 = vsel %vm5300, %v5303, %v5305
    %v5307 = vsel %vm5299, %v5286, %v5289
    %v5308 = vsel %vm5302, %v5295, 920167782
    %v5309 = vsel %vm5301, %v5292, %v5308
    %v5310 = vsel %vm5300, %v5307, %v5309
    %v5311 = vsel %vm5299, %v5289, %v5292
    %v5312 = vsel %vm5302, %v5298, 1326507024
    %v5313 = vsel %vm5301, %v5295, %v5312
    %v5314 = vsel %vm5300, %v5311, %v5313
    %v5315 = vshll.u32 %v5275, 8
    %v5316 = vmul.u32.u64.compose %v5315, %v5314
    %v5317 = vextract.low.u32 %v5316
    %v5318 = vextract.high.u32 %v5316
    %v5319 = vmul.u32.u64.compose %v5315, %v5310
    %v5320 = vextract.low.u32 %v5319
    %v5321 = vextract.high.u32 %v5319
    %v5322 = vmul.u32 %v5315, %v5306
    %v5323 = vadd.s32 %v5318, %v5320
    %vm5324 = vc.u32 %v5318, %v5320
    %v5325 = vadd.s32 %v5321, 1
    %v5326 = vsel %vm5324, %v5325, %v5321
    %v5327 = vadd.s32 %v5322, %v5326
    %v5328 = vadd.s32 %v5327, 536870912
    %v5329 = vshrl.u32 %v5328, 30
    %v5330 = vshll.u32 %v5329, 30
    %v5331 = vsub.s32 %v5327, %v5330
    %vm5332 = vcmp.lt.s32.totalorder %v5331, 0
    %v5333 = vsub.s32 0, %v5331
    %v5334 = vsel %vm5332, %v5333, %v5331
    %v5335 = vclz %v5334
    %v5336 = vsub.s32 %v5335, 2
    %vm5337 = vcmp.gt.s32.totalorder 0, %v5336
    %v5338 = vsel %vm5337, 0, %v5336
    %v5339 = vsub.s32 32, %v5338
    %v5340 = vshll.u32 %v5331, %v5338
    %v5341 = vshrl.u32 %v5323, %v5339
    %v5342 = vor.u32 %v5340, %v5341
    %v5343 = vsub.s32 4294967266, %v5338
    %v5344 = vadd.s32 %v5343, 127
    %v5345 = vshll.u32 %v5344, 23
    %v5346 = vor.u32 4788187, %v5345
    %v5347 = vand.u32 2147483647, %v5346
    %v5349 = vcvt.s32.f32 %v5342
    %v5350 = vmul.f32 %v5349, %v5347
    %v5351 = vxor.u32 %v5350, 2147483648
    %v5352 = vsel %vm5269, %v5351, %v5350
    %v5353 = vsub.s32 4, %v5329
    %v5354 = vsel %vm5269, %v5353, %v5329
    %v5355 = vsel %vm5268, %v1051, %v5352
    %v5356 = vsel %vm5268, 0, %v5354
    %v5357 = vcosq.f32.pop %v5355
    %v5358 = vsinq.f32.pop %v5355
    %vm5359 = vweird.f32 %v1051
    %v5360 = vadd.s32 %v5356, 3
    %v5361 = vand.u32 %v5360, 3
    %vm5362 = vcmp.lt.s32.totalorder %v5361, 2
    %vm5363 = vcmp.eq.s32.totalorder %v5361, 0
    %v5364 = vxor.u32 %v5358, 2147483648
    %v5365 = vsel %vm5363, %v5357, %v5364
    %vm5366 = vcmp.eq.s32.totalorder %v5361, 2
    %v5367 = vxor.u32 %v5357, 2147483648
    %v5368 = vsel %vm5366, %v5367, %v5358
    %v5369 = vsel %vm5362, %v5365, %v5368
    %v5370 = vsel %vm5359, nan, %v5369
    %v5371 = vand.u32 2147483647, %v1052
    %vm5372 = vcmp.le.f32.partialorder %v5371, 0.7853982
    %vm5373 = vcmp.lt.s32.totalorder %v1052, 0
    %v5374 = vand.u32 %v1052, 2139095040
    %v5375 = vshrl.u32 %v5374, 23
    %v5376 = vsub.s32 %v5375, 127
    %v5377 = vand.u32 2147483647, %v1052
    %v5378 = vand.u32 %v5377, 8388607
    %v5379 = vor.u32 %v5378, 8388608
    %v5380 = vsub.s32 0, %v5379
    %v5381 = vadd.s32 %v5376, 1
    %vm5382 = vcmp.gt.s32.totalorder %v5381, 0
    %v5383 = vsel %vm5382, %v5381, 0
    %v5384 = vshrl.u32 %v5383, 5
    %v5385 = vand.u32 %v5383, 31
    %v5386 = vsub.s32 32, %v5385
    %v5387 = vshrl.u32 683565275, %v5386
    %v5388 = vshll.u32 683565275, %v5385
    %v5389 = vshrl.u32 2475754826, %v5386
    %v5390 = vor.u32 %v5388, %v5389
    %v5391 = vshll.u32 2475754826, %v5385
    %v5392 = vshrl.u32 2131351028, %v5386
    %v5393 = vor.u32 %v5391, %v5392
    %v5394 = vshll.u32 2131351028, %v5385
    %v5395 = vshrl.u32 2102212464, %v5386
    %v5396 = vor.u32 %v5394, %v5395
    %v5397 = vshll.u32 2102212464, %v5385
    %v5398 = vshrl.u32 920167782, %v5386
    %v5399 = vor.u32 %v5397, %v5398
    %v5400 = vshll.u32 920167782, %v5385
    %v5401 = vshrl.u32 1326507024, %v5386
    %v5402 = vor.u32 %v5400, %v5401
    %vm5403 = vcmp.lt.s32.totalorder %v5384, 1
    %vm5404 = vcmp.lt.s32.totalorder %v5384, 2
    %vm5405 = vcmp.lt.s32.totalorder %v5384, 3
    %vm5406 = vcmp.lt.s32.totalorder %v5384, 4
    %v5407 = vsel %vm5403, %v5387, %v5390
    %v5408 = vsel %vm5406, %v5396, 2102212464
    %v5409 = vsel %vm5405, %v5393, %v5408
    %v5410 = vsel %vm5404, %v5407, %v5409
    %v5411 = vsel %vm5403, %v5390, %v5393
    %v5412 = vsel %vm5406, %v5399, 920167782
    %v5413 = vsel %vm5405, %v5396, %v5412
    %v5414 = vsel %vm5404, %v5411, %v5413
    %v5415 = vsel %vm5403, %v5393, %v5396
    %v5416 = vsel %vm5406, %v5402, 1326507024
    %v5417 = vsel %vm5405, %v5399, %v5416
    %v5418 = vsel %vm5404, %v5415, %v5417
    %v5419 = vshll.u32 %v5379, 8
    %v5420 = vmul.u32.u64.compose %v5419, %v5418
    %v5421 = vextract.low.u32 %v5420
    %v5422 = vextract.high.u32 %v5420
    %v5423 = vmul.u32.u64.compose %v5419, %v5414
    %v5424 = vextract.low.u32 %v5423
    %v5425 = vextract.high.u32 %v5423
    %v5426 = vmul.u32 %v5419, %v5410
    %v5427 = vadd.s32 %v5422, %v5424
    %vm5428 = vc.u32 %v5422, %v5424
    %v5429 = vadd.s32 %v5425, 1
    %v5430 = vsel %vm5428, %v5429, %v5425
    %v5431 = vadd.s32 %v5426, %v5430
    %v5432 = vadd.s32 %v5431, 536870912
    %v5433 = vshrl.u32 %v5432, 30
    %v5434 = vshll.u32 %v5433, 30
    %v5435 = vsub.s32 %v5431, %v5434
    %vm5436 = vcmp.lt.s32.totalorder %v5435, 0
    %v5437 = vsub.s32 0, %v5435
    %v5438 = vsel %vm5436, %v5437, %v5435
    %v5439 = vclz %v5438
    %v5440 = vsub.s32 %v5439, 2
    %vm5441 = vcmp.gt.s32.totalorder 0, %v5440
    %v5442 = vsel %vm5441, 0, %v5440
    %v5443 = vsub.s32 32, %v5442
    %v5444 = vshll.u32 %v5435, %v5442
    %v5445 = vshrl.u32 %v5427, %v5443
    %v5446 = vor.u32 %v5444, %v5445
    %v5447 = vsub.s32 4294967266, %v5442
    %v5448 = vadd.s32 %v5447, 127
    %v5449 = vshll.u32 %v5448, 23
    %v5450 = vor.u32 4788187, %v5449
    %v5451 = vand.u32 2147483647, %v5450
    %v5453 = vcvt.s32.f32 %v5446
    %v5454 = vmul.f32 %v5453, %v5451
    %v5455 = vxor.u32 %v5454, 2147483648
    %v5456 = vsel %vm5373, %v5455, %v5454
    %v5457 = vsub.s32 4, %v5433
    %v5458 = vsel %vm5373, %v5457, %v5433
    %v5459 = vsel %vm5372, %v1052, %v5456
    %v5460 = vsel %vm5372, 0, %v5458
    %v5461 = vcosq.f32.pop %v5459
    %v5462 = vsinq.f32.pop %v5459
    %vm5463 = vweird.f32 %v1052
    %v5464 = vadd.s32 %v5460, 3
    %v5465 = vand.u32 %v5464, 3
    %vm5466 = vcmp.lt.s32.totalorder %v5465, 2
    %vm5467 = vcmp.eq.s32.totalorder %v5465, 0
    %v5468 = vxor.u32 %v5462, 2147483648
    %v5469 = vsel %vm5467, %v5461, %v5468
    %vm5470 = vcmp.eq.s32.totalorder %v5465, 2
    %v5471 = vxor.u32 %v5461, 2147483648
    %v5472 = vsel %vm5470, %v5471, %v5462
    %v5473 = vsel %vm5466, %v5469, %v5472
    %v5474 = vsel %vm5463, nan, %v5473
    %v5475 = vand.u32 2147483647, %v1053
    %vm5476 = vcmp.le.f32.partialorder %v5475, 0.7853982
    %vm5477 = vcmp.lt.s32.totalorder %v1053, 0
    %v5478 = vand.u32 %v1053, 2139095040
    %v5479 = vshrl.u32 %v5478, 23
    %v5480 = vsub.s32 %v5479, 127
    %v5481 = vand.u32 2147483647, %v1053
    %v5482 = vand.u32 %v5481, 8388607
    %v5483 = vor.u32 %v5482, 8388608
    %v5484 = vsub.s32 0, %v5483
    %v5485 = vadd.s32 %v5480, 1
    %vm5486 = vcmp.gt.s32.totalorder %v5485, 0
    %v5487 = vsel %vm5486, %v5485, 0
    %v5488 = vshrl.u32 %v5487, 5
    %v5489 = vand.u32 %v5487, 31
    %v5490 = vsub.s32 32, %v5489
    %v5491 = vshrl.u32 683565275, %v5490
    %v5492 = vshll.u32 683565275, %v5489
    %v5493 = vshrl.u32 2475754826, %v5490
    %v5494 = vor.u32 %v5492, %v5493
    %v5495 = vshll.u32 2475754826, %v5489
    %v5496 = vshrl.u32 2131351028, %v5490
    %v5497 = vor.u32 %v5495, %v5496
    %v5498 = vshll.u32 2131351028, %v5489
    %v5499 = vshrl.u32 2102212464, %v5490
    %v5500 = vor.u32 %v5498, %v5499
    %v5501 = vshll.u32 2102212464, %v5489
    %v5502 = vshrl.u32 920167782, %v5490
    %v5503 = vor.u32 %v5501, %v5502
    %v5504 = vshll.u32 920167782, %v5489
    %v5505 = vshrl.u32 1326507024, %v5490
    %v5506 = vor.u32 %v5504, %v5505
    %vm5507 = vcmp.lt.s32.totalorder %v5488, 1
    %vm5508 = vcmp.lt.s32.totalorder %v5488, 2
    %vm5509 = vcmp.lt.s32.totalorder %v5488, 3
    %vm5510 = vcmp.lt.s32.totalorder %v5488, 4
    %v5511 = vsel %vm5507, %v5491, %v5494
    %v5512 = vsel %vm5510, %v5500, 2102212464
    %v5513 = vsel %vm5509, %v5497, %v5512
    %v5514 = vsel %vm5508, %v5511, %v5513
    %v5515 = vsel %vm5507, %v5494, %v5497
    %v5516 = vsel %vm5510, %v5503, 920167782
    %v5517 = vsel %vm5509, %v5500, %v5516
    %v5518 = vsel %vm5508, %v5515, %v5517
    %v5519 = vsel %vm5507, %v5497, %v5500
    %v5520 = vsel %vm5510, %v5506, 1326507024
    %v5521 = vsel %vm5509, %v5503, %v5520
    %v5522 = vsel %vm5508, %v5519, %v5521
    %v5523 = vshll.u32 %v5483, 8
    %v5524 = vmul.u32.u64.compose %v5523, %v5522
    %v5525 = vextract.low.u32 %v5524
    %v5526 = vextract.high.u32 %v5524
    %v5527 = vmul.u32.u64.compose %v5523, %v5518
    %v5528 = vextract.low.u32 %v5527
    %v5529 = vextract.high.u32 %v5527
    %v5530 = vmul.u32 %v5523, %v5514
    %v5531 = vadd.s32 %v5526, %v5528
    %vm5532 = vc.u32 %v5526, %v5528
    %v5533 = vadd.s32 %v5529, 1
    %v5534 = vsel %vm5532, %v5533, %v5529
    %v5535 = vadd.s32 %v5530, %v5534
    %v5536 = vadd.s32 %v5535, 536870912
    %v5537 = vshrl.u32 %v5536, 30
    %v5538 = vshll.u32 %v5537, 30
    %v5539 = vsub.s32 %v5535, %v5538
    %vm5540 = vcmp.lt.s32.totalorder %v5539, 0
    %v5541 = vsub.s32 0, %v5539
    %v5542 = vsel %vm5540, %v5541, %v5539
    %v5543 = vclz %v5542
    %v5544 = vsub.s32 %v5543, 2
    %vm5545 = vcmp.gt.s32.totalorder 0, %v5544
    %v5546 = vsel %vm5545, 0, %v5544
    %v5547 = vsub.s32 32, %v5546
    %v5548 = vshll.u32 %v5539, %v5546
    %v5549 = vshrl.u32 %v5531, %v5547
    %v5550 = vor.u32 %v5548, %v5549
    %v5551 = vsub.s32 4294967266, %v5546
    %v5552 = vadd.s32 %v5551, 127
    %v5553 = vshll.u32 %v5552, 23
    %v5554 = vor.u32 4788187, %v5553
    %v5555 = vand.u32 2147483647, %v5554
    %v5557 = vcvt.s32.f32 %v5550
    %v5558 = vmul.f32 %v5557, %v5555
    %v5559 = vxor.u32 %v5558, 2147483648
    %v5560 = vsel %vm5477, %v5559, %v5558
    %v5561 = vsub.s32 4, %v5537
    %v5562 = vsel %vm5477, %v5561, %v5537
    %v5563 = vsel %vm5476, %v1053, %v5560
    %v5564 = vsel %vm5476, 0, %v5562
    %v5565 = vcosq.f32.pop %v5563
    %v5566 = vsinq.f32.pop %v5563
    %vm5567 = vweird.f32 %v1053
    %v5568 = vadd.s32 %v5564, 3
    %v5569 = vand.u32 %v5568, 3
    %vm5570 = vcmp.lt.s32.totalorder %v5569, 2
    %vm5571 = vcmp.eq.s32.totalorder %v5569, 0
    %v5572 = vxor.u32 %v5566, 2147483648
    %v5573 = vsel %vm5571, %v5565, %v5572
    %vm5574 = vcmp.eq.s32.totalorder %v5569, 2
    %v5575 = vxor.u32 %v5565, 2147483648
    %v5576 = vsel %vm5574, %v5575, %v5566
    %v5577 = vsel %vm5570, %v5573, %v5576
    %v5578 = vsel %vm5567, nan, %v5577
    %v5579 = vand.u32 2147483647, %v1054
    %vm5580 = vcmp.le.f32.partialorder %v5579, 0.7853982
    %vm5581 = vcmp.lt.s32.totalorder %v1054, 0
    %v5582 = vand.u32 %v1054, 2139095040
    %v5583 = vshrl.u32 %v5582, 23
    %v5584 = vsub.s32 %v5583, 127
    %v5585 = vand.u32 2147483647, %v1054
    %v5586 = vand.u32 %v5585, 8388607
    %v5587 = vor.u32 %v5586, 8388608
    %v5588 = vsub.s32 0, %v5587
    %v5589 = vadd.s32 %v5584, 1
    %vm5590 = vcmp.gt.s32.totalorder %v5589, 0
    %v5591 = vsel %vm5590, %v5589, 0
    %v5592 = vshrl.u32 %v5591, 5
    %v5593 = vand.u32 %v5591, 31
    %v5594 = vsub.s32 32, %v5593
    %v5595 = vshrl.u32 683565275, %v5594
    %v5596 = vshll.u32 683565275, %v5593
    %v5597 = vshrl.u32 2475754826, %v5594
    %v5598 = vor.u32 %v5596, %v5597
    %v5599 = vshll.u32 2475754826, %v5593
    %v5600 = vshrl.u32 2131351028, %v5594
    %v5601 = vor.u32 %v5599, %v5600
    %v5602 = vshll.u32 2131351028, %v5593
    %v5603 = vshrl.u32 2102212464, %v5594
    %v5604 = vor.u32 %v5602, %v5603
    %v5605 = vshll.u32 2102212464, %v5593
    %v5606 = vshrl.u32 920167782, %v5594
    %v5607 = vor.u32 %v5605, %v5606
    %v5608 = vshll.u32 920167782, %v5593
    %v5609 = vshrl.u32 1326507024, %v5594
    %v5610 = vor.u32 %v5608, %v5609
    %vm5611 = vcmp.lt.s32.totalorder %v5592, 1
    %vm5612 = vcmp.lt.s32.totalorder %v5592, 2
    %vm5613 = vcmp.lt.s32.totalorder %v5592, 3
    %vm5614 = vcmp.lt.s32.totalorder %v5592, 4
    %v5615 = vsel %vm5611, %v5595, %v5598
    %v5616 = vsel %vm5614, %v5604, 2102212464
    %v5617 = vsel %vm5613, %v5601, %v5616
    %v5618 = vsel %vm5612, %v5615, %v5617
    %v5619 = vsel %vm5611, %v5598, %v5601
    %v5620 = vsel %vm5614, %v5607, 920167782
    %v5621 = vsel %vm5613, %v5604, %v5620
    %v5622 = vsel %vm5612, %v5619, %v5621
    %v5623 = vsel %vm5611, %v5601, %v5604
    %v5624 = vsel %vm5614, %v5610, 1326507024
    %v5625 = vsel %vm5613, %v5607, %v5624
    %v5626 = vsel %vm5612, %v5623, %v5625
    %v5627 = vshll.u32 %v5587, 8
    %v5628 = vmul.u32.u64.compose %v5627, %v5626
    %v5629 = vextract.low.u32 %v5628
    %v5630 = vextract.high.u32 %v5628
    %v5631 = vmul.u32.u64.compose %v5627, %v5622
    %v5632 = vextract.low.u32 %v5631
    %v5633 = vextract.high.u32 %v5631
    %v5634 = vmul.u32 %v5627, %v5618
    %v5635 = vadd.s32 %v5630, %v5632
    %vm5636 = vc.u32 %v5630, %v5632
    %v5637 = vadd.s32 %v5633, 1
    %v5638 = vsel %vm5636, %v5637, %v5633
    %v5639 = vadd.s32 %v5634, %v5638
    %v5640 = vadd.s32 %v5639, 536870912
    %v5641 = vshrl.u32 %v5640, 30
    %v5642 = vshll.u32 %v5641, 30
    %v5643 = vsub.s32 %v5639, %v5642
    %vm5644 = vcmp.lt.s32.totalorder %v5643, 0
    %v5645 = vsub.s32 0, %v5643
    %v5646 = vsel %vm5644, %v5645, %v5643
    %v5647 = vclz %v5646
    %v5648 = vsub.s32 %v5647, 2
    %vm5649 = vcmp.gt.s32.totalorder 0, %v5648
    %v5650 = vsel %vm5649, 0, %v5648
    %v5651 = vsub.s32 32, %v5650
    %v5652 = vshll.u32 %v5643, %v5650
    %v5653 = vshrl.u32 %v5635, %v5651
    %v5654 = vor.u32 %v5652, %v5653
    %v5655 = vsub.s32 4294967266, %v5650
    %v5656 = vadd.s32 %v5655, 127
    %v5657 = vshll.u32 %v5656, 23
    %v5658 = vor.u32 4788187, %v5657
    %v5659 = vand.u32 2147483647, %v5658
    %v5661 = vcvt.s32.f32 %v5654
    %v5662 = vmul.f32 %v5661, %v5659
    %v5663 = vxor.u32 %v5662, 2147483648
    %v5664 = vsel %vm5581, %v5663, %v5662
    %v5665 = vsub.s32 4, %v5641
    %v5666 = vsel %vm5581, %v5665, %v5641
    %v5667 = vsel %vm5580, %v1054, %v5664
    %v5668 = vsel %vm5580, 0, %v5666
    %v5669 = vcosq.f32.pop %v5667
    %v5670 = vsinq.f32.pop %v5667
    %vm5671 = vweird.f32 %v1054
    %v5672 = vadd.s32 %v5668, 3
    %v5673 = vand.u32 %v5672, 3
    %vm5674 = vcmp.lt.s32.totalorder %v5673, 2
    %vm5675 = vcmp.eq.s32.totalorder %v5673, 0
    %v5676 = vxor.u32 %v5670, 2147483648
    %v5677 = vsel %vm5675, %v5669, %v5676
    %vm5678 = vcmp.eq.s32.totalorder %v5673, 2
    %v5679 = vxor.u32 %v5669, 2147483648
    %v5680 = vsel %vm5678, %v5679, %v5670
    %v5681 = vsel %vm5674, %v5677, %v5680
    %v5682 = vsel %vm5671, nan, %v5681
    %v5683 = vand.u32 2147483647, %v1055
    %vm5684 = vcmp.le.f32.partialorder %v5683, 0.7853982
    %vm5685 = vcmp.lt.s32.totalorder %v1055, 0
    %v5686 = vand.u32 %v1055, 2139095040
    %v5687 = vshrl.u32 %v5686, 23
    %v5688 = vsub.s32 %v5687, 127
    %v5689 = vand.u32 2147483647, %v1055
    %v5690 = vand.u32 %v5689, 8388607
    %v5691 = vor.u32 %v5690, 8388608
    %v5692 = vsub.s32 0, %v5691
    %v5693 = vadd.s32 %v5688, 1
    %vm5694 = vcmp.gt.s32.totalorder %v5693, 0
    %v5695 = vsel %vm5694, %v5693, 0
    %v5696 = vshrl.u32 %v5695, 5
    %v5697 = vand.u32 %v5695, 31
    %v5698 = vsub.s32 32, %v5697
    %v5699 = vshrl.u32 683565275, %v5698
    %v5700 = vshll.u32 683565275, %v5697
    %v5701 = vshrl.u32 2475754826, %v5698
    %v5702 = vor.u32 %v5700, %v5701
    %v5703 = vshll.u32 2475754826, %v5697
    %v5704 = vshrl.u32 2131351028, %v5698
    %v5705 = vor.u32 %v5703, %v5704
    %v5706 = vshll.u32 2131351028, %v5697
    %v5707 = vshrl.u32 2102212464, %v5698
    %v5708 = vor.u32 %v5706, %v5707
    %v5709 = vshll.u32 2102212464, %v5697
    %v5710 = vshrl.u32 920167782, %v5698
    %v5711 = vor.u32 %v5709, %v5710
    %v5712 = vshll.u32 920167782, %v5697
    %v5713 = vshrl.u32 1326507024, %v5698
    %v5714 = vor.u32 %v5712, %v5713
    %vm5715 = vcmp.lt.s32.totalorder %v5696, 1
    %vm5716 = vcmp.lt.s32.totalorder %v5696, 2
    %vm5717 = vcmp.lt.s32.totalorder %v5696, 3
    %vm5718 = vcmp.lt.s32.totalorder %v5696, 4
    %v5719 = vsel %vm5715, %v5699, %v5702
    %v5720 = vsel %vm5718, %v5708, 2102212464
    %v5721 = vsel %vm5717, %v5705, %v5720
    %v5722 = vsel %vm5716, %v5719, %v5721
    %v5723 = vsel %vm5715, %v5702, %v5705
    %v5724 = vsel %vm5718, %v5711, 920167782
    %v5725 = vsel %vm5717, %v5708, %v5724
    %v5726 = vsel %vm5716, %v5723, %v5725
    %v5727 = vsel %vm5715, %v5705, %v5708
    %v5728 = vsel %vm5718, %v5714, 1326507024
    %v5729 = vsel %vm5717, %v5711, %v5728
    %v5730 = vsel %vm5716, %v5727, %v5729
    %v5731 = vshll.u32 %v5691, 8
    %v5732 = vmul.u32.u64.compose %v5731, %v5730
    %v5733 = vextract.low.u32 %v5732
    %v5734 = vextract.high.u32 %v5732
    %v5735 = vmul.u32.u64.compose %v5731, %v5726
    %v5736 = vextract.low.u32 %v5735
    %v5737 = vextract.high.u32 %v5735
    %v5738 = vmul.u32 %v5731, %v5722
    %v5739 = vadd.s32 %v5734, %v5736
    %vm5740 = vc.u32 %v5734, %v5736
    %v5741 = vadd.s32 %v5737, 1
    %v5742 = vsel %vm5740, %v5741, %v5737
    %v5743 = vadd.s32 %v5738, %v5742
    %v5744 = vadd.s32 %v5743, 536870912
    %v5745 = vshrl.u32 %v5744, 30
    %v5746 = vshll.u32 %v5745, 30
    %v5747 = vsub.s32 %v5743, %v5746
    %vm5748 = vcmp.lt.s32.totalorder %v5747, 0
    %v5749 = vsub.s32 0, %v5747
    %v5750 = vsel %vm5748, %v5749, %v5747
    %v5751 = vclz %v5750
    %v5752 = vsub.s32 %v5751, 2
    %vm5753 = vcmp.gt.s32.totalorder 0, %v5752
    %v5754 = vsel %vm5753, 0, %v5752
    %v5755 = vsub.s32 32, %v5754
    %v5756 = vshll.u32 %v5747, %v5754
    %v5757 = vshrl.u32 %v5739, %v5755
    %v5758 = vor.u32 %v5756, %v5757
    %v5759 = vsub.s32 4294967266, %v5754
    %v5760 = vadd.s32 %v5759, 127
    %v5761 = vshll.u32 %v5760, 23
    %v5762 = vor.u32 4788187, %v5761
    %v5763 = vand.u32 2147483647, %v5762
    %v5765 = vcvt.s32.f32 %v5758
    %v5766 = vmul.f32 %v5765, %v5763
    %v5767 = vxor.u32 %v5766, 2147483648
    %v5768 = vsel %vm5685, %v5767, %v5766
    %v5769 = vsub.s32 4, %v5745
    %v5770 = vsel %vm5685, %v5769, %v5745
    %v5771 = vsel %vm5684, %v1055, %v5768
    %v5772 = vsel %vm5684, 0, %v5770
    %v5773 = vcosq.f32.pop %v5771
    %v5774 = vsinq.f32.pop %v5771
    %vm5775 = vweird.f32 %v1055
    %v5776 = vadd.s32 %v5772, 3
    %v5777 = vand.u32 %v5776, 3
    %vm5778 = vcmp.lt.s32.totalorder %v5777, 2
    %vm5779 = vcmp.eq.s32.totalorder %v5777, 0
    %v5780 = vxor.u32 %v5774, 2147483648
    %v5781 = vsel %vm5779, %v5773, %v5780
    %vm5782 = vcmp.eq.s32.totalorder %v5777, 2
    %v5783 = vxor.u32 %v5773, 2147483648
    %v5784 = vsel %vm5782, %v5783, %v5774
    %v5785 = vsel %vm5778, %v5781, %v5784
    %v5786 = vsel %vm5775, nan, %v5785
    %v5787 = vand.u32 2147483647, %v1056
    %vm5788 = vcmp.le.f32.partialorder %v5787, 0.7853982
    %vm5789 = vcmp.lt.s32.totalorder %v1056, 0
    %v5790 = vand.u32 %v1056, 2139095040
    %v5791 = vshrl.u32 %v5790, 23
    %v5792 = vsub.s32 %v5791, 127
    %v5793 = vand.u32 2147483647, %v1056
    %v5794 = vand.u32 %v5793, 8388607
    %v5795 = vor.u32 %v5794, 8388608
    %v5796 = vsub.s32 0, %v5795
    %v5797 = vadd.s32 %v5792, 1
    %vm5798 = vcmp.gt.s32.totalorder %v5797, 0
    %v5799 = vsel %vm5798, %v5797, 0
    %v5800 = vshrl.u32 %v5799, 5
    %v5801 = vand.u32 %v5799, 31
    %v5802 = vsub.s32 32, %v5801
    %v5803 = vshrl.u32 683565275, %v5802
    %v5804 = vshll.u32 683565275, %v5801
    %v5805 = vshrl.u32 2475754826, %v5802
    %v5806 = vor.u32 %v5804, %v5805
    %v5807 = vshll.u32 2475754826, %v5801
    %v5808 = vshrl.u32 2131351028, %v5802
    %v5809 = vor.u32 %v5807, %v5808
    %v5810 = vshll.u32 2131351028, %v5801
    %v5811 = vshrl.u32 2102212464, %v5802
    %v5812 = vor.u32 %v5810, %v5811
    %v5813 = vshll.u32 2102212464, %v5801
    %v5814 = vshrl.u32 920167782, %v5802
    %v5815 = vor.u32 %v5813, %v5814
    %v5816 = vshll.u32 920167782, %v5801
    %v5817 = vshrl.u32 1326507024, %v5802
    %v5818 = vor.u32 %v5816, %v5817
    %vm5819 = vcmp.lt.s32.totalorder %v5800, 1
    %vm5820 = vcmp.lt.s32.totalorder %v5800, 2
    %vm5821 = vcmp.lt.s32.totalorder %v5800, 3
    %vm5822 = vcmp.lt.s32.totalorder %v5800, 4
    %v5823 = vsel %vm5819, %v5803, %v5806
    %v5824 = vsel %vm5822, %v5812, 2102212464
    %v5825 = vsel %vm5821, %v5809, %v5824
    %v5826 = vsel %vm5820, %v5823, %v5825
    %v5827 = vsel %vm5819, %v5806, %v5809
    %v5828 = vsel %vm5822, %v5815, 920167782
    %v5829 = vsel %vm5821, %v5812, %v5828
    %v5830 = vsel %vm5820, %v5827, %v5829
    %v5831 = vsel %vm5819, %v5809, %v5812
    %v5832 = vsel %vm5822, %v5818, 1326507024
    %v5833 = vsel %vm5821, %v5815, %v5832
    %v5834 = vsel %vm5820, %v5831, %v5833
    %v5835 = vshll.u32 %v5795, 8
    %v5836 = vmul.u32.u64.compose %v5835, %v5834
    %v5837 = vextract.low.u32 %v5836
    %v5838 = vextract.high.u32 %v5836
    %v5839 = vmul.u32.u64.compose %v5835, %v5830
    %v5840 = vextract.low.u32 %v5839
    %v5841 = vextract.high.u32 %v5839
    %v5842 = vmul.u32 %v5835, %v5826
    %v5843 = vadd.s32 %v5838, %v5840
    %vm5844 = vc.u32 %v5838, %v5840
    %v5845 = vadd.s32 %v5841, 1
    %v5846 = vsel %vm5844, %v5845, %v5841
    %v5847 = vadd.s32 %v5842, %v5846
    %v5848 = vadd.s32 %v5847, 536870912
    %v5849 = vshrl.u32 %v5848, 30
    %v5850 = vshll.u32 %v5849, 30
    %v5851 = vsub.s32 %v5847, %v5850
    %vm5852 = vcmp.lt.s32.totalorder %v5851, 0
    %v5853 = vsub.s32 0, %v5851
    %v5854 = vsel %vm5852, %v5853, %v5851
    %v5855 = vclz %v5854
    %v5856 = vsub.s32 %v5855, 2
    %vm5857 = vcmp.gt.s32.totalorder 0, %v5856
    %v5858 = vsel %vm5857, 0, %v5856
    %v5859 = vsub.s32 32, %v5858
    %v5860 = vshll.u32 %v5851, %v5858
    %v5861 = vshrl.u32 %v5843, %v5859
    %v5862 = vor.u32 %v5860, %v5861
    %v5863 = vsub.s32 4294967266, %v5858
    %v5864 = vadd.s32 %v5863, 127
    %v5865 = vshll.u32 %v5864, 23
    %v5866 = vor.u32 4788187, %v5865
    %v5867 = vand.u32 2147483647, %v5866
    %v5869 = vcvt.s32.f32 %v5862
    %v5870 = vmul.f32 %v5869, %v5867
    %v5871 = vxor.u32 %v5870, 2147483648
    %v5872 = vsel %vm5789, %v5871, %v5870
    %v5873 = vsub.s32 4, %v5849
    %v5874 = vsel %vm5789, %v5873, %v5849
    %v5875 = vsel %vm5788, %v1056, %v5872
    %v5876 = vsel %vm5788, 0, %v5874
    %v5877 = vcosq.f32.pop %v5875
    %v5878 = vsinq.f32.pop %v5875
    %vm5879 = vweird.f32 %v1056
    %v5880 = vadd.s32 %v5876, 3
    %v5881 = vand.u32 %v5880, 3
    %vm5882 = vcmp.lt.s32.totalorder %v5881, 2
    %vm5883 = vcmp.eq.s32.totalorder %v5881, 0
    %v5884 = vxor.u32 %v5878, 2147483648
    %v5885 = vsel %vm5883, %v5877, %v5884
    %vm5886 = vcmp.eq.s32.totalorder %v5881, 2
    %v5887 = vxor.u32 %v5877, 2147483648
    %v5888 = vsel %vm5886, %v5887, %v5878
    %v5889 = vsel %vm5882, %v5885, %v5888
    %v5890 = vsel %vm5879, nan, %v5889
    %v5891 = vand.u32 2147483647, %v1057
    %vm5892 = vcmp.le.f32.partialorder %v5891, 0.7853982
    %vm5893 = vcmp.lt.s32.totalorder %v1057, 0
    %v5894 = vand.u32 %v1057, 2139095040
    %v5895 = vshrl.u32 %v5894, 23
    %v5896 = vsub.s32 %v5895, 127
    %v5897 = vand.u32 2147483647, %v1057
    %v5898 = vand.u32 %v5897, 8388607
    %v5899 = vor.u32 %v5898, 8388608
    %v5900 = vsub.s32 0, %v5899
    %v5901 = vadd.s32 %v5896, 1
    %vm5902 = vcmp.gt.s32.totalorder %v5901, 0
    %v5903 = vsel %vm5902, %v5901, 0
    %v5904 = vshrl.u32 %v5903, 5
    %v5905 = vand.u32 %v5903, 31
    %v5906 = vsub.s32 32, %v5905
    %v5907 = vshrl.u32 683565275, %v5906
    %v5908 = vshll.u32 683565275, %v5905
    %v5909 = vshrl.u32 2475754826, %v5906
    %v5910 = vor.u32 %v5908, %v5909
    %v5911 = vshll.u32 2475754826, %v5905
    %v5912 = vshrl.u32 2131351028, %v5906
    %v5913 = vor.u32 %v5911, %v5912
    %v5914 = vshll.u32 2131351028, %v5905
    %v5915 = vshrl.u32 2102212464, %v5906
    %v5916 = vor.u32 %v5914, %v5915
    %v5917 = vshll.u32 2102212464, %v5905
    %v5918 = vshrl.u32 920167782, %v5906
    %v5919 = vor.u32 %v5917, %v5918
    %v5920 = vshll.u32 920167782, %v5905
    %v5921 = vshrl.u32 1326507024, %v5906
    %v5922 = vor.u32 %v5920, %v5921
    %vm5923 = vcmp.lt.s32.totalorder %v5904, 1
    %vm5924 = vcmp.lt.s32.totalorder %v5904, 2
    %vm5925 = vcmp.lt.s32.totalorder %v5904, 3
    %vm5926 = vcmp.lt.s32.totalorder %v5904, 4
    %v5927 = vsel %vm5923, %v5907, %v5910
    %v5928 = vsel %vm5926, %v5916, 2102212464
    %v5929 = vsel %vm5925, %v5913, %v5928
    %v5930 = vsel %vm5924, %v5927, %v5929
    %v5931 = vsel %vm5923, %v5910, %v5913
    %v5932 = vsel %vm5926, %v5919, 920167782
    %v5933 = vsel %vm5925, %v5916, %v5932
    %v5934 = vsel %vm5924, %v5931, %v5933
    %v5935 = vsel %vm5923, %v5913, %v5916
    %v5936 = vsel %vm5926, %v5922, 1326507024
    %v5937 = vsel %vm5925, %v5919, %v5936
    %v5938 = vsel %vm5924, %v5935, %v5937
    %v5939 = vshll.u32 %v5899, 8
    %v5940 = vmul.u32.u64.compose %v5939, %v5938
    %v5941 = vextract.low.u32 %v5940
    %v5942 = vextract.high.u32 %v5940
    %v5943 = vmul.u32.u64.compose %v5939, %v5934
    %v5944 = vextract.low.u32 %v5943
    %v5945 = vextract.high.u32 %v5943
    %v5946 = vmul.u32 %v5939, %v5930
    %v5947 = vadd.s32 %v5942, %v5944
    %vm5948 = vc.u32 %v5942, %v5944
    %v5949 = vadd.s32 %v5945, 1
    %v5950 = vsel %vm5948, %v5949, %v5945
    %v5951 = vadd.s32 %v5946, %v5950
    %v5952 = vadd.s32 %v5951, 536870912
    %v5953 = vshrl.u32 %v5952, 30
    %v5954 = vshll.u32 %v5953, 30
    %v5955 = vsub.s32 %v5951, %v5954
    %vm5956 = vcmp.lt.s32.totalorder %v5955, 0
    %v5957 = vsub.s32 0, %v5955
    %v5958 = vsel %vm5956, %v5957, %v5955
    %v5959 = vclz %v5958
    %v5960 = vsub.s32 %v5959, 2
    %vm5961 = vcmp.gt.s32.totalorder 0, %v5960
    %v5962 = vsel %vm5961, 0, %v5960
    %v5963 = vsub.s32 32, %v5962
    %v5964 = vshll.u32 %v5955, %v5962
    %v5965 = vshrl.u32 %v5947, %v5963
    %v5966 = vor.u32 %v5964, %v5965
    %v5967 = vsub.s32 4294967266, %v5962
    %v5968 = vadd.s32 %v5967, 127
    %v5969 = vshll.u32 %v5968, 23
    %v5970 = vor.u32 4788187, %v5969
    %v5971 = vand.u32 2147483647, %v5970
    %v5973 = vcvt.s32.f32 %v5966
    %v5974 = vmul.f32 %v5973, %v5971
    %v5975 = vxor.u32 %v5974, 2147483648
    %v5976 = vsel %vm5893, %v5975, %v5974
    %v5977 = vsub.s32 4, %v5953
    %v5978 = vsel %vm5893, %v5977, %v5953
    %v5979 = vsel %vm5892, %v1057, %v5976
    %v5980 = vsel %vm5892, 0, %v5978
    %v5981 = vcosq.f32.pop %v5979
    %v5982 = vsinq.f32.pop %v5979
    %vm5983 = vweird.f32 %v1057
    %v5984 = vadd.s32 %v5980, 3
    %v5985 = vand.u32 %v5984, 3
    %vm5986 = vcmp.lt.s32.totalorder %v5985, 2
    %vm5987 = vcmp.eq.s32.totalorder %v5985, 0
    %v5988 = vxor.u32 %v5982, 2147483648
    %v5989 = vsel %vm5987, %v5981, %v5988
    %vm5990 = vcmp.eq.s32.totalorder %v5985, 2
    %v5991 = vxor.u32 %v5981, 2147483648
    %v5992 = vsel %vm5990, %v5991, %v5982
    %v5993 = vsel %vm5986, %v5989, %v5992
    %v5994 = vsel %vm5983, nan, %v5993
    %v5995 = vand.u32 2147483647, %v1058
    %vm5996 = vcmp.le.f32.partialorder %v5995, 0.7853982
    %vm5997 = vcmp.lt.s32.totalorder %v1058, 0
    %v5998 = vand.u32 %v1058, 2139095040
    %v5999 = vshrl.u32 %v5998, 23
    %v6000 = vsub.s32 %v5999, 127
    %v6001 = vand.u32 2147483647, %v1058
    %v6002 = vand.u32 %v6001, 8388607
    %v6003 = vor.u32 %v6002, 8388608
    %v6004 = vsub.s32 0, %v6003
    %v6005 = vadd.s32 %v6000, 1
    %vm6006 = vcmp.gt.s32.totalorder %v6005, 0
    %v6007 = vsel %vm6006, %v6005, 0
    %v6008 = vshrl.u32 %v6007, 5
    %v6009 = vand.u32 %v6007, 31
    %v6010 = vsub.s32 32, %v6009
    %v6011 = vshrl.u32 683565275, %v6010
    %v6012 = vshll.u32 683565275, %v6009
    %v6013 = vshrl.u32 2475754826, %v6010
    %v6014 = vor.u32 %v6012, %v6013
    %v6015 = vshll.u32 2475754826, %v6009
    %v6016 = vshrl.u32 2131351028, %v6010
    %v6017 = vor.u32 %v6015, %v6016
    %v6018 = vshll.u32 2131351028, %v6009
    %v6019 = vshrl.u32 2102212464, %v6010
    %v6020 = vor.u32 %v6018, %v6019
    %v6021 = vshll.u32 2102212464, %v6009
    %v6022 = vshrl.u32 920167782, %v6010
    %v6023 = vor.u32 %v6021, %v6022
    %v6024 = vshll.u32 920167782, %v6009
    %v6025 = vshrl.u32 1326507024, %v6010
    %v6026 = vor.u32 %v6024, %v6025
    %vm6027 = vcmp.lt.s32.totalorder %v6008, 1
    %vm6028 = vcmp.lt.s32.totalorder %v6008, 2
    %vm6029 = vcmp.lt.s32.totalorder %v6008, 3
    %vm6030 = vcmp.lt.s32.totalorder %v6008, 4
    %v6031 = vsel %vm6027, %v6011, %v6014
    %v6032 = vsel %vm6030, %v6020, 2102212464
    %v6033 = vsel %vm6029, %v6017, %v6032
    %v6034 = vsel %vm6028, %v6031, %v6033
    %v6035 = vsel %vm6027, %v6014, %v6017
    %v6036 = vsel %vm6030, %v6023, 920167782
    %v6037 = vsel %vm6029, %v6020, %v6036
    %v6038 = vsel %vm6028, %v6035, %v6037
    %v6039 = vsel %vm6027, %v6017, %v6020
    %v6040 = vsel %vm6030, %v6026, 1326507024
    %v6041 = vsel %vm6029, %v6023, %v6040
    %v6042 = vsel %vm6028, %v6039, %v6041
    %v6043 = vshll.u32 %v6003, 8
    %v6044 = vmul.u32.u64.compose %v6043, %v6042
    %v6045 = vextract.low.u32 %v6044
    %v6046 = vextract.high.u32 %v6044
    %v6047 = vmul.u32.u64.compose %v6043, %v6038
    %v6048 = vextract.low.u32 %v6047
    %v6049 = vextract.high.u32 %v6047
    %v6050 = vmul.u32 %v6043, %v6034
    %v6051 = vadd.s32 %v6046, %v6048
    %vm6052 = vc.u32 %v6046, %v6048
    %v6053 = vadd.s32 %v6049, 1
    %v6054 = vsel %vm6052, %v6053, %v6049
    %v6055 = vadd.s32 %v6050, %v6054
    %v6056 = vadd.s32 %v6055, 536870912
    %v6057 = vshrl.u32 %v6056, 30
    %v6058 = vshll.u32 %v6057, 30
    %v6059 = vsub.s32 %v6055, %v6058
    %vm6060 = vcmp.lt.s32.totalorder %v6059, 0
    %v6061 = vsub.s32 0, %v6059
    %v6062 = vsel %vm6060, %v6061, %v6059
    %v6063 = vclz %v6062
    %v6064 = vsub.s32 %v6063, 2
    %vm6065 = vcmp.gt.s32.totalorder 0, %v6064
    %v6066 = vsel %vm6065, 0, %v6064
    %v6067 = vsub.s32 32, %v6066
    %v6068 = vshll.u32 %v6059, %v6066
    %v6069 = vshrl.u32 %v6051, %v6067
    %v6070 = vor.u32 %v6068, %v6069
    %v6071 = vsub.s32 4294967266, %v6066
    %v6072 = vadd.s32 %v6071, 127
    %v6073 = vshll.u32 %v6072, 23
    %v6074 = vor.u32 4788187, %v6073
    %v6075 = vand.u32 2147483647, %v6074
    %v6077 = vcvt.s32.f32 %v6070
    %v6078 = vmul.f32 %v6077, %v6075
    %v6079 = vxor.u32 %v6078, 2147483648
    %v6080 = vsel %vm5997, %v6079, %v6078
    %v6081 = vsub.s32 4, %v6057
    %v6082 = vsel %vm5997, %v6081, %v6057
    %v6083 = vsel %vm5996, %v1058, %v6080
    %v6084 = vsel %vm5996, 0, %v6082
    %v6085 = vcosq.f32.pop %v6083
    %v6086 = vsinq.f32.pop %v6083
    %vm6087 = vweird.f32 %v1058
    %v6088 = vadd.s32 %v6084, 3
    %v6089 = vand.u32 %v6088, 3
    %vm6090 = vcmp.lt.s32.totalorder %v6089, 2
    %vm6091 = vcmp.eq.s32.totalorder %v6089, 0
    %v6092 = vxor.u32 %v6086, 2147483648
    %v6093 = vsel %vm6091, %v6085, %v6092
    %vm6094 = vcmp.eq.s32.totalorder %v6089, 2
    %v6095 = vxor.u32 %v6085, 2147483648
    %v6096 = vsel %vm6094, %v6095, %v6086
    %v6097 = vsel %vm6090, %v6093, %v6096
    %v6098 = vsel %vm6087, nan, %v6097
    %v6099 = vand.u32 2147483647, %v1059
    %vm6100 = vcmp.le.f32.partialorder %v6099, 0.7853982
    %vm6101 = vcmp.lt.s32.totalorder %v1059, 0
    %v6102 = vand.u32 %v1059, 2139095040
    %v6103 = vshrl.u32 %v6102, 23
    %v6104 = vsub.s32 %v6103, 127
    %v6105 = vand.u32 2147483647, %v1059
    %v6106 = vand.u32 %v6105, 8388607
    %v6107 = vor.u32 %v6106, 8388608
    %v6108 = vsub.s32 0, %v6107
    %v6109 = vadd.s32 %v6104, 1
    %vm6110 = vcmp.gt.s32.totalorder %v6109, 0
    %v6111 = vsel %vm6110, %v6109, 0
    %v6112 = vshrl.u32 %v6111, 5
    %v6113 = vand.u32 %v6111, 31
    %v6114 = vsub.s32 32, %v6113
    %v6115 = vshrl.u32 683565275, %v6114
    %v6116 = vshll.u32 683565275, %v6113
    %v6117 = vshrl.u32 2475754826, %v6114
    %v6118 = vor.u32 %v6116, %v6117
    %v6119 = vshll.u32 2475754826, %v6113
    %v6120 = vshrl.u32 2131351028, %v6114
    %v6121 = vor.u32 %v6119, %v6120
    %v6122 = vshll.u32 2131351028, %v6113
    %v6123 = vshrl.u32 2102212464, %v6114
    %v6124 = vor.u32 %v6122, %v6123
    %v6125 = vshll.u32 2102212464, %v6113
    %v6126 = vshrl.u32 920167782, %v6114
    %v6127 = vor.u32 %v6125, %v6126
    %v6128 = vshll.u32 920167782, %v6113
    %v6129 = vshrl.u32 1326507024, %v6114
    %v6130 = vor.u32 %v6128, %v6129
    %vm6131 = vcmp.lt.s32.totalorder %v6112, 1
    %vm6132 = vcmp.lt.s32.totalorder %v6112, 2
    %vm6133 = vcmp.lt.s32.totalorder %v6112, 3
    %vm6134 = vcmp.lt.s32.totalorder %v6112, 4
    %v6135 = vsel %vm6131, %v6115, %v6118
    %v6136 = vsel %vm6134, %v6124, 2102212464
    %v6137 = vsel %vm6133, %v6121, %v6136
    %v6138 = vsel %vm6132, %v6135, %v6137
    %v6139 = vsel %vm6131, %v6118, %v6121
    %v6140 = vsel %vm6134, %v6127, 920167782
    %v6141 = vsel %vm6133, %v6124, %v6140
    %v6142 = vsel %vm6132, %v6139, %v6141
    %v6143 = vsel %vm6131, %v6121, %v6124
    %v6144 = vsel %vm6134, %v6130, 1326507024
    %v6145 = vsel %vm6133, %v6127, %v6144
    %v6146 = vsel %vm6132, %v6143, %v6145
    %v6147 = vshll.u32 %v6107, 8
    %v6148 = vmul.u32.u64.compose %v6147, %v6146
    %v6149 = vextract.low.u32 %v6148
    %v6150 = vextract.high.u32 %v6148
    %v6151 = vmul.u32.u64.compose %v6147, %v6142
    %v6152 = vextract.low.u32 %v6151
    %v6153 = vextract.high.u32 %v6151
    %v6154 = vmul.u32 %v6147, %v6138
    %v6155 = vadd.s32 %v6150, %v6152
    %vm6156 = vc.u32 %v6150, %v6152
    %v6157 = vadd.s32 %v6153, 1
    %v6158 = vsel %vm6156, %v6157, %v6153
    %v6159 = vadd.s32 %v6154, %v6158
    %v6160 = vadd.s32 %v6159, 536870912
    %v6161 = vshrl.u32 %v6160, 30
    %v6162 = vshll.u32 %v6161, 30
    %v6163 = vsub.s32 %v6159, %v6162
    %vm6164 = vcmp.lt.s32.totalorder %v6163, 0
    %v6165 = vsub.s32 0, %v6163
    %v6166 = vsel %vm6164, %v6165, %v6163
    %v6167 = vclz %v6166
    %v6168 = vsub.s32 %v6167, 2
    %vm6169 = vcmp.gt.s32.totalorder 0, %v6168
    %v6170 = vsel %vm6169, 0, %v6168
    %v6171 = vsub.s32 32, %v6170
    %v6172 = vshll.u32 %v6163, %v6170
    %v6173 = vshrl.u32 %v6155, %v6171
    %v6174 = vor.u32 %v6172, %v6173
    %v6175 = vsub.s32 4294967266, %v6170
    %v6176 = vadd.s32 %v6175, 127
    %v6177 = vshll.u32 %v6176, 23
    %v6178 = vor.u32 4788187, %v6177
    %v6179 = vand.u32 2147483647, %v6178
    %v6181 = vcvt.s32.f32 %v6174
    %v6182 = vmul.f32 %v6181, %v6179
    %v6183 = vxor.u32 %v6182, 2147483648
    %v6184 = vsel %vm6101, %v6183, %v6182
    %v6185 = vsub.s32 4, %v6161
    %v6186 = vsel %vm6101, %v6185, %v6161
    %v6187 = vsel %vm6100, %v1059, %v6184
    %v6188 = vsel %vm6100, 0, %v6186
    %v6189 = vcosq.f32.pop %v6187
    %v6190 = vsinq.f32.pop %v6187
    %vm6191 = vweird.f32 %v1059
    %v6192 = vadd.s32 %v6188, 3
    %v6193 = vand.u32 %v6192, 3
    %vm6194 = vcmp.lt.s32.totalorder %v6193, 2
    %vm6195 = vcmp.eq.s32.totalorder %v6193, 0
    %v6196 = vxor.u32 %v6190, 2147483648
    %v6197 = vsel %vm6195, %v6189, %v6196
    %vm6198 = vcmp.eq.s32.totalorder %v6193, 2
    %v6199 = vxor.u32 %v6189, 2147483648
    %v6200 = vsel %vm6198, %v6199, %v6190
    %v6201 = vsel %vm6194, %v6197, %v6200
    %v6202 = vsel %vm6191, nan, %v6201
    %v6203 = vand.u32 2147483647, %v1060
    %vm6204 = vcmp.le.f32.partialorder %v6203, 0.7853982
    %vm6205 = vcmp.lt.s32.totalorder %v1060, 0
    %v6206 = vand.u32 %v1060, 2139095040
    %v6207 = vshrl.u32 %v6206, 23
    %v6208 = vsub.s32 %v6207, 127
    %v6209 = vand.u32 2147483647, %v1060
    %v6210 = vand.u32 %v6209, 8388607
    %v6211 = vor.u32 %v6210, 8388608
    %v6212 = vsub.s32 0, %v6211
    %v6213 = vadd.s32 %v6208, 1
    %vm6214 = vcmp.gt.s32.totalorder %v6213, 0
    %v6215 = vsel %vm6214, %v6213, 0
    %v6216 = vshrl.u32 %v6215, 5
    %v6217 = vand.u32 %v6215, 31
    %v6218 = vsub.s32 32, %v6217
    %v6219 = vshrl.u32 683565275, %v6218
    %v6220 = vshll.u32 683565275, %v6217
    %v6221 = vshrl.u32 2475754826, %v6218
    %v6222 = vor.u32 %v6220, %v6221
    %v6223 = vshll.u32 2475754826, %v6217
    %v6224 = vshrl.u32 2131351028, %v6218
    %v6225 = vor.u32 %v6223, %v6224
    %v6226 = vshll.u32 2131351028, %v6217
    %v6227 = vshrl.u32 2102212464, %v6218
    %v6228 = vor.u32 %v6226, %v6227
    %v6229 = vshll.u32 2102212464, %v6217
    %v6230 = vshrl.u32 920167782, %v6218
    %v6231 = vor.u32 %v6229, %v6230
    %v6232 = vshll.u32 920167782, %v6217
    %v6233 = vshrl.u32 1326507024, %v6218
    %v6234 = vor.u32 %v6232, %v6233
    %vm6235 = vcmp.lt.s32.totalorder %v6216, 1
    %vm6236 = vcmp.lt.s32.totalorder %v6216, 2
    %vm6237 = vcmp.lt.s32.totalorder %v6216, 3
    %vm6238 = vcmp.lt.s32.totalorder %v6216, 4
    %v6239 = vsel %vm6235, %v6219, %v6222
    %v6240 = vsel %vm6238, %v6228, 2102212464
    %v6241 = vsel %vm6237, %v6225, %v6240
    %v6242 = vsel %vm6236, %v6239, %v6241
    %v6243 = vsel %vm6235, %v6222, %v6225
    %v6244 = vsel %vm6238, %v6231, 920167782
    %v6245 = vsel %vm6237, %v6228, %v6244
    %v6246 = vsel %vm6236, %v6243, %v6245
    %v6247 = vsel %vm6235, %v6225, %v6228
    %v6248 = vsel %vm6238, %v6234, 1326507024
    %v6249 = vsel %vm6237, %v6231, %v6248
    %v6250 = vsel %vm6236, %v6247, %v6249
    %v6251 = vshll.u32 %v6211, 8
    %v6252 = vmul.u32.u64.compose %v6251, %v6250
    %v6253 = vextract.low.u32 %v6252
    %v6254 = vextract.high.u32 %v6252
    %v6255 = vmul.u32.u64.compose %v6251, %v6246
    %v6256 = vextract.low.u32 %v6255
    %v6257 = vextract.high.u32 %v6255
    %v6258 = vmul.u32 %v6251, %v6242
    %v6259 = vadd.s32 %v6254, %v6256
    %vm6260 = vc.u32 %v6254, %v6256
    %v6261 = vadd.s32 %v6257, 1
    %v6262 = vsel %vm6260, %v6261, %v6257
    %v6263 = vadd.s32 %v6258, %v6262
    %v6264 = vadd.s32 %v6263, 536870912
    %v6265 = vshrl.u32 %v6264, 30
    %v6266 = vshll.u32 %v6265, 30
    %v6267 = vsub.s32 %v6263, %v6266
    %vm6268 = vcmp.lt.s32.totalorder %v6267, 0
    %v6269 = vsub.s32 0, %v6267
    %v6270 = vsel %vm6268, %v6269, %v6267
    %v6271 = vclz %v6270
    %v6272 = vsub.s32 %v6271, 2
    %vm6273 = vcmp.gt.s32.totalorder 0, %v6272
    %v6274 = vsel %vm6273, 0, %v6272
    %v6275 = vsub.s32 32, %v6274
    %v6276 = vshll.u32 %v6267, %v6274
    %v6277 = vshrl.u32 %v6259, %v6275
    %v6278 = vor.u32 %v6276, %v6277
    %v6279 = vsub.s32 4294967266, %v6274
    %v6280 = vadd.s32 %v6279, 127
    %v6281 = vshll.u32 %v6280, 23
    %v6282 = vor.u32 4788187, %v6281
    %v6283 = vand.u32 2147483647, %v6282
    %v6285 = vcvt.s32.f32 %v6278
    %v6286 = vmul.f32 %v6285, %v6283
    %v6287 = vxor.u32 %v6286, 2147483648
    %v6288 = vsel %vm6205, %v6287, %v6286
    %v6289 = vsub.s32 4, %v6265
    %v6290 = vsel %vm6205, %v6289, %v6265
    %v6291 = vsel %vm6204, %v1060, %v6288
    %v6292 = vsel %vm6204, 0, %v6290
    %v6293 = vcosq.f32.pop %v6291
    %v6294 = vsinq.f32.pop %v6291
    %vm6295 = vweird.f32 %v1060
    %v6296 = vadd.s32 %v6292, 3
    %v6297 = vand.u32 %v6296, 3
    %vm6298 = vcmp.lt.s32.totalorder %v6297, 2
    %vm6299 = vcmp.eq.s32.totalorder %v6297, 0
    %v6300 = vxor.u32 %v6294, 2147483648
    %v6301 = vsel %vm6299, %v6293, %v6300
    %vm6302 = vcmp.eq.s32.totalorder %v6297, 2
    %v6303 = vxor.u32 %v6293, 2147483648
    %v6304 = vsel %vm6302, %v6303, %v6294
    %v6305 = vsel %vm6298, %v6301, %v6304
    %v6306 = vsel %vm6295, nan, %v6305
    %v6307 = vand.u32 2147483647, %v1061
    %vm6308 = vcmp.le.f32.partialorder %v6307, 0.7853982
    %vm6309 = vcmp.lt.s32.totalorder %v1061, 0
    %v6310 = vand.u32 %v1061, 2139095040
    %v6311 = vshrl.u32 %v6310, 23
    %v6312 = vsub.s32 %v6311, 127
    %v6313 = vand.u32 2147483647, %v1061
    %v6314 = vand.u32 %v6313, 8388607
    %v6315 = vor.u32 %v6314, 8388608
    %v6316 = vsub.s32 0, %v6315
    %v6317 = vadd.s32 %v6312, 1
    %vm6318 = vcmp.gt.s32.totalorder %v6317, 0
    %v6319 = vsel %vm6318, %v6317, 0
    %v6320 = vshrl.u32 %v6319, 5
    %v6321 = vand.u32 %v6319, 31
    %v6322 = vsub.s32 32, %v6321
    %v6323 = vshrl.u32 683565275, %v6322
    %v6324 = vshll.u32 683565275, %v6321
    %v6325 = vshrl.u32 2475754826, %v6322
    %v6326 = vor.u32 %v6324, %v6325
    %v6327 = vshll.u32 2475754826, %v6321
    %v6328 = vshrl.u32 2131351028, %v6322
    %v6329 = vor.u32 %v6327, %v6328
    %v6330 = vshll.u32 2131351028, %v6321
    %v6331 = vshrl.u32 2102212464, %v6322
    %v6332 = vor.u32 %v6330, %v6331
    %v6333 = vshll.u32 2102212464, %v6321
    %v6334 = vshrl.u32 920167782, %v6322
    %v6335 = vor.u32 %v6333, %v6334
    %v6336 = vshll.u32 920167782, %v6321
    %v6337 = vshrl.u32 1326507024, %v6322
    %v6338 = vor.u32 %v6336, %v6337
    %vm6339 = vcmp.lt.s32.totalorder %v6320, 1
    %vm6340 = vcmp.lt.s32.totalorder %v6320, 2
    %vm6341 = vcmp.lt.s32.totalorder %v6320, 3
    %vm6342 = vcmp.lt.s32.totalorder %v6320, 4
    %v6343 = vsel %vm6339, %v6323, %v6326
    %v6344 = vsel %vm6342, %v6332, 2102212464
    %v6345 = vsel %vm6341, %v6329, %v6344
    %v6346 = vsel %vm6340, %v6343, %v6345
    %v6347 = vsel %vm6339, %v6326, %v6329
    %v6348 = vsel %vm6342, %v6335, 920167782
    %v6349 = vsel %vm6341, %v6332, %v6348
    %v6350 = vsel %vm6340, %v6347, %v6349
    %v6351 = vsel %vm6339, %v6329, %v6332
    %v6352 = vsel %vm6342, %v6338, 1326507024
    %v6353 = vsel %vm6341, %v6335, %v6352
    %v6354 = vsel %vm6340, %v6351, %v6353
    %v6355 = vshll.u32 %v6315, 8
    %v6356 = vmul.u32.u64.compose %v6355, %v6354
    %v6357 = vextract.low.u32 %v6356
    %v6358 = vextract.high.u32 %v6356
    %v6359 = vmul.u32.u64.compose %v6355, %v6350
    %v6360 = vextract.low.u32 %v6359
    %v6361 = vextract.high.u32 %v6359
    %v6362 = vmul.u32 %v6355, %v6346
    %v6363 = vadd.s32 %v6358, %v6360
    %vm6364 = vc.u32 %v6358, %v6360
    %v6365 = vadd.s32 %v6361, 1
    %v6366 = vsel %vm6364, %v6365, %v6361
    %v6367 = vadd.s32 %v6362, %v6366
    %v6368 = vadd.s32 %v6367, 536870912
    %v6369 = vshrl.u32 %v6368, 30
    %v6370 = vshll.u32 %v6369, 30
    %v6371 = vsub.s32 %v6367, %v6370
    %vm6372 = vcmp.lt.s32.totalorder %v6371, 0
    %v6373 = vsub.s32 0, %v6371
    %v6374 = vsel %vm6372, %v6373, %v6371
    %v6375 = vclz %v6374
    %v6376 = vsub.s32 %v6375, 2
    %vm6377 = vcmp.gt.s32.totalorder 0, %v6376
    %v6378 = vsel %vm6377, 0, %v6376
    %v6379 = vsub.s32 32, %v6378
    %v6380 = vshll.u32 %v6371, %v6378
    %v6381 = vshrl.u32 %v6363, %v6379
    %v6382 = vor.u32 %v6380, %v6381
    %v6383 = vsub.s32 4294967266, %v6378
    %v6384 = vadd.s32 %v6383, 127
    %v6385 = vshll.u32 %v6384, 23
    %v6386 = vor.u32 4788187, %v6385
    %v6387 = vand.u32 2147483647, %v6386
    %v6389 = vcvt.s32.f32 %v6382
    %v6390 = vmul.f32 %v6389, %v6387
    %v6391 = vxor.u32 %v6390, 2147483648
    %v6392 = vsel %vm6309, %v6391, %v6390
    %v6393 = vsub.s32 4, %v6369
    %v6394 = vsel %vm6309, %v6393, %v6369
    %v6395 = vsel %vm6308, %v1061, %v6392
    %v6396 = vsel %vm6308, 0, %v6394
    %v6397 = vcosq.f32.pop %v6395
    %v6398 = vsinq.f32.pop %v6395
    %vm6399 = vweird.f32 %v1061
    %v6400 = vadd.s32 %v6396, 3
    %v6401 = vand.u32 %v6400, 3
    %vm6402 = vcmp.lt.s32.totalorder %v6401, 2
    %vm6403 = vcmp.eq.s32.totalorder %v6401, 0
    %v6404 = vxor.u32 %v6398, 2147483648
    %v6405 = vsel %vm6403, %v6397, %v6404
    %vm6406 = vcmp.eq.s32.totalorder %v6401, 2
    %v6407 = vxor.u32 %v6397, 2147483648
    %v6408 = vsel %vm6406, %v6407, %v6398
    %v6409 = vsel %vm6402, %v6405, %v6408
    %v6410 = vsel %vm6399, nan, %v6409
    %v6411 = vand.u32 2147483647, %v1062
    %vm6412 = vcmp.le.f32.partialorder %v6411, 0.7853982
    %vm6413 = vcmp.lt.s32.totalorder %v1062, 0
    %v6414 = vand.u32 %v1062, 2139095040
    %v6415 = vshrl.u32 %v6414, 23
    %v6416 = vsub.s32 %v6415, 127
    %v6417 = vand.u32 2147483647, %v1062
    %v6418 = vand.u32 %v6417, 8388607
    %v6419 = vor.u32 %v6418, 8388608
    %v6420 = vsub.s32 0, %v6419
    %v6421 = vadd.s32 %v6416, 1
    %vm6422 = vcmp.gt.s32.totalorder %v6421, 0
    %v6423 = vsel %vm6422, %v6421, 0
    %v6424 = vshrl.u32 %v6423, 5
    %v6425 = vand.u32 %v6423, 31
    %v6426 = vsub.s32 32, %v6425
    %v6427 = vshrl.u32 683565275, %v6426
    %v6428 = vshll.u32 683565275, %v6425
    %v6429 = vshrl.u32 2475754826, %v6426
    %v6430 = vor.u32 %v6428, %v6429
    %v6431 = vshll.u32 2475754826, %v6425
    %v6432 = vshrl.u32 2131351028, %v6426
    %v6433 = vor.u32 %v6431, %v6432
    %v6434 = vshll.u32 2131351028, %v6425
    %v6435 = vshrl.u32 2102212464, %v6426
    %v6436 = vor.u32 %v6434, %v6435
    %v6437 = vshll.u32 2102212464, %v6425
    %v6438 = vshrl.u32 920167782, %v6426
    %v6439 = vor.u32 %v6437, %v6438
    %v6440 = vshll.u32 920167782, %v6425
    %v6441 = vshrl.u32 1326507024, %v6426
    %v6442 = vor.u32 %v6440, %v6441
    %vm6443 = vcmp.lt.s32.totalorder %v6424, 1
    %vm6444 = vcmp.lt.s32.totalorder %v6424, 2
    %vm6445 = vcmp.lt.s32.totalorder %v6424, 3
    %vm6446 = vcmp.lt.s32.totalorder %v6424, 4
    %v6447 = vsel %vm6443, %v6427, %v6430
    %v6448 = vsel %vm6446, %v6436, 2102212464
    %v6449 = vsel %vm6445, %v6433, %v6448
    %v6450 = vsel %vm6444, %v6447, %v6449
    %v6451 = vsel %vm6443, %v6430, %v6433
    %v6452 = vsel %vm6446, %v6439, 920167782
    %v6453 = vsel %vm6445, %v6436, %v6452
    %v6454 = vsel %vm6444, %v6451, %v6453
    %v6455 = vsel %vm6443, %v6433, %v6436
    %v6456 = vsel %vm6446, %v6442, 1326507024
    %v6457 = vsel %vm6445, %v6439, %v6456
    %v6458 = vsel %vm6444, %v6455, %v6457
    %v6459 = vshll.u32 %v6419, 8
    %v6460 = vmul.u32.u64.compose %v6459, %v6458
    %v6461 = vextract.low.u32 %v6460
    %v6462 = vextract.high.u32 %v6460
    %v6463 = vmul.u32.u64.compose %v6459, %v6454
    %v6464 = vextract.low.u32 %v6463
    %v6465 = vextract.high.u32 %v6463
    %v6466 = vmul.u32 %v6459, %v6450
    %v6467 = vadd.s32 %v6462, %v6464
    %vm6468 = vc.u32 %v6462, %v6464
    %v6469 = vadd.s32 %v6465, 1
    %v6470 = vsel %vm6468, %v6469, %v6465
    %v6471 = vadd.s32 %v6466, %v6470
    %v6472 = vadd.s32 %v6471, 536870912
    %v6473 = vshrl.u32 %v6472, 30
    %v6474 = vshll.u32 %v6473, 30
    %v6475 = vsub.s32 %v6471, %v6474
    %vm6476 = vcmp.lt.s32.totalorder %v6475, 0
    %v6477 = vsub.s32 0, %v6475
    %v6478 = vsel %vm6476, %v6477, %v6475
    %v6479 = vclz %v6478
    %v6480 = vsub.s32 %v6479, 2
    %vm6481 = vcmp.gt.s32.totalorder 0, %v6480
    %v6482 = vsel %vm6481, 0, %v6480
    %v6483 = vsub.s32 32, %v6482
    %v6484 = vshll.u32 %v6475, %v6482
    %v6485 = vshrl.u32 %v6467, %v6483
    %v6486 = vor.u32 %v6484, %v6485
    %v6487 = vsub.s32 4294967266, %v6482
    %v6488 = vadd.s32 %v6487, 127
    %v6489 = vshll.u32 %v6488, 23
    %v6490 = vor.u32 4788187, %v6489
    %v6491 = vand.u32 2147483647, %v6490
    %v6493 = vcvt.s32.f32 %v6486
    %v6494 = vmul.f32 %v6493, %v6491
    %v6495 = vxor.u32 %v6494, 2147483648
    %v6496 = vsel %vm6413, %v6495, %v6494
    %v6497 = vsub.s32 4, %v6473
    %v6498 = vsel %vm6413, %v6497, %v6473
    %v6499 = vsel %vm6412, %v1062, %v6496
    %v6500 = vsel %vm6412, 0, %v6498
    %v6501 = vcosq.f32.pop %v6499
    %v6502 = vsinq.f32.pop %v6499
    %vm6503 = vweird.f32 %v1062
    %v6504 = vadd.s32 %v6500, 3
    %v6505 = vand.u32 %v6504, 3
    %vm6506 = vcmp.lt.s32.totalorder %v6505, 2
    %vm6507 = vcmp.eq.s32.totalorder %v6505, 0
    %v6508 = vxor.u32 %v6502, 2147483648
    %v6509 = vsel %vm6507, %v6501, %v6508
    %vm6510 = vcmp.eq.s32.totalorder %v6505, 2
    %v6511 = vxor.u32 %v6501, 2147483648
    %v6512 = vsel %vm6510, %v6511, %v6502
    %v6513 = vsel %vm6506, %v6509, %v6512
    %v6514 = vsel %vm6503, nan, %v6513
    %v6515 = vand.u32 2147483647, %v1063
    %vm6516 = vcmp.le.f32.partialorder %v6515, 0.7853982
    %vm6517 = vcmp.lt.s32.totalorder %v1063, 0
    %v6518 = vand.u32 %v1063, 2139095040
    %v6519 = vshrl.u32 %v6518, 23
    %v6520 = vsub.s32 %v6519, 127
    %v6521 = vand.u32 2147483647, %v1063
    %v6522 = vand.u32 %v6521, 8388607
    %v6523 = vor.u32 %v6522, 8388608
    %v6524 = vsub.s32 0, %v6523
    %v6525 = vadd.s32 %v6520, 1
    %vm6526 = vcmp.gt.s32.totalorder %v6525, 0
    %v6527 = vsel %vm6526, %v6525, 0
    %v6528 = vshrl.u32 %v6527, 5
    %v6529 = vand.u32 %v6527, 31
    %v6530 = vsub.s32 32, %v6529
    %v6531 = vshrl.u32 683565275, %v6530
    %v6532 = vshll.u32 683565275, %v6529
    %v6533 = vshrl.u32 2475754826, %v6530
    %v6534 = vor.u32 %v6532, %v6533
    %v6535 = vshll.u32 2475754826, %v6529
    %v6536 = vshrl.u32 2131351028, %v6530
    %v6537 = vor.u32 %v6535, %v6536
    %v6538 = vshll.u32 2131351028, %v6529
    %v6539 = vshrl.u32 2102212464, %v6530
    %v6540 = vor.u32 %v6538, %v6539
    %v6541 = vshll.u32 2102212464, %v6529
    %v6542 = vshrl.u32 920167782, %v6530
    %v6543 = vor.u32 %v6541, %v6542
    %v6544 = vshll.u32 920167782, %v6529
    %v6545 = vshrl.u32 1326507024, %v6530
    %v6546 = vor.u32 %v6544, %v6545
    %vm6547 = vcmp.lt.s32.totalorder %v6528, 1
    %vm6548 = vcmp.lt.s32.totalorder %v6528, 2
    %vm6549 = vcmp.lt.s32.totalorder %v6528, 3
    %vm6550 = vcmp.lt.s32.totalorder %v6528, 4
    %v6551 = vsel %vm6547, %v6531, %v6534
    %v6552 = vsel %vm6550, %v6540, 2102212464
    %v6553 = vsel %vm6549, %v6537, %v6552
    %v6554 = vsel %vm6548, %v6551, %v6553
    %v6555 = vsel %vm6547, %v6534, %v6537
    %v6556 = vsel %vm6550, %v6543, 920167782
    %v6557 = vsel %vm6549, %v6540, %v6556
    %v6558 = vsel %vm6548, %v6555, %v6557
    %v6559 = vsel %vm6547, %v6537, %v6540
    %v6560 = vsel %vm6550, %v6546, 1326507024
    %v6561 = vsel %vm6549, %v6543, %v6560
    %v6562 = vsel %vm6548, %v6559, %v6561
    %v6563 = vshll.u32 %v6523, 8
    %v6564 = vmul.u32.u64.compose %v6563, %v6562
    %v6565 = vextract.low.u32 %v6564
    %v6566 = vextract.high.u32 %v6564
    %v6567 = vmul.u32.u64.compose %v6563, %v6558
    %v6568 = vextract.low.u32 %v6567
    %v6569 = vextract.high.u32 %v6567
    %v6570 = vmul.u32 %v6563, %v6554
    %v6571 = vadd.s32 %v6566, %v6568
    %vm6572 = vc.u32 %v6566, %v6568
    %v6573 = vadd.s32 %v6569, 1
    %v6574 = vsel %vm6572, %v6573, %v6569
    %v6575 = vadd.s32 %v6570, %v6574
    %v6576 = vadd.s32 %v6575, 536870912
    %v6577 = vshrl.u32 %v6576, 30
    %v6578 = vshll.u32 %v6577, 30
    %v6579 = vsub.s32 %v6575, %v6578
    %vm6580 = vcmp.lt.s32.totalorder %v6579, 0
    %v6581 = vsub.s32 0, %v6579
    %v6582 = vsel %vm6580, %v6581, %v6579
    %v6583 = vclz %v6582
    %v6584 = vsub.s32 %v6583, 2
    %vm6585 = vcmp.gt.s32.totalorder 0, %v6584
    %v6586 = vsel %vm6585, 0, %v6584
    %v6587 = vsub.s32 32, %v6586
    %v6588 = vshll.u32 %v6579, %v6586
    %v6589 = vshrl.u32 %v6571, %v6587
    %v6590 = vor.u32 %v6588, %v6589
    %v6591 = vsub.s32 4294967266, %v6586
    %v6592 = vadd.s32 %v6591, 127
    %v6593 = vshll.u32 %v6592, 23
    %v6594 = vor.u32 4788187, %v6593
    %v6595 = vand.u32 2147483647, %v6594
    %v6597 = vcvt.s32.f32 %v6590
    %v6598 = vmul.f32 %v6597, %v6595
    %v6599 = vxor.u32 %v6598, 2147483648
    %v6600 = vsel %vm6517, %v6599, %v6598
    %v6601 = vsub.s32 4, %v6577
    %v6602 = vsel %vm6517, %v6601, %v6577
    %v6603 = vsel %vm6516, %v1063, %v6600
    %v6604 = vsel %vm6516, 0, %v6602
    %v6605 = vcosq.f32.pop %v6603
    %v6606 = vsinq.f32.pop %v6603
    %vm6607 = vweird.f32 %v1063
    %v6608 = vadd.s32 %v6604, 3
    %v6609 = vand.u32 %v6608, 3
    %vm6610 = vcmp.lt.s32.totalorder %v6609, 2
    %vm6611 = vcmp.eq.s32.totalorder %v6609, 0
    %v6612 = vxor.u32 %v6606, 2147483648
    %v6613 = vsel %vm6611, %v6605, %v6612
    %vm6614 = vcmp.eq.s32.totalorder %v6609, 2
    %v6615 = vxor.u32 %v6605, 2147483648
    %v6616 = vsel %vm6614, %v6615, %v6606
    %v6617 = vsel %vm6610, %v6613, %v6616
    %v6618 = vsel %vm6607, nan, %v6617
    %v6619 = vand.u32 2147483647, %v1064
    %vm6620 = vcmp.le.f32.partialorder %v6619, 0.7853982
    %vm6621 = vcmp.lt.s32.totalorder %v1064, 0
    %v6622 = vand.u32 %v1064, 2139095040
    %v6623 = vshrl.u32 %v6622, 23
    %v6624 = vsub.s32 %v6623, 127
    %v6625 = vand.u32 2147483647, %v1064
    %v6626 = vand.u32 %v6625, 8388607
    %v6627 = vor.u32 %v6626, 8388608
    %v6628 = vsub.s32 0, %v6627
    %v6629 = vadd.s32 %v6624, 1
    %vm6630 = vcmp.gt.s32.totalorder %v6629, 0
    %v6631 = vsel %vm6630, %v6629, 0
    %v6632 = vshrl.u32 %v6631, 5
    %v6633 = vand.u32 %v6631, 31
    %v6634 = vsub.s32 32, %v6633
    %v6635 = vshrl.u32 683565275, %v6634
    %v6636 = vshll.u32 683565275, %v6633
    %v6637 = vshrl.u32 2475754826, %v6634
    %v6638 = vor.u32 %v6636, %v6637
    %v6639 = vshll.u32 2475754826, %v6633
    %v6640 = vshrl.u32 2131351028, %v6634
    %v6641 = vor.u32 %v6639, %v6640
    %v6642 = vshll.u32 2131351028, %v6633
    %v6643 = vshrl.u32 2102212464, %v6634
    %v6644 = vor.u32 %v6642, %v6643
    %v6645 = vshll.u32 2102212464, %v6633
    %v6646 = vshrl.u32 920167782, %v6634
    %v6647 = vor.u32 %v6645, %v6646
    %v6648 = vshll.u32 920167782, %v6633
    %v6649 = vshrl.u32 1326507024, %v6634
    %v6650 = vor.u32 %v6648, %v6649
    %vm6651 = vcmp.lt.s32.totalorder %v6632, 1
    %vm6652 = vcmp.lt.s32.totalorder %v6632, 2
    %vm6653 = vcmp.lt.s32.totalorder %v6632, 3
    %vm6654 = vcmp.lt.s32.totalorder %v6632, 4
    %v6655 = vsel %vm6651, %v6635, %v6638
    %v6656 = vsel %vm6654, %v6644, 2102212464
    %v6657 = vsel %vm6653, %v6641, %v6656
    %v6658 = vsel %vm6652, %v6655, %v6657
    %v6659 = vsel %vm6651, %v6638, %v6641
    %v6660 = vsel %vm6654, %v6647, 920167782
    %v6661 = vsel %vm6653, %v6644, %v6660
    %v6662 = vsel %vm6652, %v6659, %v6661
    %v6663 = vsel %vm6651, %v6641, %v6644
    %v6664 = vsel %vm6654, %v6650, 1326507024
    %v6665 = vsel %vm6653, %v6647, %v6664
    %v6666 = vsel %vm6652, %v6663, %v6665
    %v6667 = vshll.u32 %v6627, 8
    %v6668 = vmul.u32.u64.compose %v6667, %v6666
    %v6669 = vextract.low.u32 %v6668
    %v6670 = vextract.high.u32 %v6668
    %v6671 = vmul.u32.u64.compose %v6667, %v6662
    %v6672 = vextract.low.u32 %v6671
    %v6673 = vextract.high.u32 %v6671
    %v6674 = vmul.u32 %v6667, %v6658
    %v6675 = vadd.s32 %v6670, %v6672
    %vm6676 = vc.u32 %v6670, %v6672
    %v6677 = vadd.s32 %v6673, 1
    %v6678 = vsel %vm6676, %v6677, %v6673
    %v6679 = vadd.s32 %v6674, %v6678
    %v6680 = vadd.s32 %v6679, 536870912
    %v6681 = vshrl.u32 %v6680, 30
    %v6682 = vshll.u32 %v6681, 30
    %v6683 = vsub.s32 %v6679, %v6682
    %vm6684 = vcmp.lt.s32.totalorder %v6683, 0
    %v6685 = vsub.s32 0, %v6683
    %v6686 = vsel %vm6684, %v6685, %v6683
    %v6687 = vclz %v6686
    %v6688 = vsub.s32 %v6687, 2
    %vm6689 = vcmp.gt.s32.totalorder 0, %v6688
    %v6690 = vsel %vm6689, 0, %v6688
    %v6691 = vsub.s32 32, %v6690
    %v6692 = vshll.u32 %v6683, %v6690
    %v6693 = vshrl.u32 %v6675, %v6691
    %v6694 = vor.u32 %v6692, %v6693
    %v6695 = vsub.s32 4294967266, %v6690
    %v6696 = vadd.s32 %v6695, 127
    %v6697 = vshll.u32 %v6696, 23
    %v6698 = vor.u32 4788187, %v6697
    %v6699 = vand.u32 2147483647, %v6698
    %v6701 = vcvt.s32.f32 %v6694
    %v6702 = vmul.f32 %v6701, %v6699
    %v6703 = vxor.u32 %v6702, 2147483648
    %v6704 = vsel %vm6621, %v6703, %v6702
    %v6705 = vsub.s32 4, %v6681
    %v6706 = vsel %vm6621, %v6705, %v6681
    %v6707 = vsel %vm6620, %v1064, %v6704
    %v6708 = vsel %vm6620, 0, %v6706
    %v6709 = vcosq.f32.pop %v6707
    %v6710 = vsinq.f32.pop %v6707
    %vm6711 = vweird.f32 %v1064
    %v6712 = vadd.s32 %v6708, 3
    %v6713 = vand.u32 %v6712, 3
    %vm6714 = vcmp.lt.s32.totalorder %v6713, 2
    %vm6715 = vcmp.eq.s32.totalorder %v6713, 0
    %v6716 = vxor.u32 %v6710, 2147483648
    %v6717 = vsel %vm6715, %v6709, %v6716
    %vm6718 = vcmp.eq.s32.totalorder %v6713, 2
    %v6719 = vxor.u32 %v6709, 2147483648
    %v6720 = vsel %vm6718, %v6719, %v6710
    %v6721 = vsel %vm6714, %v6717, %v6720
    %v6722 = vsel %vm6711, nan, %v6721
    %v6723 = vand.u32 2147483647, %v1065
    %vm6724 = vcmp.le.f32.partialorder %v6723, 0.7853982
    %vm6725 = vcmp.lt.s32.totalorder %v1065, 0
    %v6726 = vand.u32 %v1065, 2139095040
    %v6727 = vshrl.u32 %v6726, 23
    %v6728 = vsub.s32 %v6727, 127
    %v6729 = vand.u32 2147483647, %v1065
    %v6730 = vand.u32 %v6729, 8388607
    %v6731 = vor.u32 %v6730, 8388608
    %v6732 = vsub.s32 0, %v6731
    %v6733 = vadd.s32 %v6728, 1
    %vm6734 = vcmp.gt.s32.totalorder %v6733, 0
    %v6735 = vsel %vm6734, %v6733, 0
    %v6736 = vshrl.u32 %v6735, 5
    %v6737 = vand.u32 %v6735, 31
    %v6738 = vsub.s32 32, %v6737
    %v6739 = vshrl.u32 683565275, %v6738
    %v6740 = vshll.u32 683565275, %v6737
    %v6741 = vshrl.u32 2475754826, %v6738
    %v6742 = vor.u32 %v6740, %v6741
    %v6743 = vshll.u32 2475754826, %v6737
    %v6744 = vshrl.u32 2131351028, %v6738
    %v6745 = vor.u32 %v6743, %v6744
    %v6746 = vshll.u32 2131351028, %v6737
    %v6747 = vshrl.u32 2102212464, %v6738
    %v6748 = vor.u32 %v6746, %v6747
    %v6749 = vshll.u32 2102212464, %v6737
    %v6750 = vshrl.u32 920167782, %v6738
    %v6751 = vor.u32 %v6749, %v6750
    %v6752 = vshll.u32 920167782, %v6737
    %v6753 = vshrl.u32 1326507024, %v6738
    %v6754 = vor.u32 %v6752, %v6753
    %vm6755 = vcmp.lt.s32.totalorder %v6736, 1
    %vm6756 = vcmp.lt.s32.totalorder %v6736, 2
    %vm6757 = vcmp.lt.s32.totalorder %v6736, 3
    %vm6758 = vcmp.lt.s32.totalorder %v6736, 4
    %v6759 = vsel %vm6755, %v6739, %v6742
    %v6760 = vsel %vm6758, %v6748, 2102212464
    %v6761 = vsel %vm6757, %v6745, %v6760
    %v6762 = vsel %vm6756, %v6759, %v6761
    %v6763 = vsel %vm6755, %v6742, %v6745
    %v6764 = vsel %vm6758, %v6751, 920167782
    %v6765 = vsel %vm6757, %v6748, %v6764
    %v6766 = vsel %vm6756, %v6763, %v6765
    %v6767 = vsel %vm6755, %v6745, %v6748
    %v6768 = vsel %vm6758, %v6754, 1326507024
    %v6769 = vsel %vm6757, %v6751, %v6768
    %v6770 = vsel %vm6756, %v6767, %v6769
    %v6771 = vshll.u32 %v6731, 8
    %v6772 = vmul.u32.u64.compose %v6771, %v6770
    %v6773 = vextract.low.u32 %v6772
    %v6774 = vextract.high.u32 %v6772
    %v6775 = vmul.u32.u64.compose %v6771, %v6766
    %v6776 = vextract.low.u32 %v6775
    %v6777 = vextract.high.u32 %v6775
    %v6778 = vmul.u32 %v6771, %v6762
    %v6779 = vadd.s32 %v6774, %v6776
    %vm6780 = vc.u32 %v6774, %v6776
    %v6781 = vadd.s32 %v6777, 1
    %v6782 = vsel %vm6780, %v6781, %v6777
    %v6783 = vadd.s32 %v6778, %v6782
    %v6784 = vadd.s32 %v6783, 536870912
    %v6785 = vshrl.u32 %v6784, 30
    %v6786 = vshll.u32 %v6785, 30
    %v6787 = vsub.s32 %v6783, %v6786
    %vm6788 = vcmp.lt.s32.totalorder %v6787, 0
    %v6789 = vsub.s32 0, %v6787
    %v6790 = vsel %vm6788, %v6789, %v6787
    %v6791 = vclz %v6790
    %v6792 = vsub.s32 %v6791, 2
    %vm6793 = vcmp.gt.s32.totalorder 0, %v6792
    %v6794 = vsel %vm6793, 0, %v6792
    %v6795 = vsub.s32 32, %v6794
    %v6796 = vshll.u32 %v6787, %v6794
    %v6797 = vshrl.u32 %v6779, %v6795
    %v6798 = vor.u32 %v6796, %v6797
    %v6799 = vsub.s32 4294967266, %v6794
    %v6800 = vadd.s32 %v6799, 127
    %v6801 = vshll.u32 %v6800, 23
    %v6802 = vor.u32 4788187, %v6801
    %v6803 = vand.u32 2147483647, %v6802
    %v6805 = vcvt.s32.f32 %v6798
    %v6806 = vmul.f32 %v6805, %v6803
    %v6807 = vxor.u32 %v6806, 2147483648
    %v6808 = vsel %vm6725, %v6807, %v6806
    %v6809 = vsub.s32 4, %v6785
    %v6810 = vsel %vm6725, %v6809, %v6785
    %v6811 = vsel %vm6724, %v1065, %v6808
    %v6812 = vsel %vm6724, 0, %v6810
    %v6813 = vcosq.f32.pop %v6811
    %v6814 = vsinq.f32.pop %v6811
    %vm6815 = vweird.f32 %v1065
    %v6816 = vadd.s32 %v6812, 3
    %v6817 = vand.u32 %v6816, 3
    %vm6818 = vcmp.lt.s32.totalorder %v6817, 2
    %vm6819 = vcmp.eq.s32.totalorder %v6817, 0
    %v6820 = vxor.u32 %v6814, 2147483648
    %v6821 = vsel %vm6819, %v6813, %v6820
    %vm6822 = vcmp.eq.s32.totalorder %v6817, 2
    %v6823 = vxor.u32 %v6813, 2147483648
    %v6824 = vsel %vm6822, %v6823, %v6814
    %v6825 = vsel %vm6818, %v6821, %v6824
    %v6826 = vsel %vm6815, nan, %v6825
    %v6827 = vand.u32 2147483647, %v1066
    %vm6828 = vcmp.le.f32.partialorder %v6827, 0.7853982
    %vm6829 = vcmp.lt.s32.totalorder %v1066, 0
    %v6830 = vand.u32 %v1066, 2139095040
    %v6831 = vshrl.u32 %v6830, 23
    %v6832 = vsub.s32 %v6831, 127
    %v6833 = vand.u32 2147483647, %v1066
    %v6834 = vand.u32 %v6833, 8388607
    %v6835 = vor.u32 %v6834, 8388608
    %v6836 = vsub.s32 0, %v6835
    %v6837 = vadd.s32 %v6832, 1
    %vm6838 = vcmp.gt.s32.totalorder %v6837, 0
    %v6839 = vsel %vm6838, %v6837, 0
    %v6840 = vshrl.u32 %v6839, 5
    %v6841 = vand.u32 %v6839, 31
    %v6842 = vsub.s32 32, %v6841
    %v6843 = vshrl.u32 683565275, %v6842
    %v6844 = vshll.u32 683565275, %v6841
    %v6845 = vshrl.u32 2475754826, %v6842
    %v6846 = vor.u32 %v6844, %v6845
    %v6847 = vshll.u32 2475754826, %v6841
    %v6848 = vshrl.u32 2131351028, %v6842
    %v6849 = vor.u32 %v6847, %v6848
    %v6850 = vshll.u32 2131351028, %v6841
    %v6851 = vshrl.u32 2102212464, %v6842
    %v6852 = vor.u32 %v6850, %v6851
    %v6853 = vshll.u32 2102212464, %v6841
    %v6854 = vshrl.u32 920167782, %v6842
    %v6855 = vor.u32 %v6853, %v6854
    %v6856 = vshll.u32 920167782, %v6841
    %v6857 = vshrl.u32 1326507024, %v6842
    %v6858 = vor.u32 %v6856, %v6857
    %vm6859 = vcmp.lt.s32.totalorder %v6840, 1
    %vm6860 = vcmp.lt.s32.totalorder %v6840, 2
    %vm6861 = vcmp.lt.s32.totalorder %v6840, 3
    %vm6862 = vcmp.lt.s32.totalorder %v6840, 4
    %v6863 = vsel %vm6859, %v6843, %v6846
    %v6864 = vsel %vm6862, %v6852, 2102212464
    %v6865 = vsel %vm6861, %v6849, %v6864
    %v6866 = vsel %vm6860, %v6863, %v6865
    %v6867 = vsel %vm6859, %v6846, %v6849
    %v6868 = vsel %vm6862, %v6855, 920167782
    %v6869 = vsel %vm6861, %v6852, %v6868
    %v6870 = vsel %vm6860, %v6867, %v6869
    %v6871 = vsel %vm6859, %v6849, %v6852
    %v6872 = vsel %vm6862, %v6858, 1326507024
    %v6873 = vsel %vm6861, %v6855, %v6872
    %v6874 = vsel %vm6860, %v6871, %v6873
    %v6875 = vshll.u32 %v6835, 8
    %v6876 = vmul.u32.u64.compose %v6875, %v6874
    %v6877 = vextract.low.u32 %v6876
    %v6878 = vextract.high.u32 %v6876
    %v6879 = vmul.u32.u64.compose %v6875, %v6870
    %v6880 = vextract.low.u32 %v6879
    %v6881 = vextract.high.u32 %v6879
    %v6882 = vmul.u32 %v6875, %v6866
    %v6883 = vadd.s32 %v6878, %v6880
    %vm6884 = vc.u32 %v6878, %v6880
    %v6885 = vadd.s32 %v6881, 1
    %v6886 = vsel %vm6884, %v6885, %v6881
    %v6887 = vadd.s32 %v6882, %v6886
    %v6888 = vadd.s32 %v6887, 536870912
    %v6889 = vshrl.u32 %v6888, 30
    %v6890 = vshll.u32 %v6889, 30
    %v6891 = vsub.s32 %v6887, %v6890
    %vm6892 = vcmp.lt.s32.totalorder %v6891, 0
    %v6893 = vsub.s32 0, %v6891
    %v6894 = vsel %vm6892, %v6893, %v6891
    %v6895 = vclz %v6894
    %v6896 = vsub.s32 %v6895, 2
    %vm6897 = vcmp.gt.s32.totalorder 0, %v6896
    %v6898 = vsel %vm6897, 0, %v6896
    %v6899 = vsub.s32 32, %v6898
    %v6900 = vshll.u32 %v6891, %v6898
    %v6901 = vshrl.u32 %v6883, %v6899
    %v6902 = vor.u32 %v6900, %v6901
    %v6903 = vsub.s32 4294967266, %v6898
    %v6904 = vadd.s32 %v6903, 127
    %v6905 = vshll.u32 %v6904, 23
    %v6906 = vor.u32 4788187, %v6905
    %v6907 = vand.u32 2147483647, %v6906
    %v6909 = vcvt.s32.f32 %v6902
    %v6910 = vmul.f32 %v6909, %v6907
    %v6911 = vxor.u32 %v6910, 2147483648
    %v6912 = vsel %vm6829, %v6911, %v6910
    %v6913 = vsub.s32 4, %v6889
    %v6914 = vsel %vm6829, %v6913, %v6889
    %v6915 = vsel %vm6828, %v1066, %v6912
    %v6916 = vsel %vm6828, 0, %v6914
    %v6917 = vcosq.f32.pop %v6915
    %v6918 = vsinq.f32.pop %v6915
    %vm6919 = vweird.f32 %v1066
    %v6920 = vadd.s32 %v6916, 3
    %v6921 = vand.u32 %v6920, 3
    %vm6922 = vcmp.lt.s32.totalorder %v6921, 2
    %vm6923 = vcmp.eq.s32.totalorder %v6921, 0
    %v6924 = vxor.u32 %v6918, 2147483648
    %v6925 = vsel %vm6923, %v6917, %v6924
    %vm6926 = vcmp.eq.s32.totalorder %v6921, 2
    %v6927 = vxor.u32 %v6917, 2147483648
    %v6928 = vsel %vm6926, %v6927, %v6918
    %v6929 = vsel %vm6922, %v6925, %v6928
    %v6930 = vsel %vm6919, nan, %v6929
    %v6931 = vand.u32 2147483647, %v1067
    %vm6932 = vcmp.le.f32.partialorder %v6931, 0.7853982
    %vm6933 = vcmp.lt.s32.totalorder %v1067, 0
    %v6934 = vand.u32 %v1067, 2139095040
    %v6935 = vshrl.u32 %v6934, 23
    %v6936 = vsub.s32 %v6935, 127
    %v6937 = vand.u32 2147483647, %v1067
    %v6938 = vand.u32 %v6937, 8388607
    %v6939 = vor.u32 %v6938, 8388608
    %v6940 = vsub.s32 0, %v6939
    %v6941 = vadd.s32 %v6936, 1
    %vm6942 = vcmp.gt.s32.totalorder %v6941, 0
    %v6943 = vsel %vm6942, %v6941, 0
    %v6944 = vshrl.u32 %v6943, 5
    %v6945 = vand.u32 %v6943, 31
    %v6946 = vsub.s32 32, %v6945
    %v6947 = vshrl.u32 683565275, %v6946
    %v6948 = vshll.u32 683565275, %v6945
    %v6949 = vshrl.u32 2475754826, %v6946
    %v6950 = vor.u32 %v6948, %v6949
    %v6951 = vshll.u32 2475754826, %v6945
    %v6952 = vshrl.u32 2131351028, %v6946
    %v6953 = vor.u32 %v6951, %v6952
    %v6954 = vshll.u32 2131351028, %v6945
    %v6955 = vshrl.u32 2102212464, %v6946
    %v6956 = vor.u32 %v6954, %v6955
    %v6957 = vshll.u32 2102212464, %v6945
    %v6958 = vshrl.u32 920167782, %v6946
    %v6959 = vor.u32 %v6957, %v6958
    %v6960 = vshll.u32 920167782, %v6945
    %v6961 = vshrl.u32 1326507024, %v6946
    %v6962 = vor.u32 %v6960, %v6961
    %vm6963 = vcmp.lt.s32.totalorder %v6944, 1
    %vm6964 = vcmp.lt.s32.totalorder %v6944, 2
    %vm6965 = vcmp.lt.s32.totalorder %v6944, 3
    %vm6966 = vcmp.lt.s32.totalorder %v6944, 4
    %v6967 = vsel %vm6963, %v6947, %v6950
    %v6968 = vsel %vm6966, %v6956, 2102212464
    %v6969 = vsel %vm6965, %v6953, %v6968
    %v6970 = vsel %vm6964, %v6967, %v6969
    %v6971 = vsel %vm6963, %v6950, %v6953
    %v6972 = vsel %vm6966, %v6959, 920167782
    %v6973 = vsel %vm6965, %v6956, %v6972
    %v6974 = vsel %vm6964, %v6971, %v6973
    %v6975 = vsel %vm6963, %v6953, %v6956
    %v6976 = vsel %vm6966, %v6962, 1326507024
    %v6977 = vsel %vm6965, %v6959, %v6976
    %v6978 = vsel %vm6964, %v6975, %v6977
    %v6979 = vshll.u32 %v6939, 8
    %v6980 = vmul.u32.u64.compose %v6979, %v6978
    %v6981 = vextract.low.u32 %v6980
    %v6982 = vextract.high.u32 %v6980
    %v6983 = vmul.u32.u64.compose %v6979, %v6974
    %v6984 = vextract.low.u32 %v6983
    %v6985 = vextract.high.u32 %v6983
    %v6986 = vmul.u32 %v6979, %v6970
    %v6987 = vadd.s32 %v6982, %v6984
    %vm6988 = vc.u32 %v6982, %v6984
    %v6989 = vadd.s32 %v6985, 1
    %v6990 = vsel %vm6988, %v6989, %v6985
    %v6991 = vadd.s32 %v6986, %v6990
    %v6992 = vadd.s32 %v6991, 536870912
    %v6993 = vshrl.u32 %v6992, 30
    %v6994 = vshll.u32 %v6993, 30
    %v6995 = vsub.s32 %v6991, %v6994
    %vm6996 = vcmp.lt.s32.totalorder %v6995, 0
    %v6997 = vsub.s32 0, %v6995
    %v6998 = vsel %vm6996, %v6997, %v6995
    %v6999 = vclz %v6998
    %v7000 = vsub.s32 %v6999, 2
    %vm7001 = vcmp.gt.s32.totalorder 0, %v7000
    %v7002 = vsel %vm7001, 0, %v7000
    %v7003 = vsub.s32 32, %v7002
    %v7004 = vshll.u32 %v6995, %v7002
    %v7005 = vshrl.u32 %v6987, %v7003
    %v7006 = vor.u32 %v7004, %v7005
    %v7007 = vsub.s32 4294967266, %v7002
    %v7008 = vadd.s32 %v7007, 127
    %v7009 = vshll.u32 %v7008, 23
    %v7010 = vor.u32 4788187, %v7009
    %v7011 = vand.u32 2147483647, %v7010
    %v7013 = vcvt.s32.f32 %v7006
    %v7014 = vmul.f32 %v7013, %v7011
    %v7015 = vxor.u32 %v7014, 2147483648
    %v7016 = vsel %vm6933, %v7015, %v7014
    %v7017 = vsub.s32 4, %v6993
    %v7018 = vsel %vm6933, %v7017, %v6993
    %v7019 = vsel %vm6932, %v1067, %v7016
    %v7020 = vsel %vm6932, 0, %v7018
    %v7021 = vcosq.f32.pop %v7019
    %v7022 = vsinq.f32.pop %v7019
    %vm7023 = vweird.f32 %v1067
    %v7024 = vadd.s32 %v7020, 3
    %v7025 = vand.u32 %v7024, 3
    %vm7026 = vcmp.lt.s32.totalorder %v7025, 2
    %vm7027 = vcmp.eq.s32.totalorder %v7025, 0
    %v7028 = vxor.u32 %v7022, 2147483648
    %v7029 = vsel %vm7027, %v7021, %v7028
    %vm7030 = vcmp.eq.s32.totalorder %v7025, 2
    %v7031 = vxor.u32 %v7021, 2147483648
    %v7032 = vsel %vm7030, %v7031, %v7022
    %v7033 = vsel %vm7026, %v7029, %v7032
    %v7034 = vsel %vm7023, nan, %v7033
    %v7035 = vand.u32 2147483647, %v1068
    %vm7036 = vcmp.le.f32.partialorder %v7035, 0.7853982
    %vm7037 = vcmp.lt.s32.totalorder %v1068, 0
    %v7038 = vand.u32 %v1068, 2139095040
    %v7039 = vshrl.u32 %v7038, 23
    %v7040 = vsub.s32 %v7039, 127
    %v7041 = vand.u32 2147483647, %v1068
    %v7042 = vand.u32 %v7041, 8388607
    %v7043 = vor.u32 %v7042, 8388608
    %v7044 = vsub.s32 0, %v7043
    %v7045 = vadd.s32 %v7040, 1
    %vm7046 = vcmp.gt.s32.totalorder %v7045, 0
    %v7047 = vsel %vm7046, %v7045, 0
    %v7048 = vshrl.u32 %v7047, 5
    %v7049 = vand.u32 %v7047, 31
    %v7050 = vsub.s32 32, %v7049
    %v7051 = vshrl.u32 683565275, %v7050
    %v7052 = vshll.u32 683565275, %v7049
    %v7053 = vshrl.u32 2475754826, %v7050
    %v7054 = vor.u32 %v7052, %v7053
    %v7055 = vshll.u32 2475754826, %v7049
    %v7056 = vshrl.u32 2131351028, %v7050
    %v7057 = vor.u32 %v7055, %v7056
    %v7058 = vshll.u32 2131351028, %v7049
    %v7059 = vshrl.u32 2102212464, %v7050
    %v7060 = vor.u32 %v7058, %v7059
    %v7061 = vshll.u32 2102212464, %v7049
    %v7062 = vshrl.u32 920167782, %v7050
    %v7063 = vor.u32 %v7061, %v7062
    %v7064 = vshll.u32 920167782, %v7049
    %v7065 = vshrl.u32 1326507024, %v7050
    %v7066 = vor.u32 %v7064, %v7065
    %vm7067 = vcmp.lt.s32.totalorder %v7048, 1
    %vm7068 = vcmp.lt.s32.totalorder %v7048, 2
    %vm7069 = vcmp.lt.s32.totalorder %v7048, 3
    %vm7070 = vcmp.lt.s32.totalorder %v7048, 4
    %v7071 = vsel %vm7067, %v7051, %v7054
    %v7072 = vsel %vm7070, %v7060, 2102212464
    %v7073 = vsel %vm7069, %v7057, %v7072
    %v7074 = vsel %vm7068, %v7071, %v7073
    %v7075 = vsel %vm7067, %v7054, %v7057
    %v7076 = vsel %vm7070, %v7063, 920167782
    %v7077 = vsel %vm7069, %v7060, %v7076
    %v7078 = vsel %vm7068, %v7075, %v7077
    %v7079 = vsel %vm7067, %v7057, %v7060
    %v7080 = vsel %vm7070, %v7066, 1326507024
    %v7081 = vsel %vm7069, %v7063, %v7080
    %v7082 = vsel %vm7068, %v7079, %v7081
    %v7083 = vshll.u32 %v7043, 8
    %v7084 = vmul.u32.u64.compose %v7083, %v7082
    %v7085 = vextract.low.u32 %v7084
    %v7086 = vextract.high.u32 %v7084
    %v7087 = vmul.u32.u64.compose %v7083, %v7078
    %v7088 = vextract.low.u32 %v7087
    %v7089 = vextract.high.u32 %v7087
    %v7090 = vmul.u32 %v7083, %v7074
    %v7091 = vadd.s32 %v7086, %v7088
    %vm7092 = vc.u32 %v7086, %v7088
    %v7093 = vadd.s32 %v7089, 1
    %v7094 = vsel %vm7092, %v7093, %v7089
    %v7095 = vadd.s32 %v7090, %v7094
    %v7096 = vadd.s32 %v7095, 536870912
    %v7097 = vshrl.u32 %v7096, 30
    %v7098 = vshll.u32 %v7097, 30
    %v7099 = vsub.s32 %v7095, %v7098
    %vm7100 = vcmp.lt.s32.totalorder %v7099, 0
    %v7101 = vsub.s32 0, %v7099
    %v7102 = vsel %vm7100, %v7101, %v7099
    %v7103 = vclz %v7102
    %v7104 = vsub.s32 %v7103, 2
    %vm7105 = vcmp.gt.s32.totalorder 0, %v7104
    %v7106 = vsel %vm7105, 0, %v7104
    %v7107 = vsub.s32 32, %v7106
    %v7108 = vshll.u32 %v7099, %v7106
    %v7109 = vshrl.u32 %v7091, %v7107
    %v7110 = vor.u32 %v7108, %v7109
    %v7111 = vsub.s32 4294967266, %v7106
    %v7112 = vadd.s32 %v7111, 127
    %v7113 = vshll.u32 %v7112, 23
    %v7114 = vor.u32 4788187, %v7113
    %v7115 = vand.u32 2147483647, %v7114
    %v7117 = vcvt.s32.f32 %v7110
    %v7118 = vmul.f32 %v7117, %v7115
    %v7119 = vxor.u32 %v7118, 2147483648
    %v7120 = vsel %vm7037, %v7119, %v7118
    %v7121 = vsub.s32 4, %v7097
    %v7122 = vsel %vm7037, %v7121, %v7097
    %v7123 = vsel %vm7036, %v1068, %v7120
    %v7124 = vsel %vm7036, 0, %v7122
    %v7125 = vcosq.f32.pop %v7123
    %v7126 = vsinq.f32.pop %v7123
    %vm7127 = vweird.f32 %v1068
    %v7128 = vadd.s32 %v7124, 3
    %v7129 = vand.u32 %v7128, 3
    %vm7130 = vcmp.lt.s32.totalorder %v7129, 2
    %vm7131 = vcmp.eq.s32.totalorder %v7129, 0
    %v7132 = vxor.u32 %v7126, 2147483648
    %v7133 = vsel %vm7131, %v7125, %v7132
    %vm7134 = vcmp.eq.s32.totalorder %v7129, 2
    %v7135 = vxor.u32 %v7125, 2147483648
    %v7136 = vsel %vm7134, %v7135, %v7126
    %v7137 = vsel %vm7130, %v7133, %v7136
    %v7138 = vsel %vm7127, nan, %v7137
    %v7139 = vand.u32 2147483647, %v1069
    %vm7140 = vcmp.le.f32.partialorder %v7139, 0.7853982
    %vm7141 = vcmp.lt.s32.totalorder %v1069, 0
    %v7142 = vand.u32 %v1069, 2139095040
    %v7143 = vshrl.u32 %v7142, 23
    %v7144 = vsub.s32 %v7143, 127
    %v7145 = vand.u32 2147483647, %v1069
    %v7146 = vand.u32 %v7145, 8388607
    %v7147 = vor.u32 %v7146, 8388608
    %v7148 = vsub.s32 0, %v7147
    %v7149 = vadd.s32 %v7144, 1
    %vm7150 = vcmp.gt.s32.totalorder %v7149, 0
    %v7151 = vsel %vm7150, %v7149, 0
    %v7152 = vshrl.u32 %v7151, 5
    %v7153 = vand.u32 %v7151, 31
    %v7154 = vsub.s32 32, %v7153
    %v7155 = vshrl.u32 683565275, %v7154
    %v7156 = vshll.u32 683565275, %v7153
    %v7157 = vshrl.u32 2475754826, %v7154
    %v7158 = vor.u32 %v7156, %v7157
    %v7159 = vshll.u32 2475754826, %v7153
    %v7160 = vshrl.u32 2131351028, %v7154
    %v7161 = vor.u32 %v7159, %v7160
    %v7162 = vshll.u32 2131351028, %v7153
    %v7163 = vshrl.u32 2102212464, %v7154
    %v7164 = vor.u32 %v7162, %v7163
    %v7165 = vshll.u32 2102212464, %v7153
    %v7166 = vshrl.u32 920167782, %v7154
    %v7167 = vor.u32 %v7165, %v7166
    %v7168 = vshll.u32 920167782, %v7153
    %v7169 = vshrl.u32 1326507024, %v7154
    %v7170 = vor.u32 %v7168, %v7169
    %vm7171 = vcmp.lt.s32.totalorder %v7152, 1
    %vm7172 = vcmp.lt.s32.totalorder %v7152, 2
    %vm7173 = vcmp.lt.s32.totalorder %v7152, 3
    %vm7174 = vcmp.lt.s32.totalorder %v7152, 4
    %v7175 = vsel %vm7171, %v7155, %v7158
    %v7176 = vsel %vm7174, %v7164, 2102212464
    %v7177 = vsel %vm7173, %v7161, %v7176
    %v7178 = vsel %vm7172, %v7175, %v7177
    %v7179 = vsel %vm7171, %v7158, %v7161
    %v7180 = vsel %vm7174, %v7167, 920167782
    %v7181 = vsel %vm7173, %v7164, %v7180
    %v7182 = vsel %vm7172, %v7179, %v7181
    %v7183 = vsel %vm7171, %v7161, %v7164
    %v7184 = vsel %vm7174, %v7170, 1326507024
    %v7185 = vsel %vm7173, %v7167, %v7184
    %v7186 = vsel %vm7172, %v7183, %v7185
    %v7187 = vshll.u32 %v7147, 8
    %v7188 = vmul.u32.u64.compose %v7187, %v7186
    %v7189 = vextract.low.u32 %v7188
    %v7190 = vextract.high.u32 %v7188
    %v7191 = vmul.u32.u64.compose %v7187, %v7182
    %v7192 = vextract.low.u32 %v7191
    %v7193 = vextract.high.u32 %v7191
    %v7194 = vmul.u32 %v7187, %v7178
    %v7195 = vadd.s32 %v7190, %v7192
    %vm7196 = vc.u32 %v7190, %v7192
    %v7197 = vadd.s32 %v7193, 1
    %v7198 = vsel %vm7196, %v7197, %v7193
    %v7199 = vadd.s32 %v7194, %v7198
    %v7200 = vadd.s32 %v7199, 536870912
    %v7201 = vshrl.u32 %v7200, 30
    %v7202 = vshll.u32 %v7201, 30
    %v7203 = vsub.s32 %v7199, %v7202
    %vm7204 = vcmp.lt.s32.totalorder %v7203, 0
    %v7205 = vsub.s32 0, %v7203
    %v7206 = vsel %vm7204, %v7205, %v7203
    %v7207 = vclz %v7206
    %v7208 = vsub.s32 %v7207, 2
    %vm7209 = vcmp.gt.s32.totalorder 0, %v7208
    %v7210 = vsel %vm7209, 0, %v7208
    %v7211 = vsub.s32 32, %v7210
    %v7212 = vshll.u32 %v7203, %v7210
    %v7213 = vshrl.u32 %v7195, %v7211
    %v7214 = vor.u32 %v7212, %v7213
    %v7215 = vsub.s32 4294967266, %v7210
    %v7216 = vadd.s32 %v7215, 127
    %v7217 = vshll.u32 %v7216, 23
    %v7218 = vor.u32 4788187, %v7217
    %v7219 = vand.u32 2147483647, %v7218
    %v7221 = vcvt.s32.f32 %v7214
    %v7222 = vmul.f32 %v7221, %v7219
    %v7223 = vxor.u32 %v7222, 2147483648
    %v7224 = vsel %vm7141, %v7223, %v7222
    %v7225 = vsub.s32 4, %v7201
    %v7226 = vsel %vm7141, %v7225, %v7201
    %v7227 = vsel %vm7140, %v1069, %v7224
    %v7228 = vsel %vm7140, 0, %v7226
    %v7229 = vcosq.f32.pop %v7227
    %v7230 = vsinq.f32.pop %v7227
    %vm7231 = vweird.f32 %v1069
    %v7232 = vadd.s32 %v7228, 3
    %v7233 = vand.u32 %v7232, 3
    %vm7234 = vcmp.lt.s32.totalorder %v7233, 2
    %vm7235 = vcmp.eq.s32.totalorder %v7233, 0
    %v7236 = vxor.u32 %v7230, 2147483648
    %v7237 = vsel %vm7235, %v7229, %v7236
    %vm7238 = vcmp.eq.s32.totalorder %v7233, 2
    %v7239 = vxor.u32 %v7229, 2147483648
    %v7240 = vsel %vm7238, %v7239, %v7230
    %v7241 = vsel %vm7234, %v7237, %v7240
    %v7242 = vsel %vm7231, nan, %v7241
    %v7243 = vand.u32 2147483647, %v1070
    %vm7244 = vcmp.le.f32.partialorder %v7243, 0.7853982
    %vm7245 = vcmp.lt.s32.totalorder %v1070, 0
    %v7246 = vand.u32 %v1070, 2139095040
    %v7247 = vshrl.u32 %v7246, 23
    %v7248 = vsub.s32 %v7247, 127
    %v7249 = vand.u32 2147483647, %v1070
    %v7250 = vand.u32 %v7249, 8388607
    %v7251 = vor.u32 %v7250, 8388608
    %v7252 = vsub.s32 0, %v7251
    %v7253 = vadd.s32 %v7248, 1
    %vm7254 = vcmp.gt.s32.totalorder %v7253, 0
    %v7255 = vsel %vm7254, %v7253, 0
    %v7256 = vshrl.u32 %v7255, 5
    %v7257 = vand.u32 %v7255, 31
    %v7258 = vsub.s32 32, %v7257
    %v7259 = vshrl.u32 683565275, %v7258
    %v7260 = vshll.u32 683565275, %v7257
    %v7261 = vshrl.u32 2475754826, %v7258
    %v7262 = vor.u32 %v7260, %v7261
    %v7263 = vshll.u32 2475754826, %v7257
    %v7264 = vshrl.u32 2131351028, %v7258
    %v7265 = vor.u32 %v7263, %v7264
    %v7266 = vshll.u32 2131351028, %v7257
    %v7267 = vshrl.u32 2102212464, %v7258
    %v7268 = vor.u32 %v7266, %v7267
    %v7269 = vshll.u32 2102212464, %v7257
    %v7270 = vshrl.u32 920167782, %v7258
    %v7271 = vor.u32 %v7269, %v7270
    %v7272 = vshll.u32 920167782, %v7257
    %v7273 = vshrl.u32 1326507024, %v7258
    %v7274 = vor.u32 %v7272, %v7273
    %vm7275 = vcmp.lt.s32.totalorder %v7256, 1
    %vm7276 = vcmp.lt.s32.totalorder %v7256, 2
    %vm7277 = vcmp.lt.s32.totalorder %v7256, 3
    %vm7278 = vcmp.lt.s32.totalorder %v7256, 4
    %v7279 = vsel %vm7275, %v7259, %v7262
    %v7280 = vsel %vm7278, %v7268, 2102212464
    %v7281 = vsel %vm7277, %v7265, %v7280
    %v7282 = vsel %vm7276, %v7279, %v7281
    %v7283 = vsel %vm7275, %v7262, %v7265
    %v7284 = vsel %vm7278, %v7271, 920167782
    %v7285 = vsel %vm7277, %v7268, %v7284
    %v7286 = vsel %vm7276, %v7283, %v7285
    %v7287 = vsel %vm7275, %v7265, %v7268
    %v7288 = vsel %vm7278, %v7274, 1326507024
    %v7289 = vsel %vm7277, %v7271, %v7288
    %v7290 = vsel %vm7276, %v7287, %v7289
    %v7291 = vshll.u32 %v7251, 8
    %v7292 = vmul.u32.u64.compose %v7291, %v7290
    %v7293 = vextract.low.u32 %v7292
    %v7294 = vextract.high.u32 %v7292
    %v7295 = vmul.u32.u64.compose %v7291, %v7286
    %v7296 = vextract.low.u32 %v7295
    %v7297 = vextract.high.u32 %v7295
    %v7298 = vmul.u32 %v7291, %v7282
    %v7299 = vadd.s32 %v7294, %v7296
    %vm7300 = vc.u32 %v7294, %v7296
    %v7301 = vadd.s32 %v7297, 1
    %v7302 = vsel %vm7300, %v7301, %v7297
    %v7303 = vadd.s32 %v7298, %v7302
    %v7304 = vadd.s32 %v7303, 536870912
    %v7305 = vshrl.u32 %v7304, 30
    %v7306 = vshll.u32 %v7305, 30
    %v7307 = vsub.s32 %v7303, %v7306
    %vm7308 = vcmp.lt.s32.totalorder %v7307, 0
    %v7309 = vsub.s32 0, %v7307
    %v7310 = vsel %vm7308, %v7309, %v7307
    %v7311 = vclz %v7310
    %v7312 = vsub.s32 %v7311, 2
    %vm7313 = vcmp.gt.s32.totalorder 0, %v7312
    %v7314 = vsel %vm7313, 0, %v7312
    %v7315 = vsub.s32 32, %v7314
    %v7316 = vshll.u32 %v7307, %v7314
    %v7317 = vshrl.u32 %v7299, %v7315
    %v7318 = vor.u32 %v7316, %v7317
    %v7319 = vsub.s32 4294967266, %v7314
    %v7320 = vadd.s32 %v7319, 127
    %v7321 = vshll.u32 %v7320, 23
    %v7322 = vor.u32 4788187, %v7321
    %v7323 = vand.u32 2147483647, %v7322
    %v7325 = vcvt.s32.f32 %v7318
    %v7326 = vmul.f32 %v7325, %v7323
    %v7327 = vxor.u32 %v7326, 2147483648
    %v7328 = vsel %vm7245, %v7327, %v7326
    %v7329 = vsub.s32 4, %v7305
    %v7330 = vsel %vm7245, %v7329, %v7305
    %v7331 = vsel %vm7244, %v1070, %v7328
    %v7332 = vsel %vm7244, 0, %v7330
    %v7333 = vcosq.f32.pop %v7331
    %v7334 = vsinq.f32.pop %v7331
    %vm7335 = vweird.f32 %v1070
    %v7336 = vadd.s32 %v7332, 3
    %v7337 = vand.u32 %v7336, 3
    %vm7338 = vcmp.lt.s32.totalorder %v7337, 2
    %vm7339 = vcmp.eq.s32.totalorder %v7337, 0
    %v7340 = vxor.u32 %v7334, 2147483648
    %v7341 = vsel %vm7339, %v7333, %v7340
    %vm7342 = vcmp.eq.s32.totalorder %v7337, 2
    %v7343 = vxor.u32 %v7333, 2147483648
    %v7344 = vsel %vm7342, %v7343, %v7334
    %v7345 = vsel %vm7338, %v7341, %v7344
    %v7346 = vsel %vm7335, nan, %v7345
    %v7347 = vand.u32 2147483647, %v1071
    %vm7348 = vcmp.le.f32.partialorder %v7347, 0.7853982
    %vm7349 = vcmp.lt.s32.totalorder %v1071, 0
    %v7350 = vand.u32 %v1071, 2139095040
    %v7351 = vshrl.u32 %v7350, 23
    %v7352 = vsub.s32 %v7351, 127
    %v7353 = vand.u32 2147483647, %v1071
    %v7354 = vand.u32 %v7353, 8388607
    %v7355 = vor.u32 %v7354, 8388608
    %v7356 = vsub.s32 0, %v7355
    %v7357 = vadd.s32 %v7352, 1
    %vm7358 = vcmp.gt.s32.totalorder %v7357, 0
    %v7359 = vsel %vm7358, %v7357, 0
    %v7360 = vshrl.u32 %v7359, 5
    %v7361 = vand.u32 %v7359, 31
    %v7362 = vsub.s32 32, %v7361
    %v7363 = vshrl.u32 683565275, %v7362
    %v7364 = vshll.u32 683565275, %v7361
    %v7365 = vshrl.u32 2475754826, %v7362
    %v7366 = vor.u32 %v7364, %v7365
    %v7367 = vshll.u32 2475754826, %v7361
    %v7368 = vshrl.u32 2131351028, %v7362
    %v7369 = vor.u32 %v7367, %v7368
    %v7370 = vshll.u32 2131351028, %v7361
    %v7371 = vshrl.u32 2102212464, %v7362
    %v7372 = vor.u32 %v7370, %v7371
    %v7373 = vshll.u32 2102212464, %v7361
    %v7374 = vshrl.u32 920167782, %v7362
    %v7375 = vor.u32 %v7373, %v7374
    %v7376 = vshll.u32 920167782, %v7361
    %v7377 = vshrl.u32 1326507024, %v7362
    %v7378 = vor.u32 %v7376, %v7377
    %vm7379 = vcmp.lt.s32.totalorder %v7360, 1
    %vm7380 = vcmp.lt.s32.totalorder %v7360, 2
    %vm7381 = vcmp.lt.s32.totalorder %v7360, 3
    %vm7382 = vcmp.lt.s32.totalorder %v7360, 4
    %v7383 = vsel %vm7379, %v7363, %v7366
    %v7384 = vsel %vm7382, %v7372, 2102212464
    %v7385 = vsel %vm7381, %v7369, %v7384
    %v7386 = vsel %vm7380, %v7383, %v7385
    %v7387 = vsel %vm7379, %v7366, %v7369
    %v7388 = vsel %vm7382, %v7375, 920167782
    %v7389 = vsel %vm7381, %v7372, %v7388
    %v7390 = vsel %vm7380, %v7387, %v7389
    %v7391 = vsel %vm7379, %v7369, %v7372
    %v7392 = vsel %vm7382, %v7378, 1326507024
    %v7393 = vsel %vm7381, %v7375, %v7392
    %v7394 = vsel %vm7380, %v7391, %v7393
    %v7395 = vshll.u32 %v7355, 8
    %v7396 = vmul.u32.u64.compose %v7395, %v7394
    %v7397 = vextract.low.u32 %v7396
    %v7398 = vextract.high.u32 %v7396
    %v7399 = vmul.u32.u64.compose %v7395, %v7390
    %v7400 = vextract.low.u32 %v7399
    %v7401 = vextract.high.u32 %v7399
    %v7402 = vmul.u32 %v7395, %v7386
    %v7403 = vadd.s32 %v7398, %v7400
    %vm7404 = vc.u32 %v7398, %v7400
    %v7405 = vadd.s32 %v7401, 1
    %v7406 = vsel %vm7404, %v7405, %v7401
    %v7407 = vadd.s32 %v7402, %v7406
    %v7408 = vadd.s32 %v7407, 536870912
    %v7409 = vshrl.u32 %v7408, 30
    %v7410 = vshll.u32 %v7409, 30
    %v7411 = vsub.s32 %v7407, %v7410
    %vm7412 = vcmp.lt.s32.totalorder %v7411, 0
    %v7413 = vsub.s32 0, %v7411
    %v7414 = vsel %vm7412, %v7413, %v7411
    %v7415 = vclz %v7414
    %v7416 = vsub.s32 %v7415, 2
    %vm7417 = vcmp.gt.s32.totalorder 0, %v7416
    %v7418 = vsel %vm7417, 0, %v7416
    %v7419 = vsub.s32 32, %v7418
    %v7420 = vshll.u32 %v7411, %v7418
    %v7421 = vshrl.u32 %v7403, %v7419
    %v7422 = vor.u32 %v7420, %v7421
    %v7423 = vsub.s32 4294967266, %v7418
    %v7424 = vadd.s32 %v7423, 127
    %v7425 = vshll.u32 %v7424, 23
    %v7426 = vor.u32 4788187, %v7425
    %v7427 = vand.u32 2147483647, %v7426
    %v7429 = vcvt.s32.f32 %v7422
    %v7430 = vmul.f32 %v7429, %v7427
    %v7431 = vxor.u32 %v7430, 2147483648
    %v7432 = vsel %vm7349, %v7431, %v7430
    %v7433 = vsub.s32 4, %v7409
    %v7434 = vsel %vm7349, %v7433, %v7409
    %v7435 = vsel %vm7348, %v1071, %v7432
    %v7436 = vsel %vm7348, 0, %v7434
    %v7437 = vcosq.f32.pop %v7435
    %v7438 = vsinq.f32.pop %v7435
    %vm7439 = vweird.f32 %v1071
    %v7440 = vadd.s32 %v7436, 3
    %v7441 = vand.u32 %v7440, 3
    %vm7442 = vcmp.lt.s32.totalorder %v7441, 2
    %vm7443 = vcmp.eq.s32.totalorder %v7441, 0
    %v7444 = vxor.u32 %v7438, 2147483648
    %v7445 = vsel %vm7443, %v7437, %v7444
    %vm7446 = vcmp.eq.s32.totalorder %v7441, 2
    %v7447 = vxor.u32 %v7437, 2147483648
    %v7448 = vsel %vm7446, %v7447, %v7438
    %v7449 = vsel %vm7442, %v7445, %v7448
    %v7450 = vsel %vm7439, nan, %v7449
    %v7451 = vand.u32 2147483647, %v1072
    %vm7452 = vcmp.le.f32.partialorder %v7451, 0.7853982
    %vm7453 = vcmp.lt.s32.totalorder %v1072, 0
    %v7454 = vand.u32 %v1072, 2139095040
    %v7455 = vshrl.u32 %v7454, 23
    %v7456 = vsub.s32 %v7455, 127
    %v7457 = vand.u32 2147483647, %v1072
    %v7458 = vand.u32 %v7457, 8388607
    %v7459 = vor.u32 %v7458, 8388608
    %v7460 = vsub.s32 0, %v7459
    %v7461 = vadd.s32 %v7456, 1
    %vm7462 = vcmp.gt.s32.totalorder %v7461, 0
    %v7463 = vsel %vm7462, %v7461, 0
    %v7464 = vshrl.u32 %v7463, 5
    %v7465 = vand.u32 %v7463, 31
    %v7466 = vsub.s32 32, %v7465
    %v7467 = vshrl.u32 683565275, %v7466
    %v7468 = vshll.u32 683565275, %v7465
    %v7469 = vshrl.u32 2475754826, %v7466
    %v7470 = vor.u32 %v7468, %v7469
    %v7471 = vshll.u32 2475754826, %v7465
    %v7472 = vshrl.u32 2131351028, %v7466
    %v7473 = vor.u32 %v7471, %v7472
    %v7474 = vshll.u32 2131351028, %v7465
    %v7475 = vshrl.u32 2102212464, %v7466
    %v7476 = vor.u32 %v7474, %v7475
    %v7477 = vshll.u32 2102212464, %v7465
    %v7478 = vshrl.u32 920167782, %v7466
    %v7479 = vor.u32 %v7477, %v7478
    %v7480 = vshll.u32 920167782, %v7465
    %v7481 = vshrl.u32 1326507024, %v7466
    %v7482 = vor.u32 %v7480, %v7481
    %vm7483 = vcmp.lt.s32.totalorder %v7464, 1
    %vm7484 = vcmp.lt.s32.totalorder %v7464, 2
    %vm7485 = vcmp.lt.s32.totalorder %v7464, 3
    %vm7486 = vcmp.lt.s32.totalorder %v7464, 4
    %v7487 = vsel %vm7483, %v7467, %v7470
    %v7488 = vsel %vm7486, %v7476, 2102212464
    %v7489 = vsel %vm7485, %v7473, %v7488
    %v7490 = vsel %vm7484, %v7487, %v7489
    %v7491 = vsel %vm7483, %v7470, %v7473
    %v7492 = vsel %vm7486, %v7479, 920167782
    %v7493 = vsel %vm7485, %v7476, %v7492
    %v7494 = vsel %vm7484, %v7491, %v7493
    %v7495 = vsel %vm7483, %v7473, %v7476
    %v7496 = vsel %vm7486, %v7482, 1326507024
    %v7497 = vsel %vm7485, %v7479, %v7496
    %v7498 = vsel %vm7484, %v7495, %v7497
    %v7499 = vshll.u32 %v7459, 8
    %v7500 = vmul.u32.u64.compose %v7499, %v7498
    %v7501 = vextract.low.u32 %v7500
    %v7502 = vextract.high.u32 %v7500
    %v7503 = vmul.u32.u64.compose %v7499, %v7494
    %v7504 = vextract.low.u32 %v7503
    %v7505 = vextract.high.u32 %v7503
    %v7506 = vmul.u32 %v7499, %v7490
    %v7507 = vadd.s32 %v7502, %v7504
    %vm7508 = vc.u32 %v7502, %v7504
    %v7509 = vadd.s32 %v7505, 1
    %v7510 = vsel %vm7508, %v7509, %v7505
    %v7511 = vadd.s32 %v7506, %v7510
    %v7512 = vadd.s32 %v7511, 536870912
    %v7513 = vshrl.u32 %v7512, 30
    %v7514 = vshll.u32 %v7513, 30
    %v7515 = vsub.s32 %v7511, %v7514
    %vm7516 = vcmp.lt.s32.totalorder %v7515, 0
    %v7517 = vsub.s32 0, %v7515
    %v7518 = vsel %vm7516, %v7517, %v7515
    %v7519 = vclz %v7518
    %v7520 = vsub.s32 %v7519, 2
    %vm7521 = vcmp.gt.s32.totalorder 0, %v7520
    %v7522 = vsel %vm7521, 0, %v7520
    %v7523 = vsub.s32 32, %v7522
    %v7524 = vshll.u32 %v7515, %v7522
    %v7525 = vshrl.u32 %v7507, %v7523
    %v7526 = vor.u32 %v7524, %v7525
    %v7527 = vsub.s32 4294967266, %v7522
    %v7528 = vadd.s32 %v7527, 127
    %v7529 = vshll.u32 %v7528, 23
    %v7530 = vor.u32 4788187, %v7529
    %v7531 = vand.u32 2147483647, %v7530
    %v7533 = vcvt.s32.f32 %v7526
    %v7534 = vmul.f32 %v7533, %v7531
    %v7535 = vxor.u32 %v7534, 2147483648
    %v7536 = vsel %vm7453, %v7535, %v7534
    %v7537 = vsub.s32 4, %v7513
    %v7538 = vsel %vm7453, %v7537, %v7513
    %v7539 = vsel %vm7452, %v1072, %v7536
    %v7540 = vsel %vm7452, 0, %v7538
    %v7541 = vcosq.f32.pop %v7539
    %v7542 = vsinq.f32.pop %v7539
    %vm7543 = vweird.f32 %v1072
    %v7544 = vadd.s32 %v7540, 3
    %v7545 = vand.u32 %v7544, 3
    %vm7546 = vcmp.lt.s32.totalorder %v7545, 2
    %vm7547 = vcmp.eq.s32.totalorder %v7545, 0
    %v7548 = vxor.u32 %v7542, 2147483648
    %v7549 = vsel %vm7547, %v7541, %v7548
    %vm7550 = vcmp.eq.s32.totalorder %v7545, 2
    %v7551 = vxor.u32 %v7541, 2147483648
    %v7552 = vsel %vm7550, %v7551, %v7542
    %v7553 = vsel %vm7546, %v7549, %v7552
    %v7554 = vsel %vm7543, nan, %v7553
    %v7555 = vand.u32 2147483647, %v1073
    %vm7556 = vcmp.le.f32.partialorder %v7555, 0.7853982
    %vm7557 = vcmp.lt.s32.totalorder %v1073, 0
    %v7558 = vand.u32 %v1073, 2139095040
    %v7559 = vshrl.u32 %v7558, 23
    %v7560 = vsub.s32 %v7559, 127
    %v7561 = vand.u32 2147483647, %v1073
    %v7562 = vand.u32 %v7561, 8388607
    %v7563 = vor.u32 %v7562, 8388608
    %v7564 = vsub.s32 0, %v7563
    %v7565 = vadd.s32 %v7560, 1
    %vm7566 = vcmp.gt.s32.totalorder %v7565, 0
    %v7567 = vsel %vm7566, %v7565, 0
    %v7568 = vshrl.u32 %v7567, 5
    %v7569 = vand.u32 %v7567, 31
    %v7570 = vsub.s32 32, %v7569
    %v7571 = vshrl.u32 683565275, %v7570
    %v7572 = vshll.u32 683565275, %v7569
    %v7573 = vshrl.u32 2475754826, %v7570
    %v7574 = vor.u32 %v7572, %v7573
    %v7575 = vshll.u32 2475754826, %v7569
    %v7576 = vshrl.u32 2131351028, %v7570
    %v7577 = vor.u32 %v7575, %v7576
    %v7578 = vshll.u32 2131351028, %v7569
    %v7579 = vshrl.u32 2102212464, %v7570
    %v7580 = vor.u32 %v7578, %v7579
    %v7581 = vshll.u32 2102212464, %v7569
    %v7582 = vshrl.u32 920167782, %v7570
    %v7583 = vor.u32 %v7581, %v7582
    %v7584 = vshll.u32 920167782, %v7569
    %v7585 = vshrl.u32 1326507024, %v7570
    %v7586 = vor.u32 %v7584, %v7585
    %vm7587 = vcmp.lt.s32.totalorder %v7568, 1
    %vm7588 = vcmp.lt.s32.totalorder %v7568, 2
    %vm7589 = vcmp.lt.s32.totalorder %v7568, 3
    %vm7590 = vcmp.lt.s32.totalorder %v7568, 4
    %v7591 = vsel %vm7587, %v7571, %v7574
    %v7592 = vsel %vm7590, %v7580, 2102212464
    %v7593 = vsel %vm7589, %v7577, %v7592
    %v7594 = vsel %vm7588, %v7591, %v7593
    %v7595 = vsel %vm7587, %v7574, %v7577
    %v7596 = vsel %vm7590, %v7583, 920167782
    %v7597 = vsel %vm7589, %v7580, %v7596
    %v7598 = vsel %vm7588, %v7595, %v7597
    %v7599 = vsel %vm7587, %v7577, %v7580
    %v7600 = vsel %vm7590, %v7586, 1326507024
    %v7601 = vsel %vm7589, %v7583, %v7600
    %v7602 = vsel %vm7588, %v7599, %v7601
    %v7603 = vshll.u32 %v7563, 8
    %v7604 = vmul.u32.u64.compose %v7603, %v7602
    %v7605 = vextract.low.u32 %v7604
    %v7606 = vextract.high.u32 %v7604
    %v7607 = vmul.u32.u64.compose %v7603, %v7598
    %v7608 = vextract.low.u32 %v7607
    %v7609 = vextract.high.u32 %v7607
    %v7610 = vmul.u32 %v7603, %v7594
    %v7611 = vadd.s32 %v7606, %v7608
    %vm7612 = vc.u32 %v7606, %v7608
    %v7613 = vadd.s32 %v7609, 1
    %v7614 = vsel %vm7612, %v7613, %v7609
    %v7615 = vadd.s32 %v7610, %v7614
    %v7616 = vadd.s32 %v7615, 536870912
    %v7617 = vshrl.u32 %v7616, 30
    %v7618 = vshll.u32 %v7617, 30
    %v7619 = vsub.s32 %v7615, %v7618
    %vm7620 = vcmp.lt.s32.totalorder %v7619, 0
    %v7621 = vsub.s32 0, %v7619
    %v7622 = vsel %vm7620, %v7621, %v7619
    %v7623 = vclz %v7622
    %v7624 = vsub.s32 %v7623, 2
    %vm7625 = vcmp.gt.s32.totalorder 0, %v7624
    %v7626 = vsel %vm7625, 0, %v7624
    %v7627 = vsub.s32 32, %v7626
    %v7628 = vshll.u32 %v7619, %v7626
    %v7629 = vshrl.u32 %v7611, %v7627
    %v7630 = vor.u32 %v7628, %v7629
    %v7631 = vsub.s32 4294967266, %v7626
    %v7632 = vadd.s32 %v7631, 127
    %v7633 = vshll.u32 %v7632, 23
    %v7634 = vor.u32 4788187, %v7633
    %v7635 = vand.u32 2147483647, %v7634
    %v7637 = vcvt.s32.f32 %v7630
    %v7638 = vmul.f32 %v7637, %v7635
    %v7639 = vxor.u32 %v7638, 2147483648
    %v7640 = vsel %vm7557, %v7639, %v7638
    %v7641 = vsub.s32 4, %v7617
    %v7642 = vsel %vm7557, %v7641, %v7617
    %v7643 = vsel %vm7556, %v1073, %v7640
    %v7644 = vsel %vm7556, 0, %v7642
    %v7645 = vcosq.f32.pop %v7643
    %v7646 = vsinq.f32.pop %v7643
    %vm7647 = vweird.f32 %v1073
    %v7648 = vadd.s32 %v7644, 3
    %v7649 = vand.u32 %v7648, 3
    %vm7650 = vcmp.lt.s32.totalorder %v7649, 2
    %vm7651 = vcmp.eq.s32.totalorder %v7649, 0
    %v7652 = vxor.u32 %v7646, 2147483648
    %v7653 = vsel %vm7651, %v7645, %v7652
    %vm7654 = vcmp.eq.s32.totalorder %v7649, 2
    %v7655 = vxor.u32 %v7645, 2147483648
    %v7656 = vsel %vm7654, %v7655, %v7646
    %v7657 = vsel %vm7650, %v7653, %v7656
    %v7658 = vsel %vm7647, nan, %v7657
    %v7659 = vand.u32 2147483647, %v1074
    %vm7660 = vcmp.le.f32.partialorder %v7659, 0.7853982
    %vm7661 = vcmp.lt.s32.totalorder %v1074, 0
    %v7662 = vand.u32 %v1074, 2139095040
    %v7663 = vshrl.u32 %v7662, 23
    %v7664 = vsub.s32 %v7663, 127
    %v7665 = vand.u32 2147483647, %v1074
    %v7666 = vand.u32 %v7665, 8388607
    %v7667 = vor.u32 %v7666, 8388608
    %v7668 = vsub.s32 0, %v7667
    %v7669 = vadd.s32 %v7664, 1
    %vm7670 = vcmp.gt.s32.totalorder %v7669, 0
    %v7671 = vsel %vm7670, %v7669, 0
    %v7672 = vshrl.u32 %v7671, 5
    %v7673 = vand.u32 %v7671, 31
    %v7674 = vsub.s32 32, %v7673
    %v7675 = vshrl.u32 683565275, %v7674
    %v7676 = vshll.u32 683565275, %v7673
    %v7677 = vshrl.u32 2475754826, %v7674
    %v7678 = vor.u32 %v7676, %v7677
    %v7679 = vshll.u32 2475754826, %v7673
    %v7680 = vshrl.u32 2131351028, %v7674
    %v7681 = vor.u32 %v7679, %v7680
    %v7682 = vshll.u32 2131351028, %v7673
    %v7683 = vshrl.u32 2102212464, %v7674
    %v7684 = vor.u32 %v7682, %v7683
    %v7685 = vshll.u32 2102212464, %v7673
    %v7686 = vshrl.u32 920167782, %v7674
    %v7687 = vor.u32 %v7685, %v7686
    %v7688 = vshll.u32 920167782, %v7673
    %v7689 = vshrl.u32 1326507024, %v7674
    %v7690 = vor.u32 %v7688, %v7689
    %vm7691 = vcmp.lt.s32.totalorder %v7672, 1
    %vm7692 = vcmp.lt.s32.totalorder %v7672, 2
    %vm7693 = vcmp.lt.s32.totalorder %v7672, 3
    %vm7694 = vcmp.lt.s32.totalorder %v7672, 4
    %v7695 = vsel %vm7691, %v7675, %v7678
    %v7696 = vsel %vm7694, %v7684, 2102212464
    %v7697 = vsel %vm7693, %v7681, %v7696
    %v7698 = vsel %vm7692, %v7695, %v7697
    %v7699 = vsel %vm7691, %v7678, %v7681
    %v7700 = vsel %vm7694, %v7687, 920167782
    %v7701 = vsel %vm7693, %v7684, %v7700
    %v7702 = vsel %vm7692, %v7699, %v7701
    %v7703 = vsel %vm7691, %v7681, %v7684
    %v7704 = vsel %vm7694, %v7690, 1326507024
    %v7705 = vsel %vm7693, %v7687, %v7704
    %v7706 = vsel %vm7692, %v7703, %v7705
    %v7707 = vshll.u32 %v7667, 8
    %v7708 = vmul.u32.u64.compose %v7707, %v7706
    %v7709 = vextract.low.u32 %v7708
    %v7710 = vextract.high.u32 %v7708
    %v7711 = vmul.u32.u64.compose %v7707, %v7702
    %v7712 = vextract.low.u32 %v7711
    %v7713 = vextract.high.u32 %v7711
    %v7714 = vmul.u32 %v7707, %v7698
    %v7715 = vadd.s32 %v7710, %v7712
    %vm7716 = vc.u32 %v7710, %v7712
    %v7717 = vadd.s32 %v7713, 1
    %v7718 = vsel %vm7716, %v7717, %v7713
    %v7719 = vadd.s32 %v7714, %v7718
    %v7720 = vadd.s32 %v7719, 536870912
    %v7721 = vshrl.u32 %v7720, 30
    %v7722 = vshll.u32 %v7721, 30
    %v7723 = vsub.s32 %v7719, %v7722
    %vm7724 = vcmp.lt.s32.totalorder %v7723, 0
    %v7725 = vsub.s32 0, %v7723
    %v7726 = vsel %vm7724, %v7725, %v7723
    %v7727 = vclz %v7726
    %v7728 = vsub.s32 %v7727, 2
    %vm7729 = vcmp.gt.s32.totalorder 0, %v7728
    %v7730 = vsel %vm7729, 0, %v7728
    %v7731 = vsub.s32 32, %v7730
    %v7732 = vshll.u32 %v7723, %v7730
    %v7733 = vshrl.u32 %v7715, %v7731
    %v7734 = vor.u32 %v7732, %v7733
    %v7735 = vsub.s32 4294967266, %v7730
    %v7736 = vadd.s32 %v7735, 127
    %v7737 = vshll.u32 %v7736, 23
    %v7738 = vor.u32 4788187, %v7737
    %v7739 = vand.u32 2147483647, %v7738
    %v7741 = vcvt.s32.f32 %v7734
    %v7742 = vmul.f32 %v7741, %v7739
    %v7743 = vxor.u32 %v7742, 2147483648
    %v7744 = vsel %vm7661, %v7743, %v7742
    %v7745 = vsub.s32 4, %v7721
    %v7746 = vsel %vm7661, %v7745, %v7721
    %v7747 = vsel %vm7660, %v1074, %v7744
    %v7748 = vsel %vm7660, 0, %v7746
    %v7749 = vcosq.f32.pop %v7747
    %v7750 = vsinq.f32.pop %v7747
    %vm7751 = vweird.f32 %v1074
    %v7752 = vadd.s32 %v7748, 3
    %v7753 = vand.u32 %v7752, 3
    %vm7754 = vcmp.lt.s32.totalorder %v7753, 2
    %vm7755 = vcmp.eq.s32.totalorder %v7753, 0
    %v7756 = vxor.u32 %v7750, 2147483648
    %v7757 = vsel %vm7755, %v7749, %v7756
    %vm7758 = vcmp.eq.s32.totalorder %v7753, 2
    %v7759 = vxor.u32 %v7749, 2147483648
    %v7760 = vsel %vm7758, %v7759, %v7750
    %v7761 = vsel %vm7754, %v7757, %v7760
    %v7762 = vsel %vm7751, nan, %v7761
    %v7763 = vand.u32 2147483647, %v1075
    %vm7764 = vcmp.le.f32.partialorder %v7763, 0.7853982
    %vm7765 = vcmp.lt.s32.totalorder %v1075, 0
    %v7766 = vand.u32 %v1075, 2139095040
    %v7767 = vshrl.u32 %v7766, 23
    %v7768 = vsub.s32 %v7767, 127
    %v7769 = vand.u32 2147483647, %v1075
    %v7770 = vand.u32 %v7769, 8388607
    %v7771 = vor.u32 %v7770, 8388608
    %v7772 = vsub.s32 0, %v7771
    %v7773 = vadd.s32 %v7768, 1
    %vm7774 = vcmp.gt.s32.totalorder %v7773, 0
    %v7775 = vsel %vm7774, %v7773, 0
    %v7776 = vshrl.u32 %v7775, 5
    %v7777 = vand.u32 %v7775, 31
    %v7778 = vsub.s32 32, %v7777
    %v7779 = vshrl.u32 683565275, %v7778
    %v7780 = vshll.u32 683565275, %v7777
    %v7781 = vshrl.u32 2475754826, %v7778
    %v7782 = vor.u32 %v7780, %v7781
    %v7783 = vshll.u32 2475754826, %v7777
    %v7784 = vshrl.u32 2131351028, %v7778
    %v7785 = vor.u32 %v7783, %v7784
    %v7786 = vshll.u32 2131351028, %v7777
    %v7787 = vshrl.u32 2102212464, %v7778
    %v7788 = vor.u32 %v7786, %v7787
    %v7789 = vshll.u32 2102212464, %v7777
    %v7790 = vshrl.u32 920167782, %v7778
    %v7791 = vor.u32 %v7789, %v7790
    %v7792 = vshll.u32 920167782, %v7777
    %v7793 = vshrl.u32 1326507024, %v7778
    %v7794 = vor.u32 %v7792, %v7793
    %vm7795 = vcmp.lt.s32.totalorder %v7776, 1
    %vm7796 = vcmp.lt.s32.totalorder %v7776, 2
    %vm7797 = vcmp.lt.s32.totalorder %v7776, 3
    %vm7798 = vcmp.lt.s32.totalorder %v7776, 4
    %v7799 = vsel %vm7795, %v7779, %v7782
    %v7800 = vsel %vm7798, %v7788, 2102212464
    %v7801 = vsel %vm7797, %v7785, %v7800
    %v7802 = vsel %vm7796, %v7799, %v7801
    %v7803 = vsel %vm7795, %v7782, %v7785
    %v7804 = vsel %vm7798, %v7791, 920167782
    %v7805 = vsel %vm7797, %v7788, %v7804
    %v7806 = vsel %vm7796, %v7803, %v7805
    %v7807 = vsel %vm7795, %v7785, %v7788
    %v7808 = vsel %vm7798, %v7794, 1326507024
    %v7809 = vsel %vm7797, %v7791, %v7808
    %v7810 = vsel %vm7796, %v7807, %v7809
    %v7811 = vshll.u32 %v7771, 8
    %v7812 = vmul.u32.u64.compose %v7811, %v7810
    %v7813 = vextract.low.u32 %v7812
    %v7814 = vextract.high.u32 %v7812
    %v7815 = vmul.u32.u64.compose %v7811, %v7806
    %v7816 = vextract.low.u32 %v7815
    %v7817 = vextract.high.u32 %v7815
    %v7818 = vmul.u32 %v7811, %v7802
    %v7819 = vadd.s32 %v7814, %v7816
    %vm7820 = vc.u32 %v7814, %v7816
    %v7821 = vadd.s32 %v7817, 1
    %v7822 = vsel %vm7820, %v7821, %v7817
    %v7823 = vadd.s32 %v7818, %v7822
    %v7824 = vadd.s32 %v7823, 536870912
    %v7825 = vshrl.u32 %v7824, 30
    %v7826 = vshll.u32 %v7825, 30
    %v7827 = vsub.s32 %v7823, %v7826
    %vm7828 = vcmp.lt.s32.totalorder %v7827, 0
    %v7829 = vsub.s32 0, %v7827
    %v7830 = vsel %vm7828, %v7829, %v7827
    %v7831 = vclz %v7830
    %v7832 = vsub.s32 %v7831, 2
    %vm7833 = vcmp.gt.s32.totalorder 0, %v7832
    %v7834 = vsel %vm7833, 0, %v7832
    %v7835 = vsub.s32 32, %v7834
    %v7836 = vshll.u32 %v7827, %v7834
    %v7837 = vshrl.u32 %v7819, %v7835
    %v7838 = vor.u32 %v7836, %v7837
    %v7839 = vsub.s32 4294967266, %v7834
    %v7840 = vadd.s32 %v7839, 127
    %v7841 = vshll.u32 %v7840, 23
    %v7842 = vor.u32 4788187, %v7841
    %v7843 = vand.u32 2147483647, %v7842
    %v7845 = vcvt.s32.f32 %v7838
    %v7846 = vmul.f32 %v7845, %v7843
    %v7847 = vxor.u32 %v7846, 2147483648
    %v7848 = vsel %vm7765, %v7847, %v7846
    %v7849 = vsub.s32 4, %v7825
    %v7850 = vsel %vm7765, %v7849, %v7825
    %v7851 = vsel %vm7764, %v1075, %v7848
    %v7852 = vsel %vm7764, 0, %v7850
    %v7853 = vcosq.f32.pop %v7851
    %v7854 = vsinq.f32.pop %v7851
    %vm7855 = vweird.f32 %v1075
    %v7856 = vadd.s32 %v7852, 3
    %v7857 = vand.u32 %v7856, 3
    %vm7858 = vcmp.lt.s32.totalorder %v7857, 2
    %vm7859 = vcmp.eq.s32.totalorder %v7857, 0
    %v7860 = vxor.u32 %v7854, 2147483648
    %v7861 = vsel %vm7859, %v7853, %v7860
    %vm7862 = vcmp.eq.s32.totalorder %v7857, 2
    %v7863 = vxor.u32 %v7853, 2147483648
    %v7864 = vsel %vm7862, %v7863, %v7854
    %v7865 = vsel %vm7858, %v7861, %v7864
    %v7866 = vsel %vm7855, nan, %v7865
    %v7867 = vand.u32 2147483647, %v1076
    %vm7868 = vcmp.le.f32.partialorder %v7867, 0.7853982
    %vm7869 = vcmp.lt.s32.totalorder %v1076, 0
    %v7870 = vand.u32 %v1076, 2139095040
    %v7871 = vshrl.u32 %v7870, 23
    %v7872 = vsub.s32 %v7871, 127
    %v7873 = vand.u32 2147483647, %v1076
    %v7874 = vand.u32 %v7873, 8388607
    %v7875 = vor.u32 %v7874, 8388608
    %v7876 = vsub.s32 0, %v7875
    %v7877 = vadd.s32 %v7872, 1
    %vm7878 = vcmp.gt.s32.totalorder %v7877, 0
    %v7879 = vsel %vm7878, %v7877, 0
    %v7880 = vshrl.u32 %v7879, 5
    %v7881 = vand.u32 %v7879, 31
    %v7882 = vsub.s32 32, %v7881
    %v7883 = vshrl.u32 683565275, %v7882
    %v7884 = vshll.u32 683565275, %v7881
    %v7885 = vshrl.u32 2475754826, %v7882
    %v7886 = vor.u32 %v7884, %v7885
    %v7887 = vshll.u32 2475754826, %v7881
    %v7888 = vshrl.u32 2131351028, %v7882
    %v7889 = vor.u32 %v7887, %v7888
    %v7890 = vshll.u32 2131351028, %v7881
    %v7891 = vshrl.u32 2102212464, %v7882
    %v7892 = vor.u32 %v7890, %v7891
    %v7893 = vshll.u32 2102212464, %v7881
    %v7894 = vshrl.u32 920167782, %v7882
    %v7895 = vor.u32 %v7893, %v7894
    %v7896 = vshll.u32 920167782, %v7881
    %v7897 = vshrl.u32 1326507024, %v7882
    %v7898 = vor.u32 %v7896, %v7897
    %vm7899 = vcmp.lt.s32.totalorder %v7880, 1
    %vm7900 = vcmp.lt.s32.totalorder %v7880, 2
    %vm7901 = vcmp.lt.s32.totalorder %v7880, 3
    %vm7902 = vcmp.lt.s32.totalorder %v7880, 4
    %v7903 = vsel %vm7899, %v7883, %v7886
    %v7904 = vsel %vm7902, %v7892, 2102212464
    %v7905 = vsel %vm7901, %v7889, %v7904
    %v7906 = vsel %vm7900, %v7903, %v7905
    %v7907 = vsel %vm7899, %v7886, %v7889
    %v7908 = vsel %vm7902, %v7895, 920167782
    %v7909 = vsel %vm7901, %v7892, %v7908
    %v7910 = vsel %vm7900, %v7907, %v7909
    %v7911 = vsel %vm7899, %v7889, %v7892
    %v7912 = vsel %vm7902, %v7898, 1326507024
    %v7913 = vsel %vm7901, %v7895, %v7912
    %v7914 = vsel %vm7900, %v7911, %v7913
    %v7915 = vshll.u32 %v7875, 8
    %v7916 = vmul.u32.u64.compose %v7915, %v7914
    %v7917 = vextract.low.u32 %v7916
    %v7918 = vextract.high.u32 %v7916
    %v7919 = vmul.u32.u64.compose %v7915, %v7910
    %v7920 = vextract.low.u32 %v7919
    %v7921 = vextract.high.u32 %v7919
    %v7922 = vmul.u32 %v7915, %v7906
    %v7923 = vadd.s32 %v7918, %v7920
    %vm7924 = vc.u32 %v7918, %v7920
    %v7925 = vadd.s32 %v7921, 1
    %v7926 = vsel %vm7924, %v7925, %v7921
    %v7927 = vadd.s32 %v7922, %v7926
    %v7928 = vadd.s32 %v7927, 536870912
    %v7929 = vshrl.u32 %v7928, 30
    %v7930 = vshll.u32 %v7929, 30
    %v7931 = vsub.s32 %v7927, %v7930
    %vm7932 = vcmp.lt.s32.totalorder %v7931, 0
    %v7933 = vsub.s32 0, %v7931
    %v7934 = vsel %vm7932, %v7933, %v7931
    %v7935 = vclz %v7934
    %v7936 = vsub.s32 %v7935, 2
    %vm7937 = vcmp.gt.s32.totalorder 0, %v7936
    %v7938 = vsel %vm7937, 0, %v7936
    %v7939 = vsub.s32 32, %v7938
    %v7940 = vshll.u32 %v7931, %v7938
    %v7941 = vshrl.u32 %v7923, %v7939
    %v7942 = vor.u32 %v7940, %v7941
    %v7943 = vsub.s32 4294967266, %v7938
    %v7944 = vadd.s32 %v7943, 127
    %v7945 = vshll.u32 %v7944, 23
    %v7946 = vor.u32 4788187, %v7945
    %v7947 = vand.u32 2147483647, %v7946
    %v7949 = vcvt.s32.f32 %v7942
    %v7950 = vmul.f32 %v7949, %v7947
    %v7951 = vxor.u32 %v7950, 2147483648
    %v7952 = vsel %vm7869, %v7951, %v7950
    %v7953 = vsub.s32 4, %v7929
    %v7954 = vsel %vm7869, %v7953, %v7929
    %v7955 = vsel %vm7868, %v1076, %v7952
    %v7956 = vsel %vm7868, 0, %v7954
    %v7957 = vcosq.f32.pop %v7955
    %v7958 = vsinq.f32.pop %v7955
    %vm7959 = vweird.f32 %v1076
    %v7960 = vadd.s32 %v7956, 3
    %v7961 = vand.u32 %v7960, 3
    %vm7962 = vcmp.lt.s32.totalorder %v7961, 2
    %vm7963 = vcmp.eq.s32.totalorder %v7961, 0
    %v7964 = vxor.u32 %v7958, 2147483648
    %v7965 = vsel %vm7963, %v7957, %v7964
    %vm7966 = vcmp.eq.s32.totalorder %v7961, 2
    %v7967 = vxor.u32 %v7957, 2147483648
    %v7968 = vsel %vm7966, %v7967, %v7958
    %v7969 = vsel %vm7962, %v7965, %v7968
    %v7970 = vsel %vm7959, nan, %v7969
    %v7971 = vand.u32 2147483647, %v1077
    %vm7972 = vcmp.le.f32.partialorder %v7971, 0.7853982
    %vm7973 = vcmp.lt.s32.totalorder %v1077, 0
    %v7974 = vand.u32 %v1077, 2139095040
    %v7975 = vshrl.u32 %v7974, 23
    %v7976 = vsub.s32 %v7975, 127
    %v7977 = vand.u32 2147483647, %v1077
    %v7978 = vand.u32 %v7977, 8388607
    %v7979 = vor.u32 %v7978, 8388608
    %v7980 = vsub.s32 0, %v7979
    %v7981 = vadd.s32 %v7976, 1
    %vm7982 = vcmp.gt.s32.totalorder %v7981, 0
    %v7983 = vsel %vm7982, %v7981, 0
    %v7984 = vshrl.u32 %v7983, 5
    %v7985 = vand.u32 %v7983, 31
    %v7986 = vsub.s32 32, %v7985
    %v7987 = vshrl.u32 683565275, %v7986
    %v7988 = vshll.u32 683565275, %v7985
    %v7989 = vshrl.u32 2475754826, %v7986
    %v7990 = vor.u32 %v7988, %v7989
    %v7991 = vshll.u32 2475754826, %v7985
    %v7992 = vshrl.u32 2131351028, %v7986
    %v7993 = vor.u32 %v7991, %v7992
    %v7994 = vshll.u32 2131351028, %v7985
    %v7995 = vshrl.u32 2102212464, %v7986
    %v7996 = vor.u32 %v7994, %v7995
    %v7997 = vshll.u32 2102212464, %v7985
    %v7998 = vshrl.u32 920167782, %v7986
    %v7999 = vor.u32 %v7997, %v7998
    %v8000 = vshll.u32 920167782, %v7985
    %v8001 = vshrl.u32 1326507024, %v7986
    %v8002 = vor.u32 %v8000, %v8001
    %vm8003 = vcmp.lt.s32.totalorder %v7984, 1
    %vm8004 = vcmp.lt.s32.totalorder %v7984, 2
    %vm8005 = vcmp.lt.s32.totalorder %v7984, 3
    %vm8006 = vcmp.lt.s32.totalorder %v7984, 4
    %v8007 = vsel %vm8003, %v7987, %v7990
    %v8008 = vsel %vm8006, %v7996, 2102212464
    %v8009 = vsel %vm8005, %v7993, %v8008
    %v8010 = vsel %vm8004, %v8007, %v8009
    %v8011 = vsel %vm8003, %v7990, %v7993
    %v8012 = vsel %vm8006, %v7999, 920167782
    %v8013 = vsel %vm8005, %v7996, %v8012
    %v8014 = vsel %vm8004, %v8011, %v8013
    %v8015 = vsel %vm8003, %v7993, %v7996
    %v8016 = vsel %vm8006, %v8002, 1326507024
    %v8017 = vsel %vm8005, %v7999, %v8016
    %v8018 = vsel %vm8004, %v8015, %v8017
    %v8019 = vshll.u32 %v7979, 8
    %v8020 = vmul.u32.u64.compose %v8019, %v8018
    %v8021 = vextract.low.u32 %v8020
    %v8022 = vextract.high.u32 %v8020
    %v8023 = vmul.u32.u64.compose %v8019, %v8014
    %v8024 = vextract.low.u32 %v8023
    %v8025 = vextract.high.u32 %v8023
    %v8026 = vmul.u32 %v8019, %v8010
    %v8027 = vadd.s32 %v8022, %v8024
    %vm8028 = vc.u32 %v8022, %v8024
    %v8029 = vadd.s32 %v8025, 1
    %v8030 = vsel %vm8028, %v8029, %v8025
    %v8031 = vadd.s32 %v8026, %v8030
    %v8032 = vadd.s32 %v8031, 536870912
    %v8033 = vshrl.u32 %v8032, 30
    %v8034 = vshll.u32 %v8033, 30
    %v8035 = vsub.s32 %v8031, %v8034
    %vm8036 = vcmp.lt.s32.totalorder %v8035, 0
    %v8037 = vsub.s32 0, %v8035
    %v8038 = vsel %vm8036, %v8037, %v8035
    %v8039 = vclz %v8038
    %v8040 = vsub.s32 %v8039, 2
    %vm8041 = vcmp.gt.s32.totalorder 0, %v8040
    %v8042 = vsel %vm8041, 0, %v8040
    %v8043 = vsub.s32 32, %v8042
    %v8044 = vshll.u32 %v8035, %v8042
    %v8045 = vshrl.u32 %v8027, %v8043
    %v8046 = vor.u32 %v8044, %v8045
    %v8047 = vsub.s32 4294967266, %v8042
    %v8048 = vadd.s32 %v8047, 127
    %v8049 = vshll.u32 %v8048, 23
    %v8050 = vor.u32 4788187, %v8049
    %v8051 = vand.u32 2147483647, %v8050
    %v8053 = vcvt.s32.f32 %v8046
    %v8054 = vmul.f32 %v8053, %v8051
    %v8055 = vxor.u32 %v8054, 2147483648
    %v8056 = vsel %vm7973, %v8055, %v8054
    %v8057 = vsub.s32 4, %v8033
    %v8058 = vsel %vm7973, %v8057, %v8033
    %v8059 = vsel %vm7972, %v1077, %v8056
    %v8060 = vsel %vm7972, 0, %v8058
    %v8061 = vcosq.f32.pop %v8059
    %v8062 = vsinq.f32.pop %v8059
    %vm8063 = vweird.f32 %v1077
    %v8064 = vadd.s32 %v8060, 3
    %v8065 = vand.u32 %v8064, 3
    %vm8066 = vcmp.lt.s32.totalorder %v8065, 2
    %vm8067 = vcmp.eq.s32.totalorder %v8065, 0
    %v8068 = vxor.u32 %v8062, 2147483648
    %v8069 = vsel %vm8067, %v8061, %v8068
    %vm8070 = vcmp.eq.s32.totalorder %v8065, 2
    %v8071 = vxor.u32 %v8061, 2147483648
    %v8072 = vsel %vm8070, %v8071, %v8062
    %v8073 = vsel %vm8066, %v8069, %v8072
    %v8074 = vsel %vm8063, nan, %v8073
    %v8075 = vand.u32 2147483647, %v1078
    %vm8076 = vcmp.le.f32.partialorder %v8075, 0.7853982
    %vm8077 = vcmp.lt.s32.totalorder %v1078, 0
    %v8078 = vand.u32 %v1078, 2139095040
    %v8079 = vshrl.u32 %v8078, 23
    %v8080 = vsub.s32 %v8079, 127
    %v8081 = vand.u32 2147483647, %v1078
    %v8082 = vand.u32 %v8081, 8388607
    %v8083 = vor.u32 %v8082, 8388608
    %v8084 = vsub.s32 0, %v8083
    %v8085 = vadd.s32 %v8080, 1
    %vm8086 = vcmp.gt.s32.totalorder %v8085, 0
    %v8087 = vsel %vm8086, %v8085, 0
    %v8088 = vshrl.u32 %v8087, 5
    %v8089 = vand.u32 %v8087, 31
    %v8090 = vsub.s32 32, %v8089
    %v8091 = vshrl.u32 683565275, %v8090
    %v8092 = vshll.u32 683565275, %v8089
    %v8093 = vshrl.u32 2475754826, %v8090
    %v8094 = vor.u32 %v8092, %v8093
    %v8095 = vshll.u32 2475754826, %v8089
    %v8096 = vshrl.u32 2131351028, %v8090
    %v8097 = vor.u32 %v8095, %v8096
    %v8098 = vshll.u32 2131351028, %v8089
    %v8099 = vshrl.u32 2102212464, %v8090
    %v8100 = vor.u32 %v8098, %v8099
    %v8101 = vshll.u32 2102212464, %v8089
    %v8102 = vshrl.u32 920167782, %v8090
    %v8103 = vor.u32 %v8101, %v8102
    %v8104 = vshll.u32 920167782, %v8089
    %v8105 = vshrl.u32 1326507024, %v8090
    %v8106 = vor.u32 %v8104, %v8105
    %vm8107 = vcmp.lt.s32.totalorder %v8088, 1
    %vm8108 = vcmp.lt.s32.totalorder %v8088, 2
    %vm8109 = vcmp.lt.s32.totalorder %v8088, 3
    %vm8110 = vcmp.lt.s32.totalorder %v8088, 4
    %v8111 = vsel %vm8107, %v8091, %v8094
    %v8112 = vsel %vm8110, %v8100, 2102212464
    %v8113 = vsel %vm8109, %v8097, %v8112
    %v8114 = vsel %vm8108, %v8111, %v8113
    %v8115 = vsel %vm8107, %v8094, %v8097
    %v8116 = vsel %vm8110, %v8103, 920167782
    %v8117 = vsel %vm8109, %v8100, %v8116
    %v8118 = vsel %vm8108, %v8115, %v8117
    %v8119 = vsel %vm8107, %v8097, %v8100
    %v8120 = vsel %vm8110, %v8106, 1326507024
    %v8121 = vsel %vm8109, %v8103, %v8120
    %v8122 = vsel %vm8108, %v8119, %v8121
    %v8123 = vshll.u32 %v8083, 8
    %v8124 = vmul.u32.u64.compose %v8123, %v8122
    %v8125 = vextract.low.u32 %v8124
    %v8126 = vextract.high.u32 %v8124
    %v8127 = vmul.u32.u64.compose %v8123, %v8118
    %v8128 = vextract.low.u32 %v8127
    %v8129 = vextract.high.u32 %v8127
    %v8130 = vmul.u32 %v8123, %v8114
    %v8131 = vadd.s32 %v8126, %v8128
    %vm8132 = vc.u32 %v8126, %v8128
    %v8133 = vadd.s32 %v8129, 1
    %v8134 = vsel %vm8132, %v8133, %v8129
    %v8135 = vadd.s32 %v8130, %v8134
    %v8136 = vadd.s32 %v8135, 536870912
    %v8137 = vshrl.u32 %v8136, 30
    %v8138 = vshll.u32 %v8137, 30
    %v8139 = vsub.s32 %v8135, %v8138
    %vm8140 = vcmp.lt.s32.totalorder %v8139, 0
    %v8141 = vsub.s32 0, %v8139
    %v8142 = vsel %vm8140, %v8141, %v8139
    %v8143 = vclz %v8142
    %v8144 = vsub.s32 %v8143, 2
    %vm8145 = vcmp.gt.s32.totalorder 0, %v8144
    %v8146 = vsel %vm8145, 0, %v8144
    %v8147 = vsub.s32 32, %v8146
    %v8148 = vshll.u32 %v8139, %v8146
    %v8149 = vshrl.u32 %v8131, %v8147
    %v8150 = vor.u32 %v8148, %v8149
    %v8151 = vsub.s32 4294967266, %v8146
    %v8152 = vadd.s32 %v8151, 127
    %v8153 = vshll.u32 %v8152, 23
    %v8154 = vor.u32 4788187, %v8153
    %v8155 = vand.u32 2147483647, %v8154
    %v8157 = vcvt.s32.f32 %v8150
    %v8158 = vmul.f32 %v8157, %v8155
    %v8159 = vxor.u32 %v8158, 2147483648
    %v8160 = vsel %vm8077, %v8159, %v8158
    %v8161 = vsub.s32 4, %v8137
    %v8162 = vsel %vm8077, %v8161, %v8137
    %v8163 = vsel %vm8076, %v1078, %v8160
    %v8164 = vsel %vm8076, 0, %v8162
    %v8165 = vcosq.f32.pop %v8163
    %v8166 = vsinq.f32.pop %v8163
    %vm8167 = vweird.f32 %v1078
    %v8168 = vadd.s32 %v8164, 3
    %v8169 = vand.u32 %v8168, 3
    %vm8170 = vcmp.lt.s32.totalorder %v8169, 2
    %vm8171 = vcmp.eq.s32.totalorder %v8169, 0
    %v8172 = vxor.u32 %v8166, 2147483648
    %v8173 = vsel %vm8171, %v8165, %v8172
    %vm8174 = vcmp.eq.s32.totalorder %v8169, 2
    %v8175 = vxor.u32 %v8165, 2147483648
    %v8176 = vsel %vm8174, %v8175, %v8166
    %v8177 = vsel %vm8170, %v8173, %v8176
    %v8178 = vsel %vm8167, nan, %v8177
    %v8179 = vand.u32 2147483647, %v1079
    %vm8180 = vcmp.le.f32.partialorder %v8179, 0.7853982
    %vm8181 = vcmp.lt.s32.totalorder %v1079, 0
    %v8182 = vand.u32 %v1079, 2139095040
    %v8183 = vshrl.u32 %v8182, 23
    %v8184 = vsub.s32 %v8183, 127
    %v8185 = vand.u32 2147483647, %v1079
    %v8186 = vand.u32 %v8185, 8388607
    %v8187 = vor.u32 %v8186, 8388608
    %v8188 = vsub.s32 0, %v8187
    %v8189 = vadd.s32 %v8184, 1
    %vm8190 = vcmp.gt.s32.totalorder %v8189, 0
    %v8191 = vsel %vm8190, %v8189, 0
    %v8192 = vshrl.u32 %v8191, 5
    %v8193 = vand.u32 %v8191, 31
    %v8194 = vsub.s32 32, %v8193
    %v8195 = vshrl.u32 683565275, %v8194
    %v8196 = vshll.u32 683565275, %v8193
    %v8197 = vshrl.u32 2475754826, %v8194
    %v8198 = vor.u32 %v8196, %v8197
    %v8199 = vshll.u32 2475754826, %v8193
    %v8200 = vshrl.u32 2131351028, %v8194
    %v8201 = vor.u32 %v8199, %v8200
    %v8202 = vshll.u32 2131351028, %v8193
    %v8203 = vshrl.u32 2102212464, %v8194
    %v8204 = vor.u32 %v8202, %v8203
    %v8205 = vshll.u32 2102212464, %v8193
    %v8206 = vshrl.u32 920167782, %v8194
    %v8207 = vor.u32 %v8205, %v8206
    %v8208 = vshll.u32 920167782, %v8193
    %v8209 = vshrl.u32 1326507024, %v8194
    %v8210 = vor.u32 %v8208, %v8209
    %vm8211 = vcmp.lt.s32.totalorder %v8192, 1
    %vm8212 = vcmp.lt.s32.totalorder %v8192, 2
    %vm8213 = vcmp.lt.s32.totalorder %v8192, 3
    %vm8214 = vcmp.lt.s32.totalorder %v8192, 4
    %v8215 = vsel %vm8211, %v8195, %v8198
    %v8216 = vsel %vm8214, %v8204, 2102212464
    %v8217 = vsel %vm8213, %v8201, %v8216
    %v8218 = vsel %vm8212, %v8215, %v8217
    %v8219 = vsel %vm8211, %v8198, %v8201
    %v8220 = vsel %vm8214, %v8207, 920167782
    %v8221 = vsel %vm8213, %v8204, %v8220
    %v8222 = vsel %vm8212, %v8219, %v8221
    %v8223 = vsel %vm8211, %v8201, %v8204
    %v8224 = vsel %vm8214, %v8210, 1326507024
    %v8225 = vsel %vm8213, %v8207, %v8224
    %v8226 = vsel %vm8212, %v8223, %v8225
    %v8227 = vshll.u32 %v8187, 8
    %v8228 = vmul.u32.u64.compose %v8227, %v8226
    %v8229 = vextract.low.u32 %v8228
    %v8230 = vextract.high.u32 %v8228
    %v8231 = vmul.u32.u64.compose %v8227, %v8222
    %v8232 = vextract.low.u32 %v8231
    %v8233 = vextract.high.u32 %v8231
    %v8234 = vmul.u32 %v8227, %v8218
    %v8235 = vadd.s32 %v8230, %v8232
    %vm8236 = vc.u32 %v8230, %v8232
    %v8237 = vadd.s32 %v8233, 1
    %v8238 = vsel %vm8236, %v8237, %v8233
    %v8239 = vadd.s32 %v8234, %v8238
    %v8240 = vadd.s32 %v8239, 536870912
    %v8241 = vshrl.u32 %v8240, 30
    %v8242 = vshll.u32 %v8241, 30
    %v8243 = vsub.s32 %v8239, %v8242
    %vm8244 = vcmp.lt.s32.totalorder %v8243, 0
    %v8245 = vsub.s32 0, %v8243
    %v8246 = vsel %vm8244, %v8245, %v8243
    %v8247 = vclz %v8246
    %v8248 = vsub.s32 %v8247, 2
    %vm8249 = vcmp.gt.s32.totalorder 0, %v8248
    %v8250 = vsel %vm8249, 0, %v8248
    %v8251 = vsub.s32 32, %v8250
    %v8252 = vshll.u32 %v8243, %v8250
    %v8253 = vshrl.u32 %v8235, %v8251
    %v8254 = vor.u32 %v8252, %v8253
    %v8255 = vsub.s32 4294967266, %v8250
    %v8256 = vadd.s32 %v8255, 127
    %v8257 = vshll.u32 %v8256, 23
    %v8258 = vor.u32 4788187, %v8257
    %v8259 = vand.u32 2147483647, %v8258
    %v8261 = vcvt.s32.f32 %v8254
    %v8262 = vmul.f32 %v8261, %v8259
    %v8263 = vxor.u32 %v8262, 2147483648
    %v8264 = vsel %vm8181, %v8263, %v8262
    %v8265 = vsub.s32 4, %v8241
    %v8266 = vsel %vm8181, %v8265, %v8241
    %v8267 = vsel %vm8180, %v1079, %v8264
    %v8268 = vsel %vm8180, 0, %v8266
    %v8269 = vcosq.f32.pop %v8267
    %v8270 = vsinq.f32.pop %v8267
    %vm8271 = vweird.f32 %v1079
    %v8272 = vadd.s32 %v8268, 3
    %v8273 = vand.u32 %v8272, 3
    %vm8274 = vcmp.lt.s32.totalorder %v8273, 2
    %vm8275 = vcmp.eq.s32.totalorder %v8273, 0
    %v8276 = vxor.u32 %v8270, 2147483648
    %v8277 = vsel %vm8275, %v8269, %v8276
    %vm8278 = vcmp.eq.s32.totalorder %v8273, 2
    %v8279 = vxor.u32 %v8269, 2147483648
    %v8280 = vsel %vm8278, %v8279, %v8270
    %v8281 = vsel %vm8274, %v8277, %v8280
    %v8282 = vsel %vm8271, nan, %v8281
    %v8283 = vand.u32 2147483647, %v1080
    %vm8284 = vcmp.le.f32.partialorder %v8283, 0.7853982
    %vm8285 = vcmp.lt.s32.totalorder %v1080, 0
    %v8286 = vand.u32 %v1080, 2139095040
    %v8287 = vshrl.u32 %v8286, 23
    %v8288 = vsub.s32 %v8287, 127
    %v8289 = vand.u32 2147483647, %v1080
    %v8290 = vand.u32 %v8289, 8388607
    %v8291 = vor.u32 %v8290, 8388608
    %v8292 = vsub.s32 0, %v8291
    %v8293 = vadd.s32 %v8288, 1
    %vm8294 = vcmp.gt.s32.totalorder %v8293, 0
    %v8295 = vsel %vm8294, %v8293, 0
    %v8296 = vshrl.u32 %v8295, 5
    %v8297 = vand.u32 %v8295, 31
    %v8298 = vsub.s32 32, %v8297
    %v8299 = vshrl.u32 683565275, %v8298
    %v8300 = vshll.u32 683565275, %v8297
    %v8301 = vshrl.u32 2475754826, %v8298
    %v8302 = vor.u32 %v8300, %v8301
    %v8303 = vshll.u32 2475754826, %v8297
    %v8304 = vshrl.u32 2131351028, %v8298
    %v8305 = vor.u32 %v8303, %v8304
    %v8306 = vshll.u32 2131351028, %v8297
    %v8307 = vshrl.u32 2102212464, %v8298
    %v8308 = vor.u32 %v8306, %v8307
    %v8309 = vshll.u32 2102212464, %v8297
    %v8310 = vshrl.u32 920167782, %v8298
    %v8311 = vor.u32 %v8309, %v8310
    %v8312 = vshll.u32 920167782, %v8297
    %v8313 = vshrl.u32 1326507024, %v8298
    %v8314 = vor.u32 %v8312, %v8313
    %vm8315 = vcmp.lt.s32.totalorder %v8296, 1
    %vm8316 = vcmp.lt.s32.totalorder %v8296, 2
    %vm8317 = vcmp.lt.s32.totalorder %v8296, 3
    %vm8318 = vcmp.lt.s32.totalorder %v8296, 4
    %v8319 = vsel %vm8315, %v8299, %v8302
    %v8320 = vsel %vm8318, %v8308, 2102212464
    %v8321 = vsel %vm8317, %v8305, %v8320
    %v8322 = vsel %vm8316, %v8319, %v8321
    %v8323 = vsel %vm8315, %v8302, %v8305
    %v8324 = vsel %vm8318, %v8311, 920167782
    %v8325 = vsel %vm8317, %v8308, %v8324
    %v8326 = vsel %vm8316, %v8323, %v8325
    %v8327 = vsel %vm8315, %v8305, %v8308
    %v8328 = vsel %vm8318, %v8314, 1326507024
    %v8329 = vsel %vm8317, %v8311, %v8328
    %v8330 = vsel %vm8316, %v8327, %v8329
    %v8331 = vshll.u32 %v8291, 8
    %v8332 = vmul.u32.u64.compose %v8331, %v8330
    %v8333 = vextract.low.u32 %v8332
    %v8334 = vextract.high.u32 %v8332
    %v8335 = vmul.u32.u64.compose %v8331, %v8326
    %v8336 = vextract.low.u32 %v8335
    %v8337 = vextract.high.u32 %v8335
    %v8338 = vmul.u32 %v8331, %v8322
    %v8339 = vadd.s32 %v8334, %v8336
    %vm8340 = vc.u32 %v8334, %v8336
    %v8341 = vadd.s32 %v8337, 1
    %v8342 = vsel %vm8340, %v8341, %v8337
    %v8343 = vadd.s32 %v8338, %v8342
    %v8344 = vadd.s32 %v8343, 536870912
    %v8345 = vshrl.u32 %v8344, 30
    %v8346 = vshll.u32 %v8345, 30
    %v8347 = vsub.s32 %v8343, %v8346
    %vm8348 = vcmp.lt.s32.totalorder %v8347, 0
    %v8349 = vsub.s32 0, %v8347
    %v8350 = vsel %vm8348, %v8349, %v8347
    %v8351 = vclz %v8350
    %v8352 = vsub.s32 %v8351, 2
    %vm8353 = vcmp.gt.s32.totalorder 0, %v8352
    %v8354 = vsel %vm8353, 0, %v8352
    %v8355 = vsub.s32 32, %v8354
    %v8356 = vshll.u32 %v8347, %v8354
    %v8357 = vshrl.u32 %v8339, %v8355
    %v8358 = vor.u32 %v8356, %v8357
    %v8359 = vsub.s32 4294967266, %v8354
    %v8360 = vadd.s32 %v8359, 127
    %v8361 = vshll.u32 %v8360, 23
    %v8362 = vor.u32 4788187, %v8361
    %v8363 = vand.u32 2147483647, %v8362
    %v8365 = vcvt.s32.f32 %v8358
    %v8366 = vmul.f32 %v8365, %v8363
    %v8367 = vxor.u32 %v8366, 2147483648
    %v8368 = vsel %vm8285, %v8367, %v8366
    %v8369 = vsub.s32 4, %v8345
    %v8370 = vsel %vm8285, %v8369, %v8345
    %v8371 = vsel %vm8284, %v1080, %v8368
    %v8372 = vsel %vm8284, 0, %v8370
    %v8373 = vcosq.f32.pop %v8371
    %v8374 = vsinq.f32.pop %v8371
    %vm8375 = vweird.f32 %v1080
    %v8376 = vadd.s32 %v8372, 3
    %v8377 = vand.u32 %v8376, 3
    %vm8378 = vcmp.lt.s32.totalorder %v8377, 2
    %vm8379 = vcmp.eq.s32.totalorder %v8377, 0
    %v8380 = vxor.u32 %v8374, 2147483648
    %v8381 = vsel %vm8379, %v8373, %v8380
    %vm8382 = vcmp.eq.s32.totalorder %v8377, 2
    %v8383 = vxor.u32 %v8373, 2147483648
    %v8384 = vsel %vm8382, %v8383, %v8374
    %v8385 = vsel %vm8378, %v8381, %v8384
    %v8386 = vsel %vm8375, nan, %v8385
    %v8387 = vand.u32 2147483647, %v1081
    %vm8388 = vcmp.le.f32.partialorder %v8387, 0.7853982
    %vm8389 = vcmp.lt.s32.totalorder %v1081, 0
    %v8390 = vand.u32 %v1081, 2139095040
    %v8391 = vshrl.u32 %v8390, 23
    %v8392 = vsub.s32 %v8391, 127
    %v8393 = vand.u32 2147483647, %v1081
    %v8394 = vand.u32 %v8393, 8388607
    %v8395 = vor.u32 %v8394, 8388608
    %v8396 = vsub.s32 0, %v8395
    %v8397 = vadd.s32 %v8392, 1
    %vm8398 = vcmp.gt.s32.totalorder %v8397, 0
    %v8399 = vsel %vm8398, %v8397, 0
    %v8400 = vshrl.u32 %v8399, 5
    %v8401 = vand.u32 %v8399, 31
    %v8402 = vsub.s32 32, %v8401
    %v8403 = vshrl.u32 683565275, %v8402
    %v8404 = vshll.u32 683565275, %v8401
    %v8405 = vshrl.u32 2475754826, %v8402
    %v8406 = vor.u32 %v8404, %v8405
    %v8407 = vshll.u32 2475754826, %v8401
    %v8408 = vshrl.u32 2131351028, %v8402
    %v8409 = vor.u32 %v8407, %v8408
    %v8410 = vshll.u32 2131351028, %v8401
    %v8411 = vshrl.u32 2102212464, %v8402
    %v8412 = vor.u32 %v8410, %v8411
    %v8413 = vshll.u32 2102212464, %v8401
    %v8414 = vshrl.u32 920167782, %v8402
    %v8415 = vor.u32 %v8413, %v8414
    %v8416 = vshll.u32 920167782, %v8401
    %v8417 = vshrl.u32 1326507024, %v8402
    %v8418 = vor.u32 %v8416, %v8417
    %vm8419 = vcmp.lt.s32.totalorder %v8400, 1
    %vm8420 = vcmp.lt.s32.totalorder %v8400, 2
    %vm8421 = vcmp.lt.s32.totalorder %v8400, 3
    %vm8422 = vcmp.lt.s32.totalorder %v8400, 4
    %v8423 = vsel %vm8419, %v8403, %v8406
    %v8424 = vsel %vm8422, %v8412, 2102212464
    %v8425 = vsel %vm8421, %v8409, %v8424
    %v8426 = vsel %vm8420, %v8423, %v8425
    %v8427 = vsel %vm8419, %v8406, %v8409
    %v8428 = vsel %vm8422, %v8415, 920167782
    %v8429 = vsel %vm8421, %v8412, %v8428
    %v8430 = vsel %vm8420, %v8427, %v8429
    %v8431 = vsel %vm8419, %v8409, %v8412
    %v8432 = vsel %vm8422, %v8418, 1326507024
    %v8433 = vsel %vm8421, %v8415, %v8432
    %v8434 = vsel %vm8420, %v8431, %v8433
    %v8435 = vshll.u32 %v8395, 8
    %v8436 = vmul.u32.u64.compose %v8435, %v8434
    %v8437 = vextract.low.u32 %v8436
    %v8438 = vextract.high.u32 %v8436
    %v8439 = vmul.u32.u64.compose %v8435, %v8430
    %v8440 = vextract.low.u32 %v8439
    %v8441 = vextract.high.u32 %v8439
    %v8442 = vmul.u32 %v8435, %v8426
    %v8443 = vadd.s32 %v8438, %v8440
    %vm8444 = vc.u32 %v8438, %v8440
    %v8445 = vadd.s32 %v8441, 1
    %v8446 = vsel %vm8444, %v8445, %v8441
    %v8447 = vadd.s32 %v8442, %v8446
    %v8448 = vadd.s32 %v8447, 536870912
    %v8449 = vshrl.u32 %v8448, 30
    %v8450 = vshll.u32 %v8449, 30
    %v8451 = vsub.s32 %v8447, %v8450
    %vm8452 = vcmp.lt.s32.totalorder %v8451, 0
    %v8453 = vsub.s32 0, %v8451
    %v8454 = vsel %vm8452, %v8453, %v8451
    %v8455 = vclz %v8454
    %v8456 = vsub.s32 %v8455, 2
    %vm8457 = vcmp.gt.s32.totalorder 0, %v8456
    %v8458 = vsel %vm8457, 0, %v8456
    %v8459 = vsub.s32 32, %v8458
    %v8460 = vshll.u32 %v8451, %v8458
    %v8461 = vshrl.u32 %v8443, %v8459
    %v8462 = vor.u32 %v8460, %v8461
    %v8463 = vsub.s32 4294967266, %v8458
    %v8464 = vadd.s32 %v8463, 127
    %v8465 = vshll.u32 %v8464, 23
    %v8466 = vor.u32 4788187, %v8465
    %v8467 = vand.u32 2147483647, %v8466
    %v8469 = vcvt.s32.f32 %v8462
    %v8470 = vmul.f32 %v8469, %v8467
    %v8471 = vxor.u32 %v8470, 2147483648
    %v8472 = vsel %vm8389, %v8471, %v8470
    %v8473 = vsub.s32 4, %v8449
    %v8474 = vsel %vm8389, %v8473, %v8449
    %v8475 = vsel %vm8388, %v1081, %v8472
    %v8476 = vsel %vm8388, 0, %v8474
    %v8477 = vcosq.f32.pop %v8475
    %v8478 = vsinq.f32.pop %v8475
    %vm8479 = vweird.f32 %v1081
    %v8480 = vadd.s32 %v8476, 3
    %v8481 = vand.u32 %v8480, 3
    %vm8482 = vcmp.lt.s32.totalorder %v8481, 2
    %vm8483 = vcmp.eq.s32.totalorder %v8481, 0
    %v8484 = vxor.u32 %v8478, 2147483648
    %v8485 = vsel %vm8483, %v8477, %v8484
    %vm8486 = vcmp.eq.s32.totalorder %v8481, 2
    %v8487 = vxor.u32 %v8477, 2147483648
    %v8488 = vsel %vm8486, %v8487, %v8478
    %v8489 = vsel %vm8482, %v8485, %v8488
    %v8490 = vsel %vm8479, nan, %v8489
    %v8491 = vand.u32 2147483647, %v1082
    %vm8492 = vcmp.le.f32.partialorder %v8491, 0.7853982
    %vm8493 = vcmp.lt.s32.totalorder %v1082, 0
    %v8494 = vand.u32 %v1082, 2139095040
    %v8495 = vshrl.u32 %v8494, 23
    %v8496 = vsub.s32 %v8495, 127
    %v8497 = vand.u32 2147483647, %v1082
    %v8498 = vand.u32 %v8497, 8388607
    %v8499 = vor.u32 %v8498, 8388608
    %v8500 = vsub.s32 0, %v8499
    %v8501 = vadd.s32 %v8496, 1
    %vm8502 = vcmp.gt.s32.totalorder %v8501, 0
    %v8503 = vsel %vm8502, %v8501, 0
    %v8504 = vshrl.u32 %v8503, 5
    %v8505 = vand.u32 %v8503, 31
    %v8506 = vsub.s32 32, %v8505
    %v8507 = vshrl.u32 683565275, %v8506
    %v8508 = vshll.u32 683565275, %v8505
    %v8509 = vshrl.u32 2475754826, %v8506
    %v8510 = vor.u32 %v8508, %v8509
    %v8511 = vshll.u32 2475754826, %v8505
    %v8512 = vshrl.u32 2131351028, %v8506
    %v8513 = vor.u32 %v8511, %v8512
    %v8514 = vshll.u32 2131351028, %v8505
    %v8515 = vshrl.u32 2102212464, %v8506
    %v8516 = vor.u32 %v8514, %v8515
    %v8517 = vshll.u32 2102212464, %v8505
    %v8518 = vshrl.u32 920167782, %v8506
    %v8519 = vor.u32 %v8517, %v8518
    %v8520 = vshll.u32 920167782, %v8505
    %v8521 = vshrl.u32 1326507024, %v8506
    %v8522 = vor.u32 %v8520, %v8521
    %vm8523 = vcmp.lt.s32.totalorder %v8504, 1
    %vm8524 = vcmp.lt.s32.totalorder %v8504, 2
    %vm8525 = vcmp.lt.s32.totalorder %v8504, 3
    %vm8526 = vcmp.lt.s32.totalorder %v8504, 4
    %v8527 = vsel %vm8523, %v8507, %v8510
    %v8528 = vsel %vm8526, %v8516, 2102212464
    %v8529 = vsel %vm8525, %v8513, %v8528
    %v8530 = vsel %vm8524, %v8527, %v8529
    %v8531 = vsel %vm8523, %v8510, %v8513
    %v8532 = vsel %vm8526, %v8519, 920167782
    %v8533 = vsel %vm8525, %v8516, %v8532
    %v8534 = vsel %vm8524, %v8531, %v8533
    %v8535 = vsel %vm8523, %v8513, %v8516
    %v8536 = vsel %vm8526, %v8522, 1326507024
    %v8537 = vsel %vm8525, %v8519, %v8536
    %v8538 = vsel %vm8524, %v8535, %v8537
    %v8539 = vshll.u32 %v8499, 8
    %v8540 = vmul.u32.u64.compose %v8539, %v8538
    %v8541 = vextract.low.u32 %v8540
    %v8542 = vextract.high.u32 %v8540
    %v8543 = vmul.u32.u64.compose %v8539, %v8534
    %v8544 = vextract.low.u32 %v8543
    %v8545 = vextract.high.u32 %v8543
    %v8546 = vmul.u32 %v8539, %v8530
    %v8547 = vadd.s32 %v8542, %v8544
    %vm8548 = vc.u32 %v8542, %v8544
    %v8549 = vadd.s32 %v8545, 1
    %v8550 = vsel %vm8548, %v8549, %v8545
    %v8551 = vadd.s32 %v8546, %v8550
    %v8552 = vadd.s32 %v8551, 536870912
    %v8553 = vshrl.u32 %v8552, 30
    %v8554 = vshll.u32 %v8553, 30
    %v8555 = vsub.s32 %v8551, %v8554
    %vm8556 = vcmp.lt.s32.totalorder %v8555, 0
    %v8557 = vsub.s32 0, %v8555
    %v8558 = vsel %vm8556, %v8557, %v8555
    %v8559 = vclz %v8558
    %v8560 = vsub.s32 %v8559, 2
    %vm8561 = vcmp.gt.s32.totalorder 0, %v8560
    %v8562 = vsel %vm8561, 0, %v8560
    %v8563 = vsub.s32 32, %v8562
    %v8564 = vshll.u32 %v8555, %v8562
    %v8565 = vshrl.u32 %v8547, %v8563
    %v8566 = vor.u32 %v8564, %v8565
    %v8567 = vsub.s32 4294967266, %v8562
    %v8568 = vadd.s32 %v8567, 127
    %v8569 = vshll.u32 %v8568, 23
    %v8570 = vor.u32 4788187, %v8569
    %v8571 = vand.u32 2147483647, %v8570
    %v8573 = vcvt.s32.f32 %v8566
    %v8574 = vmul.f32 %v8573, %v8571
    %v8575 = vxor.u32 %v8574, 2147483648
    %v8576 = vsel %vm8493, %v8575, %v8574
    %v8577 = vsub.s32 4, %v8553
    %v8578 = vsel %vm8493, %v8577, %v8553
    %v8579 = vsel %vm8492, %v1082, %v8576
    %v8580 = vsel %vm8492, 0, %v8578
    %v8581 = vcosq.f32.pop %v8579
    %v8582 = vsinq.f32.pop %v8579
    %vm8583 = vweird.f32 %v1082
    %v8584 = vadd.s32 %v8580, 3
    %v8585 = vand.u32 %v8584, 3
    %vm8586 = vcmp.lt.s32.totalorder %v8585, 2
    %vm8587 = vcmp.eq.s32.totalorder %v8585, 0
    %v8588 = vxor.u32 %v8582, 2147483648
    %v8589 = vsel %vm8587, %v8581, %v8588
    %vm8590 = vcmp.eq.s32.totalorder %v8585, 2
    %v8591 = vxor.u32 %v8581, 2147483648
    %v8592 = vsel %vm8590, %v8591, %v8582
    %v8593 = vsel %vm8586, %v8589, %v8592
    %v8594 = vsel %vm8583, nan, %v8593
    %v8595 = vand.u32 2147483647, %v1083
    %vm8596 = vcmp.le.f32.partialorder %v8595, 0.7853982
    %vm8597 = vcmp.lt.s32.totalorder %v1083, 0
    %v8598 = vand.u32 %v1083, 2139095040
    %v8599 = vshrl.u32 %v8598, 23
    %v8600 = vsub.s32 %v8599, 127
    %v8601 = vand.u32 2147483647, %v1083
    %v8602 = vand.u32 %v8601, 8388607
    %v8603 = vor.u32 %v8602, 8388608
    %v8604 = vsub.s32 0, %v8603
    %v8605 = vadd.s32 %v8600, 1
    %vm8606 = vcmp.gt.s32.totalorder %v8605, 0
    %v8607 = vsel %vm8606, %v8605, 0
    %v8608 = vshrl.u32 %v8607, 5
    %v8609 = vand.u32 %v8607, 31
    %v8610 = vsub.s32 32, %v8609
    %v8611 = vshrl.u32 683565275, %v8610
    %v8612 = vshll.u32 683565275, %v8609
    %v8613 = vshrl.u32 2475754826, %v8610
    %v8614 = vor.u32 %v8612, %v8613
    %v8615 = vshll.u32 2475754826, %v8609
    %v8616 = vshrl.u32 2131351028, %v8610
    %v8617 = vor.u32 %v8615, %v8616
    %v8618 = vshll.u32 2131351028, %v8609
    %v8619 = vshrl.u32 2102212464, %v8610
    %v8620 = vor.u32 %v8618, %v8619
    %v8621 = vshll.u32 2102212464, %v8609
    %v8622 = vshrl.u32 920167782, %v8610
    %v8623 = vor.u32 %v8621, %v8622
    %v8624 = vshll.u32 920167782, %v8609
    %v8625 = vshrl.u32 1326507024, %v8610
    %v8626 = vor.u32 %v8624, %v8625
    %vm8627 = vcmp.lt.s32.totalorder %v8608, 1
    %vm8628 = vcmp.lt.s32.totalorder %v8608, 2
    %vm8629 = vcmp.lt.s32.totalorder %v8608, 3
    %vm8630 = vcmp.lt.s32.totalorder %v8608, 4
    %v8631 = vsel %vm8627, %v8611, %v8614
    %v8632 = vsel %vm8630, %v8620, 2102212464
    %v8633 = vsel %vm8629, %v8617, %v8632
    %v8634 = vsel %vm8628, %v8631, %v8633
    %v8635 = vsel %vm8627, %v8614, %v8617
    %v8636 = vsel %vm8630, %v8623, 920167782
    %v8637 = vsel %vm8629, %v8620, %v8636
    %v8638 = vsel %vm8628, %v8635, %v8637
    %v8639 = vsel %vm8627, %v8617, %v8620
    %v8640 = vsel %vm8630, %v8626, 1326507024
    %v8641 = vsel %vm8629, %v8623, %v8640
    %v8642 = vsel %vm8628, %v8639, %v8641
    %v8643 = vshll.u32 %v8603, 8
    %v8644 = vmul.u32.u64.compose %v8643, %v8642
    %v8645 = vextract.low.u32 %v8644
    %v8646 = vextract.high.u32 %v8644
    %v8647 = vmul.u32.u64.compose %v8643, %v8638
    %v8648 = vextract.low.u32 %v8647
    %v8649 = vextract.high.u32 %v8647
    %v8650 = vmul.u32 %v8643, %v8634
    %v8651 = vadd.s32 %v8646, %v8648
    %vm8652 = vc.u32 %v8646, %v8648
    %v8653 = vadd.s32 %v8649, 1
    %v8654 = vsel %vm8652, %v8653, %v8649
    %v8655 = vadd.s32 %v8650, %v8654
    %v8656 = vadd.s32 %v8655, 536870912
    %v8657 = vshrl.u32 %v8656, 30
    %v8658 = vshll.u32 %v8657, 30
    %v8659 = vsub.s32 %v8655, %v8658
    %vm8660 = vcmp.lt.s32.totalorder %v8659, 0
    %v8661 = vsub.s32 0, %v8659
    %v8662 = vsel %vm8660, %v8661, %v8659
    %v8663 = vclz %v8662
    %v8664 = vsub.s32 %v8663, 2
    %vm8665 = vcmp.gt.s32.totalorder 0, %v8664
    %v8666 = vsel %vm8665, 0, %v8664
    %v8667 = vsub.s32 32, %v8666
    %v8668 = vshll.u32 %v8659, %v8666
    %v8669 = vshrl.u32 %v8651, %v8667
    %v8670 = vor.u32 %v8668, %v8669
    %v8671 = vsub.s32 4294967266, %v8666
    %v8672 = vadd.s32 %v8671, 127
    %v8673 = vshll.u32 %v8672, 23
    %v8674 = vor.u32 4788187, %v8673
    %v8675 = vand.u32 2147483647, %v8674
    %v8677 = vcvt.s32.f32 %v8670
    %v8678 = vmul.f32 %v8677, %v8675
    %v8679 = vxor.u32 %v8678, 2147483648
    %v8680 = vsel %vm8597, %v8679, %v8678
    %v8681 = vsub.s32 4, %v8657
    %v8682 = vsel %vm8597, %v8681, %v8657
    %v8683 = vsel %vm8596, %v1083, %v8680
    %v8684 = vsel %vm8596, 0, %v8682
    %v8685 = vcosq.f32.pop %v8683
    %v8686 = vsinq.f32.pop %v8683
    %vm8687 = vweird.f32 %v1083
    %v8688 = vadd.s32 %v8684, 3
    %v8689 = vand.u32 %v8688, 3
    %vm8690 = vcmp.lt.s32.totalorder %v8689, 2
    %vm8691 = vcmp.eq.s32.totalorder %v8689, 0
    %v8692 = vxor.u32 %v8686, 2147483648
    %v8693 = vsel %vm8691, %v8685, %v8692
    %vm8694 = vcmp.eq.s32.totalorder %v8689, 2
    %v8695 = vxor.u32 %v8685, 2147483648
    %v8696 = vsel %vm8694, %v8695, %v8686
    %v8697 = vsel %vm8690, %v8693, %v8696
    %v8698 = vsel %vm8687, nan, %v8697
    %v8699 = vand.u32 2147483647, %v1084
    %vm8700 = vcmp.le.f32.partialorder %v8699, 0.7853982
    %vm8701 = vcmp.lt.s32.totalorder %v1084, 0
    %v8702 = vand.u32 %v1084, 2139095040
    %v8703 = vshrl.u32 %v8702, 23
    %v8704 = vsub.s32 %v8703, 127
    %v8705 = vand.u32 2147483647, %v1084
    %v8706 = vand.u32 %v8705, 8388607
    %v8707 = vor.u32 %v8706, 8388608
    %v8708 = vsub.s32 0, %v8707
    %v8709 = vadd.s32 %v8704, 1
    %vm8710 = vcmp.gt.s32.totalorder %v8709, 0
    %v8711 = vsel %vm8710, %v8709, 0
    %v8712 = vshrl.u32 %v8711, 5
    %v8713 = vand.u32 %v8711, 31
    %v8714 = vsub.s32 32, %v8713
    %v8715 = vshrl.u32 683565275, %v8714
    %v8716 = vshll.u32 683565275, %v8713
    %v8717 = vshrl.u32 2475754826, %v8714
    %v8718 = vor.u32 %v8716, %v8717
    %v8719 = vshll.u32 2475754826, %v8713
    %v8720 = vshrl.u32 2131351028, %v8714
    %v8721 = vor.u32 %v8719, %v8720
    %v8722 = vshll.u32 2131351028, %v8713
    %v8723 = vshrl.u32 2102212464, %v8714
    %v8724 = vor.u32 %v8722, %v8723
    %v8725 = vshll.u32 2102212464, %v8713
    %v8726 = vshrl.u32 920167782, %v8714
    %v8727 = vor.u32 %v8725, %v8726
    %v8728 = vshll.u32 920167782, %v8713
    %v8729 = vshrl.u32 1326507024, %v8714
    %v8730 = vor.u32 %v8728, %v8729
    %vm8731 = vcmp.lt.s32.totalorder %v8712, 1
    %vm8732 = vcmp.lt.s32.totalorder %v8712, 2
    %vm8733 = vcmp.lt.s32.totalorder %v8712, 3
    %vm8734 = vcmp.lt.s32.totalorder %v8712, 4
    %v8735 = vsel %vm8731, %v8715, %v8718
    %v8736 = vsel %vm8734, %v8724, 2102212464
    %v8737 = vsel %vm8733, %v8721, %v8736
    %v8738 = vsel %vm8732, %v8735, %v8737
    %v8739 = vsel %vm8731, %v8718, %v8721
    %v8740 = vsel %vm8734, %v8727, 920167782
    %v8741 = vsel %vm8733, %v8724, %v8740
    %v8742 = vsel %vm8732, %v8739, %v8741
    %v8743 = vsel %vm8731, %v8721, %v8724
    %v8744 = vsel %vm8734, %v8730, 1326507024
    %v8745 = vsel %vm8733, %v8727, %v8744
    %v8746 = vsel %vm8732, %v8743, %v8745
    %v8747 = vshll.u32 %v8707, 8
    %v8748 = vmul.u32.u64.compose %v8747, %v8746
    %v8749 = vextract.low.u32 %v8748
    %v8750 = vextract.high.u32 %v8748
    %v8751 = vmul.u32.u64.compose %v8747, %v8742
    %v8752 = vextract.low.u32 %v8751
    %v8753 = vextract.high.u32 %v8751
    %v8754 = vmul.u32 %v8747, %v8738
    %v8755 = vadd.s32 %v8750, %v8752
    %vm8756 = vc.u32 %v8750, %v8752
    %v8757 = vadd.s32 %v8753, 1
    %v8758 = vsel %vm8756, %v8757, %v8753
    %v8759 = vadd.s32 %v8754, %v8758
    %v8760 = vadd.s32 %v8759, 536870912
    %v8761 = vshrl.u32 %v8760, 30
    %v8762 = vshll.u32 %v8761, 30
    %v8763 = vsub.s32 %v8759, %v8762
    %vm8764 = vcmp.lt.s32.totalorder %v8763, 0
    %v8765 = vsub.s32 0, %v8763
    %v8766 = vsel %vm8764, %v8765, %v8763
    %v8767 = vclz %v8766
    %v8768 = vsub.s32 %v8767, 2
    %vm8769 = vcmp.gt.s32.totalorder 0, %v8768
    %v8770 = vsel %vm8769, 0, %v8768
    %v8771 = vsub.s32 32, %v8770
    %v8772 = vshll.u32 %v8763, %v8770
    %v8773 = vshrl.u32 %v8755, %v8771
    %v8774 = vor.u32 %v8772, %v8773
    %v8775 = vsub.s32 4294967266, %v8770
    %v8776 = vadd.s32 %v8775, 127
    %v8777 = vshll.u32 %v8776, 23
    %v8778 = vor.u32 4788187, %v8777
    %v8779 = vand.u32 2147483647, %v8778
    %v8781 = vcvt.s32.f32 %v8774
    %v8782 = vmul.f32 %v8781, %v8779
    %v8783 = vxor.u32 %v8782, 2147483648
    %v8784 = vsel %vm8701, %v8783, %v8782
    %v8785 = vsub.s32 4, %v8761
    %v8786 = vsel %vm8701, %v8785, %v8761
    %v8787 = vsel %vm8700, %v1084, %v8784
    %v8788 = vsel %vm8700, 0, %v8786
    %v8789 = vcosq.f32.pop %v8787
    %v8790 = vsinq.f32.pop %v8787
    %vm8791 = vweird.f32 %v1084
    %v8792 = vadd.s32 %v8788, 3
    %v8793 = vand.u32 %v8792, 3
    %vm8794 = vcmp.lt.s32.totalorder %v8793, 2
    %vm8795 = vcmp.eq.s32.totalorder %v8793, 0
    %v8796 = vxor.u32 %v8790, 2147483648
    %v8797 = vsel %vm8795, %v8789, %v8796
    %vm8798 = vcmp.eq.s32.totalorder %v8793, 2
    %v8799 = vxor.u32 %v8789, 2147483648
    %v8800 = vsel %vm8798, %v8799, %v8790
    %v8801 = vsel %vm8794, %v8797, %v8800
    %v8802 = vsel %vm8791, nan, %v8801
    %v8803 = vand.u32 2147483647, %v1085
    %vm8804 = vcmp.le.f32.partialorder %v8803, 0.7853982
    %vm8805 = vcmp.lt.s32.totalorder %v1085, 0
    %v8806 = vand.u32 %v1085, 2139095040
    %v8807 = vshrl.u32 %v8806, 23
    %v8808 = vsub.s32 %v8807, 127
    %v8809 = vand.u32 2147483647, %v1085
    %v8810 = vand.u32 %v8809, 8388607
    %v8811 = vor.u32 %v8810, 8388608
    %v8812 = vsub.s32 0, %v8811
    %v8813 = vadd.s32 %v8808, 1
    %vm8814 = vcmp.gt.s32.totalorder %v8813, 0
    %v8815 = vsel %vm8814, %v8813, 0
    %v8816 = vshrl.u32 %v8815, 5
    %v8817 = vand.u32 %v8815, 31
    %v8818 = vsub.s32 32, %v8817
    %v8819 = vshrl.u32 683565275, %v8818
    %v8820 = vshll.u32 683565275, %v8817
    %v8821 = vshrl.u32 2475754826, %v8818
    %v8822 = vor.u32 %v8820, %v8821
    %v8823 = vshll.u32 2475754826, %v8817
    %v8824 = vshrl.u32 2131351028, %v8818
    %v8825 = vor.u32 %v8823, %v8824
    %v8826 = vshll.u32 2131351028, %v8817
    %v8827 = vshrl.u32 2102212464, %v8818
    %v8828 = vor.u32 %v8826, %v8827
    %v8829 = vshll.u32 2102212464, %v8817
    %v8830 = vshrl.u32 920167782, %v8818
    %v8831 = vor.u32 %v8829, %v8830
    %v8832 = vshll.u32 920167782, %v8817
    %v8833 = vshrl.u32 1326507024, %v8818
    %v8834 = vor.u32 %v8832, %v8833
    %vm8835 = vcmp.lt.s32.totalorder %v8816, 1
    %vm8836 = vcmp.lt.s32.totalorder %v8816, 2
    %vm8837 = vcmp.lt.s32.totalorder %v8816, 3
    %vm8838 = vcmp.lt.s32.totalorder %v8816, 4
    %v8839 = vsel %vm8835, %v8819, %v8822
    %v8840 = vsel %vm8838, %v8828, 2102212464
    %v8841 = vsel %vm8837, %v8825, %v8840
    %v8842 = vsel %vm8836, %v8839, %v8841
    %v8843 = vsel %vm8835, %v8822, %v8825
    %v8844 = vsel %vm8838, %v8831, 920167782
    %v8845 = vsel %vm8837, %v8828, %v8844
    %v8846 = vsel %vm8836, %v8843, %v8845
    %v8847 = vsel %vm8835, %v8825, %v8828
    %v8848 = vsel %vm8838, %v8834, 1326507024
    %v8849 = vsel %vm8837, %v8831, %v8848
    %v8850 = vsel %vm8836, %v8847, %v8849
    %v8851 = vshll.u32 %v8811, 8
    %v8852 = vmul.u32.u64.compose %v8851, %v8850
    %v8853 = vextract.low.u32 %v8852
    %v8854 = vextract.high.u32 %v8852
    %v8855 = vmul.u32.u64.compose %v8851, %v8846
    %v8856 = vextract.low.u32 %v8855
    %v8857 = vextract.high.u32 %v8855
    %v8858 = vmul.u32 %v8851, %v8842
    %v8859 = vadd.s32 %v8854, %v8856
    %vm8860 = vc.u32 %v8854, %v8856
    %v8861 = vadd.s32 %v8857, 1
    %v8862 = vsel %vm8860, %v8861, %v8857
    %v8863 = vadd.s32 %v8858, %v8862
    %v8864 = vadd.s32 %v8863, 536870912
    %v8865 = vshrl.u32 %v8864, 30
    %v8866 = vshll.u32 %v8865, 30
    %v8867 = vsub.s32 %v8863, %v8866
    %vm8868 = vcmp.lt.s32.totalorder %v8867, 0
    %v8869 = vsub.s32 0, %v8867
    %v8870 = vsel %vm8868, %v8869, %v8867
    %v8871 = vclz %v8870
    %v8872 = vsub.s32 %v8871, 2
    %vm8873 = vcmp.gt.s32.totalorder 0, %v8872
    %v8874 = vsel %vm8873, 0, %v8872
    %v8875 = vsub.s32 32, %v8874
    %v8876 = vshll.u32 %v8867, %v8874
    %v8877 = vshrl.u32 %v8859, %v8875
    %v8878 = vor.u32 %v8876, %v8877
    %v8879 = vsub.s32 4294967266, %v8874
    %v8880 = vadd.s32 %v8879, 127
    %v8881 = vshll.u32 %v8880, 23
    %v8882 = vor.u32 4788187, %v8881
    %v8883 = vand.u32 2147483647, %v8882
    %v8885 = vcvt.s32.f32 %v8878
    %v8886 = vmul.f32 %v8885, %v8883
    %v8887 = vxor.u32 %v8886, 2147483648
    %v8888 = vsel %vm8805, %v8887, %v8886
    %v8889 = vsub.s32 4, %v8865
    %v8890 = vsel %vm8805, %v8889, %v8865
    %v8891 = vsel %vm8804, %v1085, %v8888
    %v8892 = vsel %vm8804, 0, %v8890
    %v8893 = vcosq.f32.pop %v8891
    %v8894 = vsinq.f32.pop %v8891
    %vm8895 = vweird.f32 %v1085
    %v8896 = vadd.s32 %v8892, 3
    %v8897 = vand.u32 %v8896, 3
    %vm8898 = vcmp.lt.s32.totalorder %v8897, 2
    %vm8899 = vcmp.eq.s32.totalorder %v8897, 0
    %v8900 = vxor.u32 %v8894, 2147483648
    %v8901 = vsel %vm8899, %v8893, %v8900
    %vm8902 = vcmp.eq.s32.totalorder %v8897, 2
    %v8903 = vxor.u32 %v8893, 2147483648
    %v8904 = vsel %vm8902, %v8903, %v8894
    %v8905 = vsel %vm8898, %v8901, %v8904
    %v8906 = vsel %vm8895, nan, %v8905
    %v8907 = vand.u32 2147483647, %v1086
    %vm8908 = vcmp.le.f32.partialorder %v8907, 0.7853982
    %vm8909 = vcmp.lt.s32.totalorder %v1086, 0
    %v8910 = vand.u32 %v1086, 2139095040
    %v8911 = vshrl.u32 %v8910, 23
    %v8912 = vsub.s32 %v8911, 127
    %v8913 = vand.u32 2147483647, %v1086
    %v8914 = vand.u32 %v8913, 8388607
    %v8915 = vor.u32 %v8914, 8388608
    %v8916 = vsub.s32 0, %v8915
    %v8917 = vadd.s32 %v8912, 1
    %vm8918 = vcmp.gt.s32.totalorder %v8917, 0
    %v8919 = vsel %vm8918, %v8917, 0
    %v8920 = vshrl.u32 %v8919, 5
    %v8921 = vand.u32 %v8919, 31
    %v8922 = vsub.s32 32, %v8921
    %v8923 = vshrl.u32 683565275, %v8922
    %v8924 = vshll.u32 683565275, %v8921
    %v8925 = vshrl.u32 2475754826, %v8922
    %v8926 = vor.u32 %v8924, %v8925
    %v8927 = vshll.u32 2475754826, %v8921
    %v8928 = vshrl.u32 2131351028, %v8922
    %v8929 = vor.u32 %v8927, %v8928
    %v8930 = vshll.u32 2131351028, %v8921
    %v8931 = vshrl.u32 2102212464, %v8922
    %v8932 = vor.u32 %v8930, %v8931
    %v8933 = vshll.u32 2102212464, %v8921
    %v8934 = vshrl.u32 920167782, %v8922
    %v8935 = vor.u32 %v8933, %v8934
    %v8936 = vshll.u32 920167782, %v8921
    %v8937 = vshrl.u32 1326507024, %v8922
    %v8938 = vor.u32 %v8936, %v8937
    %vm8939 = vcmp.lt.s32.totalorder %v8920, 1
    %vm8940 = vcmp.lt.s32.totalorder %v8920, 2
    %vm8941 = vcmp.lt.s32.totalorder %v8920, 3
    %vm8942 = vcmp.lt.s32.totalorder %v8920, 4
    %v8943 = vsel %vm8939, %v8923, %v8926
    %v8944 = vsel %vm8942, %v8932, 2102212464
    %v8945 = vsel %vm8941, %v8929, %v8944
    %v8946 = vsel %vm8940, %v8943, %v8945
    %v8947 = vsel %vm8939, %v8926, %v8929
    %v8948 = vsel %vm8942, %v8935, 920167782
    %v8949 = vsel %vm8941, %v8932, %v8948
    %v8950 = vsel %vm8940, %v8947, %v8949
    %v8951 = vsel %vm8939, %v8929, %v8932
    %v8952 = vsel %vm8942, %v8938, 1326507024
    %v8953 = vsel %vm8941, %v8935, %v8952
    %v8954 = vsel %vm8940, %v8951, %v8953
    %v8955 = vshll.u32 %v8915, 8
    %v8956 = vmul.u32.u64.compose %v8955, %v8954
    %v8957 = vextract.low.u32 %v8956
    %v8958 = vextract.high.u32 %v8956
    %v8959 = vmul.u32.u64.compose %v8955, %v8950
    %v8960 = vextract.low.u32 %v8959
    %v8961 = vextract.high.u32 %v8959
    %v8962 = vmul.u32 %v8955, %v8946
    %v8963 = vadd.s32 %v8958, %v8960
    %vm8964 = vc.u32 %v8958, %v8960
    %v8965 = vadd.s32 %v8961, 1
    %v8966 = vsel %vm8964, %v8965, %v8961
    %v8967 = vadd.s32 %v8962, %v8966
    %v8968 = vadd.s32 %v8967, 536870912
    %v8969 = vshrl.u32 %v8968, 30
    %v8970 = vshll.u32 %v8969, 30
    %v8971 = vsub.s32 %v8967, %v8970
    %vm8972 = vcmp.lt.s32.totalorder %v8971, 0
    %v8973 = vsub.s32 0, %v8971
    %v8974 = vsel %vm8972, %v8973, %v8971
    %v8975 = vclz %v8974
    %v8976 = vsub.s32 %v8975, 2
    %vm8977 = vcmp.gt.s32.totalorder 0, %v8976
    %v8978 = vsel %vm8977, 0, %v8976
    %v8979 = vsub.s32 32, %v8978
    %v8980 = vshll.u32 %v8971, %v8978
    %v8981 = vshrl.u32 %v8963, %v8979
    %v8982 = vor.u32 %v8980, %v8981
    %v8983 = vsub.s32 4294967266, %v8978
    %v8984 = vadd.s32 %v8983, 127
    %v8985 = vshll.u32 %v8984, 23
    %v8986 = vor.u32 4788187, %v8985
    %v8987 = vand.u32 2147483647, %v8986
    %v8989 = vcvt.s32.f32 %v8982
    %v8990 = vmul.f32 %v8989, %v8987
    %v8991 = vxor.u32 %v8990, 2147483648
    %v8992 = vsel %vm8909, %v8991, %v8990
    %v8993 = vsub.s32 4, %v8969
    %v8994 = vsel %vm8909, %v8993, %v8969
    %v8995 = vsel %vm8908, %v1086, %v8992
    %v8996 = vsel %vm8908, 0, %v8994
    %v8997 = vcosq.f32.pop %v8995
    %v8998 = vsinq.f32.pop %v8995
    %vm8999 = vweird.f32 %v1086
    %v9000 = vadd.s32 %v8996, 3
    %v9001 = vand.u32 %v9000, 3
    %vm9002 = vcmp.lt.s32.totalorder %v9001, 2
    %vm9003 = vcmp.eq.s32.totalorder %v9001, 0
    %v9004 = vxor.u32 %v8998, 2147483648
    %v9005 = vsel %vm9003, %v8997, %v9004
    %vm9006 = vcmp.eq.s32.totalorder %v9001, 2
    %v9007 = vxor.u32 %v8997, 2147483648
    %v9008 = vsel %vm9006, %v9007, %v8998
    %v9009 = vsel %vm9002, %v9005, %v9008
    %v9010 = vsel %vm8999, nan, %v9009
    %v9011 = vand.u32 2147483647, %v1087
    %vm9012 = vcmp.le.f32.partialorder %v9011, 0.7853982
    %vm9013 = vcmp.lt.s32.totalorder %v1087, 0
    %v9014 = vand.u32 %v1087, 2139095040
    %v9015 = vshrl.u32 %v9014, 23
    %v9016 = vsub.s32 %v9015, 127
    %v9017 = vand.u32 2147483647, %v1087
    %v9018 = vand.u32 %v9017, 8388607
    %v9019 = vor.u32 %v9018, 8388608
    %v9020 = vsub.s32 0, %v9019
    %v9021 = vadd.s32 %v9016, 1
    %vm9022 = vcmp.gt.s32.totalorder %v9021, 0
    %v9023 = vsel %vm9022, %v9021, 0
    %v9024 = vshrl.u32 %v9023, 5
    %v9025 = vand.u32 %v9023, 31
    %v9026 = vsub.s32 32, %v9025
    %v9027 = vshrl.u32 683565275, %v9026
    %v9028 = vshll.u32 683565275, %v9025
    %v9029 = vshrl.u32 2475754826, %v9026
    %v9030 = vor.u32 %v9028, %v9029
    %v9031 = vshll.u32 2475754826, %v9025
    %v9032 = vshrl.u32 2131351028, %v9026
    %v9033 = vor.u32 %v9031, %v9032
    %v9034 = vshll.u32 2131351028, %v9025
    %v9035 = vshrl.u32 2102212464, %v9026
    %v9036 = vor.u32 %v9034, %v9035
    %v9037 = vshll.u32 2102212464, %v9025
    %v9038 = vshrl.u32 920167782, %v9026
    %v9039 = vor.u32 %v9037, %v9038
    %v9040 = vshll.u32 920167782, %v9025
    %v9041 = vshrl.u32 1326507024, %v9026
    %v9042 = vor.u32 %v9040, %v9041
    %vm9043 = vcmp.lt.s32.totalorder %v9024, 1
    %vm9044 = vcmp.lt.s32.totalorder %v9024, 2
    %vm9045 = vcmp.lt.s32.totalorder %v9024, 3
    %vm9046 = vcmp.lt.s32.totalorder %v9024, 4
    %v9047 = vsel %vm9043, %v9027, %v9030
    %v9048 = vsel %vm9046, %v9036, 2102212464
    %v9049 = vsel %vm9045, %v9033, %v9048
    %v9050 = vsel %vm9044, %v9047, %v9049
    %v9051 = vsel %vm9043, %v9030, %v9033
    %v9052 = vsel %vm9046, %v9039, 920167782
    %v9053 = vsel %vm9045, %v9036, %v9052
    %v9054 = vsel %vm9044, %v9051, %v9053
    %v9055 = vsel %vm9043, %v9033, %v9036
    %v9056 = vsel %vm9046, %v9042, 1326507024
    %v9057 = vsel %vm9045, %v9039, %v9056
    %v9058 = vsel %vm9044, %v9055, %v9057
    %v9059 = vshll.u32 %v9019, 8
    %v9060 = vmul.u32.u64.compose %v9059, %v9058
    %v9061 = vextract.low.u32 %v9060
    %v9062 = vextract.high.u32 %v9060
    %v9063 = vmul.u32.u64.compose %v9059, %v9054
    %v9064 = vextract.low.u32 %v9063
    %v9065 = vextract.high.u32 %v9063
    %v9066 = vmul.u32 %v9059, %v9050
    %v9067 = vadd.s32 %v9062, %v9064
    %vm9068 = vc.u32 %v9062, %v9064
    %v9069 = vadd.s32 %v9065, 1
    %v9070 = vsel %vm9068, %v9069, %v9065
    %v9071 = vadd.s32 %v9066, %v9070
    %v9072 = vadd.s32 %v9071, 536870912
    %v9073 = vshrl.u32 %v9072, 30
    %v9074 = vshll.u32 %v9073, 30
    %v9075 = vsub.s32 %v9071, %v9074
    %vm9076 = vcmp.lt.s32.totalorder %v9075, 0
    %v9077 = vsub.s32 0, %v9075
    %v9078 = vsel %vm9076, %v9077, %v9075
    %v9079 = vclz %v9078
    %v9080 = vsub.s32 %v9079, 2
    %vm9081 = vcmp.gt.s32.totalorder 0, %v9080
    %v9082 = vsel %vm9081, 0, %v9080
    %v9083 = vsub.s32 32, %v9082
    %v9084 = vshll.u32 %v9075, %v9082
    %v9085 = vshrl.u32 %v9067, %v9083
    %v9086 = vor.u32 %v9084, %v9085
    %v9087 = vsub.s32 4294967266, %v9082
    %v9088 = vadd.s32 %v9087, 127
    %v9089 = vshll.u32 %v9088, 23
    %v9090 = vor.u32 4788187, %v9089
    %v9091 = vand.u32 2147483647, %v9090
    %v9093 = vcvt.s32.f32 %v9086
    %v9094 = vmul.f32 %v9093, %v9091
    %v9095 = vxor.u32 %v9094, 2147483648
    %v9096 = vsel %vm9013, %v9095, %v9094
    %v9097 = vsub.s32 4, %v9073
    %v9098 = vsel %vm9013, %v9097, %v9073
    %v9099 = vsel %vm9012, %v1087, %v9096
    %v9100 = vsel %vm9012, 0, %v9098
    %v9101 = vcosq.f32.pop %v9099
    %v9102 = vsinq.f32.pop %v9099
    %vm9103 = vweird.f32 %v1087
    %v9104 = vadd.s32 %v9100, 3
    %v9105 = vand.u32 %v9104, 3
    %vm9106 = vcmp.lt.s32.totalorder %v9105, 2
    %vm9107 = vcmp.eq.s32.totalorder %v9105, 0
    %v9108 = vxor.u32 %v9102, 2147483648
    %v9109 = vsel %vm9107, %v9101, %v9108
    %vm9110 = vcmp.eq.s32.totalorder %v9105, 2
    %v9111 = vxor.u32 %v9101, 2147483648
    %v9112 = vsel %vm9110, %v9111, %v9102
    %v9113 = vsel %vm9106, %v9109, %v9112
    %v9114 = vsel %vm9103, nan, %v9113
    %v9115 = vand.u32 2147483647, %v1088
    %vm9116 = vcmp.le.f32.partialorder %v9115, 0.7853982
    %vm9117 = vcmp.lt.s32.totalorder %v1088, 0
    %v9118 = vand.u32 %v1088, 2139095040
    %v9119 = vshrl.u32 %v9118, 23
    %v9120 = vsub.s32 %v9119, 127
    %v9121 = vand.u32 2147483647, %v1088
    %v9122 = vand.u32 %v9121, 8388607
    %v9123 = vor.u32 %v9122, 8388608
    %v9124 = vsub.s32 0, %v9123
    %v9125 = vadd.s32 %v9120, 1
    %vm9126 = vcmp.gt.s32.totalorder %v9125, 0
    %v9127 = vsel %vm9126, %v9125, 0
    %v9128 = vshrl.u32 %v9127, 5
    %v9129 = vand.u32 %v9127, 31
    %v9130 = vsub.s32 32, %v9129
    %v9131 = vshrl.u32 683565275, %v9130
    %v9132 = vshll.u32 683565275, %v9129
    %v9133 = vshrl.u32 2475754826, %v9130
    %v9134 = vor.u32 %v9132, %v9133
    %v9135 = vshll.u32 2475754826, %v9129
    %v9136 = vshrl.u32 2131351028, %v9130
    %v9137 = vor.u32 %v9135, %v9136
    %v9138 = vshll.u32 2131351028, %v9129
    %v9139 = vshrl.u32 2102212464, %v9130
    %v9140 = vor.u32 %v9138, %v9139
    %v9141 = vshll.u32 2102212464, %v9129
    %v9142 = vshrl.u32 920167782, %v9130
    %v9143 = vor.u32 %v9141, %v9142
    %v9144 = vshll.u32 920167782, %v9129
    %v9145 = vshrl.u32 1326507024, %v9130
    %v9146 = vor.u32 %v9144, %v9145
    %vm9147 = vcmp.lt.s32.totalorder %v9128, 1
    %vm9148 = vcmp.lt.s32.totalorder %v9128, 2
    %vm9149 = vcmp.lt.s32.totalorder %v9128, 3
    %vm9150 = vcmp.lt.s32.totalorder %v9128, 4
    %v9151 = vsel %vm9147, %v9131, %v9134
    %v9152 = vsel %vm9150, %v9140, 2102212464
    %v9153 = vsel %vm9149, %v9137, %v9152
    %v9154 = vsel %vm9148, %v9151, %v9153
    %v9155 = vsel %vm9147, %v9134, %v9137
    %v9156 = vsel %vm9150, %v9143, 920167782
    %v9157 = vsel %vm9149, %v9140, %v9156
    %v9158 = vsel %vm9148, %v9155, %v9157
    %v9159 = vsel %vm9147, %v9137, %v9140
    %v9160 = vsel %vm9150, %v9146, 1326507024
    %v9161 = vsel %vm9149, %v9143, %v9160
    %v9162 = vsel %vm9148, %v9159, %v9161
    %v9163 = vshll.u32 %v9123, 8
    %v9164 = vmul.u32.u64.compose %v9163, %v9162
    %v9165 = vextract.low.u32 %v9164
    %v9166 = vextract.high.u32 %v9164
    %v9167 = vmul.u32.u64.compose %v9163, %v9158
    %v9168 = vextract.low.u32 %v9167
    %v9169 = vextract.high.u32 %v9167
    %v9170 = vmul.u32 %v9163, %v9154
    %v9171 = vadd.s32 %v9166, %v9168
    %vm9172 = vc.u32 %v9166, %v9168
    %v9173 = vadd.s32 %v9169, 1
    %v9174 = vsel %vm9172, %v9173, %v9169
    %v9175 = vadd.s32 %v9170, %v9174
    %v9176 = vadd.s32 %v9175, 536870912
    %v9177 = vshrl.u32 %v9176, 30
    %v9178 = vshll.u32 %v9177, 30
    %v9179 = vsub.s32 %v9175, %v9178
    %vm9180 = vcmp.lt.s32.totalorder %v9179, 0
    %v9181 = vsub.s32 0, %v9179
    %v9182 = vsel %vm9180, %v9181, %v9179
    %v9183 = vclz %v9182
    %v9184 = vsub.s32 %v9183, 2
    %vm9185 = vcmp.gt.s32.totalorder 0, %v9184
    %v9186 = vsel %vm9185, 0, %v9184
    %v9187 = vsub.s32 32, %v9186
    %v9188 = vshll.u32 %v9179, %v9186
    %v9189 = vshrl.u32 %v9171, %v9187
    %v9190 = vor.u32 %v9188, %v9189
    %v9191 = vsub.s32 4294967266, %v9186
    %v9192 = vadd.s32 %v9191, 127
    %v9193 = vshll.u32 %v9192, 23
    %v9194 = vor.u32 4788187, %v9193
    %v9195 = vand.u32 2147483647, %v9194
    %v9197 = vcvt.s32.f32 %v9190
    %v9198 = vmul.f32 %v9197, %v9195
    %v9199 = vxor.u32 %v9198, 2147483648
    %v9200 = vsel %vm9117, %v9199, %v9198
    %v9201 = vsub.s32 4, %v9177
    %v9202 = vsel %vm9117, %v9201, %v9177
    %v9203 = vsel %vm9116, %v1088, %v9200
    %v9204 = vsel %vm9116, 0, %v9202
    %v9205 = vcosq.f32.pop %v9203
    %v9206 = vsinq.f32.pop %v9203
    %vm9207 = vweird.f32 %v1088
    %v9208 = vadd.s32 %v9204, 3
    %v9209 = vand.u32 %v9208, 3
    %vm9210 = vcmp.lt.s32.totalorder %v9209, 2
    %vm9211 = vcmp.eq.s32.totalorder %v9209, 0
    %v9212 = vxor.u32 %v9206, 2147483648
    %v9213 = vsel %vm9211, %v9205, %v9212
    %vm9214 = vcmp.eq.s32.totalorder %v9209, 2
    %v9215 = vxor.u32 %v9205, 2147483648
    %v9216 = vsel %vm9214, %v9215, %v9206
    %v9217 = vsel %vm9210, %v9213, %v9216
    %v9218 = vsel %vm9207, nan, %v9217
    %v9219 = vand.u32 2147483647, %v1089
    %vm9220 = vcmp.le.f32.partialorder %v9219, 0.7853982
    %vm9221 = vcmp.lt.s32.totalorder %v1089, 0
    %v9222 = vand.u32 %v1089, 2139095040
    %v9223 = vshrl.u32 %v9222, 23
    %v9224 = vsub.s32 %v9223, 127
    %v9225 = vand.u32 2147483647, %v1089
    %v9226 = vand.u32 %v9225, 8388607
    %v9227 = vor.u32 %v9226, 8388608
    %v9228 = vsub.s32 0, %v9227
    %v9229 = vadd.s32 %v9224, 1
    %vm9230 = vcmp.gt.s32.totalorder %v9229, 0
    %v9231 = vsel %vm9230, %v9229, 0
    %v9232 = vshrl.u32 %v9231, 5
    %v9233 = vand.u32 %v9231, 31
    %v9234 = vsub.s32 32, %v9233
    %v9235 = vshrl.u32 683565275, %v9234
    %v9236 = vshll.u32 683565275, %v9233
    %v9237 = vshrl.u32 2475754826, %v9234
    %v9238 = vor.u32 %v9236, %v9237
    %v9239 = vshll.u32 2475754826, %v9233
    %v9240 = vshrl.u32 2131351028, %v9234
    %v9241 = vor.u32 %v9239, %v9240
    %v9242 = vshll.u32 2131351028, %v9233
    %v9243 = vshrl.u32 2102212464, %v9234
    %v9244 = vor.u32 %v9242, %v9243
    %v9245 = vshll.u32 2102212464, %v9233
    %v9246 = vshrl.u32 920167782, %v9234
    %v9247 = vor.u32 %v9245, %v9246
    %v9248 = vshll.u32 920167782, %v9233
    %v9249 = vshrl.u32 1326507024, %v9234
    %v9250 = vor.u32 %v9248, %v9249
    %vm9251 = vcmp.lt.s32.totalorder %v9232, 1
    %vm9252 = vcmp.lt.s32.totalorder %v9232, 2
    %vm9253 = vcmp.lt.s32.totalorder %v9232, 3
    %vm9254 = vcmp.lt.s32.totalorder %v9232, 4
    %v9255 = vsel %vm9251, %v9235, %v9238
    %v9256 = vsel %vm9254, %v9244, 2102212464
    %v9257 = vsel %vm9253, %v9241, %v9256
    %v9258 = vsel %vm9252, %v9255, %v9257
    %v9259 = vsel %vm9251, %v9238, %v9241
    %v9260 = vsel %vm9254, %v9247, 920167782
    %v9261 = vsel %vm9253, %v9244, %v9260
    %v9262 = vsel %vm9252, %v9259, %v9261
    %v9263 = vsel %vm9251, %v9241, %v9244
    %v9264 = vsel %vm9254, %v9250, 1326507024
    %v9265 = vsel %vm9253, %v9247, %v9264
    %v9266 = vsel %vm9252, %v9263, %v9265
    %v9267 = vshll.u32 %v9227, 8
    %v9268 = vmul.u32.u64.compose %v9267, %v9266
    %v9269 = vextract.low.u32 %v9268
    %v9270 = vextract.high.u32 %v9268
    %v9271 = vmul.u32.u64.compose %v9267, %v9262
    %v9272 = vextract.low.u32 %v9271
    %v9273 = vextract.high.u32 %v9271
    %v9274 = vmul.u32 %v9267, %v9258
    %v9275 = vadd.s32 %v9270, %v9272
    %vm9276 = vc.u32 %v9270, %v9272
    %v9277 = vadd.s32 %v9273, 1
    %v9278 = vsel %vm9276, %v9277, %v9273
    %v9279 = vadd.s32 %v9274, %v9278
    %v9280 = vadd.s32 %v9279, 536870912
    %v9281 = vshrl.u32 %v9280, 30
    %v9282 = vshll.u32 %v9281, 30
    %v9283 = vsub.s32 %v9279, %v9282
    %vm9284 = vcmp.lt.s32.totalorder %v9283, 0
    %v9285 = vsub.s32 0, %v9283
    %v9286 = vsel %vm9284, %v9285, %v9283
    %v9287 = vclz %v9286
    %v9288 = vsub.s32 %v9287, 2
    %vm9289 = vcmp.gt.s32.totalorder 0, %v9288
    %v9290 = vsel %vm9289, 0, %v9288
    %v9291 = vsub.s32 32, %v9290
    %v9292 = vshll.u32 %v9283, %v9290
    %v9293 = vshrl.u32 %v9275, %v9291
    %v9294 = vor.u32 %v9292, %v9293
    %v9295 = vsub.s32 4294967266, %v9290
    %v9296 = vadd.s32 %v9295, 127
    %v9297 = vshll.u32 %v9296, 23
    %v9298 = vor.u32 4788187, %v9297
    %v9299 = vand.u32 2147483647, %v9298
    %v9301 = vcvt.s32.f32 %v9294
    %v9302 = vmul.f32 %v9301, %v9299
    %v9303 = vxor.u32 %v9302, 2147483648
    %v9304 = vsel %vm9221, %v9303, %v9302
    %v9305 = vsub.s32 4, %v9281
    %v9306 = vsel %vm9221, %v9305, %v9281
    %v9307 = vsel %vm9220, %v1089, %v9304
    %v9308 = vsel %vm9220, 0, %v9306
    %v9309 = vcosq.f32.pop %v9307
    %v9310 = vsinq.f32.pop %v9307
    %vm9311 = vweird.f32 %v1089
    %v9312 = vadd.s32 %v9308, 3
    %v9313 = vand.u32 %v9312, 3
    %vm9314 = vcmp.lt.s32.totalorder %v9313, 2
    %vm9315 = vcmp.eq.s32.totalorder %v9313, 0
    %v9316 = vxor.u32 %v9310, 2147483648
    %v9317 = vsel %vm9315, %v9309, %v9316
    %vm9318 = vcmp.eq.s32.totalorder %v9313, 2
    %v9319 = vxor.u32 %v9309, 2147483648
    %v9320 = vsel %vm9318, %v9319, %v9310
    %v9321 = vsel %vm9314, %v9317, %v9320
    %v9322 = vsel %vm9311, nan, %v9321
    %v9323 = vand.u32 2147483647, %v1090
    %vm9324 = vcmp.le.f32.partialorder %v9323, 0.7853982
    %vm9325 = vcmp.lt.s32.totalorder %v1090, 0
    %v9326 = vand.u32 %v1090, 2139095040
    %v9327 = vshrl.u32 %v9326, 23
    %v9328 = vsub.s32 %v9327, 127
    %v9329 = vand.u32 2147483647, %v1090
    %v9330 = vand.u32 %v9329, 8388607
    %v9331 = vor.u32 %v9330, 8388608
    %v9332 = vsub.s32 0, %v9331
    %v9333 = vadd.s32 %v9328, 1
    %vm9334 = vcmp.gt.s32.totalorder %v9333, 0
    %v9335 = vsel %vm9334, %v9333, 0
    %v9336 = vshrl.u32 %v9335, 5
    %v9337 = vand.u32 %v9335, 31
    %v9338 = vsub.s32 32, %v9337
    %v9339 = vshrl.u32 683565275, %v9338
    %v9340 = vshll.u32 683565275, %v9337
    %v9341 = vshrl.u32 2475754826, %v9338
    %v9342 = vor.u32 %v9340, %v9341
    %v9343 = vshll.u32 2475754826, %v9337
    %v9344 = vshrl.u32 2131351028, %v9338
    %v9345 = vor.u32 %v9343, %v9344
    %v9346 = vshll.u32 2131351028, %v9337
    %v9347 = vshrl.u32 2102212464, %v9338
    %v9348 = vor.u32 %v9346, %v9347
    %v9349 = vshll.u32 2102212464, %v9337
    %v9350 = vshrl.u32 920167782, %v9338
    %v9351 = vor.u32 %v9349, %v9350
    %v9352 = vshll.u32 920167782, %v9337
    %v9353 = vshrl.u32 1326507024, %v9338
    %v9354 = vor.u32 %v9352, %v9353
    %vm9355 = vcmp.lt.s32.totalorder %v9336, 1
    %vm9356 = vcmp.lt.s32.totalorder %v9336, 2
    %vm9357 = vcmp.lt.s32.totalorder %v9336, 3
    %vm9358 = vcmp.lt.s32.totalorder %v9336, 4
    %v9359 = vsel %vm9355, %v9339, %v9342
    %v9360 = vsel %vm9358, %v9348, 2102212464
    %v9361 = vsel %vm9357, %v9345, %v9360
    %v9362 = vsel %vm9356, %v9359, %v9361
    %v9363 = vsel %vm9355, %v9342, %v9345
    %v9364 = vsel %vm9358, %v9351, 920167782
    %v9365 = vsel %vm9357, %v9348, %v9364
    %v9366 = vsel %vm9356, %v9363, %v9365
    %v9367 = vsel %vm9355, %v9345, %v9348
    %v9368 = vsel %vm9358, %v9354, 1326507024
    %v9369 = vsel %vm9357, %v9351, %v9368
    %v9370 = vsel %vm9356, %v9367, %v9369
    %v9371 = vshll.u32 %v9331, 8
    %v9372 = vmul.u32.u64.compose %v9371, %v9370
    %v9373 = vextract.low.u32 %v9372
    %v9374 = vextract.high.u32 %v9372
    %v9375 = vmul.u32.u64.compose %v9371, %v9366
    %v9376 = vextract.low.u32 %v9375
    %v9377 = vextract.high.u32 %v9375
    %v9378 = vmul.u32 %v9371, %v9362
    %v9379 = vadd.s32 %v9374, %v9376
    %vm9380 = vc.u32 %v9374, %v9376
    %v9381 = vadd.s32 %v9377, 1
    %v9382 = vsel %vm9380, %v9381, %v9377
    %v9383 = vadd.s32 %v9378, %v9382
    %v9384 = vadd.s32 %v9383, 536870912
    %v9385 = vshrl.u32 %v9384, 30
    %v9386 = vshll.u32 %v9385, 30
    %v9387 = vsub.s32 %v9383, %v9386
    %vm9388 = vcmp.lt.s32.totalorder %v9387, 0
    %v9389 = vsub.s32 0, %v9387
    %v9390 = vsel %vm9388, %v9389, %v9387
    %v9391 = vclz %v9390
    %v9392 = vsub.s32 %v9391, 2
    %vm9393 = vcmp.gt.s32.totalorder 0, %v9392
    %v9394 = vsel %vm9393, 0, %v9392
    %v9395 = vsub.s32 32, %v9394
    %v9396 = vshll.u32 %v9387, %v9394
    %v9397 = vshrl.u32 %v9379, %v9395
    %v9398 = vor.u32 %v9396, %v9397
    %v9399 = vsub.s32 4294967266, %v9394
    %v9400 = vadd.s32 %v9399, 127
    %v9401 = vshll.u32 %v9400, 23
    %v9402 = vor.u32 4788187, %v9401
    %v9403 = vand.u32 2147483647, %v9402
    %v9405 = vcvt.s32.f32 %v9398
    %v9406 = vmul.f32 %v9405, %v9403
    %v9407 = vxor.u32 %v9406, 2147483648
    %v9408 = vsel %vm9325, %v9407, %v9406
    %v9409 = vsub.s32 4, %v9385
    %v9410 = vsel %vm9325, %v9409, %v9385
    %v9411 = vsel %vm9324, %v1090, %v9408
    %v9412 = vsel %vm9324, 0, %v9410
    %v9413 = vcosq.f32.pop %v9411
    %v9414 = vsinq.f32.pop %v9411
    %vm9415 = vweird.f32 %v1090
    %v9416 = vadd.s32 %v9412, 3
    %v9417 = vand.u32 %v9416, 3
    %vm9418 = vcmp.lt.s32.totalorder %v9417, 2
    %vm9419 = vcmp.eq.s32.totalorder %v9417, 0
    %v9420 = vxor.u32 %v9414, 2147483648
    %v9421 = vsel %vm9419, %v9413, %v9420
    %vm9422 = vcmp.eq.s32.totalorder %v9417, 2
    %v9423 = vxor.u32 %v9413, 2147483648
    %v9424 = vsel %vm9422, %v9423, %v9414
    %v9425 = vsel %vm9418, %v9421, %v9424
    %v9426 = vsel %vm9415, nan, %v9425
    %v9427 = vand.u32 2147483647, %v1091
    %vm9428 = vcmp.le.f32.partialorder %v9427, 0.7853982
    %vm9429 = vcmp.lt.s32.totalorder %v1091, 0
    %v9430 = vand.u32 %v1091, 2139095040
    %v9431 = vshrl.u32 %v9430, 23
    %v9432 = vsub.s32 %v9431, 127
    %v9433 = vand.u32 2147483647, %v1091
    %v9434 = vand.u32 %v9433, 8388607
    %v9435 = vor.u32 %v9434, 8388608
    %v9436 = vsub.s32 0, %v9435
    %v9437 = vadd.s32 %v9432, 1
    %vm9438 = vcmp.gt.s32.totalorder %v9437, 0
    %v9439 = vsel %vm9438, %v9437, 0
    %v9440 = vshrl.u32 %v9439, 5
    %v9441 = vand.u32 %v9439, 31
    %v9442 = vsub.s32 32, %v9441
    %v9443 = vshrl.u32 683565275, %v9442
    %v9444 = vshll.u32 683565275, %v9441
    %v9445 = vshrl.u32 2475754826, %v9442
    %v9446 = vor.u32 %v9444, %v9445
    %v9447 = vshll.u32 2475754826, %v9441
    %v9448 = vshrl.u32 2131351028, %v9442
    %v9449 = vor.u32 %v9447, %v9448
    %v9450 = vshll.u32 2131351028, %v9441
    %v9451 = vshrl.u32 2102212464, %v9442
    %v9452 = vor.u32 %v9450, %v9451
    %v9453 = vshll.u32 2102212464, %v9441
    %v9454 = vshrl.u32 920167782, %v9442
    %v9455 = vor.u32 %v9453, %v9454
    %v9456 = vshll.u32 920167782, %v9441
    %v9457 = vshrl.u32 1326507024, %v9442
    %v9458 = vor.u32 %v9456, %v9457
    %vm9459 = vcmp.lt.s32.totalorder %v9440, 1
    %vm9460 = vcmp.lt.s32.totalorder %v9440, 2
    %vm9461 = vcmp.lt.s32.totalorder %v9440, 3
    %vm9462 = vcmp.lt.s32.totalorder %v9440, 4
    %v9463 = vsel %vm9459, %v9443, %v9446
    %v9464 = vsel %vm9462, %v9452, 2102212464
    %v9465 = vsel %vm9461, %v9449, %v9464
    %v9466 = vsel %vm9460, %v9463, %v9465
    %v9467 = vsel %vm9459, %v9446, %v9449
    %v9468 = vsel %vm9462, %v9455, 920167782
    %v9469 = vsel %vm9461, %v9452, %v9468
    %v9470 = vsel %vm9460, %v9467, %v9469
    %v9471 = vsel %vm9459, %v9449, %v9452
    %v9472 = vsel %vm9462, %v9458, 1326507024
    %v9473 = vsel %vm9461, %v9455, %v9472
    %v9474 = vsel %vm9460, %v9471, %v9473
    %v9475 = vshll.u32 %v9435, 8
    %v9476 = vmul.u32.u64.compose %v9475, %v9474
    %v9477 = vextract.low.u32 %v9476
    %v9478 = vextract.high.u32 %v9476
    %v9479 = vmul.u32.u64.compose %v9475, %v9470
    %v9480 = vextract.low.u32 %v9479
    %v9481 = vextract.high.u32 %v9479
    %v9482 = vmul.u32 %v9475, %v9466
    %v9483 = vadd.s32 %v9478, %v9480
    %vm9484 = vc.u32 %v9478, %v9480
    %v9485 = vadd.s32 %v9481, 1
    %v9486 = vsel %vm9484, %v9485, %v9481
    %v9487 = vadd.s32 %v9482, %v9486
    %v9488 = vadd.s32 %v9487, 536870912
    %v9489 = vshrl.u32 %v9488, 30
    %v9490 = vshll.u32 %v9489, 30
    %v9491 = vsub.s32 %v9487, %v9490
    %vm9492 = vcmp.lt.s32.totalorder %v9491, 0
    %v9493 = vsub.s32 0, %v9491
    %v9494 = vsel %vm9492, %v9493, %v9491
    %v9495 = vclz %v9494
    %v9496 = vsub.s32 %v9495, 2
    %vm9497 = vcmp.gt.s32.totalorder 0, %v9496
    %v9498 = vsel %vm9497, 0, %v9496
    %v9499 = vsub.s32 32, %v9498
    %v9500 = vshll.u32 %v9491, %v9498
    %v9501 = vshrl.u32 %v9483, %v9499
    %v9502 = vor.u32 %v9500, %v9501
    %v9503 = vsub.s32 4294967266, %v9498
    %v9504 = vadd.s32 %v9503, 127
    %v9505 = vshll.u32 %v9504, 23
    %v9506 = vor.u32 4788187, %v9505
    %v9507 = vand.u32 2147483647, %v9506
    %v9509 = vcvt.s32.f32 %v9502
    %v9510 = vmul.f32 %v9509, %v9507
    %v9511 = vxor.u32 %v9510, 2147483648
    %v9512 = vsel %vm9429, %v9511, %v9510
    %v9513 = vsub.s32 4, %v9489
    %v9514 = vsel %vm9429, %v9513, %v9489
    %v9515 = vsel %vm9428, %v1091, %v9512
    %v9516 = vsel %vm9428, 0, %v9514
    %v9517 = vcosq.f32.pop %v9515
    %v9518 = vsinq.f32.pop %v9515
    %vm9519 = vweird.f32 %v1091
    %v9520 = vadd.s32 %v9516, 3
    %v9521 = vand.u32 %v9520, 3
    %vm9522 = vcmp.lt.s32.totalorder %v9521, 2
    %vm9523 = vcmp.eq.s32.totalorder %v9521, 0
    %v9524 = vxor.u32 %v9518, 2147483648
    %v9525 = vsel %vm9523, %v9517, %v9524
    %vm9526 = vcmp.eq.s32.totalorder %v9521, 2
    %v9527 = vxor.u32 %v9517, 2147483648
    %v9528 = vsel %vm9526, %v9527, %v9518
    %v9529 = vsel %vm9522, %v9525, %v9528
    %v9530 = vsel %vm9519, nan, %v9529
    %v9531 = vand.u32 2147483647, %v1092
    %vm9532 = vcmp.le.f32.partialorder %v9531, 0.7853982
    %vm9533 = vcmp.lt.s32.totalorder %v1092, 0
    %v9534 = vand.u32 %v1092, 2139095040
    %v9535 = vshrl.u32 %v9534, 23
    %v9536 = vsub.s32 %v9535, 127
    %v9537 = vand.u32 2147483647, %v1092
    %v9538 = vand.u32 %v9537, 8388607
    %v9539 = vor.u32 %v9538, 8388608
    %v9540 = vsub.s32 0, %v9539
    %v9541 = vadd.s32 %v9536, 1
    %vm9542 = vcmp.gt.s32.totalorder %v9541, 0
    %v9543 = vsel %vm9542, %v9541, 0
    %v9544 = vshrl.u32 %v9543, 5
    %v9545 = vand.u32 %v9543, 31
    %v9546 = vsub.s32 32, %v9545
    %v9547 = vshrl.u32 683565275, %v9546
    %v9548 = vshll.u32 683565275, %v9545
    %v9549 = vshrl.u32 2475754826, %v9546
    %v9550 = vor.u32 %v9548, %v9549
    %v9551 = vshll.u32 2475754826, %v9545
    %v9552 = vshrl.u32 2131351028, %v9546
    %v9553 = vor.u32 %v9551, %v9552
    %v9554 = vshll.u32 2131351028, %v9545
    %v9555 = vshrl.u32 2102212464, %v9546
    %v9556 = vor.u32 %v9554, %v9555
    %v9557 = vshll.u32 2102212464, %v9545
    %v9558 = vshrl.u32 920167782, %v9546
    %v9559 = vor.u32 %v9557, %v9558
    %v9560 = vshll.u32 920167782, %v9545
    %v9561 = vshrl.u32 1326507024, %v9546
    %v9562 = vor.u32 %v9560, %v9561
    %vm9563 = vcmp.lt.s32.totalorder %v9544, 1
    %vm9564 = vcmp.lt.s32.totalorder %v9544, 2
    %vm9565 = vcmp.lt.s32.totalorder %v9544, 3
    %vm9566 = vcmp.lt.s32.totalorder %v9544, 4
    %v9567 = vsel %vm9563, %v9547, %v9550
    %v9568 = vsel %vm9566, %v9556, 2102212464
    %v9569 = vsel %vm9565, %v9553, %v9568
    %v9570 = vsel %vm9564, %v9567, %v9569
    %v9571 = vsel %vm9563, %v9550, %v9553
    %v9572 = vsel %vm9566, %v9559, 920167782
    %v9573 = vsel %vm9565, %v9556, %v9572
    %v9574 = vsel %vm9564, %v9571, %v9573
    %v9575 = vsel %vm9563, %v9553, %v9556
    %v9576 = vsel %vm9566, %v9562, 1326507024
    %v9577 = vsel %vm9565, %v9559, %v9576
    %v9578 = vsel %vm9564, %v9575, %v9577
    %v9579 = vshll.u32 %v9539, 8
    %v9580 = vmul.u32.u64.compose %v9579, %v9578
    %v9581 = vextract.low.u32 %v9580
    %v9582 = vextract.high.u32 %v9580
    %v9583 = vmul.u32.u64.compose %v9579, %v9574
    %v9584 = vextract.low.u32 %v9583
    %v9585 = vextract.high.u32 %v9583
    %v9586 = vmul.u32 %v9579, %v9570
    %v9587 = vadd.s32 %v9582, %v9584
    %vm9588 = vc.u32 %v9582, %v9584
    %v9589 = vadd.s32 %v9585, 1
    %v9590 = vsel %vm9588, %v9589, %v9585
    %v9591 = vadd.s32 %v9586, %v9590
    %v9592 = vadd.s32 %v9591, 536870912
    %v9593 = vshrl.u32 %v9592, 30
    %v9594 = vshll.u32 %v9593, 30
    %v9595 = vsub.s32 %v9591, %v9594
    %vm9596 = vcmp.lt.s32.totalorder %v9595, 0
    %v9597 = vsub.s32 0, %v9595
    %v9598 = vsel %vm9596, %v9597, %v9595
    %v9599 = vclz %v9598
    %v9600 = vsub.s32 %v9599, 2
    %vm9601 = vcmp.gt.s32.totalorder 0, %v9600
    %v9602 = vsel %vm9601, 0, %v9600
    %v9603 = vsub.s32 32, %v9602
    %v9604 = vshll.u32 %v9595, %v9602
    %v9605 = vshrl.u32 %v9587, %v9603
    %v9606 = vor.u32 %v9604, %v9605
    %v9607 = vsub.s32 4294967266, %v9602
    %v9608 = vadd.s32 %v9607, 127
    %v9609 = vshll.u32 %v9608, 23
    %v9610 = vor.u32 4788187, %v9609
    %v9611 = vand.u32 2147483647, %v9610
    %v9613 = vcvt.s32.f32 %v9606
    %v9614 = vmul.f32 %v9613, %v9611
    %v9615 = vxor.u32 %v9614, 2147483648
    %v9616 = vsel %vm9533, %v9615, %v9614
    %v9617 = vsub.s32 4, %v9593
    %v9618 = vsel %vm9533, %v9617, %v9593
    %v9619 = vsel %vm9532, %v1092, %v9616
    %v9620 = vsel %vm9532, 0, %v9618
    %v9621 = vcosq.f32.pop %v9619
    %v9622 = vsinq.f32.pop %v9619
    %vm9623 = vweird.f32 %v1092
    %v9624 = vadd.s32 %v9620, 3
    %v9625 = vand.u32 %v9624, 3
    %vm9626 = vcmp.lt.s32.totalorder %v9625, 2
    %vm9627 = vcmp.eq.s32.totalorder %v9625, 0
    %v9628 = vxor.u32 %v9622, 2147483648
    %v9629 = vsel %vm9627, %v9621, %v9628
    %vm9630 = vcmp.eq.s32.totalorder %v9625, 2
    %v9631 = vxor.u32 %v9621, 2147483648
    %v9632 = vsel %vm9630, %v9631, %v9622
    %v9633 = vsel %vm9626, %v9629, %v9632
    %v9634 = vsel %vm9623, nan, %v9633
    %v9635 = vand.u32 2147483647, %v1093
    %vm9636 = vcmp.le.f32.partialorder %v9635, 0.7853982
    %vm9637 = vcmp.lt.s32.totalorder %v1093, 0
    %v9638 = vand.u32 %v1093, 2139095040
    %v9639 = vshrl.u32 %v9638, 23
    %v9640 = vsub.s32 %v9639, 127
    %v9641 = vand.u32 2147483647, %v1093
    %v9642 = vand.u32 %v9641, 8388607
    %v9643 = vor.u32 %v9642, 8388608
    %v9644 = vsub.s32 0, %v9643
    %v9645 = vadd.s32 %v9640, 1
    %vm9646 = vcmp.gt.s32.totalorder %v9645, 0
    %v9647 = vsel %vm9646, %v9645, 0
    %v9648 = vshrl.u32 %v9647, 5
    %v9649 = vand.u32 %v9647, 31
    %v9650 = vsub.s32 32, %v9649
    %v9651 = vshrl.u32 683565275, %v9650
    %v9652 = vshll.u32 683565275, %v9649
    %v9653 = vshrl.u32 2475754826, %v9650
    %v9654 = vor.u32 %v9652, %v9653
    %v9655 = vshll.u32 2475754826, %v9649
    %v9656 = vshrl.u32 2131351028, %v9650
    %v9657 = vor.u32 %v9655, %v9656
    %v9658 = vshll.u32 2131351028, %v9649
    %v9659 = vshrl.u32 2102212464, %v9650
    %v9660 = vor.u32 %v9658, %v9659
    %v9661 = vshll.u32 2102212464, %v9649
    %v9662 = vshrl.u32 920167782, %v9650
    %v9663 = vor.u32 %v9661, %v9662
    %v9664 = vshll.u32 920167782, %v9649
    %v9665 = vshrl.u32 1326507024, %v9650
    %v9666 = vor.u32 %v9664, %v9665
    %vm9667 = vcmp.lt.s32.totalorder %v9648, 1
    %vm9668 = vcmp.lt.s32.totalorder %v9648, 2
    %vm9669 = vcmp.lt.s32.totalorder %v9648, 3
    %vm9670 = vcmp.lt.s32.totalorder %v9648, 4
    %v9671 = vsel %vm9667, %v9651, %v9654
    %v9672 = vsel %vm9670, %v9660, 2102212464
    %v9673 = vsel %vm9669, %v9657, %v9672
    %v9674 = vsel %vm9668, %v9671, %v9673
    %v9675 = vsel %vm9667, %v9654, %v9657
    %v9676 = vsel %vm9670, %v9663, 920167782
    %v9677 = vsel %vm9669, %v9660, %v9676
    %v9678 = vsel %vm9668, %v9675, %v9677
    %v9679 = vsel %vm9667, %v9657, %v9660
    %v9680 = vsel %vm9670, %v9666, 1326507024
    %v9681 = vsel %vm9669, %v9663, %v9680
    %v9682 = vsel %vm9668, %v9679, %v9681
    %v9683 = vshll.u32 %v9643, 8
    %v9684 = vmul.u32.u64.compose %v9683, %v9682
    %v9685 = vextract.low.u32 %v9684
    %v9686 = vextract.high.u32 %v9684
    %v9687 = vmul.u32.u64.compose %v9683, %v9678
    %v9688 = vextract.low.u32 %v9687
    %v9689 = vextract.high.u32 %v9687
    %v9690 = vmul.u32 %v9683, %v9674
    %v9691 = vadd.s32 %v9686, %v9688
    %vm9692 = vc.u32 %v9686, %v9688
    %v9693 = vadd.s32 %v9689, 1
    %v9694 = vsel %vm9692, %v9693, %v9689
    %v9695 = vadd.s32 %v9690, %v9694
    %v9696 = vadd.s32 %v9695, 536870912
    %v9697 = vshrl.u32 %v9696, 30
    %v9698 = vshll.u32 %v9697, 30
    %v9699 = vsub.s32 %v9695, %v9698
    %vm9700 = vcmp.lt.s32.totalorder %v9699, 0
    %v9701 = vsub.s32 0, %v9699
    %v9702 = vsel %vm9700, %v9701, %v9699
    %v9703 = vclz %v9702
    %v9704 = vsub.s32 %v9703, 2
    %vm9705 = vcmp.gt.s32.totalorder 0, %v9704
    %v9706 = vsel %vm9705, 0, %v9704
    %v9707 = vsub.s32 32, %v9706
    %v9708 = vshll.u32 %v9699, %v9706
    %v9709 = vshrl.u32 %v9691, %v9707
    %v9710 = vor.u32 %v9708, %v9709
    %v9711 = vsub.s32 4294967266, %v9706
    %v9712 = vadd.s32 %v9711, 127
    %v9713 = vshll.u32 %v9712, 23
    %v9714 = vor.u32 4788187, %v9713
    %v9715 = vand.u32 2147483647, %v9714
    %v9717 = vcvt.s32.f32 %v9710
    %v9718 = vmul.f32 %v9717, %v9715
    %v9719 = vxor.u32 %v9718, 2147483648
    %v9720 = vsel %vm9637, %v9719, %v9718
    %v9721 = vsub.s32 4, %v9697
    %v9722 = vsel %vm9637, %v9721, %v9697
    %v9723 = vsel %vm9636, %v1093, %v9720
    %v9724 = vsel %vm9636, 0, %v9722
    %v9725 = vcosq.f32.pop %v9723
    %v9726 = vsinq.f32.pop %v9723
    %vm9727 = vweird.f32 %v1093
    %v9728 = vadd.s32 %v9724, 3
    %v9729 = vand.u32 %v9728, 3
    %vm9730 = vcmp.lt.s32.totalorder %v9729, 2
    %vm9731 = vcmp.eq.s32.totalorder %v9729, 0
    %v9732 = vxor.u32 %v9726, 2147483648
    %v9733 = vsel %vm9731, %v9725, %v9732
    %vm9734 = vcmp.eq.s32.totalorder %v9729, 2
    %v9735 = vxor.u32 %v9725, 2147483648
    %v9736 = vsel %vm9734, %v9735, %v9726
    %v9737 = vsel %vm9730, %v9733, %v9736
    %v9738 = vsel %vm9727, nan, %v9737
    %v9739 = vand.u32 2147483647, %v1094
    %vm9740 = vcmp.le.f32.partialorder %v9739, 0.7853982
    %vm9741 = vcmp.lt.s32.totalorder %v1094, 0
    %v9742 = vand.u32 %v1094, 2139095040
    %v9743 = vshrl.u32 %v9742, 23
    %v9744 = vsub.s32 %v9743, 127
    %v9745 = vand.u32 2147483647, %v1094
    %v9746 = vand.u32 %v9745, 8388607
    %v9747 = vor.u32 %v9746, 8388608
    %v9748 = vsub.s32 0, %v9747
    %v9749 = vadd.s32 %v9744, 1
    %vm9750 = vcmp.gt.s32.totalorder %v9749, 0
    %v9751 = vsel %vm9750, %v9749, 0
    %v9752 = vshrl.u32 %v9751, 5
    %v9753 = vand.u32 %v9751, 31
    %v9754 = vsub.s32 32, %v9753
    %v9755 = vshrl.u32 683565275, %v9754
    %v9756 = vshll.u32 683565275, %v9753
    %v9757 = vshrl.u32 2475754826, %v9754
    %v9758 = vor.u32 %v9756, %v9757
    %v9759 = vshll.u32 2475754826, %v9753
    %v9760 = vshrl.u32 2131351028, %v9754
    %v9761 = vor.u32 %v9759, %v9760
    %v9762 = vshll.u32 2131351028, %v9753
    %v9763 = vshrl.u32 2102212464, %v9754
    %v9764 = vor.u32 %v9762, %v9763
    %v9765 = vshll.u32 2102212464, %v9753
    %v9766 = vshrl.u32 920167782, %v9754
    %v9767 = vor.u32 %v9765, %v9766
    %v9768 = vshll.u32 920167782, %v9753
    %v9769 = vshrl.u32 1326507024, %v9754
    %v9770 = vor.u32 %v9768, %v9769
    %vm9771 = vcmp.lt.s32.totalorder %v9752, 1
    %vm9772 = vcmp.lt.s32.totalorder %v9752, 2
    %vm9773 = vcmp.lt.s32.totalorder %v9752, 3
    %vm9774 = vcmp.lt.s32.totalorder %v9752, 4
    %v9775 = vsel %vm9771, %v9755, %v9758
    %v9776 = vsel %vm9774, %v9764, 2102212464
    %v9777 = vsel %vm9773, %v9761, %v9776
    %v9778 = vsel %vm9772, %v9775, %v9777
    %v9779 = vsel %vm9771, %v9758, %v9761
    %v9780 = vsel %vm9774, %v9767, 920167782
    %v9781 = vsel %vm9773, %v9764, %v9780
    %v9782 = vsel %vm9772, %v9779, %v9781
    %v9783 = vsel %vm9771, %v9761, %v9764
    %v9784 = vsel %vm9774, %v9770, 1326507024
    %v9785 = vsel %vm9773, %v9767, %v9784
    %v9786 = vsel %vm9772, %v9783, %v9785
    %v9787 = vshll.u32 %v9747, 8
    %v9788 = vmul.u32.u64.compose %v9787, %v9786
    %v9789 = vextract.low.u32 %v9788
    %v9790 = vextract.high.u32 %v9788
    %v9791 = vmul.u32.u64.compose %v9787, %v9782
    %v9792 = vextract.low.u32 %v9791
    %v9793 = vextract.high.u32 %v9791
    %v9794 = vmul.u32 %v9787, %v9778
    %v9795 = vadd.s32 %v9790, %v9792
    %vm9796 = vc.u32 %v9790, %v9792
    %v9797 = vadd.s32 %v9793, 1
    %v9798 = vsel %vm9796, %v9797, %v9793
    %v9799 = vadd.s32 %v9794, %v9798
    %v9800 = vadd.s32 %v9799, 536870912
    %v9801 = vshrl.u32 %v9800, 30
    %v9802 = vshll.u32 %v9801, 30
    %v9803 = vsub.s32 %v9799, %v9802
    %vm9804 = vcmp.lt.s32.totalorder %v9803, 0
    %v9805 = vsub.s32 0, %v9803
    %v9806 = vsel %vm9804, %v9805, %v9803
    %v9807 = vclz %v9806
    %v9808 = vsub.s32 %v9807, 2
    %vm9809 = vcmp.gt.s32.totalorder 0, %v9808
    %v9810 = vsel %vm9809, 0, %v9808
    %v9811 = vsub.s32 32, %v9810
    %v9812 = vshll.u32 %v9803, %v9810
    %v9813 = vshrl.u32 %v9795, %v9811
    %v9814 = vor.u32 %v9812, %v9813
    %v9815 = vsub.s32 4294967266, %v9810
    %v9816 = vadd.s32 %v9815, 127
    %v9817 = vshll.u32 %v9816, 23
    %v9818 = vor.u32 4788187, %v9817
    %v9819 = vand.u32 2147483647, %v9818
    %v9821 = vcvt.s32.f32 %v9814
    %v9822 = vmul.f32 %v9821, %v9819
    %v9823 = vxor.u32 %v9822, 2147483648
    %v9824 = vsel %vm9741, %v9823, %v9822
    %v9825 = vsub.s32 4, %v9801
    %v9826 = vsel %vm9741, %v9825, %v9801
    %v9827 = vsel %vm9740, %v1094, %v9824
    %v9828 = vsel %vm9740, 0, %v9826
    %v9829 = vcosq.f32.pop %v9827
    %v9830 = vsinq.f32.pop %v9827
    %vm9831 = vweird.f32 %v1094
    %v9832 = vadd.s32 %v9828, 3
    %v9833 = vand.u32 %v9832, 3
    %vm9834 = vcmp.lt.s32.totalorder %v9833, 2
    %vm9835 = vcmp.eq.s32.totalorder %v9833, 0
    %v9836 = vxor.u32 %v9830, 2147483648
    %v9837 = vsel %vm9835, %v9829, %v9836
    %vm9838 = vcmp.eq.s32.totalorder %v9833, 2
    %v9839 = vxor.u32 %v9829, 2147483648
    %v9840 = vsel %vm9838, %v9839, %v9830
    %v9841 = vsel %vm9834, %v9837, %v9840
    %v9842 = vsel %vm9831, nan, %v9841
    %v9843 = vand.u32 2147483647, %v1095
    %vm9844 = vcmp.le.f32.partialorder %v9843, 0.7853982
    %vm9845 = vcmp.lt.s32.totalorder %v1095, 0
    %v9846 = vand.u32 %v1095, 2139095040
    %v9847 = vshrl.u32 %v9846, 23
    %v9848 = vsub.s32 %v9847, 127
    %v9849 = vand.u32 2147483647, %v1095
    %v9850 = vand.u32 %v9849, 8388607
    %v9851 = vor.u32 %v9850, 8388608
    %v9852 = vsub.s32 0, %v9851
    %v9853 = vadd.s32 %v9848, 1
    %vm9854 = vcmp.gt.s32.totalorder %v9853, 0
    %v9855 = vsel %vm9854, %v9853, 0
    %v9856 = vshrl.u32 %v9855, 5
    %v9857 = vand.u32 %v9855, 31
    %v9858 = vsub.s32 32, %v9857
    %v9859 = vshrl.u32 683565275, %v9858
    %v9860 = vshll.u32 683565275, %v9857
    %v9861 = vshrl.u32 2475754826, %v9858
    %v9862 = vor.u32 %v9860, %v9861
    %v9863 = vshll.u32 2475754826, %v9857
    %v9864 = vshrl.u32 2131351028, %v9858
    %v9865 = vor.u32 %v9863, %v9864
    %v9866 = vshll.u32 2131351028, %v9857
    %v9867 = vshrl.u32 2102212464, %v9858
    %v9868 = vor.u32 %v9866, %v9867
    %v9869 = vshll.u32 2102212464, %v9857
    %v9870 = vshrl.u32 920167782, %v9858
    %v9871 = vor.u32 %v9869, %v9870
    %v9872 = vshll.u32 920167782, %v9857
    %v9873 = vshrl.u32 1326507024, %v9858
    %v9874 = vor.u32 %v9872, %v9873
    %vm9875 = vcmp.lt.s32.totalorder %v9856, 1
    %vm9876 = vcmp.lt.s32.totalorder %v9856, 2
    %vm9877 = vcmp.lt.s32.totalorder %v9856, 3
    %vm9878 = vcmp.lt.s32.totalorder %v9856, 4
    %v9879 = vsel %vm9875, %v9859, %v9862
    %v9880 = vsel %vm9878, %v9868, 2102212464
    %v9881 = vsel %vm9877, %v9865, %v9880
    %v9882 = vsel %vm9876, %v9879, %v9881
    %v9883 = vsel %vm9875, %v9862, %v9865
    %v9884 = vsel %vm9878, %v9871, 920167782
    %v9885 = vsel %vm9877, %v9868, %v9884
    %v9886 = vsel %vm9876, %v9883, %v9885
    %v9887 = vsel %vm9875, %v9865, %v9868
    %v9888 = vsel %vm9878, %v9874, 1326507024
    %v9889 = vsel %vm9877, %v9871, %v9888
    %v9890 = vsel %vm9876, %v9887, %v9889
    %v9891 = vshll.u32 %v9851, 8
    %v9892 = vmul.u32.u64.compose %v9891, %v9890
    %v9893 = vextract.low.u32 %v9892
    %v9894 = vextract.high.u32 %v9892
    %v9895 = vmul.u32.u64.compose %v9891, %v9886
    %v9896 = vextract.low.u32 %v9895
    %v9897 = vextract.high.u32 %v9895
    %v9898 = vmul.u32 %v9891, %v9882
    %v9899 = vadd.s32 %v9894, %v9896
    %vm9900 = vc.u32 %v9894, %v9896
    %v9901 = vadd.s32 %v9897, 1
    %v9902 = vsel %vm9900, %v9901, %v9897
    %v9903 = vadd.s32 %v9898, %v9902
    %v9904 = vadd.s32 %v9903, 536870912
    %v9905 = vshrl.u32 %v9904, 30
    %v9906 = vshll.u32 %v9905, 30
    %v9907 = vsub.s32 %v9903, %v9906
    %vm9908 = vcmp.lt.s32.totalorder %v9907, 0
    %v9909 = vsub.s32 0, %v9907
    %v9910 = vsel %vm9908, %v9909, %v9907
    %v9911 = vclz %v9910
    %v9912 = vsub.s32 %v9911, 2
    %vm9913 = vcmp.gt.s32.totalorder 0, %v9912
    %v9914 = vsel %vm9913, 0, %v9912
    %v9915 = vsub.s32 32, %v9914
    %v9916 = vshll.u32 %v9907, %v9914
    %v9917 = vshrl.u32 %v9899, %v9915
    %v9918 = vor.u32 %v9916, %v9917
    %v9919 = vsub.s32 4294967266, %v9914
    %v9920 = vadd.s32 %v9919, 127
    %v9921 = vshll.u32 %v9920, 23
    %v9922 = vor.u32 4788187, %v9921
    %v9923 = vand.u32 2147483647, %v9922
    %v9925 = vcvt.s32.f32 %v9918
    %v9926 = vmul.f32 %v9925, %v9923
    %v9927 = vxor.u32 %v9926, 2147483648
    %v9928 = vsel %vm9845, %v9927, %v9926
    %v9929 = vsub.s32 4, %v9905
    %v9930 = vsel %vm9845, %v9929, %v9905
    %v9931 = vsel %vm9844, %v1095, %v9928
    %v9932 = vsel %vm9844, 0, %v9930
    %v9933 = vcosq.f32.pop %v9931
    %v9934 = vsinq.f32.pop %v9931
    %vm9935 = vweird.f32 %v1095
    %v9936 = vadd.s32 %v9932, 3
    %v9937 = vand.u32 %v9936, 3
    %vm9938 = vcmp.lt.s32.totalorder %v9937, 2
    %vm9939 = vcmp.eq.s32.totalorder %v9937, 0
    %v9940 = vxor.u32 %v9934, 2147483648
    %v9941 = vsel %vm9939, %v9933, %v9940
    %vm9942 = vcmp.eq.s32.totalorder %v9937, 2
    %v9943 = vxor.u32 %v9933, 2147483648
    %v9944 = vsel %vm9942, %v9943, %v9934
    %v9945 = vsel %vm9938, %v9941, %v9944
    %v9946 = vsel %vm9935, nan, %v9945
    %v9947 = vand.u32 2147483647, %v1096
    %vm9948 = vcmp.le.f32.partialorder %v9947, 0.7853982
    %vm9949 = vcmp.lt.s32.totalorder %v1096, 0
    %v9950 = vand.u32 %v1096, 2139095040
    %v9951 = vshrl.u32 %v9950, 23
    %v9952 = vsub.s32 %v9951, 127
    %v9953 = vand.u32 2147483647, %v1096
    %v9954 = vand.u32 %v9953, 8388607
    %v9955 = vor.u32 %v9954, 8388608
    %v9956 = vsub.s32 0, %v9955
    %v9957 = vadd.s32 %v9952, 1
    %vm9958 = vcmp.gt.s32.totalorder %v9957, 0
    %v9959 = vsel %vm9958, %v9957, 0
    %v9960 = vshrl.u32 %v9959, 5
    %v9961 = vand.u32 %v9959, 31
    %v9962 = vsub.s32 32, %v9961
    %v9963 = vshrl.u32 683565275, %v9962
    %v9964 = vshll.u32 683565275, %v9961
    %v9965 = vshrl.u32 2475754826, %v9962
    %v9966 = vor.u32 %v9964, %v9965
    %v9967 = vshll.u32 2475754826, %v9961
    %v9968 = vshrl.u32 2131351028, %v9962
    %v9969 = vor.u32 %v9967, %v9968
    %v9970 = vshll.u32 2131351028, %v9961
    %v9971 = vshrl.u32 2102212464, %v9962
    %v9972 = vor.u32 %v9970, %v9971
    %v9973 = vshll.u32 2102212464, %v9961
    %v9974 = vshrl.u32 920167782, %v9962
    %v9975 = vor.u32 %v9973, %v9974
    %v9976 = vshll.u32 920167782, %v9961
    %v9977 = vshrl.u32 1326507024, %v9962
    %v9978 = vor.u32 %v9976, %v9977
    %vm9979 = vcmp.lt.s32.totalorder %v9960, 1
    %vm9980 = vcmp.lt.s32.totalorder %v9960, 2
    %vm9981 = vcmp.lt.s32.totalorder %v9960, 3
    %vm9982 = vcmp.lt.s32.totalorder %v9960, 4
    %v9983 = vsel %vm9979, %v9963, %v9966
    %v9984 = vsel %vm9982, %v9972, 2102212464
    %v9985 = vsel %vm9981, %v9969, %v9984
    %v9986 = vsel %vm9980, %v9983, %v9985
    %v9987 = vsel %vm9979, %v9966, %v9969
    %v9988 = vsel %vm9982, %v9975, 920167782
    %v9989 = vsel %vm9981, %v9972, %v9988
    %v9990 = vsel %vm9980, %v9987, %v9989
    %v9991 = vsel %vm9979, %v9969, %v9972
    %v9992 = vsel %vm9982, %v9978, 1326507024
    %v9993 = vsel %vm9981, %v9975, %v9992
    %v9994 = vsel %vm9980, %v9991, %v9993
    %v9995 = vshll.u32 %v9955, 8
    %v9996 = vmul.u32.u64.compose %v9995, %v9994
    %v9997 = vextract.low.u32 %v9996
    %v9998 = vextract.high.u32 %v9996
    %v9999 = vmul.u32.u64.compose %v9995, %v9990
    %v10000 = vextract.low.u32 %v9999
    %v10001 = vextract.high.u32 %v9999
    %v10002 = vmul.u32 %v9995, %v9986
    %v10003 = vadd.s32 %v9998, %v10000
    %vm10004 = vc.u32 %v9998, %v10000
    %v10005 = vadd.s32 %v10001, 1
    %v10006 = vsel %vm10004, %v10005, %v10001
    %v10007 = vadd.s32 %v10002, %v10006
    %v10008 = vadd.s32 %v10007, 536870912
    %v10009 = vshrl.u32 %v10008, 30
    %v10010 = vshll.u32 %v10009, 30
    %v10011 = vsub.s32 %v10007, %v10010
    %vm10012 = vcmp.lt.s32.totalorder %v10011, 0
    %v10013 = vsub.s32 0, %v10011
    %v10014 = vsel %vm10012, %v10013, %v10011
    %v10015 = vclz %v10014
    %v10016 = vsub.s32 %v10015, 2
    %vm10017 = vcmp.gt.s32.totalorder 0, %v10016
    %v10018 = vsel %vm10017, 0, %v10016
    %v10019 = vsub.s32 32, %v10018
    %v10020 = vshll.u32 %v10011, %v10018
    %v10021 = vshrl.u32 %v10003, %v10019
    %v10022 = vor.u32 %v10020, %v10021
    %v10023 = vsub.s32 4294967266, %v10018
    %v10024 = vadd.s32 %v10023, 127
    %v10025 = vshll.u32 %v10024, 23
    %v10026 = vor.u32 4788187, %v10025
    %v10027 = vand.u32 2147483647, %v10026
    %v10029 = vcvt.s32.f32 %v10022
    %v10030 = vmul.f32 %v10029, %v10027
    %v10031 = vxor.u32 %v10030, 2147483648
    %v10032 = vsel %vm9949, %v10031, %v10030
    %v10033 = vsub.s32 4, %v10009
    %v10034 = vsel %vm9949, %v10033, %v10009
    %v10035 = vsel %vm9948, %v1096, %v10032
    %v10036 = vsel %vm9948, 0, %v10034
    %v10037 = vcosq.f32.pop %v10035
    %v10038 = vsinq.f32.pop %v10035
    %vm10039 = vweird.f32 %v1096
    %v10040 = vadd.s32 %v10036, 3
    %v10041 = vand.u32 %v10040, 3
    %vm10042 = vcmp.lt.s32.totalorder %v10041, 2
    %vm10043 = vcmp.eq.s32.totalorder %v10041, 0
    %v10044 = vxor.u32 %v10038, 2147483648
    %v10045 = vsel %vm10043, %v10037, %v10044
    %vm10046 = vcmp.eq.s32.totalorder %v10041, 2
    %v10047 = vxor.u32 %v10037, 2147483648
    %v10048 = vsel %vm10046, %v10047, %v10038
    %v10049 = vsel %vm10042, %v10045, %v10048
    %v10050 = vsel %vm10039, nan, %v10049
    %v10051 = vand.u32 2147483647, %v1097
    %vm10052 = vcmp.le.f32.partialorder %v10051, 0.7853982
    %vm10053 = vcmp.lt.s32.totalorder %v1097, 0
    %v10054 = vand.u32 %v1097, 2139095040
    %v10055 = vshrl.u32 %v10054, 23
    %v10056 = vsub.s32 %v10055, 127
    %v10057 = vand.u32 2147483647, %v1097
    %v10058 = vand.u32 %v10057, 8388607
    %v10059 = vor.u32 %v10058, 8388608
    %v10060 = vsub.s32 0, %v10059
    %v10061 = vadd.s32 %v10056, 1
    %vm10062 = vcmp.gt.s32.totalorder %v10061, 0
    %v10063 = vsel %vm10062, %v10061, 0
    %v10064 = vshrl.u32 %v10063, 5
    %v10065 = vand.u32 %v10063, 31
    %v10066 = vsub.s32 32, %v10065
    %v10067 = vshrl.u32 683565275, %v10066
    %v10068 = vshll.u32 683565275, %v10065
    %v10069 = vshrl.u32 2475754826, %v10066
    %v10070 = vor.u32 %v10068, %v10069
    %v10071 = vshll.u32 2475754826, %v10065
    %v10072 = vshrl.u32 2131351028, %v10066
    %v10073 = vor.u32 %v10071, %v10072
    %v10074 = vshll.u32 2131351028, %v10065
    %v10075 = vshrl.u32 2102212464, %v10066
    %v10076 = vor.u32 %v10074, %v10075
    %v10077 = vshll.u32 2102212464, %v10065
    %v10078 = vshrl.u32 920167782, %v10066
    %v10079 = vor.u32 %v10077, %v10078
    %v10080 = vshll.u32 920167782, %v10065
    %v10081 = vshrl.u32 1326507024, %v10066
    %v10082 = vor.u32 %v10080, %v10081
    %vm10083 = vcmp.lt.s32.totalorder %v10064, 1
    %vm10084 = vcmp.lt.s32.totalorder %v10064, 2
    %vm10085 = vcmp.lt.s32.totalorder %v10064, 3
    %vm10086 = vcmp.lt.s32.totalorder %v10064, 4
    %v10087 = vsel %vm10083, %v10067, %v10070
    %v10088 = vsel %vm10086, %v10076, 2102212464
    %v10089 = vsel %vm10085, %v10073, %v10088
    %v10090 = vsel %vm10084, %v10087, %v10089
    %v10091 = vsel %vm10083, %v10070, %v10073
    %v10092 = vsel %vm10086, %v10079, 920167782
    %v10093 = vsel %vm10085, %v10076, %v10092
    %v10094 = vsel %vm10084, %v10091, %v10093
    %v10095 = vsel %vm10083, %v10073, %v10076
    %v10096 = vsel %vm10086, %v10082, 1326507024
    %v10097 = vsel %vm10085, %v10079, %v10096
    %v10098 = vsel %vm10084, %v10095, %v10097
    %v10099 = vshll.u32 %v10059, 8
    %v10100 = vmul.u32.u64.compose %v10099, %v10098
    %v10101 = vextract.low.u32 %v10100
    %v10102 = vextract.high.u32 %v10100
    %v10103 = vmul.u32.u64.compose %v10099, %v10094
    %v10104 = vextract.low.u32 %v10103
    %v10105 = vextract.high.u32 %v10103
    %v10106 = vmul.u32 %v10099, %v10090
    %v10107 = vadd.s32 %v10102, %v10104
    %vm10108 = vc.u32 %v10102, %v10104
    %v10109 = vadd.s32 %v10105, 1
    %v10110 = vsel %vm10108, %v10109, %v10105
    %v10111 = vadd.s32 %v10106, %v10110
    %v10112 = vadd.s32 %v10111, 536870912
    %v10113 = vshrl.u32 %v10112, 30
    %v10114 = vshll.u32 %v10113, 30
    %v10115 = vsub.s32 %v10111, %v10114
    %vm10116 = vcmp.lt.s32.totalorder %v10115, 0
    %v10117 = vsub.s32 0, %v10115
    %v10118 = vsel %vm10116, %v10117, %v10115
    %v10119 = vclz %v10118
    %v10120 = vsub.s32 %v10119, 2
    %vm10121 = vcmp.gt.s32.totalorder 0, %v10120
    %v10122 = vsel %vm10121, 0, %v10120
    %v10123 = vsub.s32 32, %v10122
    %v10124 = vshll.u32 %v10115, %v10122
    %v10125 = vshrl.u32 %v10107, %v10123
    %v10126 = vor.u32 %v10124, %v10125
    %v10127 = vsub.s32 4294967266, %v10122
    %v10128 = vadd.s32 %v10127, 127
    %v10129 = vshll.u32 %v10128, 23
    %v10130 = vor.u32 4788187, %v10129
    %v10131 = vand.u32 2147483647, %v10130
    %v10133 = vcvt.s32.f32 %v10126
    %v10134 = vmul.f32 %v10133, %v10131
    %v10135 = vxor.u32 %v10134, 2147483648
    %v10136 = vsel %vm10053, %v10135, %v10134
    %v10137 = vsub.s32 4, %v10113
    %v10138 = vsel %vm10053, %v10137, %v10113
    %v10139 = vsel %vm10052, %v1097, %v10136
    %v10140 = vsel %vm10052, 0, %v10138
    %v10141 = vcosq.f32.pop %v10139
    %v10142 = vsinq.f32.pop %v10139
    %vm10143 = vweird.f32 %v1097
    %v10144 = vadd.s32 %v10140, 3
    %v10145 = vand.u32 %v10144, 3
    %vm10146 = vcmp.lt.s32.totalorder %v10145, 2
    %vm10147 = vcmp.eq.s32.totalorder %v10145, 0
    %v10148 = vxor.u32 %v10142, 2147483648
    %v10149 = vsel %vm10147, %v10141, %v10148
    %vm10150 = vcmp.eq.s32.totalorder %v10145, 2
    %v10151 = vxor.u32 %v10141, 2147483648
    %v10152 = vsel %vm10150, %v10151, %v10142
    %v10153 = vsel %vm10146, %v10149, %v10152
    %v10154 = vsel %vm10143, nan, %v10153
    %v10155 = vand.u32 2147483647, %v1098
    %vm10156 = vcmp.le.f32.partialorder %v10155, 0.7853982
    %vm10157 = vcmp.lt.s32.totalorder %v1098, 0
    %v10158 = vand.u32 %v1098, 2139095040
    %v10159 = vshrl.u32 %v10158, 23
    %v10160 = vsub.s32 %v10159, 127
    %v10161 = vand.u32 2147483647, %v1098
    %v10162 = vand.u32 %v10161, 8388607
    %v10163 = vor.u32 %v10162, 8388608
    %v10164 = vsub.s32 0, %v10163
    %v10165 = vadd.s32 %v10160, 1
    %vm10166 = vcmp.gt.s32.totalorder %v10165, 0
    %v10167 = vsel %vm10166, %v10165, 0
    %v10168 = vshrl.u32 %v10167, 5
    %v10169 = vand.u32 %v10167, 31
    %v10170 = vsub.s32 32, %v10169
    %v10171 = vshrl.u32 683565275, %v10170
    %v10172 = vshll.u32 683565275, %v10169
    %v10173 = vshrl.u32 2475754826, %v10170
    %v10174 = vor.u32 %v10172, %v10173
    %v10175 = vshll.u32 2475754826, %v10169
    %v10176 = vshrl.u32 2131351028, %v10170
    %v10177 = vor.u32 %v10175, %v10176
    %v10178 = vshll.u32 2131351028, %v10169
    %v10179 = vshrl.u32 2102212464, %v10170
    %v10180 = vor.u32 %v10178, %v10179
    %v10181 = vshll.u32 2102212464, %v10169
    %v10182 = vshrl.u32 920167782, %v10170
    %v10183 = vor.u32 %v10181, %v10182
    %v10184 = vshll.u32 920167782, %v10169
    %v10185 = vshrl.u32 1326507024, %v10170
    %v10186 = vor.u32 %v10184, %v10185
    %vm10187 = vcmp.lt.s32.totalorder %v10168, 1
    %vm10188 = vcmp.lt.s32.totalorder %v10168, 2
    %vm10189 = vcmp.lt.s32.totalorder %v10168, 3
    %vm10190 = vcmp.lt.s32.totalorder %v10168, 4
    %v10191 = vsel %vm10187, %v10171, %v10174
    %v10192 = vsel %vm10190, %v10180, 2102212464
    %v10193 = vsel %vm10189, %v10177, %v10192
    %v10194 = vsel %vm10188, %v10191, %v10193
    %v10195 = vsel %vm10187, %v10174, %v10177
    %v10196 = vsel %vm10190, %v10183, 920167782
    %v10197 = vsel %vm10189, %v10180, %v10196
    %v10198 = vsel %vm10188, %v10195, %v10197
    %v10199 = vsel %vm10187, %v10177, %v10180
    %v10200 = vsel %vm10190, %v10186, 1326507024
    %v10201 = vsel %vm10189, %v10183, %v10200
    %v10202 = vsel %vm10188, %v10199, %v10201
    %v10203 = vshll.u32 %v10163, 8
    %v10204 = vmul.u32.u64.compose %v10203, %v10202
    %v10205 = vextract.low.u32 %v10204
    %v10206 = vextract.high.u32 %v10204
    %v10207 = vmul.u32.u64.compose %v10203, %v10198
    %v10208 = vextract.low.u32 %v10207
    %v10209 = vextract.high.u32 %v10207
    %v10210 = vmul.u32 %v10203, %v10194
    %v10211 = vadd.s32 %v10206, %v10208
    %vm10212 = vc.u32 %v10206, %v10208
    %v10213 = vadd.s32 %v10209, 1
    %v10214 = vsel %vm10212, %v10213, %v10209
    %v10215 = vadd.s32 %v10210, %v10214
    %v10216 = vadd.s32 %v10215, 536870912
    %v10217 = vshrl.u32 %v10216, 30
    %v10218 = vshll.u32 %v10217, 30
    %v10219 = vsub.s32 %v10215, %v10218
    %vm10220 = vcmp.lt.s32.totalorder %v10219, 0
    %v10221 = vsub.s32 0, %v10219
    %v10222 = vsel %vm10220, %v10221, %v10219
    %v10223 = vclz %v10222
    %v10224 = vsub.s32 %v10223, 2
    %vm10225 = vcmp.gt.s32.totalorder 0, %v10224
    %v10226 = vsel %vm10225, 0, %v10224
    %v10227 = vsub.s32 32, %v10226
    %v10228 = vshll.u32 %v10219, %v10226
    %v10229 = vshrl.u32 %v10211, %v10227
    %v10230 = vor.u32 %v10228, %v10229
    %v10231 = vsub.s32 4294967266, %v10226
    %v10232 = vadd.s32 %v10231, 127
    %v10233 = vshll.u32 %v10232, 23
    %v10234 = vor.u32 4788187, %v10233
    %v10235 = vand.u32 2147483647, %v10234
    %v10237 = vcvt.s32.f32 %v10230
    %v10238 = vmul.f32 %v10237, %v10235
    %v10239 = vxor.u32 %v10238, 2147483648
    %v10240 = vsel %vm10157, %v10239, %v10238
    %v10241 = vsub.s32 4, %v10217
    %v10242 = vsel %vm10157, %v10241, %v10217
    %v10243 = vsel %vm10156, %v1098, %v10240
    %v10244 = vsel %vm10156, 0, %v10242
    %v10245 = vcosq.f32.pop %v10243
    %v10246 = vsinq.f32.pop %v10243
    %vm10247 = vweird.f32 %v1098
    %v10248 = vadd.s32 %v10244, 3
    %v10249 = vand.u32 %v10248, 3
    %vm10250 = vcmp.lt.s32.totalorder %v10249, 2
    %vm10251 = vcmp.eq.s32.totalorder %v10249, 0
    %v10252 = vxor.u32 %v10246, 2147483648
    %v10253 = vsel %vm10251, %v10245, %v10252
    %vm10254 = vcmp.eq.s32.totalorder %v10249, 2
    %v10255 = vxor.u32 %v10245, 2147483648
    %v10256 = vsel %vm10254, %v10255, %v10246
    %v10257 = vsel %vm10250, %v10253, %v10256
    %v10258 = vsel %vm10247, nan, %v10257
    %v10259 = vand.u32 2147483647, %v1099
    %vm10260 = vcmp.le.f32.partialorder %v10259, 0.7853982
    %vm10261 = vcmp.lt.s32.totalorder %v1099, 0
    %v10262 = vand.u32 %v1099, 2139095040
    %v10263 = vshrl.u32 %v10262, 23
    %v10264 = vsub.s32 %v10263, 127
    %v10265 = vand.u32 2147483647, %v1099
    %v10266 = vand.u32 %v10265, 8388607
    %v10267 = vor.u32 %v10266, 8388608
    %v10268 = vsub.s32 0, %v10267
    %v10269 = vadd.s32 %v10264, 1
    %vm10270 = vcmp.gt.s32.totalorder %v10269, 0
    %v10271 = vsel %vm10270, %v10269, 0
    %v10272 = vshrl.u32 %v10271, 5
    %v10273 = vand.u32 %v10271, 31
    %v10274 = vsub.s32 32, %v10273
    %v10275 = vshrl.u32 683565275, %v10274
    %v10276 = vshll.u32 683565275, %v10273
    %v10277 = vshrl.u32 2475754826, %v10274
    %v10278 = vor.u32 %v10276, %v10277
    %v10279 = vshll.u32 2475754826, %v10273
    %v10280 = vshrl.u32 2131351028, %v10274
    %v10281 = vor.u32 %v10279, %v10280
    %v10282 = vshll.u32 2131351028, %v10273
    %v10283 = vshrl.u32 2102212464, %v10274
    %v10284 = vor.u32 %v10282, %v10283
    %v10285 = vshll.u32 2102212464, %v10273
    %v10286 = vshrl.u32 920167782, %v10274
    %v10287 = vor.u32 %v10285, %v10286
    %v10288 = vshll.u32 920167782, %v10273
    %v10289 = vshrl.u32 1326507024, %v10274
    %v10290 = vor.u32 %v10288, %v10289
    %vm10291 = vcmp.lt.s32.totalorder %v10272, 1
    %vm10292 = vcmp.lt.s32.totalorder %v10272, 2
    %vm10293 = vcmp.lt.s32.totalorder %v10272, 3
    %vm10294 = vcmp.lt.s32.totalorder %v10272, 4
    %v10295 = vsel %vm10291, %v10275, %v10278
    %v10296 = vsel %vm10294, %v10284, 2102212464
    %v10297 = vsel %vm10293, %v10281, %v10296
    %v10298 = vsel %vm10292, %v10295, %v10297
    %v10299 = vsel %vm10291, %v10278, %v10281
    %v10300 = vsel %vm10294, %v10287, 920167782
    %v10301 = vsel %vm10293, %v10284, %v10300
    %v10302 = vsel %vm10292, %v10299, %v10301
    %v10303 = vsel %vm10291, %v10281, %v10284
    %v10304 = vsel %vm10294, %v10290, 1326507024
    %v10305 = vsel %vm10293, %v10287, %v10304
    %v10306 = vsel %vm10292, %v10303, %v10305
    %v10307 = vshll.u32 %v10267, 8
    %v10308 = vmul.u32.u64.compose %v10307, %v10306
    %v10309 = vextract.low.u32 %v10308
    %v10310 = vextract.high.u32 %v10308
    %v10311 = vmul.u32.u64.compose %v10307, %v10302
    %v10312 = vextract.low.u32 %v10311
    %v10313 = vextract.high.u32 %v10311
    %v10314 = vmul.u32 %v10307, %v10298
    %v10315 = vadd.s32 %v10310, %v10312
    %vm10316 = vc.u32 %v10310, %v10312
    %v10317 = vadd.s32 %v10313, 1
    %v10318 = vsel %vm10316, %v10317, %v10313
    %v10319 = vadd.s32 %v10314, %v10318
    %v10320 = vadd.s32 %v10319, 536870912
    %v10321 = vshrl.u32 %v10320, 30
    %v10322 = vshll.u32 %v10321, 30
    %v10323 = vsub.s32 %v10319, %v10322
    %vm10324 = vcmp.lt.s32.totalorder %v10323, 0
    %v10325 = vsub.s32 0, %v10323
    %v10326 = vsel %vm10324, %v10325, %v10323
    %v10327 = vclz %v10326
    %v10328 = vsub.s32 %v10327, 2
    %vm10329 = vcmp.gt.s32.totalorder 0, %v10328
    %v10330 = vsel %vm10329, 0, %v10328
    %v10331 = vsub.s32 32, %v10330
    %v10332 = vshll.u32 %v10323, %v10330
    %v10333 = vshrl.u32 %v10315, %v10331
    %v10334 = vor.u32 %v10332, %v10333
    %v10335 = vsub.s32 4294967266, %v10330
    %v10336 = vadd.s32 %v10335, 127
    %v10337 = vshll.u32 %v10336, 23
    %v10338 = vor.u32 4788187, %v10337
    %v10339 = vand.u32 2147483647, %v10338
    %v10341 = vcvt.s32.f32 %v10334
    %v10342 = vmul.f32 %v10341, %v10339
    %v10343 = vxor.u32 %v10342, 2147483648
    %v10344 = vsel %vm10261, %v10343, %v10342
    %v10345 = vsub.s32 4, %v10321
    %v10346 = vsel %vm10261, %v10345, %v10321
    %v10347 = vsel %vm10260, %v1099, %v10344
    %v10348 = vsel %vm10260, 0, %v10346
    %v10349 = vcosq.f32.pop %v10347
    %v10350 = vsinq.f32.pop %v10347
    %vm10351 = vweird.f32 %v1099
    %v10352 = vadd.s32 %v10348, 3
    %v10353 = vand.u32 %v10352, 3
    %vm10354 = vcmp.lt.s32.totalorder %v10353, 2
    %vm10355 = vcmp.eq.s32.totalorder %v10353, 0
    %v10356 = vxor.u32 %v10350, 2147483648
    %v10357 = vsel %vm10355, %v10349, %v10356
    %vm10358 = vcmp.eq.s32.totalorder %v10353, 2
    %v10359 = vxor.u32 %v10349, 2147483648
    %v10360 = vsel %vm10358, %v10359, %v10350
    %v10361 = vsel %vm10354, %v10357, %v10360
    %v10362 = vsel %vm10351, nan, %v10361
    %v10363 = vand.u32 2147483647, %v1100
    %vm10364 = vcmp.le.f32.partialorder %v10363, 0.7853982
    %vm10365 = vcmp.lt.s32.totalorder %v1100, 0
    %v10366 = vand.u32 %v1100, 2139095040
    %v10367 = vshrl.u32 %v10366, 23
    %v10368 = vsub.s32 %v10367, 127
    %v10369 = vand.u32 2147483647, %v1100
    %v10370 = vand.u32 %v10369, 8388607
    %v10371 = vor.u32 %v10370, 8388608
    %v10372 = vsub.s32 0, %v10371
    %v10373 = vadd.s32 %v10368, 1
    %vm10374 = vcmp.gt.s32.totalorder %v10373, 0
    %v10375 = vsel %vm10374, %v10373, 0
    %v10376 = vshrl.u32 %v10375, 5
    %v10377 = vand.u32 %v10375, 31
    %v10378 = vsub.s32 32, %v10377
    %v10379 = vshrl.u32 683565275, %v10378
    %v10380 = vshll.u32 683565275, %v10377
    %v10381 = vshrl.u32 2475754826, %v10378
    %v10382 = vor.u32 %v10380, %v10381
    %v10383 = vshll.u32 2475754826, %v10377
    %v10384 = vshrl.u32 2131351028, %v10378
    %v10385 = vor.u32 %v10383, %v10384
    %v10386 = vshll.u32 2131351028, %v10377
    %v10387 = vshrl.u32 2102212464, %v10378
    %v10388 = vor.u32 %v10386, %v10387
    %v10389 = vshll.u32 2102212464, %v10377
    %v10390 = vshrl.u32 920167782, %v10378
    %v10391 = vor.u32 %v10389, %v10390
    %v10392 = vshll.u32 920167782, %v10377
    %v10393 = vshrl.u32 1326507024, %v10378
    %v10394 = vor.u32 %v10392, %v10393
    %vm10395 = vcmp.lt.s32.totalorder %v10376, 1
    %vm10396 = vcmp.lt.s32.totalorder %v10376, 2
    %vm10397 = vcmp.lt.s32.totalorder %v10376, 3
    %vm10398 = vcmp.lt.s32.totalorder %v10376, 4
    %v10399 = vsel %vm10395, %v10379, %v10382
    %v10400 = vsel %vm10398, %v10388, 2102212464
    %v10401 = vsel %vm10397, %v10385, %v10400
    %v10402 = vsel %vm10396, %v10399, %v10401
    %v10403 = vsel %vm10395, %v10382, %v10385
    %v10404 = vsel %vm10398, %v10391, 920167782
    %v10405 = vsel %vm10397, %v10388, %v10404
    %v10406 = vsel %vm10396, %v10403, %v10405
    %v10407 = vsel %vm10395, %v10385, %v10388
    %v10408 = vsel %vm10398, %v10394, 1326507024
    %v10409 = vsel %vm10397, %v10391, %v10408
    %v10410 = vsel %vm10396, %v10407, %v10409
    %v10411 = vshll.u32 %v10371, 8
    %v10412 = vmul.u32.u64.compose %v10411, %v10410
    %v10413 = vextract.low.u32 %v10412
    %v10414 = vextract.high.u32 %v10412
    %v10415 = vmul.u32.u64.compose %v10411, %v10406
    %v10416 = vextract.low.u32 %v10415
    %v10417 = vextract.high.u32 %v10415
    %v10418 = vmul.u32 %v10411, %v10402
    %v10419 = vadd.s32 %v10414, %v10416
    %vm10420 = vc.u32 %v10414, %v10416
    %v10421 = vadd.s32 %v10417, 1
    %v10422 = vsel %vm10420, %v10421, %v10417
    %v10423 = vadd.s32 %v10418, %v10422
    %v10424 = vadd.s32 %v10423, 536870912
    %v10425 = vshrl.u32 %v10424, 30
    %v10426 = vshll.u32 %v10425, 30
    %v10427 = vsub.s32 %v10423, %v10426
    %vm10428 = vcmp.lt.s32.totalorder %v10427, 0
    %v10429 = vsub.s32 0, %v10427
    %v10430 = vsel %vm10428, %v10429, %v10427
    %v10431 = vclz %v10430
    %v10432 = vsub.s32 %v10431, 2
    %vm10433 = vcmp.gt.s32.totalorder 0, %v10432
    %v10434 = vsel %vm10433, 0, %v10432
    %v10435 = vsub.s32 32, %v10434
    %v10436 = vshll.u32 %v10427, %v10434
    %v10437 = vshrl.u32 %v10419, %v10435
    %v10438 = vor.u32 %v10436, %v10437
    %v10439 = vsub.s32 4294967266, %v10434
    %v10440 = vadd.s32 %v10439, 127
    %v10441 = vshll.u32 %v10440, 23
    %v10442 = vor.u32 4788187, %v10441
    %v10443 = vand.u32 2147483647, %v10442
    %v10445 = vcvt.s32.f32 %v10438
    %v10446 = vmul.f32 %v10445, %v10443
    %v10447 = vxor.u32 %v10446, 2147483648
    %v10448 = vsel %vm10365, %v10447, %v10446
    %v10449 = vsub.s32 4, %v10425
    %v10450 = vsel %vm10365, %v10449, %v10425
    %v10451 = vsel %vm10364, %v1100, %v10448
    %v10452 = vsel %vm10364, 0, %v10450
    %v10453 = vcosq.f32.pop %v10451
    %v10454 = vsinq.f32.pop %v10451
    %vm10455 = vweird.f32 %v1100
    %v10456 = vadd.s32 %v10452, 3
    %v10457 = vand.u32 %v10456, 3
    %vm10458 = vcmp.lt.s32.totalorder %v10457, 2
    %vm10459 = vcmp.eq.s32.totalorder %v10457, 0
    %v10460 = vxor.u32 %v10454, 2147483648
    %v10461 = vsel %vm10459, %v10453, %v10460
    %vm10462 = vcmp.eq.s32.totalorder %v10457, 2
    %v10463 = vxor.u32 %v10453, 2147483648
    %v10464 = vsel %vm10462, %v10463, %v10454
    %v10465 = vsel %vm10458, %v10461, %v10464
    %v10466 = vsel %vm10455, nan, %v10465
    %v10467 = vand.u32 2147483647, %v1101
    %vm10468 = vcmp.le.f32.partialorder %v10467, 0.7853982
    %vm10469 = vcmp.lt.s32.totalorder %v1101, 0
    %v10470 = vand.u32 %v1101, 2139095040
    %v10471 = vshrl.u32 %v10470, 23
    %v10472 = vsub.s32 %v10471, 127
    %v10473 = vand.u32 2147483647, %v1101
    %v10474 = vand.u32 %v10473, 8388607
    %v10475 = vor.u32 %v10474, 8388608
    %v10476 = vsub.s32 0, %v10475
    %v10477 = vadd.s32 %v10472, 1
    %vm10478 = vcmp.gt.s32.totalorder %v10477, 0
    %v10479 = vsel %vm10478, %v10477, 0
    %v10480 = vshrl.u32 %v10479, 5
    %v10481 = vand.u32 %v10479, 31
    %v10482 = vsub.s32 32, %v10481
    %v10483 = vshrl.u32 683565275, %v10482
    %v10484 = vshll.u32 683565275, %v10481
    %v10485 = vshrl.u32 2475754826, %v10482
    %v10486 = vor.u32 %v10484, %v10485
    %v10487 = vshll.u32 2475754826, %v10481
    %v10488 = vshrl.u32 2131351028, %v10482
    %v10489 = vor.u32 %v10487, %v10488
    %v10490 = vshll.u32 2131351028, %v10481
    %v10491 = vshrl.u32 2102212464, %v10482
    %v10492 = vor.u32 %v10490, %v10491
    %v10493 = vshll.u32 2102212464, %v10481
    %v10494 = vshrl.u32 920167782, %v10482
    %v10495 = vor.u32 %v10493, %v10494
    %v10496 = vshll.u32 920167782, %v10481
    %v10497 = vshrl.u32 1326507024, %v10482
    %v10498 = vor.u32 %v10496, %v10497
    %vm10499 = vcmp.lt.s32.totalorder %v10480, 1
    %vm10500 = vcmp.lt.s32.totalorder %v10480, 2
    %vm10501 = vcmp.lt.s32.totalorder %v10480, 3
    %vm10502 = vcmp.lt.s32.totalorder %v10480, 4
    %v10503 = vsel %vm10499, %v10483, %v10486
    %v10504 = vsel %vm10502, %v10492, 2102212464
    %v10505 = vsel %vm10501, %v10489, %v10504
    %v10506 = vsel %vm10500, %v10503, %v10505
    %v10507 = vsel %vm10499, %v10486, %v10489
    %v10508 = vsel %vm10502, %v10495, 920167782
    %v10509 = vsel %vm10501, %v10492, %v10508
    %v10510 = vsel %vm10500, %v10507, %v10509
    %v10511 = vsel %vm10499, %v10489, %v10492
    %v10512 = vsel %vm10502, %v10498, 1326507024
    %v10513 = vsel %vm10501, %v10495, %v10512
    %v10514 = vsel %vm10500, %v10511, %v10513
    %v10515 = vshll.u32 %v10475, 8
    %v10516 = vmul.u32.u64.compose %v10515, %v10514
    %v10517 = vextract.low.u32 %v10516
    %v10518 = vextract.high.u32 %v10516
    %v10519 = vmul.u32.u64.compose %v10515, %v10510
    %v10520 = vextract.low.u32 %v10519
    %v10521 = vextract.high.u32 %v10519
    %v10522 = vmul.u32 %v10515, %v10506
    %v10523 = vadd.s32 %v10518, %v10520
    %vm10524 = vc.u32 %v10518, %v10520
    %v10525 = vadd.s32 %v10521, 1
    %v10526 = vsel %vm10524, %v10525, %v10521
    %v10527 = vadd.s32 %v10522, %v10526
    %v10528 = vadd.s32 %v10527, 536870912
    %v10529 = vshrl.u32 %v10528, 30
    %v10530 = vshll.u32 %v10529, 30
    %v10531 = vsub.s32 %v10527, %v10530
    %vm10532 = vcmp.lt.s32.totalorder %v10531, 0
    %v10533 = vsub.s32 0, %v10531
    %v10534 = vsel %vm10532, %v10533, %v10531
    %v10535 = vclz %v10534
    %v10536 = vsub.s32 %v10535, 2
    %vm10537 = vcmp.gt.s32.totalorder 0, %v10536
    %v10538 = vsel %vm10537, 0, %v10536
    %v10539 = vsub.s32 32, %v10538
    %v10540 = vshll.u32 %v10531, %v10538
    %v10541 = vshrl.u32 %v10523, %v10539
    %v10542 = vor.u32 %v10540, %v10541
    %v10543 = vsub.s32 4294967266, %v10538
    %v10544 = vadd.s32 %v10543, 127
    %v10545 = vshll.u32 %v10544, 23
    %v10546 = vor.u32 4788187, %v10545
    %v10547 = vand.u32 2147483647, %v10546
    %v10549 = vcvt.s32.f32 %v10542
    %v10550 = vmul.f32 %v10549, %v10547
    %v10551 = vxor.u32 %v10550, 2147483648
    %v10552 = vsel %vm10469, %v10551, %v10550
    %v10553 = vsub.s32 4, %v10529
    %v10554 = vsel %vm10469, %v10553, %v10529
    %v10555 = vsel %vm10468, %v1101, %v10552
    %v10556 = vsel %vm10468, 0, %v10554
    %v10557 = vcosq.f32.pop %v10555
    %v10558 = vsinq.f32.pop %v10555
    %vm10559 = vweird.f32 %v1101
    %v10560 = vadd.s32 %v10556, 3
    %v10561 = vand.u32 %v10560, 3
    %vm10562 = vcmp.lt.s32.totalorder %v10561, 2
    %vm10563 = vcmp.eq.s32.totalorder %v10561, 0
    %v10564 = vxor.u32 %v10558, 2147483648
    %v10565 = vsel %vm10563, %v10557, %v10564
    %vm10566 = vcmp.eq.s32.totalorder %v10561, 2
    %v10567 = vxor.u32 %v10557, 2147483648
    %v10568 = vsel %vm10566, %v10567, %v10558
    %v10569 = vsel %vm10562, %v10565, %v10568
    %v10570 = vsel %vm10559, nan, %v10569
    %v10571 = vand.u32 2147483647, %v1102
    %vm10572 = vcmp.le.f32.partialorder %v10571, 0.7853982
    %vm10573 = vcmp.lt.s32.totalorder %v1102, 0
    %v10574 = vand.u32 %v1102, 2139095040
    %v10575 = vshrl.u32 %v10574, 23
    %v10576 = vsub.s32 %v10575, 127
    %v10577 = vand.u32 2147483647, %v1102
    %v10578 = vand.u32 %v10577, 8388607
    %v10579 = vor.u32 %v10578, 8388608
    %v10580 = vsub.s32 0, %v10579
    %v10581 = vadd.s32 %v10576, 1
    %vm10582 = vcmp.gt.s32.totalorder %v10581, 0
    %v10583 = vsel %vm10582, %v10581, 0
    %v10584 = vshrl.u32 %v10583, 5
    %v10585 = vand.u32 %v10583, 31
    %v10586 = vsub.s32 32, %v10585
    %v10587 = vshrl.u32 683565275, %v10586
    %v10588 = vshll.u32 683565275, %v10585
    %v10589 = vshrl.u32 2475754826, %v10586
    %v10590 = vor.u32 %v10588, %v10589
    %v10591 = vshll.u32 2475754826, %v10585
    %v10592 = vshrl.u32 2131351028, %v10586
    %v10593 = vor.u32 %v10591, %v10592
    %v10594 = vshll.u32 2131351028, %v10585
    %v10595 = vshrl.u32 2102212464, %v10586
    %v10596 = vor.u32 %v10594, %v10595
    %v10597 = vshll.u32 2102212464, %v10585
    %v10598 = vshrl.u32 920167782, %v10586
    %v10599 = vor.u32 %v10597, %v10598
    %v10600 = vshll.u32 920167782, %v10585
    %v10601 = vshrl.u32 1326507024, %v10586
    %v10602 = vor.u32 %v10600, %v10601
    %vm10603 = vcmp.lt.s32.totalorder %v10584, 1
    %vm10604 = vcmp.lt.s32.totalorder %v10584, 2
    %vm10605 = vcmp.lt.s32.totalorder %v10584, 3
    %vm10606 = vcmp.lt.s32.totalorder %v10584, 4
    %v10607 = vsel %vm10603, %v10587, %v10590
    %v10608 = vsel %vm10606, %v10596, 2102212464
    %v10609 = vsel %vm10605, %v10593, %v10608
    %v10610 = vsel %vm10604, %v10607, %v10609
    %v10611 = vsel %vm10603, %v10590, %v10593
    %v10612 = vsel %vm10606, %v10599, 920167782
    %v10613 = vsel %vm10605, %v10596, %v10612
    %v10614 = vsel %vm10604, %v10611, %v10613
    %v10615 = vsel %vm10603, %v10593, %v10596
    %v10616 = vsel %vm10606, %v10602, 1326507024
    %v10617 = vsel %vm10605, %v10599, %v10616
    %v10618 = vsel %vm10604, %v10615, %v10617
    %v10619 = vshll.u32 %v10579, 8
    %v10620 = vmul.u32.u64.compose %v10619, %v10618
    %v10621 = vextract.low.u32 %v10620
    %v10622 = vextract.high.u32 %v10620
    %v10623 = vmul.u32.u64.compose %v10619, %v10614
    %v10624 = vextract.low.u32 %v10623
    %v10625 = vextract.high.u32 %v10623
    %v10626 = vmul.u32 %v10619, %v10610
    %v10627 = vadd.s32 %v10622, %v10624
    %vm10628 = vc.u32 %v10622, %v10624
    %v10629 = vadd.s32 %v10625, 1
    %v10630 = vsel %vm10628, %v10629, %v10625
    %v10631 = vadd.s32 %v10626, %v10630
    %v10632 = vadd.s32 %v10631, 536870912
    %v10633 = vshrl.u32 %v10632, 30
    %v10634 = vshll.u32 %v10633, 30
    %v10635 = vsub.s32 %v10631, %v10634
    %vm10636 = vcmp.lt.s32.totalorder %v10635, 0
    %v10637 = vsub.s32 0, %v10635
    %v10638 = vsel %vm10636, %v10637, %v10635
    %v10639 = vclz %v10638
    %v10640 = vsub.s32 %v10639, 2
    %vm10641 = vcmp.gt.s32.totalorder 0, %v10640
    %v10642 = vsel %vm10641, 0, %v10640
    %v10643 = vsub.s32 32, %v10642
    %v10644 = vshll.u32 %v10635, %v10642
    %v10645 = vshrl.u32 %v10627, %v10643
    %v10646 = vor.u32 %v10644, %v10645
    %v10647 = vsub.s32 4294967266, %v10642
    %v10648 = vadd.s32 %v10647, 127
    %v10649 = vshll.u32 %v10648, 23
    %v10650 = vor.u32 4788187, %v10649
    %v10651 = vand.u32 2147483647, %v10650
    %v10653 = vcvt.s32.f32 %v10646
    %v10654 = vmul.f32 %v10653, %v10651
    %v10655 = vxor.u32 %v10654, 2147483648
    %v10656 = vsel %vm10573, %v10655, %v10654
    %v10657 = vsub.s32 4, %v10633
    %v10658 = vsel %vm10573, %v10657, %v10633
    %v10659 = vsel %vm10572, %v1102, %v10656
    %v10660 = vsel %vm10572, 0, %v10658
    %v10661 = vcosq.f32.pop %v10659
    %v10662 = vsinq.f32.pop %v10659
    %vm10663 = vweird.f32 %v1102
    %v10664 = vadd.s32 %v10660, 3
    %v10665 = vand.u32 %v10664, 3
    %vm10666 = vcmp.lt.s32.totalorder %v10665, 2
    %vm10667 = vcmp.eq.s32.totalorder %v10665, 0
    %v10668 = vxor.u32 %v10662, 2147483648
    %v10669 = vsel %vm10667, %v10661, %v10668
    %vm10670 = vcmp.eq.s32.totalorder %v10665, 2
    %v10671 = vxor.u32 %v10661, 2147483648
    %v10672 = vsel %vm10670, %v10671, %v10662
    %v10673 = vsel %vm10666, %v10669, %v10672
    %v10674 = vsel %vm10663, nan, %v10673
    %v10675 = vand.u32 2147483647, %v1103
    %vm10676 = vcmp.le.f32.partialorder %v10675, 0.7853982
    %vm10677 = vcmp.lt.s32.totalorder %v1103, 0
    %v10678 = vand.u32 %v1103, 2139095040
    %v10679 = vshrl.u32 %v10678, 23
    %v10680 = vsub.s32 %v10679, 127
    %v10681 = vand.u32 2147483647, %v1103
    %v10682 = vand.u32 %v10681, 8388607
    %v10683 = vor.u32 %v10682, 8388608
    %v10684 = vsub.s32 0, %v10683
    %v10685 = vadd.s32 %v10680, 1
    %vm10686 = vcmp.gt.s32.totalorder %v10685, 0
    %v10687 = vsel %vm10686, %v10685, 0
    %v10688 = vshrl.u32 %v10687, 5
    %v10689 = vand.u32 %v10687, 31
    %v10690 = vsub.s32 32, %v10689
    %v10691 = vshrl.u32 683565275, %v10690
    %v10692 = vshll.u32 683565275, %v10689
    %v10693 = vshrl.u32 2475754826, %v10690
    %v10694 = vor.u32 %v10692, %v10693
    %v10695 = vshll.u32 2475754826, %v10689
    %v10696 = vshrl.u32 2131351028, %v10690
    %v10697 = vor.u32 %v10695, %v10696
    %v10698 = vshll.u32 2131351028, %v10689
    %v10699 = vshrl.u32 2102212464, %v10690
    %v10700 = vor.u32 %v10698, %v10699
    %v10701 = vshll.u32 2102212464, %v10689
    %v10702 = vshrl.u32 920167782, %v10690
    %v10703 = vor.u32 %v10701, %v10702
    %v10704 = vshll.u32 920167782, %v10689
    %v10705 = vshrl.u32 1326507024, %v10690
    %v10706 = vor.u32 %v10704, %v10705
    %vm10707 = vcmp.lt.s32.totalorder %v10688, 1
    %vm10708 = vcmp.lt.s32.totalorder %v10688, 2
    %vm10709 = vcmp.lt.s32.totalorder %v10688, 3
    %vm10710 = vcmp.lt.s32.totalorder %v10688, 4
    %v10711 = vsel %vm10707, %v10691, %v10694
    %v10712 = vsel %vm10710, %v10700, 2102212464
    %v10713 = vsel %vm10709, %v10697, %v10712
    %v10714 = vsel %vm10708, %v10711, %v10713
    %v10715 = vsel %vm10707, %v10694, %v10697
    %v10716 = vsel %vm10710, %v10703, 920167782
    %v10717 = vsel %vm10709, %v10700, %v10716
    %v10718 = vsel %vm10708, %v10715, %v10717
    %v10719 = vsel %vm10707, %v10697, %v10700
    %v10720 = vsel %vm10710, %v10706, 1326507024
    %v10721 = vsel %vm10709, %v10703, %v10720
    %v10722 = vsel %vm10708, %v10719, %v10721
    %v10723 = vshll.u32 %v10683, 8
    %v10724 = vmul.u32.u64.compose %v10723, %v10722
    %v10725 = vextract.low.u32 %v10724
    %v10726 = vextract.high.u32 %v10724
    %v10727 = vmul.u32.u64.compose %v10723, %v10718
    %v10728 = vextract.low.u32 %v10727
    %v10729 = vextract.high.u32 %v10727
    %v10730 = vmul.u32 %v10723, %v10714
    %v10731 = vadd.s32 %v10726, %v10728
    %vm10732 = vc.u32 %v10726, %v10728
    %v10733 = vadd.s32 %v10729, 1
    %v10734 = vsel %vm10732, %v10733, %v10729
    %v10735 = vadd.s32 %v10730, %v10734
    %v10736 = vadd.s32 %v10735, 536870912
    %v10737 = vshrl.u32 %v10736, 30
    %v10738 = vshll.u32 %v10737, 30
    %v10739 = vsub.s32 %v10735, %v10738
    %vm10740 = vcmp.lt.s32.totalorder %v10739, 0
    %v10741 = vsub.s32 0, %v10739
    %v10742 = vsel %vm10740, %v10741, %v10739
    %v10743 = vclz %v10742
    %v10744 = vsub.s32 %v10743, 2
    %vm10745 = vcmp.gt.s32.totalorder 0, %v10744
    %v10746 = vsel %vm10745, 0, %v10744
    %v10747 = vsub.s32 32, %v10746
    %v10748 = vshll.u32 %v10739, %v10746
    %v10749 = vshrl.u32 %v10731, %v10747
    %v10750 = vor.u32 %v10748, %v10749
    %v10751 = vsub.s32 4294967266, %v10746
    %v10752 = vadd.s32 %v10751, 127
    %v10753 = vshll.u32 %v10752, 23
    %v10754 = vor.u32 4788187, %v10753
    %v10755 = vand.u32 2147483647, %v10754
    %v10757 = vcvt.s32.f32 %v10750
    %v10758 = vmul.f32 %v10757, %v10755
    %v10759 = vxor.u32 %v10758, 2147483648
    %v10760 = vsel %vm10677, %v10759, %v10758
    %v10761 = vsub.s32 4, %v10737
    %v10762 = vsel %vm10677, %v10761, %v10737
    %v10763 = vsel %vm10676, %v1103, %v10760
    %v10764 = vsel %vm10676, 0, %v10762
    %v10765 = vcosq.f32.pop %v10763
    %v10766 = vsinq.f32.pop %v10763
    %vm10767 = vweird.f32 %v1103
    %v10768 = vadd.s32 %v10764, 3
    %v10769 = vand.u32 %v10768, 3
    %vm10770 = vcmp.lt.s32.totalorder %v10769, 2
    %vm10771 = vcmp.eq.s32.totalorder %v10769, 0
    %v10772 = vxor.u32 %v10766, 2147483648
    %v10773 = vsel %vm10771, %v10765, %v10772
    %vm10774 = vcmp.eq.s32.totalorder %v10769, 2
    %v10775 = vxor.u32 %v10765, 2147483648
    %v10776 = vsel %vm10774, %v10775, %v10766
    %v10777 = vsel %vm10770, %v10773, %v10776
    %v10778 = vsel %vm10767, nan, %v10777
    %v10779 = vand.u32 2147483647, %v1104
    %vm10780 = vcmp.le.f32.partialorder %v10779, 0.7853982
    %vm10781 = vcmp.lt.s32.totalorder %v1104, 0
    %v10782 = vand.u32 %v1104, 2139095040
    %v10783 = vshrl.u32 %v10782, 23
    %v10784 = vsub.s32 %v10783, 127
    %v10785 = vand.u32 2147483647, %v1104
    %v10786 = vand.u32 %v10785, 8388607
    %v10787 = vor.u32 %v10786, 8388608
    %v10788 = vsub.s32 0, %v10787
    %v10789 = vadd.s32 %v10784, 1
    %vm10790 = vcmp.gt.s32.totalorder %v10789, 0
    %v10791 = vsel %vm10790, %v10789, 0
    %v10792 = vshrl.u32 %v10791, 5
    %v10793 = vand.u32 %v10791, 31
    %v10794 = vsub.s32 32, %v10793
    %v10795 = vshrl.u32 683565275, %v10794
    %v10796 = vshll.u32 683565275, %v10793
    %v10797 = vshrl.u32 2475754826, %v10794
    %v10798 = vor.u32 %v10796, %v10797
    %v10799 = vshll.u32 2475754826, %v10793
    %v10800 = vshrl.u32 2131351028, %v10794
    %v10801 = vor.u32 %v10799, %v10800
    %v10802 = vshll.u32 2131351028, %v10793
    %v10803 = vshrl.u32 2102212464, %v10794
    %v10804 = vor.u32 %v10802, %v10803
    %v10805 = vshll.u32 2102212464, %v10793
    %v10806 = vshrl.u32 920167782, %v10794
    %v10807 = vor.u32 %v10805, %v10806
    %v10808 = vshll.u32 920167782, %v10793
    %v10809 = vshrl.u32 1326507024, %v10794
    %v10810 = vor.u32 %v10808, %v10809
    %vm10811 = vcmp.lt.s32.totalorder %v10792, 1
    %vm10812 = vcmp.lt.s32.totalorder %v10792, 2
    %vm10813 = vcmp.lt.s32.totalorder %v10792, 3
    %vm10814 = vcmp.lt.s32.totalorder %v10792, 4
    %v10815 = vsel %vm10811, %v10795, %v10798
    %v10816 = vsel %vm10814, %v10804, 2102212464
    %v10817 = vsel %vm10813, %v10801, %v10816
    %v10818 = vsel %vm10812, %v10815, %v10817
    %v10819 = vsel %vm10811, %v10798, %v10801
    %v10820 = vsel %vm10814, %v10807, 920167782
    %v10821 = vsel %vm10813, %v10804, %v10820
    %v10822 = vsel %vm10812, %v10819, %v10821
    %v10823 = vsel %vm10811, %v10801, %v10804
    %v10824 = vsel %vm10814, %v10810, 1326507024
    %v10825 = vsel %vm10813, %v10807, %v10824
    %v10826 = vsel %vm10812, %v10823, %v10825
    %v10827 = vshll.u32 %v10787, 8
    %v10828 = vmul.u32.u64.compose %v10827, %v10826
    %v10829 = vextract.low.u32 %v10828
    %v10830 = vextract.high.u32 %v10828
    %v10831 = vmul.u32.u64.compose %v10827, %v10822
    %v10832 = vextract.low.u32 %v10831
    %v10833 = vextract.high.u32 %v10831
    %v10834 = vmul.u32 %v10827, %v10818
    %v10835 = vadd.s32 %v10830, %v10832
    %vm10836 = vc.u32 %v10830, %v10832
    %v10837 = vadd.s32 %v10833, 1
    %v10838 = vsel %vm10836, %v10837, %v10833
    %v10839 = vadd.s32 %v10834, %v10838
    %v10840 = vadd.s32 %v10839, 536870912
    %v10841 = vshrl.u32 %v10840, 30
    %v10842 = vshll.u32 %v10841, 30
    %v10843 = vsub.s32 %v10839, %v10842
    %vm10844 = vcmp.lt.s32.totalorder %v10843, 0
    %v10845 = vsub.s32 0, %v10843
    %v10846 = vsel %vm10844, %v10845, %v10843
    %v10847 = vclz %v10846
    %v10848 = vsub.s32 %v10847, 2
    %vm10849 = vcmp.gt.s32.totalorder 0, %v10848
    %v10850 = vsel %vm10849, 0, %v10848
    %v10851 = vsub.s32 32, %v10850
    %v10852 = vshll.u32 %v10843, %v10850
    %v10853 = vshrl.u32 %v10835, %v10851
    %v10854 = vor.u32 %v10852, %v10853
    %v10855 = vsub.s32 4294967266, %v10850
    %v10856 = vadd.s32 %v10855, 127
    %v10857 = vshll.u32 %v10856, 23
    %v10858 = vor.u32 4788187, %v10857
    %v10859 = vand.u32 2147483647, %v10858
    %v10861 = vcvt.s32.f32 %v10854
    %v10862 = vmul.f32 %v10861, %v10859
    %v10863 = vxor.u32 %v10862, 2147483648
    %v10864 = vsel %vm10781, %v10863, %v10862
    %v10865 = vsub.s32 4, %v10841
    %v10866 = vsel %vm10781, %v10865, %v10841
    %v10867 = vsel %vm10780, %v1104, %v10864
    %v10868 = vsel %vm10780, 0, %v10866
    %v10869 = vcosq.f32.pop %v10867
    %v10870 = vsinq.f32.pop %v10867
    %vm10871 = vweird.f32 %v1104
    %v10872 = vadd.s32 %v10868, 3
    %v10873 = vand.u32 %v10872, 3
    %vm10874 = vcmp.lt.s32.totalorder %v10873, 2
    %vm10875 = vcmp.eq.s32.totalorder %v10873, 0
    %v10876 = vxor.u32 %v10870, 2147483648
    %v10877 = vsel %vm10875, %v10869, %v10876
    %vm10878 = vcmp.eq.s32.totalorder %v10873, 2
    %v10879 = vxor.u32 %v10869, 2147483648
    %v10880 = vsel %vm10878, %v10879, %v10870
    %v10881 = vsel %vm10874, %v10877, %v10880
    %v10882 = vsel %vm10871, nan, %v10881
    %v10883 = vand.u32 2147483647, %v1105
    %vm10884 = vcmp.le.f32.partialorder %v10883, 0.7853982
    %vm10885 = vcmp.lt.s32.totalorder %v1105, 0
    %v10886 = vand.u32 %v1105, 2139095040
    %v10887 = vshrl.u32 %v10886, 23
    %v10888 = vsub.s32 %v10887, 127
    %v10889 = vand.u32 2147483647, %v1105
    %v10890 = vand.u32 %v10889, 8388607
    %v10891 = vor.u32 %v10890, 8388608
    %v10892 = vsub.s32 0, %v10891
    %v10893 = vadd.s32 %v10888, 1
    %vm10894 = vcmp.gt.s32.totalorder %v10893, 0
    %v10895 = vsel %vm10894, %v10893, 0
    %v10896 = vshrl.u32 %v10895, 5
    %v10897 = vand.u32 %v10895, 31
    %v10898 = vsub.s32 32, %v10897
    %v10899 = vshrl.u32 683565275, %v10898
    %v10900 = vshll.u32 683565275, %v10897
    %v10901 = vshrl.u32 2475754826, %v10898
    %v10902 = vor.u32 %v10900, %v10901
    %v10903 = vshll.u32 2475754826, %v10897
    %v10904 = vshrl.u32 2131351028, %v10898
    %v10905 = vor.u32 %v10903, %v10904
    %v10906 = vshll.u32 2131351028, %v10897
    %v10907 = vshrl.u32 2102212464, %v10898
    %v10908 = vor.u32 %v10906, %v10907
    %v10909 = vshll.u32 2102212464, %v10897
    %v10910 = vshrl.u32 920167782, %v10898
    %v10911 = vor.u32 %v10909, %v10910
    %v10912 = vshll.u32 920167782, %v10897
    %v10913 = vshrl.u32 1326507024, %v10898
    %v10914 = vor.u32 %v10912, %v10913
    %vm10915 = vcmp.lt.s32.totalorder %v10896, 1
    %vm10916 = vcmp.lt.s32.totalorder %v10896, 2
    %vm10917 = vcmp.lt.s32.totalorder %v10896, 3
    %vm10918 = vcmp.lt.s32.totalorder %v10896, 4
    %v10919 = vsel %vm10915, %v10899, %v10902
    %v10920 = vsel %vm10918, %v10908, 2102212464
    %v10921 = vsel %vm10917, %v10905, %v10920
    %v10922 = vsel %vm10916, %v10919, %v10921
    %v10923 = vsel %vm10915, %v10902, %v10905
    %v10924 = vsel %vm10918, %v10911, 920167782
    %v10925 = vsel %vm10917, %v10908, %v10924
    %v10926 = vsel %vm10916, %v10923, %v10925
    %v10927 = vsel %vm10915, %v10905, %v10908
    %v10928 = vsel %vm10918, %v10914, 1326507024
    %v10929 = vsel %vm10917, %v10911, %v10928
    %v10930 = vsel %vm10916, %v10927, %v10929
    %v10931 = vshll.u32 %v10891, 8
    %v10932 = vmul.u32.u64.compose %v10931, %v10930
    %v10933 = vextract.low.u32 %v10932
    %v10934 = vextract.high.u32 %v10932
    %v10935 = vmul.u32.u64.compose %v10931, %v10926
    %v10936 = vextract.low.u32 %v10935
    %v10937 = vextract.high.u32 %v10935
    %v10938 = vmul.u32 %v10931, %v10922
    %v10939 = vadd.s32 %v10934, %v10936
    %vm10940 = vc.u32 %v10934, %v10936
    %v10941 = vadd.s32 %v10937, 1
    %v10942 = vsel %vm10940, %v10941, %v10937
    %v10943 = vadd.s32 %v10938, %v10942
    %v10944 = vadd.s32 %v10943, 536870912
    %v10945 = vshrl.u32 %v10944, 30
    %v10946 = vshll.u32 %v10945, 30
    %v10947 = vsub.s32 %v10943, %v10946
    %vm10948 = vcmp.lt.s32.totalorder %v10947, 0
    %v10949 = vsub.s32 0, %v10947
    %v10950 = vsel %vm10948, %v10949, %v10947
    %v10951 = vclz %v10950
    %v10952 = vsub.s32 %v10951, 2
    %vm10953 = vcmp.gt.s32.totalorder 0, %v10952
    %v10954 = vsel %vm10953, 0, %v10952
    %v10955 = vsub.s32 32, %v10954
    %v10956 = vshll.u32 %v10947, %v10954
    %v10957 = vshrl.u32 %v10939, %v10955
    %v10958 = vor.u32 %v10956, %v10957
    %v10959 = vsub.s32 4294967266, %v10954
    %v10960 = vadd.s32 %v10959, 127
    %v10961 = vshll.u32 %v10960, 23
    %v10962 = vor.u32 4788187, %v10961
    %v10963 = vand.u32 2147483647, %v10962
    %v10965 = vcvt.s32.f32 %v10958
    %v10966 = vmul.f32 %v10965, %v10963
    %v10967 = vxor.u32 %v10966, 2147483648
    %v10968 = vsel %vm10885, %v10967, %v10966
    %v10969 = vsub.s32 4, %v10945
    %v10970 = vsel %vm10885, %v10969, %v10945
    %v10971 = vsel %vm10884, %v1105, %v10968
    %v10972 = vsel %vm10884, 0, %v10970
    %v10973 = vcosq.f32.pop %v10971
    %v10974 = vsinq.f32.pop %v10971
    %vm10975 = vweird.f32 %v1105
    %v10976 = vadd.s32 %v10972, 3
    %v10977 = vand.u32 %v10976, 3
    %vm10978 = vcmp.lt.s32.totalorder %v10977, 2
    %vm10979 = vcmp.eq.s32.totalorder %v10977, 0
    %v10980 = vxor.u32 %v10974, 2147483648
    %v10981 = vsel %vm10979, %v10973, %v10980
    %vm10982 = vcmp.eq.s32.totalorder %v10977, 2
    %v10983 = vxor.u32 %v10973, 2147483648
    %v10984 = vsel %vm10982, %v10983, %v10974
    %v10985 = vsel %vm10978, %v10981, %v10984
    %v10986 = vsel %vm10975, nan, %v10985
    %v10987 = vand.u32 2147483647, %v1106
    %vm10988 = vcmp.le.f32.partialorder %v10987, 0.7853982
    %vm10989 = vcmp.lt.s32.totalorder %v1106, 0
    %v10990 = vand.u32 %v1106, 2139095040
    %v10991 = vshrl.u32 %v10990, 23
    %v10992 = vsub.s32 %v10991, 127
    %v10993 = vand.u32 2147483647, %v1106
    %v10994 = vand.u32 %v10993, 8388607
    %v10995 = vor.u32 %v10994, 8388608
    %v10996 = vsub.s32 0, %v10995
    %v10997 = vadd.s32 %v10992, 1
    %vm10998 = vcmp.gt.s32.totalorder %v10997, 0
    %v10999 = vsel %vm10998, %v10997, 0
    %v11000 = vshrl.u32 %v10999, 5
    %v11001 = vand.u32 %v10999, 31
    %v11002 = vsub.s32 32, %v11001
    %v11003 = vshrl.u32 683565275, %v11002
    %v11004 = vshll.u32 683565275, %v11001
    %v11005 = vshrl.u32 2475754826, %v11002
    %v11006 = vor.u32 %v11004, %v11005
    %v11007 = vshll.u32 2475754826, %v11001
    %v11008 = vshrl.u32 2131351028, %v11002
    %v11009 = vor.u32 %v11007, %v11008
    %v11010 = vshll.u32 2131351028, %v11001
    %v11011 = vshrl.u32 2102212464, %v11002
    %v11012 = vor.u32 %v11010, %v11011
    %v11013 = vshll.u32 2102212464, %v11001
    %v11014 = vshrl.u32 920167782, %v11002
    %v11015 = vor.u32 %v11013, %v11014
    %v11016 = vshll.u32 920167782, %v11001
    %v11017 = vshrl.u32 1326507024, %v11002
    %v11018 = vor.u32 %v11016, %v11017
    %vm11019 = vcmp.lt.s32.totalorder %v11000, 1
    %vm11020 = vcmp.lt.s32.totalorder %v11000, 2
    %vm11021 = vcmp.lt.s32.totalorder %v11000, 3
    %vm11022 = vcmp.lt.s32.totalorder %v11000, 4
    %v11023 = vsel %vm11019, %v11003, %v11006
    %v11024 = vsel %vm11022, %v11012, 2102212464
    %v11025 = vsel %vm11021, %v11009, %v11024
    %v11026 = vsel %vm11020, %v11023, %v11025
    %v11027 = vsel %vm11019, %v11006, %v11009
    %v11028 = vsel %vm11022, %v11015, 920167782
    %v11029 = vsel %vm11021, %v11012, %v11028
    %v11030 = vsel %vm11020, %v11027, %v11029
    %v11031 = vsel %vm11019, %v11009, %v11012
    %v11032 = vsel %vm11022, %v11018, 1326507024
    %v11033 = vsel %vm11021, %v11015, %v11032
    %v11034 = vsel %vm11020, %v11031, %v11033
    %v11035 = vshll.u32 %v10995, 8
    %v11036 = vmul.u32.u64.compose %v11035, %v11034
    %v11037 = vextract.low.u32 %v11036
    %v11038 = vextract.high.u32 %v11036
    %v11039 = vmul.u32.u64.compose %v11035, %v11030
    %v11040 = vextract.low.u32 %v11039
    %v11041 = vextract.high.u32 %v11039
    %v11042 = vmul.u32 %v11035, %v11026
    %v11043 = vadd.s32 %v11038, %v11040
    %vm11044 = vc.u32 %v11038, %v11040
    %v11045 = vadd.s32 %v11041, 1
    %v11046 = vsel %vm11044, %v11045, %v11041
    %v11047 = vadd.s32 %v11042, %v11046
    %v11048 = vadd.s32 %v11047, 536870912
    %v11049 = vshrl.u32 %v11048, 30
    %v11050 = vshll.u32 %v11049, 30
    %v11051 = vsub.s32 %v11047, %v11050
    %vm11052 = vcmp.lt.s32.totalorder %v11051, 0
    %v11053 = vsub.s32 0, %v11051
    %v11054 = vsel %vm11052, %v11053, %v11051
    %v11055 = vclz %v11054
    %v11056 = vsub.s32 %v11055, 2
    %vm11057 = vcmp.gt.s32.totalorder 0, %v11056
    %v11058 = vsel %vm11057, 0, %v11056
    %v11059 = vsub.s32 32, %v11058
    %v11060 = vshll.u32 %v11051, %v11058
    %v11061 = vshrl.u32 %v11043, %v11059
    %v11062 = vor.u32 %v11060, %v11061
    %v11063 = vsub.s32 4294967266, %v11058
    %v11064 = vadd.s32 %v11063, 127
    %v11065 = vshll.u32 %v11064, 23
    %v11066 = vor.u32 4788187, %v11065
    %v11067 = vand.u32 2147483647, %v11066
    %v11069 = vcvt.s32.f32 %v11062
    %v11070 = vmul.f32 %v11069, %v11067
    %v11071 = vxor.u32 %v11070, 2147483648
    %v11072 = vsel %vm10989, %v11071, %v11070
    %v11073 = vsub.s32 4, %v11049
    %v11074 = vsel %vm10989, %v11073, %v11049
    %v11075 = vsel %vm10988, %v1106, %v11072
    %v11076 = vsel %vm10988, 0, %v11074
    %v11077 = vcosq.f32.pop %v11075
    %v11078 = vsinq.f32.pop %v11075
    %vm11079 = vweird.f32 %v1106
    %v11080 = vadd.s32 %v11076, 3
    %v11081 = vand.u32 %v11080, 3
    %vm11082 = vcmp.lt.s32.totalorder %v11081, 2
    %vm11083 = vcmp.eq.s32.totalorder %v11081, 0
    %v11084 = vxor.u32 %v11078, 2147483648
    %v11085 = vsel %vm11083, %v11077, %v11084
    %vm11086 = vcmp.eq.s32.totalorder %v11081, 2
    %v11087 = vxor.u32 %v11077, 2147483648
    %v11088 = vsel %vm11086, %v11087, %v11078
    %v11089 = vsel %vm11082, %v11085, %v11088
    %v11090 = vsel %vm11079, nan, %v11089
    %11091 = vst [vmem:[#allocation2] sm:$0xff] %v1210
    %11092 = vst [vmem:[#allocation2 + $0x8] sm:$0xff] %v1314
    %11093 = vst [vmem:[#allocation2 + $0x10] sm:$0xff] %v1418
    %11094 = vst [vmem:[#allocation2 + $0x18] sm:$0xff] %v1522
    %11095 = vst [vmem:[#allocation2 + $0x20] sm:$0xff] %v1626
    %11096 = vst [vmem:[#allocation2 + $0x28] sm:$0xff] %v1730
    %11097 = vst [vmem:[#allocation2 + $0x30] sm:$0xff] %v1834
    %11098 = vst [vmem:[#allocation2 + $0x38] sm:$0xff] %v1938
    %11099 = vst [vmem:[#allocation2 + $0x40] sm:$0xff] %v2042
    %11100 = vst [vmem:[#allocation2 + $0x48] sm:$0xff] %v2146
    %11101 = vst [vmem:[#allocation2 + $0x50] sm:$0xff] %v2250
    %11102 = vst [vmem:[#allocation2 + $0x58] sm:$0xff] %v2354
    %11103 = vst [vmem:[#allocation2 + $0x60] sm:$0xff] %v2458
    %11104 = vst [vmem:[#allocation2 + $0x68] sm:$0xff] %v2562
    %11105 = vst [vmem:[#allocation2 + $0x70] sm:$0xff] %v2666
    %11106 = vst [vmem:[#allocation2 + $0x78] sm:$0xff] %v2770
    %11107 = vst [vmem:[#allocation2 + $0x80] sm:$0xff] %v2874
    %11108 = vst [vmem:[#allocation2 + $0x88] sm:$0xff] %v2978
    %11109 = vst [vmem:[#allocation2 + $0x90] sm:$0xff] %v3082
    %11110 = vst [vmem:[#allocation2 + $0x98] sm:$0xff] %v3186
    %11111 = vst [vmem:[#allocation2 + $0xa0] sm:$0xff] %v3290
    %11112 = vst [vmem:[#allocation2 + $0xa8] sm:$0xff] %v3394
    %11113 = vst [vmem:[#allocation2 + $0xb0] sm:$0xff] %v3498
    %11114 = vst [vmem:[#allocation2 + $0xb8] sm:$0xff] %v3602
    %11115 = vst [vmem:[#allocation2 + $0xc0] sm:$0xff] %v3706
    %11116 = vst [vmem:[#allocation2 + $0xc8] sm:$0xff] %v3810
    %11117 = vst [vmem:[#allocation2 + $0xd0] sm:$0xff] %v3914
    %11118 = vst [vmem:[#allocation2 + $0xd8] sm:$0xff] %v4018
    %11119 = vst [vmem:[#allocation2 + $0xe0] sm:$0xff] %v4122
    %11120 = vst [vmem:[#allocation2 + $0xe8] sm:$0xff] %v4226
    %11121 = vst [vmem:[#allocation2 + $0xf0] sm:$0xff] %v4330
    %11122 = vst [vmem:[#allocation2 + $0xf8] sm:$0xff] %v4434
    %11123 = vst [vmem:[#allocation2 + $0x100] sm:$0xff] %v4538
    %11124 = vst [vmem:[#allocation2 + $0x108] sm:$0xff] %v4642
    %11125 = vst [vmem:[#allocation2 + $0x110] sm:$0xff] %v4746
    %11126 = vst [vmem:[#allocation2 + $0x118] sm:$0xff] %v4850
    %11127 = vst [vmem:[#allocation2 + $0x120] sm:$0xff] %v4954
    %11128 = vst [vmem:[#allocation2 + $0x128] sm:$0xff] %v5058
    %11129 = vst [vmem:[#allocation2 + $0x130] sm:$0xff] %v5162
    %11130 = vst [vmem:[#allocation2 + $0x138] sm:$0xff] %v5266
    %11131 = vst [vmem:[#allocation2 + $0x140] sm:$0xff] %v5370
    %11132 = vst [vmem:[#allocation2 + $0x148] sm:$0xff] %v5474
    %11133 = vst [vmem:[#allocation2 + $0x150] sm:$0xff] %v5578
    %11134 = vst [vmem:[#allocation2 + $0x158] sm:$0xff] %v5682
    %11135 = vst [vmem:[#allocation2 + $0x160] sm:$0xff] %v5786
    %11136 = vst [vmem:[#allocation2 + $0x168] sm:$0xff] %v5890
    %11137 = vst [vmem:[#allocation2 + $0x170] sm:$0xff] %v5994
    %11138 = vst [vmem:[#allocation2 + $0x178] sm:$0xff] %v6098
    %11139 = vst [vmem:[#allocation2 + $0x180] sm:$0xff] %v6202
    %11140 = vst [vmem:[#allocation2 + $0x188] sm:$0xff] %v6306
    %11141 = vst [vmem:[#allocation2 + $0x190] sm:$0xff] %v6410
    %11142 = vst [vmem:[#allocation2 + $0x198] sm:$0xff] %v6514
    %11143 = vst [vmem:[#allocation2 + $0x1a0] sm:$0xff] %v6618
    %11144 = vst [vmem:[#allocation2 + $0x1a8] sm:$0xff] %v6722
    %11145 = vst [vmem:[#allocation2 + $0x1b0] sm:$0xff] %v6826
    %11146 = vst [vmem:[#allocation2 + $0x1b8] sm:$0xff] %v6930
    %11147 = vst [vmem:[#allocation2 + $0x1c0] sm:$0xff] %v7034
    %11148 = vst [vmem:[#allocation2 + $0x1c8] sm:$0xff] %v7138
    %11149 = vst [vmem:[#allocation2 + $0x1d0] sm:$0xff] %v7242
    %11150 = vst [vmem:[#allocation2 + $0x1d8] sm:$0xff] %v7346
    %11151 = vst [vmem:[#allocation2 + $0x1e0] sm:$0xff] %v7450
    %11152 = vst [vmem:[#allocation2 + $0x1e8] sm:$0xff] %v7554
    %11153 = vst [vmem:[#allocation2 + $0x1f0] sm:$0xff] %v7658
    %11154 = vst [vmem:[#allocation2 + $0x1f8] sm:$0xff] %v7762
    %11155 = vst [vmem:[#allocation2 + $0x200] sm:$0xff] %v7866
    %11156 = vst [vmem:[#allocation2 + $0x208] sm:$0xff] %v7970
    %11157 = vst [vmem:[#allocation2 + $0x210] sm:$0xff] %v8074
    %11158 = vst [vmem:[#allocation2 + $0x218] sm:$0xff] %v8178
    %11159 = vst [vmem:[#allocation2 + $0x220] sm:$0xff] %v8282
    %11160 = vst [vmem:[#allocation2 + $0x228] sm:$0xff] %v8386
    %11161 = vst [vmem:[#allocation2 + $0x230] sm:$0xff] %v8490
    %11162 = vst [vmem:[#allocation2 + $0x238] sm:$0xff] %v8594
    %11163 = vst [vmem:[#allocation2 + $0x240] sm:$0xff] %v8698
    %11164 = vst [vmem:[#allocation2 + $0x248] sm:$0xff] %v8802
    %11165 = vst [vmem:[#allocation2 + $0x250] sm:$0xff] %v8906
    %11166 = vst [vmem:[#allocation2 + $0x258] sm:$0xff] %v9010
    %11167 = vst [vmem:[#allocation2 + $0x260] sm:$0xff] %v9114
    %11168 = vst [vmem:[#allocation2 + $0x268] sm:$0xff] %v9218
    %11169 = vst [vmem:[#allocation2 + $0x270] sm:$0xff] %v9322
    %11170 = vst [vmem:[#allocation2 + $0x278] sm:$0xff] %v9426
    %11171 = vst [vmem:[#allocation2 + $0x280] sm:$0xff] %v9530
    %11172 = vst [vmem:[#allocation2 + $0x288] sm:$0xff] %v9634
    %11173 = vst [vmem:[#allocation2 + $0x290] sm:$0xff] %v9738
    %11174 = vst [vmem:[#allocation2 + $0x298] sm:$0xff] %v9842
    %11175 = vst [vmem:[#allocation2 + $0x2a0] sm:$0xff] %v9946
    %11176 = vst [vmem:[#allocation2 + $0x2a8] sm:$0xff] %v10050
    %11177 = vst [vmem:[#allocation2 + $0x2b0] sm:$0xff] %v10154
    %11178 = vst [vmem:[#allocation2 + $0x2b8] sm:$0xff] %v10258
    %11179 = vst [vmem:[#allocation2 + $0x2c0] sm:$0xff] %v10362
    %11180 = vst [vmem:[#allocation2 + $0x2c8] sm:$0xff] %v10466
    %11181 = vst [vmem:[#allocation2 + $0x2d0] sm:$0xff] %v10570
    %11182 = vst [vmem:[#allocation2 + $0x2d8] sm:$0xff] %v10674
    %11183 = vst [vmem:[#allocation2 + $0x2e0] sm:$0xff] %v10778
    %11184 = vst [vmem:[#allocation2 + $0x2e8] sm:$0xff] %v10882
    %11185 = vst [vmem:[#allocation2 + $0x2f0] sm:$0xff] %v10986
    %11186 = vst [vmem:[#allocation2 + $0x2f8] sm:$0xff] %v11090
    // Predicated region
    $region10: #{tpu_custom_call.1} parent=1 // pred_check
      _
    $region11: #{tpu_custom_call.1} parent=1 // pred_check_branch
      %11188 = sbr.rel (0) target = $region13
    $region12: #{tpu_custom_call.1} parent=1 // pred_region
      %s11190 = ssub.s32 12288, 12288
      %11191 = vsyncadd [#allocation3], %s11190
      %s11192 = sshll.u32 [#allocation2], 4
      %s11193 = int_to_ptr.vmem [resolvable:$true] %s11192
      %11198 = dma.vmem_to_hbm [thread:$0]  %s11193, 12288, %s2, [#allocation3], 384, 384, 24
    $region13: #{tpu_custom_call.1} parent=1 // pred_fallthru
      _
    // Predicated region
    $region14: #{tpu_custom_call.1} parent=1 // pred_check
      _
    $region15: #{tpu_custom_call.1} parent=1 // pred_check_branch
      %11200 = sbr.rel (0) target = $region17
    $region16: #{tpu_custom_call.1} parent=1 // pred_region
      %11201 = dma.done [#allocation3], 12288
    $region17: #{tpu_custom_call.1} parent=1 // pred_fallthru
      _
    %11202 = vsyncpa [#allocation3], 1

</llo_original>
